<compile_context>
chip_gen: v7x
topology: tpu7x:2x2x1
jax: 0.10.0
libtpu: 0.0.40
codegen_flags: <defaults>
</compile_context>

<pallas_src>
import jax
import jax.numpy as jnp
from jax.experimental import pallas as pl
from jax.experimental.pallas import tpu as pltpu


# ----------------------------------------------------------------------------
# Fused Pallas kernel: conv1 -> conv2 -> conv3 -> dueling head (one grid step
# per batch sample)
# ----------------------------------------------------------------------------
# Geometry (fixed by the module / 84x84 input), per sample:
#   conv1: 84x84x1  -k8 s4-> 20x20x32   (polyphase: 4 phase images of 10x10,
#                                         stored as 4 blocks of 104 rows)
#   conv2: 20x20x32 -k4 s2->  9x9x64    (stored padded as  9x10 rows -> 96)
#   conv3:  9x9x64  -k3 s1->  7x7x64    (stored padded as  7x10 rows -> 72)
#   feat = 7*7*64 = 3136 (column order (oy, ox, ch); head weights permuted
#   accordingly at prep time so PyTorch NCHW-flatten semantics are preserved).
def _fused_forward_kernel(cols1_ref, w1_ref, b1_ref, w2_ref, b2_ref,
                          w3_ref, b3_ref, w1h_hbm_ref, b1h_ref, w2h_ref,
                          b2h_ref,
                          raw_ref,
                          y1_ref, pat2_ref, act2_ref, pat3_ref, act3_ref,
                          feat_ref, w1h_vmem_ref, w1h_sem):
    f32 = jnp.float32

    # ---- hide the ~0.8 MB head-weight DMA behind the whole conv stack -------
    w1h_copy = pltpu.make_async_copy(w1h_hbm_ref, w1h_vmem_ref, w1h_sem)
    w1h_copy.start()

    # ---- conv1: one GEMM over the externally gathered polyphase patches -----
    # Row layout of y1: (p*2+q)*104 + r*10 + c holds conv1 output pixel
    # (2r+p, 2c+q); rows 100..103 of each 104-row phase block are zero padding
    # that keeps every later shifted slice inside its own phase block.
    y1 = jnp.dot(cols1_ref[...], w1_ref[...], preferred_element_type=f32)
    y1_ref[...] = jnp.maximum(y1 + b1_ref[...], 0.0)

    # ---- conv2: in-kernel im2col (contiguous shifted slices of the polyphase
    # conv1 output), then ONE merged (96,512)x(512,64) GEMM. -------------------
    # Output lives on a padded 9x10 grid (column 9 is garbage, never read by
    # valid conv3 outputs); rows 90..95 are alignment padding.
    pat2_ref[88:96, :] = jnp.zeros((8, 512), f32)   # keep pad rows defined
    for i in range(4):          # kernel row
        for j in range(4):      # kernel col
            ph, ia = i % 2, i // 2          # i = 2*ia + ph  (phase / shift)
            qh, ja = j % 2, j // 2          # j = 2*ja + qh
            t = i * 4 + j                   # weight row block
            src = (ph * 2 + qh) * 104 + ia * 10 + ja
            pat2_ref[0:90, t * 32:(t + 1) * 32] = y1_ref[src:src + 90, :]
    y2 = jnp.dot(pat2_ref[...], w2_ref[...], preferred_element_type=f32)
    act2_ref[...] = jnp.maximum(y2 + b2_ref[...], 0.0)

    # ---- conv3: stride 1, same shifted-slice trick, ONE (72,576)x(576,64) ----
    pat3_ref[64:72, :] = jnp.zeros((8, 576), f32)   # keep pad rows defined
    for di in range(3):
        for dj in range(3):
            u = di * 3 + dj
            src = di * 10 + dj
            pat3_ref[0:70, u * 64:(u + 1) * 64] = act2_ref[src:src + 70, :]
    y3 = jnp.dot(pat3_ref[...], w3_ref[...], preferred_element_type=f32)
    act3_ref[...] = jnp.maximum(y3 + b3_ref[...], 0.0)

    # ---- flatten the 49 valid 7x7 positions into feat (1, 3136) --------------
    # Column order is (oy, ox, ch); head weights were permuted to match the
    # PyTorch (ch, oy, ox) flatten at prep time.
    for oy in range(7):
        for ox in range(7):
            src = oy * 10 + ox
            dst = (oy * 7 + ox) * 64
            feat_ref[0:1, dst:dst + 64] = act3_ref[src:src + 1, :]

    # ---- dueling head: both streams concatenated -> one GEMM per layer -------
    w1h_copy.wait()                                  # head weights now in VMEM
    h = jnp.dot(feat_ref[...], w1h_vmem_ref[...], preferred_element_type=f32)
    h = jnp.maximum(h + b1h_ref[...], 0.0)           # (1, 2H)
    o2 = jnp.dot(h, w2h_ref[...], preferred_element_type=f32) + b2h_ref[...]
    raw_ref[...] = o2.reshape(raw_ref.shape)         # raw [adv | val] row


# ----------------------------------------------------------------------------
# Plain-JAX glue: raw-input im2col (polyphase row order) + one-time weight prep
# ----------------------------------------------------------------------------
def _build_conv1_patches(x):
    """x: (B, 1, 84, 84) raw input -> (B*416, 64) conv1 patch matrix.

    Per sample: 4 phase blocks of 104 rows (100 data + 4 zero-pad rows), row
    (p*2+q)*104 + r*10 + c holding the 64-tap patch for conv1 output pixel
    (2r+p, 2c+q).  8-aligned phase blocks keep in-kernel shifted slices both
    in bounds and sublane-friendly."""
    B = x.shape[0]
    img = x[:, 0]                                                  # (B, 84, 84)
    pats = [img[:, i:i + 77:4, j:j + 77:4] for i in range(8) for j in range(8)]
    p = jnp.stack(pats, axis=-1)                                   # (B, 20, 20, 64)
    p = p.reshape(B, 10, 2, 10, 2, 64)                             # (B, r, p, c, q, K)
    p = p.transpose(0, 2, 4, 1, 3, 5)                              # (B, p, q, r, c, K)
    p = p.reshape(B, 4, 100, 64)                                   # (B, phase, pos, K)
    p = jnp.pad(p, ((0, 0), (0, 0), (0, 4), (0, 0)))               # 104-row blocks
    return p.reshape(B * 416, 64)


def prepare_params(params, cfg):
    """One-time parameter prep: fold /255 into conv1, permute conv weights to
    (kh, kw, cin, cout) GEMM layout, permute + concatenate the head weights."""
    H = params["a1b"].shape[0]
    A = params["a2b"].shape[0]
    scale = (1.0 / 255.0) if cfg["normalize_image"] else 1.0

    w1 = params["c1w"].transpose(2, 3, 1, 0).reshape(64, 32) * scale
    b1 = params["c1b"].reshape(1, 32)
    w2 = params["c2w"].transpose(2, 3, 1, 0).reshape(4 * 4 * 32, 64)
    b2 = params["c2b"].reshape(1, 64)
    w3 = params["c3w"].transpose(2, 3, 1, 0).reshape(3 * 3 * 64, 64)
    b3 = params["c3b"].reshape(1, 64)

    def perm_fc1(w):   # torch flatten order (ch, oy, ox) -> kernel order (oy, ox, ch)
        return w.reshape(64, 7, 7, H).transpose(1, 2, 0, 3).reshape(7 * 7 * 64, H)

    w1h = jnp.concatenate([perm_fc1(params["a1w"]), perm_fc1(params["v1w"])], axis=1)
    b1h = jnp.concatenate([params["a1b"], params["v1b"]]).reshape(1, 2 * H)
    w2h = jnp.zeros((2 * H, A + 1), jnp.float32)
    w2h = w2h.at[:H, :A].set(params["a2w"])
    w2h = w2h.at[H:, A].set(params["v2w"][:, 0])
    b2h = jnp.concatenate([params["a2b"], params["v2b"]]).reshape(1, A + 1)

    return {"w1": w1, "b1": b1, "w2": w2, "b2": b2, "w3": w3, "b3": b3,
            "w1h": w1h, "b1h": b1h, "w2h": w2h, "b2h": b2h}


@jax.jit
def forward(x, pp):
    """Fused forward pass.  x: (B, 1, 84, 84) float32 (raw, un-normalized)."""
    B = x.shape[0]
    assert x.shape[1:] == (1, 84, 84), "architecture requires 84x84 1-channel input"
    A = pp["w2h"].shape[1] - 1
    H2 = pp["w1h"].shape[1]
    cols1 = _build_conv1_patches(x)                                # (B*416, 64)

    operands = (cols1, pp["w1"], pp["b1"], pp["w2"], pp["b2"], pp["w3"], pp["b3"],
                pp["w1h"], pp["b1h"], pp["w2h"], pp["b2h"])

    def resident(a):    # full-array block, constant index -> fetched once, stays in VMEM
        return pl.BlockSpec(a.shape, lambda b: (0,) * a.ndim)

    raw = pl.pallas_call(
        _fused_forward_kernel,
        out_shape=jax.ShapeDtypeStruct((B, 1, A + 1), jnp.float32),
        grid=(B,),
        in_specs=[
            pl.BlockSpec((416, 64), lambda b: (b, 0)),     # per-sample conv1 patches
            resident(pp["w1"]), resident(pp["b1"]),
            resident(pp["w2"]), resident(pp["b2"]),
            resident(pp["w3"]), resident(pp["b3"]),
            pl.BlockSpec(memory_space=pl.ANY),             # w1h stays in HBM; manual DMA
            resident(pp["b1h"]), resident(pp["w2h"]), resident(pp["b2h"]),
        ],
        out_specs=pl.BlockSpec((1, 1, A + 1), lambda b: (b, 0, 0)),
        scratch_shapes=[
            pltpu.VMEM((416, 32), jnp.float32),   # conv1 out (polyphase, 104-row blocks)
            pltpu.VMEM((96, 512), jnp.float32),   # conv2 im2col patches (padded to 96)
            pltpu.VMEM((96, 64), jnp.float32),    # conv2 out (9x10 + pad rows)
            pltpu.VMEM((72, 576), jnp.float32),   # conv3 im2col patches (padded to 72)
            pltpu.VMEM((72, 64), jnp.float32),    # conv3 out (7x10 + pad rows)
            pltpu.VMEM((1, 3136), jnp.float32),   # flattened features
            pltpu.VMEM((3136, H2), jnp.float32),  # w1h landing buffer (manual DMA dst)
            pltpu.SemaphoreType.DMA,              # w1h DMA completion semaphore
        ],
        compiler_params=pltpu.CompilerParams(dimension_semantics=("parallel",)),
    )(*operands)

    # Global "AllMean" dueling combine (couples samples -> outside the kernel).
    adv = raw[:, 0, :A]                                            # (B, A)
    val = raw[:, 0, A:]                                            # (B, 1)
    return val + adv - adv.mean()


# ----------------------------------------------------------------------------
# Pure-JAX reference (original PyTorch semantics) for correctness check
# ----------------------------------------------------------------------------
def ref_forward(x, params, cfg):
    if cfg["normalize_image"]:
        x = x / 255.0

    def conv(x, w, b, stride):
        y = jax.lax.conv_general_dilated(
            x, w, (stride, stride), "VALID",
            dimension_numbers=("NCHW", "OIHW", "NCHW"))
        return jax.nn.relu(y + b[None, :, None, None])

    y = conv(x, params["c1w"], params["c1b"], 4)
    y = conv(y, params["c2w"], params["c2b"], 2)
    y = conv(y, params["c3w"], params["c3b"], 1)
    feat = y.reshape(y.shape[0], -1)
    h_a = jax.nn.relu(feat @ params["a1w"] + params["a1b"])
    adv = h_a @ params["a2w"] + params["a2b"]
    h_v = jax.nn.relu(feat @ params["v1w"] + params["v1b"])
    val = h_v @ params["v2w"] + params["v2b"]
    return val + adv - adv.mean()


# ----------------------------------------------------------------------------
# Deterministic parameter init + driver
# ----------------------------------------------------------------------------
def init_params(key, hidden, n_out):
    ks = jax.random.split(key, 14)
    s = 0.05
    return {
        # conv weights in PyTorch OIHW layout
        "c1w": jax.random.normal(ks[0], (32, 1, 8, 8), jnp.float32) * s,
        "c1b": jax.random.normal(ks[1], (32,), jnp.float32) * s,
        "c2w": jax.random.normal(ks[2], (64, 32, 4, 4), jnp.float32) * s,
        "c2b": jax.random.normal(ks[3], (64,), jnp.float32) * s,
        "c3w": jax.random.normal(ks[4], (64, 64, 3, 3), jnp.float32) * s,
        "c3b": jax.random.normal(ks[5], (64,), jnp.float32) * s,
        # linear weights stored as (in, out); "in" uses the torch NCHW flatten order
        "a1w": jax.random.normal(ks[6], (7 * 7 * 64, hidden), jnp.float32) * s,
        "a1b": jax.random.normal(ks[7], (hidden,), jnp.float32) * s,
        "a2w": jax.random.normal(ks[8], (hidden, n_out), jnp.float32) * s,
        "a2b": jax.random.normal(ks[9], (n_out,), jnp.float32) * s,
        "v1w": jax.random.normal(ks[10], (7 * 7 * 64, hidden), jnp.float32) * s,
        "v1b": jax.random.normal(ks[11], (hidden,), jnp.float32) * s,
        "v2w": jax.random.normal(ks[12], (hidden, 1), jnp.float32) * s,
        "v2b": jax.random.normal(ks[13], (1,), jnp.float32) * s,
    }


if __name__ == "__main__":
    cfg = {"normalize_image": True, "hidden_layer_size": 32, "number_of_outputs": 4}

    key = jax.random.PRNGKey(0)
    k_x, k_p = jax.random.split(key)
    # 84x84 single-channel image: required by the hard-coded 7*7*64 flatten size.
    x = jax.random.uniform(k_x, (2, 1, 84, 84), jnp.float32, 0.0, 255.0)
    params = init_params(k_p, cfg["hidden_layer_size"], cfg["number_of_outputs"])

    prepped = prepare_params(params, cfg)          # one-time, outside the hot path
    out = jax.block_until_ready(forward(x, prepped))
    ref = jax.block_until_ready(ref_forward(x, params, cfg))

    assert out.shape == (2, cfg["number_of_outputs"])
    assert jnp.allclose(out, ref, rtol=1e-4, atol=1e-4), (out, ref)
    print("KERNEL_OK")
</pallas_src>

<mosaic_0001>
module attributes {stable_mosaic.version = 11 : i64} {
  func.func @_fused_forward_kernel(%arg0: i32, %arg1: memref<416x64xf32, #tpu.memory_space<vmem>>, %arg2: memref<64x32xf32, #tpu.memory_space<vmem>>, %arg3: memref<1x32xf32, #tpu.memory_space<vmem>>, %arg4: memref<512x64xf32, #tpu.memory_space<vmem>>, %arg5: memref<1x64xf32, #tpu.memory_space<vmem>>, %arg6: memref<576x64xf32, #tpu.memory_space<vmem>>, %arg7: memref<1x64xf32, #tpu.memory_space<vmem>>, %arg8: memref<3136x64xf32, #tpu.memory_space<any>>, %arg9: memref<1x64xf32, #tpu.memory_space<vmem>>, %arg10: memref<64x5xf32, #tpu.memory_space<vmem>>, %arg11: memref<1x5xf32, #tpu.memory_space<vmem>>, %arg12: memref<1x1x5xf32, #tpu.memory_space<vmem>>, %arg13: memref<416x32xf32, #tpu.memory_space<vmem>>, %arg14: memref<96x512xf32, #tpu.memory_space<vmem>>, %arg15: memref<96x64xf32, #tpu.memory_space<vmem>>, %arg16: memref<72x576xf32, #tpu.memory_space<vmem>>, %arg17: memref<72x64xf32, #tpu.memory_space<vmem>>, %arg18: memref<1x3136xf32, #tpu.memory_space<vmem>>, %arg19: memref<3136x64xf32, #tpu.memory_space<vmem>>, %arg20: memref<!tpu.dma_semaphore, #tpu.memory_space<semaphore_mem>>) attributes {dimension_semantics = [#tpu.dimension_semantics<parallel>], iteration_bounds = array<i64: 2>, scalar_prefetch = 0 : i64, scratch_operands = 8 : i64, tpu.core_type = #tpu.core_type<tc>, window_params = [{transform_indices = @transform_0, window_bounds = array<i64: 416, 64>}, {pipeline_mode = #tpu.pipeline_mode<synchronous>, transform_indices = @transform_1, window_bounds = array<i64: 64, 32>}, {pipeline_mode = #tpu.pipeline_mode<synchronous>, transform_indices = @transform_2, window_bounds = array<i64: 1, 32>}, {pipeline_mode = #tpu.pipeline_mode<synchronous>, transform_indices = @transform_3, window_bounds = array<i64: 512, 64>}, {pipeline_mode = #tpu.pipeline_mode<synchronous>, transform_indices = @transform_4, window_bounds = array<i64: 1, 64>}, {pipeline_mode = #tpu.pipeline_mode<synchronous>, transform_indices = @transform_5, window_bounds = array<i64: 576, 64>}, {pipeline_mode = #tpu.pipeline_mode<synchronous>, transform_indices = @transform_6, window_bounds = array<i64: 1, 64>}, {}, {pipeline_mode = #tpu.pipeline_mode<synchronous>, transform_indices = @transform_8, window_bounds = array<i64: 1, 64>}, {pipeline_mode = #tpu.pipeline_mode<synchronous>, transform_indices = @transform_9, window_bounds = array<i64: 64, 5>}, {pipeline_mode = #tpu.pipeline_mode<synchronous>, transform_indices = @transform_10, window_bounds = array<i64: 1, 5>}, {transform_indices = @transform_11, window_bounds = array<i64: 1, 1, 5>}]} {
    tpu.enqueue_dma source(%arg8 : memref<3136x64xf32, #tpu.memory_space<any>>) target(%arg19 : memref<3136x64xf32, #tpu.memory_space<vmem>>) target_semaphore(%arg20 : memref<!tpu.dma_semaphore, #tpu.memory_space<semaphore_mem>>)
    %c0 = arith.constant 0 : index
    %c0_0 = arith.constant 0 : index
    %0 = vector.load %arg1[%c0, %c0_0] : memref<416x64xf32, #tpu.memory_space<vmem>>, vector<416x64xf32>
    %c0_1 = arith.constant 0 : index
    %c0_2 = arith.constant 0 : index
    %1 = vector.load %arg2[%c0_1, %c0_2] : memref<64x32xf32, #tpu.memory_space<vmem>>, vector<64x32xf32>
    %cst = arith.constant dense<0.000000e+00> : vector<416x32xf32>
    %2 = tpu.matmul %0, %1, %cst {dimension_numbers = #tpu.dot_dimension_numbers<[1], [0], [0], [1], [0, 0, 1, 1], [], []>} : vector<416x64xf32>, vector<64x32xf32>, vector<416x32xf32> -> vector<416x32xf32>
    %c0_3 = arith.constant 0 : index
    %c0_4 = arith.constant 0 : index
    %3 = vector.load %arg3[%c0_3, %c0_4] : memref<1x32xf32, #tpu.memory_space<vmem>>, vector<1x32xf32>
    %4 = vector.broadcast %3 : vector<1x32xf32> to vector<416x32xf32>
    %5 = arith.addf %2, %4 : vector<416x32xf32>
    %cst_5 = arith.constant 0.000000e+00 : f32
    %6 = vector.broadcast %cst_5 : f32 to vector<416x32xf32>
    %7 = arith.maximumf %5, %6 : vector<416x32xf32>
    %c0_6 = arith.constant 0 : index
    %c0_7 = arith.constant 0 : index
    %8 = vector.load %arg13[%c0_6, %c0_7] : memref<416x32xf32, #tpu.memory_space<vmem>>, vector<416x32xf32>
    tpu.vector_store %arg13[%c0_6, %c0_7], %7 {strides = array<i32>} : memref<416x32xf32, #tpu.memory_space<vmem>>, vector<416x32xf32>,
    %cst_8 = arith.constant 0.000000e+00 : f32
    %9 = vector.broadcast %cst_8 : f32 to vector<8x512xf32>
    %c88 = arith.constant 88 : index
    %c0_9 = arith.constant 0 : index
    %10 = vector.load %arg14[%c88, %c0_9] : memref<96x512xf32, #tpu.memory_space<vmem>>, vector<8x512xf32>
    tpu.vector_store %arg14[%c88, %c0_9], %9 {strides = array<i32>} : memref<96x512xf32, #tpu.memory_space<vmem>>, vector<8x512xf32>,
    %c0_10 = arith.constant 0 : index
    %c0_11 = arith.constant 0 : index
    %11 = vector.load %arg13[%c0_10, %c0_11] : memref<416x32xf32, #tpu.memory_space<vmem>>, vector<90x32xf32>
    %c0_12 = arith.constant 0 : index
    %c0_13 = arith.constant 0 : index
    %12 = vector.load %arg14[%c0_12, %c0_13] : memref<96x512xf32, #tpu.memory_space<vmem>>, vector<90x32xf32>
    tpu.vector_store %arg14[%c0_12, %c0_13], %11 {strides = array<i32>} : memref<96x512xf32, #tpu.memory_space<vmem>>, vector<90x32xf32>,
    %c104 = arith.constant 104 : index
    %c0_14 = arith.constant 0 : index
    %13 = vector.load %arg13[%c104, %c0_14] : memref<416x32xf32, #tpu.memory_space<vmem>>, vector<90x32xf32>
    %c0_15 = arith.constant 0 : index
    %c32 = arith.constant 32 : index
    %14 = vector.load %arg14[%c0_15, %c32] : memref<96x512xf32, #tpu.memory_space<vmem>>, vector<90x32xf32>
    tpu.vector_store %arg14[%c0_15, %c32], %13 {strides = array<i32>} : memref<96x512xf32, #tpu.memory_space<vmem>>, vector<90x32xf32>,
    %c1 = arith.constant 1 : index
    %c0_16 = arith.constant 0 : index
    %15 = vector.load %arg13[%c1, %c0_16] : memref<416x32xf32, #tpu.memory_space<vmem>>, vector<90x32xf32>
    %c0_17 = arith.constant 0 : index
    %c64 = arith.constant 64 : index
    %16 = vector.load %arg14[%c0_17, %c64] : memref<96x512xf32, #tpu.memory_space<vmem>>, vector<90x32xf32>
    tpu.vector_store %arg14[%c0_17, %c64], %15 {strides = array<i32>} : memref<96x512xf32, #tpu.memory_space<vmem>>, vector<90x32xf32>,
    %c105 = arith.constant 105 : index
    %c0_18 = arith.constant 0 : index
    %17 = vector.load %arg13[%c105, %c0_18] : memref<416x32xf32, #tpu.memory_space<vmem>>, vector<90x32xf32>
    %c0_19 = arith.constant 0 : index
    %c96 = arith.constant 96 : index
    %18 = vector.load %arg14[%c0_19, %c96] : memref<96x512xf32, #tpu.memory_space<vmem>>, vector<90x32xf32>
    tpu.vector_store %arg14[%c0_19, %c96], %17 {strides = array<i32>} : memref<96x512xf32, #tpu.memory_space<vmem>>, vector<90x32xf32>,
    %c208 = arith.constant 208 : index
    %c0_20 = arith.constant 0 : index
    %19 = vector.load %arg13[%c208, %c0_20] : memref<416x32xf32, #tpu.memory_space<vmem>>, vector<90x32xf32>
    %c0_21 = arith.constant 0 : index
    %c128 = arith.constant 128 : index
    %20 = vector.load %arg14[%c0_21, %c128] : memref<96x512xf32, #tpu.memory_space<vmem>>, vector<90x32xf32>
    tpu.vector_store %arg14[%c0_21, %c128], %19 {strides = array<i32>} : memref<96x512xf32, #tpu.memory_space<vmem>>, vector<90x32xf32>,
    %c312 = arith.constant 312 : index
    %c0_22 = arith.constant 0 : index
    %21 = vector.load %arg13[%c312, %c0_22] : memref<416x32xf32, #tpu.memory_space<vmem>>, vector<90x32xf32>
    %c0_23 = arith.constant 0 : index
    %c160 = arith.constant 160 : index
    %22 = vector.load %arg14[%c0_23, %c160] : memref<96x512xf32, #tpu.memory_space<vmem>>, vector<90x32xf32>
    tpu.vector_store %arg14[%c0_23, %c160], %21 {strides = array<i32>} : memref<96x512xf32, #tpu.memory_space<vmem>>, vector<90x32xf32>,
    %c209 = arith.constant 209 : index
    %c0_24 = arith.constant 0 : index
    %23 = vector.load %arg13[%c209, %c0_24] : memref<416x32xf32, #tpu.memory_space<vmem>>, vector<90x32xf32>
    %c0_25 = arith.constant 0 : index
    %c192 = arith.constant 192 : index
    %24 = vector.load %arg14[%c0_25, %c192] : memref<96x512xf32, #tpu.memory_space<vmem>>, vector<90x32xf32>
    tpu.vector_store %arg14[%c0_25, %c192], %23 {strides = array<i32>} : memref<96x512xf32, #tpu.memory_space<vmem>>, vector<90x32xf32>,
    %c313 = arith.constant 313 : index
    %c0_26 = arith.constant 0 : index
    %25 = vector.load %arg13[%c313, %c0_26] : memref<416x32xf32, #tpu.memory_space<vmem>>, vector<90x32xf32>
    %c0_27 = arith.constant 0 : index
    %c224 = arith.constant 224 : index
    %26 = vector.load %arg14[%c0_27, %c224] : memref<96x512xf32, #tpu.memory_space<vmem>>, vector<90x32xf32>
    tpu.vector_store %arg14[%c0_27, %c224], %25 {strides = array<i32>} : memref<96x512xf32, #tpu.memory_space<vmem>>, vector<90x32xf32>,
    %c10 = arith.constant 10 : index
    %c0_28 = arith.constant 0 : index
    %27 = vector.load %arg13[%c10, %c0_28] : memref<416x32xf32, #tpu.memory_space<vmem>>, vector<90x32xf32>
    %c0_29 = arith.constant 0 : index
    %c256 = arith.constant 256 : index
    %28 = vector.load %arg14[%c0_29, %c256] : memref<96x512xf32, #tpu.memory_space<vmem>>, vector<90x32xf32>
    tpu.vector_store %arg14[%c0_29, %c256], %27 {strides = array<i32>} : memref<96x512xf32, #tpu.memory_space<vmem>>, vector<90x32xf32>,
    %c114 = arith.constant 114 : index
    %c0_30 = arith.constant 0 : index
    %29 = vector.load %arg13[%c114, %c0_30] : memref<416x32xf32, #tpu.memory_space<vmem>>, vector<90x32xf32>
    %c0_31 = arith.constant 0 : index
    %c288 = arith.constant 288 : index
    %30 = vector.load %arg14[%c0_31, %c288] : memref<96x512xf32, #tpu.memory_space<vmem>>, vector<90x32xf32>
    tpu.vector_store %arg14[%c0_31, %c288], %29 {strides = array<i32>} : memref<96x512xf32, #tpu.memory_space<vmem>>, vector<90x32xf32>,
    %c11 = arith.constant 11 : index
    %c0_32 = arith.constant 0 : index
    %31 = vector.load %arg13[%c11, %c0_32] : memref<416x32xf32, #tpu.memory_space<vmem>>, vector<90x32xf32>
    %c0_33 = arith.constant 0 : index
    %c320 = arith.constant 320 : index
    %32 = vector.load %arg14[%c0_33, %c320] : memref<96x512xf32, #tpu.memory_space<vmem>>, vector<90x32xf32>
    tpu.vector_store %arg14[%c0_33, %c320], %31 {strides = array<i32>} : memref<96x512xf32, #tpu.memory_space<vmem>>, vector<90x32xf32>,
    %c115 = arith.constant 115 : index
    %c0_34 = arith.constant 0 : index
    %33 = vector.load %arg13[%c115, %c0_34] : memref<416x32xf32, #tpu.memory_space<vmem>>, vector<90x32xf32>
    %c0_35 = arith.constant 0 : index
    %c352 = arith.constant 352 : index
    %34 = vector.load %arg14[%c0_35, %c352] : memref<96x512xf32, #tpu.memory_space<vmem>>, vector<90x32xf32>
    tpu.vector_store %arg14[%c0_35, %c352], %33 {strides = array<i32>} : memref<96x512xf32, #tpu.memory_space<vmem>>, vector<90x32xf32>,
    %c218 = arith.constant 218 : index
    %c0_36 = arith.constant 0 : index
    %35 = vector.load %arg13[%c218, %c0_36] : memref<416x32xf32, #tpu.memory_space<vmem>>, vector<90x32xf32>
    %c0_37 = arith.constant 0 : index
    %c384 = arith.constant 384 : index
    %36 = vector.load %arg14[%c0_37, %c384] : memref<96x512xf32, #tpu.memory_space<vmem>>, vector<90x32xf32>
    tpu.vector_store %arg14[%c0_37, %c384], %35 {strides = array<i32>} : memref<96x512xf32, #tpu.memory_space<vmem>>, vector<90x32xf32>,
    %c322 = arith.constant 322 : index
    %c0_38 = arith.constant 0 : index
    %37 = vector.load %arg13[%c322, %c0_38] : memref<416x32xf32, #tpu.memory_space<vmem>>, vector<90x32xf32>
    %c0_39 = arith.constant 0 : index
    %c416 = arith.constant 416 : index
    %38 = vector.load %arg14[%c0_39, %c416] : memref<96x512xf32, #tpu.memory_space<vmem>>, vector<90x32xf32>
    tpu.vector_store %arg14[%c0_39, %c416], %37 {strides = array<i32>} : memref<96x512xf32, #tpu.memory_space<vmem>>, vector<90x32xf32>,
    %c219 = arith.constant 219 : index
    %c0_40 = arith.constant 0 : index
    %39 = vector.load %arg13[%c219, %c0_40] : memref<416x32xf32, #tpu.memory_space<vmem>>, vector<90x32xf32>
    %c0_41 = arith.constant 0 : index
    %c448 = arith.constant 448 : index
    %40 = vector.load %arg14[%c0_41, %c448] : memref<96x512xf32, #tpu.memory_space<vmem>>, vector<90x32xf32>
    tpu.vector_store %arg14[%c0_41, %c448], %39 {strides = array<i32>} : memref<96x512xf32, #tpu.memory_space<vmem>>, vector<90x32xf32>,
    %c323 = arith.constant 323 : index
    %c0_42 = arith.constant 0 : index
    %41 = vector.load %arg13[%c323, %c0_42] : memref<416x32xf32, #tpu.memory_space<vmem>>, vector<90x32xf32>
    %c0_43 = arith.constant 0 : index
    %c480 = arith.constant 480 : index
    %42 = vector.load %arg14[%c0_43, %c480] : memref<96x512xf32, #tpu.memory_space<vmem>>, vector<90x32xf32>
    tpu.vector_store %arg14[%c0_43, %c480], %41 {strides = array<i32>} : memref<96x512xf32, #tpu.memory_space<vmem>>, vector<90x32xf32>,
    %c0_44 = arith.constant 0 : index
    %c0_45 = arith.constant 0 : index
    %43 = vector.load %arg14[%c0_44, %c0_45] : memref<96x512xf32, #tpu.memory_space<vmem>>, vector<96x512xf32>
    %c0_46 = arith.constant 0 : index
    %c0_47 = arith.constant 0 : index
    %44 = vector.load %arg4[%c0_46, %c0_47] : memref<512x64xf32, #tpu.memory_space<vmem>>, vector<512x64xf32>
    %cst_48 = arith.constant dense<0.000000e+00> : vector<96x64xf32>
    %45 = tpu.matmul %43, %44, %cst_48 {dimension_numbers = #tpu.dot_dimension_numbers<[1], [0], [0], [1], [0, 0, 1, 1], [], []>} : vector<96x512xf32>, vector<512x64xf32>, vector<96x64xf32> -> vector<96x64xf32>
    %c0_49 = arith.constant 0 : index
    %c0_50 = arith.constant 0 : index
    %46 = vector.load %arg5[%c0_49, %c0_50] : memref<1x64xf32, #tpu.memory_space<vmem>>, vector<1x64xf32>
    %47 = vector.broadcast %46 : vector<1x64xf32> to vector<96x64xf32>
    %48 = arith.addf %45, %47 : vector<96x64xf32>
    %cst_51 = arith.constant 0.000000e+00 : f32
    %49 = vector.broadcast %cst_51 : f32 to vector<96x64xf32>
    %50 = arith.maximumf %48, %49 : vector<96x64xf32>
    %c0_52 = arith.constant 0 : index
    %c0_53 = arith.constant 0 : index
    %51 = vector.load %arg15[%c0_52, %c0_53] : memref<96x64xf32, #tpu.memory_space<vmem>>, vector<96x64xf32>
    tpu.vector_store %arg15[%c0_52, %c0_53], %50 {strides = array<i32>} : memref<96x64xf32, #tpu.memory_space<vmem>>, vector<96x64xf32>,
    %cst_54 = arith.constant 0.000000e+00 : f32
    %52 = vector.broadcast %cst_54 : f32 to vector<8x576xf32>
    %c64_55 = arith.constant 64 : index
    %c0_56 = arith.constant 0 : index
    %53 = vector.load %arg16[%c64_55, %c0_56] : memref<72x576xf32, #tpu.memory_space<vmem>>, vector<8x576xf32>
    tpu.vector_store %arg16[%c64_55, %c0_56], %52 {strides = array<i32>} : memref<72x576xf32, #tpu.memory_space<vmem>>, vector<8x576xf32>,
    %c0_57 = arith.constant 0 : index
    %c0_58 = arith.constant 0 : index
    %54 = vector.load %arg15[%c0_57, %c0_58] : memref<96x64xf32, #tpu.memory_space<vmem>>, vector<70x64xf32>
    %c0_59 = arith.constant 0 : index
    %c0_60 = arith.constant 0 : index
    %55 = vector.load %arg16[%c0_59, %c0_60] : memref<72x576xf32, #tpu.memory_space<vmem>>, vector<70x64xf32>
    tpu.vector_store %arg16[%c0_59, %c0_60], %54 {strides = array<i32>} : memref<72x576xf32, #tpu.memory_space<vmem>>, vector<70x64xf32>,
    %c1_61 = arith.constant 1 : index
    %c0_62 = arith.constant 0 : index
    %56 = vector.load %arg15[%c1_61, %c0_62] : memref<96x64xf32, #tpu.memory_space<vmem>>, vector<70x64xf32>
    %c0_63 = arith.constant 0 : index
    %c64_64 = arith.constant 64 : index
    %57 = vector.load %arg16[%c0_63, %c64_64] : memref<72x576xf32, #tpu.memory_space<vmem>>, vector<70x64xf32>
    tpu.vector_store %arg16[%c0_63, %c64_64], %56 {strides = array<i32>} : memref<72x576xf32, #tpu.memory_space<vmem>>, vector<70x64xf32>,
    %c2 = arith.constant 2 : index
    %c0_65 = arith.constant 0 : index
    %58 = vector.load %arg15[%c2, %c0_65] : memref<96x64xf32, #tpu.memory_space<vmem>>, vector<70x64xf32>
    %c0_66 = arith.constant 0 : index
    %c128_67 = arith.constant 128 : index
    %59 = vector.load %arg16[%c0_66, %c128_67] : memref<72x576xf32, #tpu.memory_space<vmem>>, vector<70x64xf32>
    tpu.vector_store %arg16[%c0_66, %c128_67], %58 {strides = array<i32>} : memref<72x576xf32, #tpu.memory_space<vmem>>, vector<70x64xf32>,
    %c10_68 = arith.constant 10 : index
    %c0_69 = arith.constant 0 : index
    %60 = vector.load %arg15[%c10_68, %c0_69] : memref<96x64xf32, #tpu.memory_space<vmem>>, vector<70x64xf32>
    %c0_70 = arith.constant 0 : index
    %c192_71 = arith.constant 192 : index
    %61 = vector.load %arg16[%c0_70, %c192_71] : memref<72x576xf32, #tpu.memory_space<vmem>>, vector<70x64xf32>
    tpu.vector_store %arg16[%c0_70, %c192_71], %60 {strides = array<i32>} : memref<72x576xf32, #tpu.memory_space<vmem>>, vector<70x64xf32>,
    %c11_72 = arith.constant 11 : index
    %c0_73 = arith.constant 0 : index
    %62 = vector.load %arg15[%c11_72, %c0_73] : memref<96x64xf32, #tpu.memory_space<vmem>>, vector<70x64xf32>
    %c0_74 = arith.constant 0 : index
    %c256_75 = arith.constant 256 : index
    %63 = vector.load %arg16[%c0_74, %c256_75] : memref<72x576xf32, #tpu.memory_space<vmem>>, vector<70x64xf32>
    tpu.vector_store %arg16[%c0_74, %c256_75], %62 {strides = array<i32>} : memref<72x576xf32, #tpu.memory_space<vmem>>, vector<70x64xf32>,
    %c12 = arith.constant 12 : index
    %c0_76 = arith.constant 0 : index
    %64 = vector.load %arg15[%c12, %c0_76] : memref<96x64xf32, #tpu.memory_space<vmem>>, vector<70x64xf32>
    %c0_77 = arith.constant 0 : index
    %c320_78 = arith.constant 320 : index
    %65 = vector.load %arg16[%c0_77, %c320_78] : memref<72x576xf32, #tpu.memory_space<vmem>>, vector<70x64xf32>
    tpu.vector_store %arg16[%c0_77, %c320_78], %64 {strides = array<i32>} : memref<72x576xf32, #tpu.memory_space<vmem>>, vector<70x64xf32>,
    %c20 = arith.constant 20 : index
    %c0_79 = arith.constant 0 : index
    %66 = vector.load %arg15[%c20, %c0_79] : memref<96x64xf32, #tpu.memory_space<vmem>>, vector<70x64xf32>
    %c0_80 = arith.constant 0 : index
    %c384_81 = arith.constant 384 : index
    %67 = vector.load %arg16[%c0_80, %c384_81] : memref<72x576xf32, #tpu.memory_space<vmem>>, vector<70x64xf32>
    tpu.vector_store %arg16[%c0_80, %c384_81], %66 {strides = array<i32>} : memref<72x576xf32, #tpu.memory_space<vmem>>, vector<70x64xf32>,
    %c21 = arith.constant 21 : index
    %c0_82 = arith.constant 0 : index
    %68 = vector.load %arg15[%c21, %c0_82] : memref<96x64xf32, #tpu.memory_space<vmem>>, vector<70x64xf32>
    %c0_83 = arith.constant 0 : index
    %c448_84 = arith.constant 448 : index
    %69 = vector.load %arg16[%c0_83, %c448_84] : memref<72x576xf32, #tpu.memory_space<vmem>>, vector<70x64xf32>
    tpu.vector_store %arg16[%c0_83, %c448_84], %68 {strides = array<i32>} : memref<72x576xf32, #tpu.memory_space<vmem>>, vector<70x64xf32>,
    %c22 = arith.constant 22 : index
    %c0_85 = arith.constant 0 : index
    %70 = vector.load %arg15[%c22, %c0_85] : memref<96x64xf32, #tpu.memory_space<vmem>>, vector<70x64xf32>
    %c0_86 = arith.constant 0 : index
    %c512 = arith.constant 512 : index
    %71 = vector.load %arg16[%c0_86, %c512] : memref<72x576xf32, #tpu.memory_space<vmem>>, vector<70x64xf32>
    tpu.vector_store %arg16[%c0_86, %c512], %70 {strides = array<i32>} : memref<72x576xf32, #tpu.memory_space<vmem>>, vector<70x64xf32>,
    %c0_87 = arith.constant 0 : index
    %c0_88 = arith.constant 0 : index
    %72 = vector.load %arg16[%c0_87, %c0_88] : memref<72x576xf32, #tpu.memory_space<vmem>>, vector<72x576xf32>
    %c0_89 = arith.constant 0 : index
    %c0_90 = arith.constant 0 : index
    %73 = vector.load %arg6[%c0_89, %c0_90] : memref<576x64xf32, #tpu.memory_space<vmem>>, vector<576x64xf32>
    %cst_91 = arith.constant dense<0.000000e+00> : vector<72x64xf32>
    %74 = tpu.matmul %72, %73, %cst_91 {dimension_numbers = #tpu.dot_dimension_numbers<[1], [0], [0], [1], [0, 0, 1, 1], [], []>} : vector<72x576xf32>, vector<576x64xf32>, vector<72x64xf32> -> vector<72x64xf32>
    %c0_92 = arith.constant 0 : index
    %c0_93 = arith.constant 0 : index
    %75 = vector.load %arg7[%c0_92, %c0_93] : memref<1x64xf32, #tpu.memory_space<vmem>>, vector<1x64xf32>
    %76 = vector.broadcast %75 : vector<1x64xf32> to vector<72x64xf32>
    %77 = arith.addf %74, %76 : vector<72x64xf32>
    %cst_94 = arith.constant 0.000000e+00 : f32
    %78 = vector.broadcast %cst_94 : f32 to vector<72x64xf32>
    %79 = arith.maximumf %77, %78 : vector<72x64xf32>
    %c0_95 = arith.constant 0 : index
    %c0_96 = arith.constant 0 : index
    %80 = vector.load %arg17[%c0_95, %c0_96] : memref<72x64xf32, #tpu.memory_space<vmem>>, vector<72x64xf32>
    tpu.vector_store %arg17[%c0_95, %c0_96], %79 {strides = array<i32>} : memref<72x64xf32, #tpu.memory_space<vmem>>, vector<72x64xf32>,
    %c0_97 = arith.constant 0 : index
    %c0_98 = arith.constant 0 : index
    %81 = vector.load %arg17[%c0_97, %c0_98] : memref<72x64xf32, #tpu.memory_space<vmem>>, vector<1x64xf32>
    %c0_99 = arith.constant 0 : index
    %c0_100 = arith.constant 0 : index
    %82 = vector.load %arg18[%c0_99, %c0_100] : memref<1x3136xf32, #tpu.memory_space<vmem>>, vector<1x64xf32>
    tpu.vector_store %arg18[%c0_99, %c0_100], %81 {strides = array<i32>} : memref<1x3136xf32, #tpu.memory_space<vmem>>, vector<1x64xf32>,
    %c1_101 = arith.constant 1 : index
    %c0_102 = arith.constant 0 : index
    %83 = vector.load %arg17[%c1_101, %c0_102] : memref<72x64xf32, #tpu.memory_space<vmem>>, vector<1x64xf32>
    %c0_103 = arith.constant 0 : index
    %c64_104 = arith.constant 64 : index
    %84 = vector.load %arg18[%c0_103, %c64_104] : memref<1x3136xf32, #tpu.memory_space<vmem>>, vector<1x64xf32>
    tpu.vector_store %arg18[%c0_103, %c64_104], %83 {strides = array<i32>} : memref<1x3136xf32, #tpu.memory_space<vmem>>, vector<1x64xf32>,
    %c2_105 = arith.constant 2 : index
    %c0_106 = arith.constant 0 : index
    %85 = vector.load %arg17[%c2_105, %c0_106] : memref<72x64xf32, #tpu.memory_space<vmem>>, vector<1x64xf32>
    %c0_107 = arith.constant 0 : index
    %c128_108 = arith.constant 128 : index
    %86 = vector.load %arg18[%c0_107, %c128_108] : memref<1x3136xf32, #tpu.memory_space<vmem>>, vector<1x64xf32>
    tpu.vector_store %arg18[%c0_107, %c128_108], %85 {strides = array<i32>} : memref<1x3136xf32, #tpu.memory_space<vmem>>, vector<1x64xf32>,
    %c3 = arith.constant 3 : index
    %c0_109 = arith.constant 0 : index
    %87 = vector.load %arg17[%c3, %c0_109] : memref<72x64xf32, #tpu.memory_space<vmem>>, vector<1x64xf32>
    %c0_110 = arith.constant 0 : index
    %c192_111 = arith.constant 192 : index
    %88 = vector.load %arg18[%c0_110, %c192_111] : memref<1x3136xf32, #tpu.memory_space<vmem>>, vector<1x64xf32>
    tpu.vector_store %arg18[%c0_110, %c192_111], %87 {strides = array<i32>} : memref<1x3136xf32, #tpu.memory_space<vmem>>, vector<1x64xf32>,
    %c4 = arith.constant 4 : index
    %c0_112 = arith.constant 0 : index
    %89 = vector.load %arg17[%c4, %c0_112] : memref<72x64xf32, #tpu.memory_space<vmem>>, vector<1x64xf32>
    %c0_113 = arith.constant 0 : index
    %c256_114 = arith.constant 256 : index
    %90 = vector.load %arg18[%c0_113, %c256_114] : memref<1x3136xf32, #tpu.memory_space<vmem>>, vector<1x64xf32>
    tpu.vector_store %arg18[%c0_113, %c256_114], %89 {strides = array<i32>} : memref<1x3136xf32, #tpu.memory_space<vmem>>, vector<1x64xf32>,
    %c5 = arith.constant 5 : index
    %c0_115 = arith.constant 0 : index
    %91 = vector.load %arg17[%c5, %c0_115] : memref<72x64xf32, #tpu.memory_space<vmem>>, vector<1x64xf32>
    %c0_116 = arith.constant 0 : index
    %c320_117 = arith.constant 320 : index
    %92 = vector.load %arg18[%c0_116, %c320_117] : memref<1x3136xf32, #tpu.memory_space<vmem>>, vector<1x64xf32>
    tpu.vector_store %arg18[%c0_116, %c320_117], %91 {strides = array<i32>} : memref<1x3136xf32, #tpu.memory_space<vmem>>, vector<1x64xf32>,
    %c6 = arith.constant 6 : index
    %c0_118 = arith.constant 0 : index
    %93 = vector.load %arg17[%c6, %c0_118] : memref<72x64xf32, #tpu.memory_space<vmem>>, vector<1x64xf32>
    %c0_119 = arith.constant 0 : index
    %c384_120 = arith.constant 384 : index
    %94 = vector.load %arg18[%c0_119, %c384_120] : memref<1x3136xf32, #tpu.memory_space<vmem>>, vector<1x64xf32>
    tpu.vector_store %arg18[%c0_119, %c384_120], %93 {strides = array<i32>} : memref<1x3136xf32, #tpu.memory_space<vmem>>, vector<1x64xf32>,
    %c10_121 = arith.constant 10 : index
    %c0_122 = arith.constant 0 : index
    %95 = vector.load %arg17[%c10_121, %c0_122] : memref<72x64xf32, #tpu.memory_space<vmem>>, vector<1x64xf32>
    %c0_123 = arith.constant 0 : index
    %c448_124 = arith.constant 448 : index
    %96 = vector.load %arg18[%c0_123, %c448_124] : memref<1x3136xf32, #tpu.memory_space<vmem>>, vector<1x64xf32>
    tpu.vector_store %arg18[%c0_123, %c448_124], %95 {strides = array<i32>} : memref<1x3136xf32, #tpu.memory_space<vmem>>, vector<1x64xf32>,
    %c11_125 = arith.constant 11 : index
    %c0_126 = arith.constant 0 : index
    %97 = vector.load %arg17[%c11_125, %c0_126] : memref<72x64xf32, #tpu.memory_space<vmem>>, vector<1x64xf32>
    %c0_127 = arith.constant 0 : index
    %c512_128 = arith.constant 512 : index
    %98 = vector.load %arg18[%c0_127, %c512_128] : memref<1x3136xf32, #tpu.memory_space<vmem>>, vector<1x64xf32>
    tpu.vector_store %arg18[%c0_127, %c512_128], %97 {strides = array<i32>} : memref<1x3136xf32, #tpu.memory_space<vmem>>, vector<1x64xf32>,
    %c12_129 = arith.constant 12 : index
    %c0_130 = arith.constant 0 : index
    %99 = vector.load %arg17[%c12_129, %c0_130] : memref<72x64xf32, #tpu.memory_space<vmem>>, vector<1x64xf32>
    %c0_131 = arith.constant 0 : index
    %c576 = arith.constant 576 : index
    %100 = vector.load %arg18[%c0_131, %c576] : memref<1x3136xf32, #tpu.memory_space<vmem>>, vector<1x64xf32>
    tpu.vector_store %arg18[%c0_131, %c576], %99 {strides = array<i32>} : memref<1x3136xf32, #tpu.memory_space<vmem>>, vector<1x64xf32>,
    %c13 = arith.constant 13 : index
    %c0_132 = arith.constant 0 : index
    %101 = vector.load %arg17[%c13, %c0_132] : memref<72x64xf32, #tpu.memory_space<vmem>>, vector<1x64xf32>
    %c0_133 = arith.constant 0 : index
    %c640 = arith.constant 640 : index
    %102 = vector.load %arg18[%c0_133, %c640] : memref<1x3136xf32, #tpu.memory_space<vmem>>, vector<1x64xf32>
    tpu.vector_store %arg18[%c0_133, %c640], %101 {strides = array<i32>} : memref<1x3136xf32, #tpu.memory_space<vmem>>, vector<1x64xf32>,
    %c14 = arith.constant 14 : index
    %c0_134 = arith.constant 0 : index
    %103 = vector.load %arg17[%c14, %c0_134] : memref<72x64xf32, #tpu.memory_space<vmem>>, vector<1x64xf32>
    %c0_135 = arith.constant 0 : index
    %c704 = arith.constant 704 : index
    %104 = vector.load %arg18[%c0_135, %c704] : memref<1x3136xf32, #tpu.memory_space<vmem>>, vector<1x64xf32>
    tpu.vector_store %arg18[%c0_135, %c704], %103 {strides = array<i32>} : memref<1x3136xf32, #tpu.memory_space<vmem>>, vector<1x64xf32>,
    %c15 = arith.constant 15 : index
    %c0_136 = arith.constant 0 : index
    %105 = vector.load %arg17[%c15, %c0_136] : memref<72x64xf32, #tpu.memory_space<vmem>>, vector<1x64xf32>
    %c0_137 = arith.constant 0 : index
    %c768 = arith.constant 768 : index
    %106 = vector.load %arg18[%c0_137, %c768] : memref<1x3136xf32, #tpu.memory_space<vmem>>, vector<1x64xf32>
    tpu.vector_store %arg18[%c0_137, %c768], %105 {strides = array<i32>} : memref<1x3136xf32, #tpu.memory_space<vmem>>, vector<1x64xf32>,
    %c16 = arith.constant 16 : index
    %c0_138 = arith.constant 0 : index
    %107 = vector.load %arg17[%c16, %c0_138] : memref<72x64xf32, #tpu.memory_space<vmem>>, vector<1x64xf32>
    %c0_139 = arith.constant 0 : index
    %c832 = arith.constant 832 : index
    %108 = vector.load %arg18[%c0_139, %c832] : memref<1x3136xf32, #tpu.memory_space<vmem>>, vector<1x64xf32>
    tpu.vector_store %arg18[%c0_139, %c832], %107 {strides = array<i32>} : memref<1x3136xf32, #tpu.memory_space<vmem>>, vector<1x64xf32>,
    %c20_140 = arith.constant 20 : index
    %c0_141 = arith.constant 0 : index
    %109 = vector.load %arg17[%c20_140, %c0_141] : memref<72x64xf32, #tpu.memory_space<vmem>>, vector<1x64xf32>
    %c0_142 = arith.constant 0 : index
    %c896 = arith.constant 896 : index
    %110 = vector.load %arg18[%c0_142, %c896] : memref<1x3136xf32, #tpu.memory_space<vmem>>, vector<1x64xf32>
    tpu.vector_store %arg18[%c0_142, %c896], %109 {strides = array<i32>} : memref<1x3136xf32, #tpu.memory_space<vmem>>, vector<1x64xf32>,
    %c21_143 = arith.constant 21 : index
    %c0_144 = arith.constant 0 : index
    %111 = vector.load %arg17[%c21_143, %c0_144] : memref<72x64xf32, #tpu.memory_space<vmem>>, vector<1x64xf32>
    %c0_145 = arith.constant 0 : index
    %c960 = arith.constant 960 : index
    %112 = vector.load %arg18[%c0_145, %c960] : memref<1x3136xf32, #tpu.memory_space<vmem>>, vector<1x64xf32>
    tpu.vector_store %arg18[%c0_145, %c960], %111 {strides = array<i32>} : memref<1x3136xf32, #tpu.memory_space<vmem>>, vector<1x64xf32>,
    %c22_146 = arith.constant 22 : index
    %c0_147 = arith.constant 0 : index
    %113 = vector.load %arg17[%c22_146, %c0_147] : memref<72x64xf32, #tpu.memory_space<vmem>>, vector<1x64xf32>
    %c0_148 = arith.constant 0 : index
    %c1024 = arith.constant 1024 : index
    %114 = vector.load %arg18[%c0_148, %c1024] : memref<1x3136xf32, #tpu.memory_space<vmem>>, vector<1x64xf32>
    tpu.vector_store %arg18[%c0_148, %c1024], %113 {strides = array<i32>} : memref<1x3136xf32, #tpu.memory_space<vmem>>, vector<1x64xf32>,
    %c23 = arith.constant 23 : index
    %c0_149 = arith.constant 0 : index
    %115 = vector.load %arg17[%c23, %c0_149] : memref<72x64xf32, #tpu.memory_space<vmem>>, vector<1x64xf32>
    %c0_150 = arith.constant 0 : index
    %c1088 = arith.constant 1088 : index
    %116 = vector.load %arg18[%c0_150, %c1088] : memref<1x3136xf32, #tpu.memory_space<vmem>>, vector<1x64xf32>
    tpu.vector_store %arg18[%c0_150, %c1088], %115 {strides = array<i32>} : memref<1x3136xf32, #tpu.memory_space<vmem>>, vector<1x64xf32>,
    %c24 = arith.constant 24 : index
    %c0_151 = arith.constant 0 : index
    %117 = vector.load %arg17[%c24, %c0_151] : memref<72x64xf32, #tpu.memory_space<vmem>>, vector<1x64xf32>
    %c0_152 = arith.constant 0 : index
    %c1152 = arith.constant 1152 : index
    %118 = vector.load %arg18[%c0_152, %c1152] : memref<1x3136xf32, #tpu.memory_space<vmem>>, vector<1x64xf32>
    tpu.vector_store %arg18[%c0_152, %c1152], %117 {strides = array<i32>} : memref<1x3136xf32, #tpu.memory_space<vmem>>, vector<1x64xf32>,
    %c25 = arith.constant 25 : index
    %c0_153 = arith.constant 0 : index
    %119 = vector.load %arg17[%c25, %c0_153] : memref<72x64xf32, #tpu.memory_space<vmem>>, vector<1x64xf32>
    %c0_154 = arith.constant 0 : index
    %c1216 = arith.constant 1216 : index
    %120 = vector.load %arg18[%c0_154, %c1216] : memref<1x3136xf32, #tpu.memory_space<vmem>>, vector<1x64xf32>
    tpu.vector_store %arg18[%c0_154, %c1216], %119 {strides = array<i32>} : memref<1x3136xf32, #tpu.memory_space<vmem>>, vector<1x64xf32>,
    %c26 = arith.constant 26 : index
    %c0_155 = arith.constant 0 : index
    %121 = vector.load %arg17[%c26, %c0_155] : memref<72x64xf32, #tpu.memory_space<vmem>>, vector<1x64xf32>
    %c0_156 = arith.constant 0 : index
    %c1280 = arith.constant 1280 : index
    %122 = vector.load %arg18[%c0_156, %c1280] : memref<1x3136xf32, #tpu.memory_space<vmem>>, vector<1x64xf32>
    tpu.vector_store %arg18[%c0_156, %c1280], %121 {strides = array<i32>} : memref<1x3136xf32, #tpu.memory_space<vmem>>, vector<1x64xf32>,
    %c30 = arith.constant 30 : index
    %c0_157 = arith.constant 0 : index
    %123 = vector.load %arg17[%c30, %c0_157] : memref<72x64xf32, #tpu.memory_space<vmem>>, vector<1x64xf32>
    %c0_158 = arith.constant 0 : index
    %c1344 = arith.constant 1344 : index
    %124 = vector.load %arg18[%c0_158, %c1344] : memref<1x3136xf32, #tpu.memory_space<vmem>>, vector<1x64xf32>
    tpu.vector_store %arg18[%c0_158, %c1344], %123 {strides = array<i32>} : memref<1x3136xf32, #tpu.memory_space<vmem>>, vector<1x64xf32>,
    %c31 = arith.constant 31 : index
    %c0_159 = arith.constant 0 : index
    %125 = vector.load %arg17[%c31, %c0_159] : memref<72x64xf32, #tpu.memory_space<vmem>>, vector<1x64xf32>
    %c0_160 = arith.constant 0 : index
    %c1408 = arith.constant 1408 : index
    %126 = vector.load %arg18[%c0_160, %c1408] : memref<1x3136xf32, #tpu.memory_space<vmem>>, vector<1x64xf32>
    tpu.vector_store %arg18[%c0_160, %c1408], %125 {strides = array<i32>} : memref<1x3136xf32, #tpu.memory_space<vmem>>, vector<1x64xf32>,
    %c32_161 = arith.constant 32 : index
    %c0_162 = arith.constant 0 : index
    %127 = vector.load %arg17[%c32_161, %c0_162] : memref<72x64xf32, #tpu.memory_space<vmem>>, vector<1x64xf32>
    %c0_163 = arith.constant 0 : index
    %c1472 = arith.constant 1472 : index
    %128 = vector.load %arg18[%c0_163, %c1472] : memref<1x3136xf32, #tpu.memory_space<vmem>>, vector<1x64xf32>
    tpu.vector_store %arg18[%c0_163, %c1472], %127 {strides = array<i32>} : memref<1x3136xf32, #tpu.memory_space<vmem>>, vector<1x64xf32>,
    %c33 = arith.constant 33 : index
    %c0_164 = arith.constant 0 : index
    %129 = vector.load %arg17[%c33, %c0_164] : memref<72x64xf32, #tpu.memory_space<vmem>>, vector<1x64xf32>
    %c0_165 = arith.constant 0 : index
    %c1536 = arith.constant 1536 : index
    %130 = vector.load %arg18[%c0_165, %c1536] : memref<1x3136xf32, #tpu.memory_space<vmem>>, vector<1x64xf32>
    tpu.vector_store %arg18[%c0_165, %c1536], %129 {strides = array<i32>} : memref<1x3136xf32, #tpu.memory_space<vmem>>, vector<1x64xf32>,
    %c34 = arith.constant 34 : index
    %c0_166 = arith.constant 0 : index
    %131 = vector.load %arg17[%c34, %c0_166] : memref<72x64xf32, #tpu.memory_space<vmem>>, vector<1x64xf32>
    %c0_167 = arith.constant 0 : index
    %c1600 = arith.constant 1600 : index
    %132 = vector.load %arg18[%c0_167, %c1600] : memref<1x3136xf32, #tpu.memory_space<vmem>>, vector<1x64xf32>
    tpu.vector_store %arg18[%c0_167, %c1600], %131 {strides = array<i32>} : memref<1x3136xf32, #tpu.memory_space<vmem>>, vector<1x64xf32>,
    %c35 = arith.constant 35 : index
    %c0_168 = arith.constant 0 : index
    %133 = vector.load %arg17[%c35, %c0_168] : memref<72x64xf32, #tpu.memory_space<vmem>>, vector<1x64xf32>
    %c0_169 = arith.constant 0 : index
    %c1664 = arith.constant 1664 : index
    %134 = vector.load %arg18[%c0_169, %c1664] : memref<1x3136xf32, #tpu.memory_space<vmem>>, vector<1x64xf32>
    tpu.vector_store %arg18[%c0_169, %c1664], %133 {strides = array<i32>} : memref<1x3136xf32, #tpu.memory_space<vmem>>, vector<1x64xf32>,
    %c36 = arith.constant 36 : index
    %c0_170 = arith.constant 0 : index
    %135 = vector.load %arg17[%c36, %c0_170] : memref<72x64xf32, #tpu.memory_space<vmem>>, vector<1x64xf32>
    %c0_171 = arith.constant 0 : index
    %c1728 = arith.constant 1728 : index
    %136 = vector.load %arg18[%c0_171, %c1728] : memref<1x3136xf32, #tpu.memory_space<vmem>>, vector<1x64xf32>
    tpu.vector_store %arg18[%c0_171, %c1728], %135 {strides = array<i32>} : memref<1x3136xf32, #tpu.memory_space<vmem>>, vector<1x64xf32>,
    %c40 = arith.constant 40 : index
    %c0_172 = arith.constant 0 : index
    %137 = vector.load %arg17[%c40, %c0_172] : memref<72x64xf32, #tpu.memory_space<vmem>>, vector<1x64xf32>
    %c0_173 = arith.constant 0 : index
    %c1792 = arith.constant 1792 : index
    %138 = vector.load %arg18[%c0_173, %c1792] : memref<1x3136xf32, #tpu.memory_space<vmem>>, vector<1x64xf32>
    tpu.vector_store %arg18[%c0_173, %c1792], %137 {strides = array<i32>} : memref<1x3136xf32, #tpu.memory_space<vmem>>, vector<1x64xf32>,
    %c41 = arith.constant 41 : index
    %c0_174 = arith.constant 0 : index
    %139 = vector.load %arg17[%c41, %c0_174] : memref<72x64xf32, #tpu.memory_space<vmem>>, vector<1x64xf32>
    %c0_175 = arith.constant 0 : index
    %c1856 = arith.constant 1856 : index
    %140 = vector.load %arg18[%c0_175, %c1856] : memref<1x3136xf32, #tpu.memory_space<vmem>>, vector<1x64xf32>
    tpu.vector_store %arg18[%c0_175, %c1856], %139 {strides = array<i32>} : memref<1x3136xf32, #tpu.memory_space<vmem>>, vector<1x64xf32>,
    %c42 = arith.constant 42 : index
    %c0_176 = arith.constant 0 : index
    %141 = vector.load %arg17[%c42, %c0_176] : memref<72x64xf32, #tpu.memory_space<vmem>>, vector<1x64xf32>
    %c0_177 = arith.constant 0 : index
    %c1920 = arith.constant 1920 : index
    %142 = vector.load %arg18[%c0_177, %c1920] : memref<1x3136xf32, #tpu.memory_space<vmem>>, vector<1x64xf32>
    tpu.vector_store %arg18[%c0_177, %c1920], %141 {strides = array<i32>} : memref<1x3136xf32, #tpu.memory_space<vmem>>, vector<1x64xf32>,
    %c43 = arith.constant 43 : index
    %c0_178 = arith.constant 0 : index
    %143 = vector.load %arg17[%c43, %c0_178] : memref<72x64xf32, #tpu.memory_space<vmem>>, vector<1x64xf32>
    %c0_179 = arith.constant 0 : index
    %c1984 = arith.constant 1984 : index
    %144 = vector.load %arg18[%c0_179, %c1984] : memref<1x3136xf32, #tpu.memory_space<vmem>>, vector<1x64xf32>
    tpu.vector_store %arg18[%c0_179, %c1984], %143 {strides = array<i32>} : memref<1x3136xf32, #tpu.memory_space<vmem>>, vector<1x64xf32>,
    %c44 = arith.constant 44 : index
    %c0_180 = arith.constant 0 : index
    %145 = vector.load %arg17[%c44, %c0_180] : memref<72x64xf32, #tpu.memory_space<vmem>>, vector<1x64xf32>
    %c0_181 = arith.constant 0 : index
    %c2048 = arith.constant 2048 : index
    %146 = vector.load %arg18[%c0_181, %c2048] : memref<1x3136xf32, #tpu.memory_space<vmem>>, vector<1x64xf32>
    tpu.vector_store %arg18[%c0_181, %c2048], %145 {strides = array<i32>} : memref<1x3136xf32, #tpu.memory_space<vmem>>, vector<1x64xf32>,
    %c45 = arith.constant 45 : index
    %c0_182 = arith.constant 0 : index
    %147 = vector.load %arg17[%c45, %c0_182] : memref<72x64xf32, #tpu.memory_space<vmem>>, vector<1x64xf32>
    %c0_183 = arith.constant 0 : index
    %c2112 = arith.constant 2112 : index
    %148 = vector.load %arg18[%c0_183, %c2112] : memref<1x3136xf32, #tpu.memory_space<vmem>>, vector<1x64xf32>
    tpu.vector_store %arg18[%c0_183, %c2112], %147 {strides = array<i32>} : memref<1x3136xf32, #tpu.memory_space<vmem>>, vector<1x64xf32>,
    %c46 = arith.constant 46 : index
    %c0_184 = arith.constant 0 : index
    %149 = vector.load %arg17[%c46, %c0_184] : memref<72x64xf32, #tpu.memory_space<vmem>>, vector<1x64xf32>
    %c0_185 = arith.constant 0 : index
    %c2176 = arith.constant 2176 : index
    %150 = vector.load %arg18[%c0_185, %c2176] : memref<1x3136xf32, #tpu.memory_space<vmem>>, vector<1x64xf32>
    tpu.vector_store %arg18[%c0_185, %c2176], %149 {strides = array<i32>} : memref<1x3136xf32, #tpu.memory_space<vmem>>, vector<1x64xf32>,
    %c50 = arith.constant 50 : index
    %c0_186 = arith.constant 0 : index
    %151 = vector.load %arg17[%c50, %c0_186] : memref<72x64xf32, #tpu.memory_space<vmem>>, vector<1x64xf32>
    %c0_187 = arith.constant 0 : index
    %c2240 = arith.constant 2240 : index
    %152 = vector.load %arg18[%c0_187, %c2240] : memref<1x3136xf32, #tpu.memory_space<vmem>>, vector<1x64xf32>
    tpu.vector_store %arg18[%c0_187, %c2240], %151 {strides = array<i32>} : memref<1x3136xf32, #tpu.memory_space<vmem>>, vector<1x64xf32>,
    %c51 = arith.constant 51 : index
    %c0_188 = arith.constant 0 : index
    %153 = vector.load %arg17[%c51, %c0_188] : memref<72x64xf32, #tpu.memory_space<vmem>>, vector<1x64xf32>
    %c0_189 = arith.constant 0 : index
    %c2304 = arith.constant 2304 : index
    %154 = vector.load %arg18[%c0_189, %c2304] : memref<1x3136xf32, #tpu.memory_space<vmem>>, vector<1x64xf32>
    tpu.vector_store %arg18[%c0_189, %c2304], %153 {strides = array<i32>} : memref<1x3136xf32, #tpu.memory_space<vmem>>, vector<1x64xf32>,
    %c52 = arith.constant 52 : index
    %c0_190 = arith.constant 0 : index
    %155 = vector.load %arg17[%c52, %c0_190] : memref<72x64xf32, #tpu.memory_space<vmem>>, vector<1x64xf32>
    %c0_191 = arith.constant 0 : index
    %c2368 = arith.constant 2368 : index
    %156 = vector.load %arg18[%c0_191, %c2368] : memref<1x3136xf32, #tpu.memory_space<vmem>>, vector<1x64xf32>
    tpu.vector_store %arg18[%c0_191, %c2368], %155 {strides = array<i32>} : memref<1x3136xf32, #tpu.memory_space<vmem>>, vector<1x64xf32>,
    %c53 = arith.constant 53 : index
    %c0_192 = arith.constant 0 : index
    %157 = vector.load %arg17[%c53, %c0_192] : memref<72x64xf32, #tpu.memory_space<vmem>>, vector<1x64xf32>
    %c0_193 = arith.constant 0 : index
    %c2432 = arith.constant 2432 : index
    %158 = vector.load %arg18[%c0_193, %c2432] : memref<1x3136xf32, #tpu.memory_space<vmem>>, vector<1x64xf32>
    tpu.vector_store %arg18[%c0_193, %c2432], %157 {strides = array<i32>} : memref<1x3136xf32, #tpu.memory_space<vmem>>, vector<1x64xf32>,
    %c54 = arith.constant 54 : index
    %c0_194 = arith.constant 0 : index
    %159 = vector.load %arg17[%c54, %c0_194] : memref<72x64xf32, #tpu.memory_space<vmem>>, vector<1x64xf32>
    %c0_195 = arith.constant 0 : index
    %c2496 = arith.constant 2496 : index
    %160 = vector.load %arg18[%c0_195, %c2496] : memref<1x3136xf32, #tpu.memory_space<vmem>>, vector<1x64xf32>
    tpu.vector_store %arg18[%c0_195, %c2496], %159 {strides = array<i32>} : memref<1x3136xf32, #tpu.memory_space<vmem>>, vector<1x64xf32>,
    %c55 = arith.constant 55 : index
    %c0_196 = arith.constant 0 : index
    %161 = vector.load %arg17[%c55, %c0_196] : memref<72x64xf32, #tpu.memory_space<vmem>>, vector<1x64xf32>
    %c0_197 = arith.constant 0 : index
    %c2560 = arith.constant 2560 : index
    %162 = vector.load %arg18[%c0_197, %c2560] : memref<1x3136xf32, #tpu.memory_space<vmem>>, vector<1x64xf32>
    tpu.vector_store %arg18[%c0_197, %c2560], %161 {strides = array<i32>} : memref<1x3136xf32, #tpu.memory_space<vmem>>, vector<1x64xf32>,
    %c56 = arith.constant 56 : index
    %c0_198 = arith.constant 0 : index
    %163 = vector.load %arg17[%c56, %c0_198] : memref<72x64xf32, #tpu.memory_space<vmem>>, vector<1x64xf32>
    %c0_199 = arith.constant 0 : index
    %c2624 = arith.constant 2624 : index
    %164 = vector.load %arg18[%c0_199, %c2624] : memref<1x3136xf32, #tpu.memory_space<vmem>>, vector<1x64xf32>
    tpu.vector_store %arg18[%c0_199, %c2624], %163 {strides = array<i32>} : memref<1x3136xf32, #tpu.memory_space<vmem>>, vector<1x64xf32>,
    %c60 = arith.constant 60 : index
    %c0_200 = arith.constant 0 : index
    %165 = vector.load %arg17[%c60, %c0_200] : memref<72x64xf32, #tpu.memory_space<vmem>>, vector<1x64xf32>
    %c0_201 = arith.constant 0 : index
    %c2688 = arith.constant 2688 : index
    %166 = vector.load %arg18[%c0_201, %c2688] : memref<1x3136xf32, #tpu.memory_space<vmem>>, vector<1x64xf32>
    tpu.vector_store %arg18[%c0_201, %c2688], %165 {strides = array<i32>} : memref<1x3136xf32, #tpu.memory_space<vmem>>, vector<1x64xf32>,
    %c61 = arith.constant 61 : index
    %c0_202 = arith.constant 0 : index
    %167 = vector.load %arg17[%c61, %c0_202] : memref<72x64xf32, #tpu.memory_space<vmem>>, vector<1x64xf32>
    %c0_203 = arith.constant 0 : index
    %c2752 = arith.constant 2752 : index
    %168 = vector.load %arg18[%c0_203, %c2752] : memref<1x3136xf32, #tpu.memory_space<vmem>>, vector<1x64xf32>
    tpu.vector_store %arg18[%c0_203, %c2752], %167 {strides = array<i32>} : memref<1x3136xf32, #tpu.memory_space<vmem>>, vector<1x64xf32>,
    %c62 = arith.constant 62 : index
    %c0_204 = arith.constant 0 : index
    %169 = vector.load %arg17[%c62, %c0_204] : memref<72x64xf32, #tpu.memory_space<vmem>>, vector<1x64xf32>
    %c0_205 = arith.constant 0 : index
    %c2816 = arith.constant 2816 : index
    %170 = vector.load %arg18[%c0_205, %c2816] : memref<1x3136xf32, #tpu.memory_space<vmem>>, vector<1x64xf32>
    tpu.vector_store %arg18[%c0_205, %c2816], %169 {strides = array<i32>} : memref<1x3136xf32, #tpu.memory_space<vmem>>, vector<1x64xf32>,
    %c63 = arith.constant 63 : index
    %c0_206 = arith.constant 0 : index
    %171 = vector.load %arg17[%c63, %c0_206] : memref<72x64xf32, #tpu.memory_space<vmem>>, vector<1x64xf32>
    %c0_207 = arith.constant 0 : index
    %c2880 = arith.constant 2880 : index
    %172 = vector.load %arg18[%c0_207, %c2880] : memref<1x3136xf32, #tpu.memory_space<vmem>>, vector<1x64xf32>
    tpu.vector_store %arg18[%c0_207, %c2880], %171 {strides = array<i32>} : memref<1x3136xf32, #tpu.memory_space<vmem>>, vector<1x64xf32>,
    %c64_208 = arith.constant 64 : index
    %c0_209 = arith.constant 0 : index
    %173 = vector.load %arg17[%c64_208, %c0_209] : memref<72x64xf32, #tpu.memory_space<vmem>>, vector<1x64xf32>
    %c0_210 = arith.constant 0 : index
    %c2944 = arith.constant 2944 : index
    %174 = vector.load %arg18[%c0_210, %c2944] : memref<1x3136xf32, #tpu.memory_space<vmem>>, vector<1x64xf32>
    tpu.vector_store %arg18[%c0_210, %c2944], %173 {strides = array<i32>} : memref<1x3136xf32, #tpu.memory_space<vmem>>, vector<1x64xf32>,
    %c65 = arith.constant 65 : index
    %c0_211 = arith.constant 0 : index
    %175 = vector.load %arg17[%c65, %c0_211] : memref<72x64xf32, #tpu.memory_space<vmem>>, vector<1x64xf32>
    %c0_212 = arith.constant 0 : index
    %c3008 = arith.constant 3008 : index
    %176 = vector.load %arg18[%c0_212, %c3008] : memref<1x3136xf32, #tpu.memory_space<vmem>>, vector<1x64xf32>
    tpu.vector_store %arg18[%c0_212, %c3008], %175 {strides = array<i32>} : memref<1x3136xf32, #tpu.memory_space<vmem>>, vector<1x64xf32>,
    %c66 = arith.constant 66 : index
    %c0_213 = arith.constant 0 : index
    %177 = vector.load %arg17[%c66, %c0_213] : memref<72x64xf32, #tpu.memory_space<vmem>>, vector<1x64xf32>
    %c0_214 = arith.constant 0 : index
    %c3072 = arith.constant 3072 : index
    %178 = vector.load %arg18[%c0_214, %c3072] : memref<1x3136xf32, #tpu.memory_space<vmem>>, vector<1x64xf32>
    tpu.vector_store %arg18[%c0_214, %c3072], %177 {strides = array<i32>} : memref<1x3136xf32, #tpu.memory_space<vmem>>, vector<1x64xf32>,
    tpu.wait_dma2 semaphore(%arg20 : memref<!tpu.dma_semaphore, #tpu.memory_space<semaphore_mem>>) src(%arg8 : memref<3136x64xf32, #tpu.memory_space<any>>) dst(%arg19 : memref<3136x64xf32, #tpu.memory_space<vmem>>)
    %c0_215 = arith.constant 0 : index
    %c0_216 = arith.constant 0 : index
    %179 = vector.load %arg18[%c0_215, %c0_216] : memref<1x3136xf32, #tpu.memory_space<vmem>>, vector<1x3136xf32>
    %c0_217 = arith.constant 0 : index
    %c0_218 = arith.constant 0 : index
    %180 = vector.load %arg19[%c0_217, %c0_218] : memref<3136x64xf32, #tpu.memory_space<vmem>>, vector<3136x64xf32>
    %cst_219 = arith.constant dense<0.000000e+00> : vector<1x64xf32>
    %181 = tpu.matmul %179, %180, %cst_219 {dimension_numbers = #tpu.dot_dimension_numbers<[1], [0], [0], [1], [0, 0, 1, 1], [], []>} : vector<1x3136xf32>, vector<3136x64xf32>, vector<1x64xf32> -> vector<1x64xf32>
    %c0_220 = arith.constant 0 : index
    %c0_221 = arith.constant 0 : index
    %182 = vector.load %arg9[%c0_220, %c0_221] : memref<1x64xf32, #tpu.memory_space<vmem>>, vector<1x64xf32>
    %183 = arith.addf %181, %182 : vector<1x64xf32>
    %cst_222 = arith.constant 0.000000e+00 : f32
    %184 = vector.broadcast %cst_222 : f32 to vector<1x64xf32>
    %185 = arith.maximumf %183, %184 : vector<1x64xf32>
    %c0_223 = arith.constant 0 : index
    %c0_224 = arith.constant 0 : index
    %186 = vector.load %arg10[%c0_223, %c0_224] : memref<64x5xf32, #tpu.memory_space<vmem>>, vector<64x5xf32>
    %cst_225 = arith.constant dense<0.000000e+00> : vector<1x5xf32>
    %187 = tpu.matmul %185, %186, %cst_225 {dimension_numbers = #tpu.dot_dimension_numbers<[1], [0], [0], [1], [0, 0, 1, 1], [], []>} : vector<1x64xf32>, vector<64x5xf32>, vector<1x5xf32> -> vector<1x5xf32>
    %c0_226 = arith.constant 0 : index
    %c0_227 = arith.constant 0 : index
    %188 = vector.load %arg11[%c0_226, %c0_227] : memref<1x5xf32, #tpu.memory_space<vmem>>, vector<1x5xf32>
    %189 = arith.addf %187, %188 : vector<1x5xf32>
    %190 = vector.shape_cast %189 : vector<1x5xf32> to vector<1x1x5xf32>
    %c0_228 = arith.constant 0 : index
    %c0_229 = arith.constant 0 : index
    %c0_230 = arith.constant 0 : index
    %191 = vector.load %arg12[%c0_228, %c0_229, %c0_230] : memref<1x1x5xf32, #tpu.memory_space<vmem>>, vector<1x1x5xf32>
    tpu.vector_store %arg12[%c0_228, %c0_229, %c0_230], %190 {strides = array<i32>} : memref<1x1x5xf32, #tpu.memory_space<vmem>>, vector<1x1x5xf32>,
    return
  }
  func.func @transform_0(%arg0: i32) -> (i32, i32) {
    %c0_i32 = arith.constant 0 : i32
    %c0_i32_0 = arith.constant 0 : i32
    return %arg0, %c0_i32 : i32, i32
  }
  func.func @transform_1(%arg0: i32) -> (i32, i32) {
    %c0_i32 = arith.constant 0 : i32
    %c0_i32_0 = arith.constant 0 : i32
    %c0_i32_1 = arith.constant 0 : i32
    return %c0_i32, %c0_i32_0 : i32, i32
  }
  func.func @transform_2(%arg0: i32) -> (i32, i32) {
    %c0_i32 = arith.constant 0 : i32
    %c0_i32_0 = arith.constant 0 : i32
    %c0_i32_1 = arith.constant 0 : i32
    return %c0_i32, %c0_i32_0 : i32, i32
  }
  func.func @transform_3(%arg0: i32) -> (i32, i32) {
    %c0_i32 = arith.constant 0 : i32
    %c0_i32_0 = arith.constant 0 : i32
    %c0_i32_1 = arith.constant 0 : i32
    return %c0_i32, %c0_i32_0 : i32, i32
  }
  func.func @transform_4(%arg0: i32) -> (i32, i32) {
    %c0_i32 = arith.constant 0 : i32
    %c0_i32_0 = arith.constant 0 : i32
    %c0_i32_1 = arith.constant 0 : i32
    return %c0_i32, %c0_i32_0 : i32, i32
  }
  func.func @transform_5(%arg0: i32) -> (i32, i32) {
    %c0_i32 = arith.constant 0 : i32
    %c0_i32_0 = arith.constant 0 : i32
    %c0_i32_1 = arith.constant 0 : i32
    return %c0_i32, %c0_i32_0 : i32, i32
  }
  func.func @transform_6(%arg0: i32) -> (i32, i32) {
    %c0_i32 = arith.constant 0 : i32
    %c0_i32_0 = arith.constant 0 : i32
    %c0_i32_1 = arith.constant 0 : i32
    return %c0_i32, %c0_i32_0 : i32, i32
  }
  func.func @transform_8(%arg0: i32) -> (i32, i32) {
    %c0_i32 = arith.constant 0 : i32
    %c0_i32_0 = arith.constant 0 : i32
    %c0_i32_1 = arith.constant 0 : i32
    return %c0_i32, %c0_i32_0 : i32, i32
  }
  func.func @transform_9(%arg0: i32) -> (i32, i32) {
    %c0_i32 = arith.constant 0 : i32
    %c0_i32_0 = arith.constant 0 : i32
    %c0_i32_1 = arith.constant 0 : i32
    return %c0_i32, %c0_i32_0 : i32, i32
  }
  func.func @transform_10(%arg0: i32) -> (i32, i32) {
    %c0_i32 = arith.constant 0 : i32
    %c0_i32_0 = arith.constant 0 : i32
    %c0_i32_1 = arith.constant 0 : i32
    return %c0_i32, %c0_i32_0 : i32, i32
  }
  func.func @transform_11(%arg0: i32) -> (i32, i32, i32) {
    %c0_i32 = arith.constant 0 : i32
    %c0_i32_0 = arith.constant 0 : i32
    %c0_i32_1 = arith.constant 0 : i32
    return %arg0, %c0_i32, %c0_i32_0 : i32, i32, i32
  }
}

</mosaic_0001>

<llo_original>
// kernel: forward.1
$region0: #{forward.1}
  #allocation0 [shape = 'u32[]', space=smem, size = 0x4, offset = 0x4, fixed_abs, tag = 'smem constant byte address 0x4 - core index']
  #allocation1 [shape = 'u32[144,128]{1,0:T(1,128)}', space=vmem, size = 0x12000, scoped, tag = 'internal scratch']
  #allocation2 [shape = 'f32[416,32]{1,0:T(8,128)}', space=vmem, size = 0x34000, scoped, tag = 'scratch operand']
  #allocation3 [shape = 'f32[96,512]{1,0:T(8,128)}', space=vmem, size = 0x30000, scoped, tag = 'scratch operand']
  #allocation4 [shape = 'f32[96,64]{1,0:T(8,128)}', space=vmem, size = 0xc000, scoped, tag = 'scratch operand']
  #allocation5 [shape = 'f32[72,576]{1,0:T(8,128)}', space=vmem, size = 0x2d000, scoped, tag = 'scratch operand']
  #allocation6 [shape = 'f32[72,64]{1,0:T(8,128)}', space=vmem, size = 0x9000, scoped, tag = 'scratch operand']
  #allocation7 [shape = 'f32[1,3136]{1,0:T(1,128)}', space=vmem, size = 0x3200, scoped, tag = 'scratch operand']
  #allocation8 [shape = 'f32[3136,64]{1,0:T(8,128)}', space=vmem, size = 0x188000, scoped, tag = 'scratch operand']
  #allocation9 [shape = 's32[1]{0}', space=sflag, size = 0x4, scoped, tag = 'scratch operand']
  #allocation10 [shape = 's32[]', space=sflag, size = 0x4, offset = 0, fixed_abs, tag = 'sflag constant byte address 0x0 - dummy sync flag']
  %s0 = inlined_call_operand.vmem [shape: f32[832,64], index: 0, kind: input, shape index: {}]
  %s1 = inlined_call_operand.vmem [shape: f32[64,32], index: 1, kind: input, shape index: {}]
  %s2 = inlined_call_operand.vmem [shape: f32[1,32], index: 2, kind: input, shape index: {}]
  %s3 = inlined_call_operand.vmem [shape: f32[512,64], index: 3, kind: input, shape index: {}]
  %s4 = inlined_call_operand.vmem [shape: f32[1,64], index: 4, kind: input, shape index: {}]
  %s5 = inlined_call_operand.vmem [shape: f32[576,64], index: 5, kind: input, shape index: {}]
  %s6 = inlined_call_operand.vmem [shape: f32[1,64], index: 6, kind: input, shape index: {}]
  %s7 = inlined_call_operand.vmem [shape: f32[3136,64], index: 7, kind: input, shape index: {}]
  %s8 = inlined_call_operand.vmem [shape: f32[1,64], index: 8, kind: input, shape index: {}]
  %s9 = inlined_call_operand.vmem [shape: f32[64,5], index: 9, kind: input, shape index: {}]
  %s10 = inlined_call_operand.vmem [shape: f32[1,5], index: 10, kind: input, shape index: {}]
  %s11 = inlined_call_operand.vmem [shape: f32[2,1,5], index: 11, kind: output, shape index: {}]
  %s12 = sld [smem:[#allocation0]]
  $region107: #{forward.1} parent=0
    _
  %s14 = ssub.s32 1, %s12
  %s15 = scalar_select 0, %s14, %s12
  loop: start=0, step=1, limit=4
  $region2: #{forward.1} parent=0 // loop_pre_header
    _
  $region3: #{forward.1} parent=0 // loop_header
    %s17 = sphi 0, %s21
    %p18 = scmp.ge.s32.totalorder %s17, 4
    %s27 = sphi 0, %s29
    %s30 = sphi 0, %s27
    %s31 = sphi 0, %s30
    %s47 = sphi 0, %s31
    %s51 = sphi 0, %s51
    %s53 = sphi 0, %s51
    %s54 = sphi 0, %s53
    %s68 = sphi 0, %s54
    %s72 = sphi 0, %s72
    %s74 = sphi 0, %s72
    %s75 = sphi 0, %s74
    %s89 = sphi 0, %s75
    %s93 = sphi 0, %s93
    %s95 = sphi 0, %s93
    %s96 = sphi 0, %s95
    %s110 = sphi 0, %s96
    %s114 = sphi 0, %s114
    %s116 = sphi 0, %s114
    %s117 = sphi 0, %s116
    %s131 = sphi 0, %s117
    %s135 = sphi 0, %s135
    %s137 = sphi 0, %s135
    %s138 = sphi 0, %s137
    %s152 = sphi 0, %s138
    %s156 = sphi 0, %s156
    %s158 = sphi 0, %s156
    %s159 = sphi 0, %s158
    %s173 = sphi 0, %s159
    %s177 = sphi 0, %s177
    %s179 = sphi 0, %s177
    %s180 = sphi 0, %s179
    %s194 = sphi 0, %s180
    %s198 = sphi 0, %s198
    %s200 = sphi 0, %s198
    %s201 = sphi 0, %s200
    %s215 = sphi 0, %s201
    %s219 = sphi 0, %s219
    %s221 = sphi 0, %s219
    %s222 = sphi 0, %s221
    %s236 = sphi 0, %s222
    %s242 = sphi 0, %s244
    %s245 = sphi 0, %s242
    %s246 = sphi 0, %s245
    %s262 = sphi 0, %s246
  $region4: #{forward.1} parent=0 // loop_header_branch
    %20 = sbr.rel (%p18) target = $region8
  $region5: #{forward.1} parent=0 // loop_body
    %s22 = ssub.s32 %s17, 1
    %s23 = ssub.s32 %s17, 2
    %s24 = sadd.s32 %s17, 1
    %s25 = ssub.s32 %s17, %s24
    %p26 = scmp.eq.s32.totalorder %s25, 0
    %s28 = sadd.s32 %s27, 1
    %s29 = scalar_select %p26, %s27, %s28
    %p32 = pneg %p26
    %p33 = scmp.eq.s32.totalorder %s17, 1
    %p34 = por %p32, %p33
    %p35 = scmp.ne.s32.totalorder %s27, %s30
    %p36 = scmp.eq.s32.totalorder %s17, 0
    %p37 = por %p35, %p36
    %p38 = scmp.ne.s32.totalorder %s27, %s30
    %p39 = scmp.eq.s32.totalorder %s22, 1
    %p40 = por %p38, %p39
    %p41 = scmp.ne.s32.totalorder %s30, %s31
    %p42 = scmp.eq.s32.totalorder %s22, 0
    %p43 = por %p41, %p42
    %p44 = scmp.ne.s32.totalorder %s30, %s31
    %p45 = scmp.eq.s32.totalorder %s23, 1
    %p46 = por %p44, %p45
    %p48 = scmp.ne.s32.totalorder %s31, %s47
    %p49 = scmp.eq.s32.totalorder %s23, 0
    %p50 = por %p48, %p49
    %s52 = sadd.s32 %s51, 1
    %p55 = scmp.eq.s32.totalorder %s17, 1
    %p56 = scmp.ne.s32.totalorder %s51, %s53
    %p57 = scmp.eq.s32.totalorder %s17, 0
    %p58 = por %p56, %p57
    %p59 = scmp.ne.s32.totalorder %s51, %s53
    %p60 = scmp.eq.s32.totalorder %s22, 1
    %p61 = por %p59, %p60
    %p62 = scmp.ne.s32.totalorder %s53, %s54
    %p63 = scmp.eq.s32.totalorder %s22, 0
    %p64 = por %p62, %p63
    %p65 = scmp.ne.s32.totalorder %s53, %s54
    %p66 = scmp.eq.s32.totalorder %s23, 1
    %p67 = por %p65, %p66
    %p69 = scmp.ne.s32.totalorder %s54, %s68
    %p70 = scmp.eq.s32.totalorder %s23, 0
    %p71 = por %p69, %p70
    %s73 = sadd.s32 %s72, 1
    %p76 = scmp.eq.s32.totalorder %s17, 1
    %p77 = scmp.ne.s32.totalorder %s72, %s74
    %p78 = scmp.eq.s32.totalorder %s17, 0
    %p79 = por %p77, %p78
    %p80 = scmp.ne.s32.totalorder %s72, %s74
    %p81 = scmp.eq.s32.totalorder %s22, 1
    %p82 = por %p80, %p81
    %p83 = scmp.ne.s32.totalorder %s74, %s75
    %p84 = scmp.eq.s32.totalorder %s22, 0
    %p85 = por %p83, %p84
    %p86 = scmp.ne.s32.totalorder %s74, %s75
    %p87 = scmp.eq.s32.totalorder %s23, 1
    %p88 = por %p86, %p87
    %p90 = scmp.ne.s32.totalorder %s75, %s89
    %p91 = scmp.eq.s32.totalorder %s23, 0
    %p92 = por %p90, %p91
    %s94 = sadd.s32 %s93, 1
    %p97 = scmp.eq.s32.totalorder %s17, 1
    %p98 = scmp.ne.s32.totalorder %s93, %s95
    %p99 = scmp.eq.s32.totalorder %s17, 0
    %p100 = por %p98, %p99
    %p101 = scmp.ne.s32.totalorder %s93, %s95
    %p102 = scmp.eq.s32.totalorder %s22, 1
    %p103 = por %p101, %p102
    %p104 = scmp.ne.s32.totalorder %s95, %s96
    %p105 = scmp.eq.s32.totalorder %s22, 0
    %p106 = por %p104, %p105
    %p107 = scmp.ne.s32.totalorder %s95, %s96
    %p108 = scmp.eq.s32.totalorder %s23, 1
    %p109 = por %p107, %p108
    %p111 = scmp.ne.s32.totalorder %s96, %s110
    %p112 = scmp.eq.s32.totalorder %s23, 0
    %p113 = por %p111, %p112
    %s115 = sadd.s32 %s114, 1
    %p118 = scmp.eq.s32.totalorder %s17, 1
    %p119 = scmp.ne.s32.totalorder %s114, %s116
    %p120 = scmp.eq.s32.totalorder %s17, 0
    %p121 = por %p119, %p120
    %p122 = scmp.ne.s32.totalorder %s114, %s116
    %p123 = scmp.eq.s32.totalorder %s22, 1
    %p124 = por %p122, %p123
    %p125 = scmp.ne.s32.totalorder %s116, %s117
    %p126 = scmp.eq.s32.totalorder %s22, 0
    %p127 = por %p125, %p126
    %p128 = scmp.ne.s32.totalorder %s116, %s117
    %p129 = scmp.eq.s32.totalorder %s23, 1
    %p130 = por %p128, %p129
    %p132 = scmp.ne.s32.totalorder %s117, %s131
    %p133 = scmp.eq.s32.totalorder %s23, 0
    %p134 = por %p132, %p133
    %s136 = sadd.s32 %s135, 1
    %p139 = scmp.eq.s32.totalorder %s17, 1
    %p140 = scmp.ne.s32.totalorder %s135, %s137
    %p141 = scmp.eq.s32.totalorder %s17, 0
    %p142 = por %p140, %p141
    %p143 = scmp.ne.s32.totalorder %s135, %s137
    %p144 = scmp.eq.s32.totalorder %s22, 1
    %p145 = por %p143, %p144
    %p146 = scmp.ne.s32.totalorder %s137, %s138
    %p147 = scmp.eq.s32.totalorder %s22, 0
    %p148 = por %p146, %p147
    %p149 = scmp.ne.s32.totalorder %s137, %s138
    %p150 = scmp.eq.s32.totalorder %s23, 1
    %p151 = por %p149, %p150
    %p153 = scmp.ne.s32.totalorder %s138, %s152
    %p154 = scmp.eq.s32.totalorder %s23, 0
    %p155 = por %p153, %p154
    %s157 = sadd.s32 %s156, 1
    %p160 = scmp.eq.s32.totalorder %s17, 1
    %p161 = scmp.ne.s32.totalorder %s156, %s158
    %p162 = scmp.eq.s32.totalorder %s17, 0
    %p163 = por %p161, %p162
    %p164 = scmp.ne.s32.totalorder %s156, %s158
    %p165 = scmp.eq.s32.totalorder %s22, 1
    %p166 = por %p164, %p165
    %p167 = scmp.ne.s32.totalorder %s158, %s159
    %p168 = scmp.eq.s32.totalorder %s22, 0
    %p169 = por %p167, %p168
    %p170 = scmp.ne.s32.totalorder %s158, %s159
    %p171 = scmp.eq.s32.totalorder %s23, 1
    %p172 = por %p170, %p171
    %p174 = scmp.ne.s32.totalorder %s159, %s173
    %p175 = scmp.eq.s32.totalorder %s23, 0
    %p176 = por %p174, %p175
    %s178 = sadd.s32 %s177, 1
    %p181 = scmp.eq.s32.totalorder %s17, 1
    %p182 = scmp.ne.s32.totalorder %s177, %s179
    %p183 = scmp.eq.s32.totalorder %s17, 0
    %p184 = por %p182, %p183
    %p185 = scmp.ne.s32.totalorder %s177, %s179
    %p186 = scmp.eq.s32.totalorder %s22, 1
    %p187 = por %p185, %p186
    %p188 = scmp.ne.s32.totalorder %s179, %s180
    %p189 = scmp.eq.s32.totalorder %s22, 0
    %p190 = por %p188, %p189
    %p191 = scmp.ne.s32.totalorder %s179, %s180
    %p192 = scmp.eq.s32.totalorder %s23, 1
    %p193 = por %p191, %p192
    %p195 = scmp.ne.s32.totalorder %s180, %s194
    %p196 = scmp.eq.s32.totalorder %s23, 0
    %p197 = por %p195, %p196
    %s199 = sadd.s32 %s198, 1
    %p202 = scmp.eq.s32.totalorder %s17, 1
    %p203 = scmp.ne.s32.totalorder %s198, %s200
    %p204 = scmp.eq.s32.totalorder %s17, 0
    %p205 = por %p203, %p204
    %p206 = scmp.ne.s32.totalorder %s198, %s200
    %p207 = scmp.eq.s32.totalorder %s22, 1
    %p208 = por %p206, %p207
    %p209 = scmp.ne.s32.totalorder %s200, %s201
    %p210 = scmp.eq.s32.totalorder %s22, 0
    %p211 = por %p209, %p210
    %p212 = scmp.ne.s32.totalorder %s200, %s201
    %p213 = scmp.eq.s32.totalorder %s23, 1
    %p214 = por %p212, %p213
    %p216 = scmp.ne.s32.totalorder %s201, %s215
    %p217 = scmp.eq.s32.totalorder %s23, 0
    %p218 = por %p216, %p217
    %s220 = sadd.s32 %s219, 1
    %p223 = scmp.eq.s32.totalorder %s17, 1
    %p224 = scmp.ne.s32.totalorder %s219, %s221
    %p225 = scmp.eq.s32.totalorder %s17, 0
    %p226 = por %p224, %p225
    %p227 = scmp.ne.s32.totalorder %s219, %s221
    %p228 = scmp.eq.s32.totalorder %s22, 1
    %p229 = por %p227, %p228
    %p230 = scmp.ne.s32.totalorder %s221, %s222
    %p231 = scmp.eq.s32.totalorder %s22, 0
    %p232 = por %p230, %p231
    %p233 = scmp.ne.s32.totalorder %s221, %s222
    %p234 = scmp.eq.s32.totalorder %s23, 1
    %p235 = por %p233, %p234
    %p237 = scmp.ne.s32.totalorder %s222, %s236
    %p238 = scmp.eq.s32.totalorder %s23, 0
    %p239 = por %p237, %p238
    %s240 = ssub.s32 %s17, %s24
    %p241 = scmp.eq.s32.totalorder %s240, 0
    %s243 = sadd.s32 %s242, 1
    %s244 = scalar_select %p241, %s242, %s243
    %p247 = pneg %p241
    %p248 = scmp.eq.s32.totalorder %s17, 1
    %p249 = por %p247, %p248
    %p250 = scmp.ne.s32.totalorder %s242, %s245
    %p251 = scmp.eq.s32.totalorder %s17, 0
    %p252 = por %p250, %p251
    %p253 = scmp.ne.s32.totalorder %s242, %s245
    %p254 = scmp.eq.s32.totalorder %s22, 1
    %p255 = por %p253, %p254
    %p256 = scmp.ne.s32.totalorder %s245, %s246
    %p257 = scmp.eq.s32.totalorder %s22, 0
    %p258 = por %p256, %p257
    %p259 = scmp.ne.s32.totalorder %s245, %s246
    %p260 = scmp.eq.s32.totalorder %s23, 1
    %p261 = por %p259, %p260
    %p263 = scmp.ne.s32.totalorder %s246, %s262
    %p264 = scmp.eq.s32.totalorder %s23, 0
    %p265 = por %p263, %p264
    %p266 = scmp.le.s32.totalorder 1, %s17
    %p267 = scmp.lt.s32.totalorder %s17, 3
    %p268 = pnand %p266, %p267
    %p269 = pneg %p268
    // Predicated region
    $region9: #{forward.1} parent=5 // pred_check
      _
    $region10: #{forward.1} parent=5 // pred_check_branch
      %271 = sbr.rel (%p268) target = $region12
    $region11: #{forward.1} parent=5 // pred_region
      %s272 = ssub.s32 %s17, 1
      // Predicated region
      $region13: #{forward.1} parent=11 // pred_check
        %p273 = pneg %p64
      $region14: #{forward.1} parent=11 // pred_check_branch
        %275 = sbr.rel (%p273) target = $region16
      $region15: #{forward.1} parent=11 // pred_region
        _
      $region16: #{forward.1} parent=11 // pred_fallthru
        _
      // Predicated region
      $region17: #{forward.1} parent=11 // pred_check
        %p276 = pneg %p85
      $region18: #{forward.1} parent=11 // pred_check_branch
        %278 = sbr.rel (%p276) target = $region20
      $region19: #{forward.1} parent=11 // pred_region
        _
      $region20: #{forward.1} parent=11 // pred_fallthru
        _
      // Predicated region
      $region21: #{forward.1} parent=11 // pred_check
        %p279 = pneg %p106
      $region22: #{forward.1} parent=11 // pred_check_branch
        %281 = sbr.rel (%p279) target = $region24
      $region23: #{forward.1} parent=11 // pred_region
        _
      $region24: #{forward.1} parent=11 // pred_fallthru
        _
      // Predicated region
      $region25: #{forward.1} parent=11 // pred_check
        %p282 = pneg %p127
      $region26: #{forward.1} parent=11 // pred_check_branch
        %284 = sbr.rel (%p282) target = $region28
      $region27: #{forward.1} parent=11 // pred_region
        _
      $region28: #{forward.1} parent=11 // pred_fallthru
        _
      // Predicated region
      $region29: #{forward.1} parent=11 // pred_check
        %p285 = pneg %p148
      $region30: #{forward.1} parent=11 // pred_check_branch
        %287 = sbr.rel (%p285) target = $region32
      $region31: #{forward.1} parent=11 // pred_region
        _
      $region32: #{forward.1} parent=11 // pred_fallthru
        _
      // Predicated region
      $region33: #{forward.1} parent=11 // pred_check
        %p288 = pneg %p169
      $region34: #{forward.1} parent=11 // pred_check_branch
        %290 = sbr.rel (%p288) target = $region36
      $region35: #{forward.1} parent=11 // pred_region
        _
      $region36: #{forward.1} parent=11 // pred_fallthru
        _
      // Predicated region
      $region37: #{forward.1} parent=11 // pred_check
        %p291 = pneg %p190
      $region38: #{forward.1} parent=11 // pred_check_branch
        %293 = sbr.rel (%p291) target = $region40
      $region39: #{forward.1} parent=11 // pred_region
        _
      $region40: #{forward.1} parent=11 // pred_fallthru
        _
      // Predicated region
      $region41: #{forward.1} parent=11 // pred_check
        %p294 = pneg %p211
      $region42: #{forward.1} parent=11 // pred_check_branch
        %296 = sbr.rel (%p294) target = $region44
      $region43: #{forward.1} parent=11 // pred_region
        _
      $region44: #{forward.1} parent=11 // pred_fallthru
        _
      // Predicated region
      $region45: #{forward.1} parent=11 // pred_check
        %p297 = pneg %p232
      $region46: #{forward.1} parent=11 // pred_check_branch
        %299 = sbr.rel (%p297) target = $region48
      $region47: #{forward.1} parent=11 // pred_region
        _
      $region48: #{forward.1} parent=11 // pred_fallthru
        _
    $region12: #{forward.1} parent=5 // pred_fallthru
      _
    %p300 = scmp.lt.s32.totalorder %s17, 2
    // Predicated region
    $region49: #{forward.1} parent=5 // pred_check
      %p301 = pneg %p300
    $region50: #{forward.1} parent=5 // pred_check_branch
      %303 = sbr.rel (%p301) target = $region52
    $region51: #{forward.1} parent=5 // pred_region
      // Predicated region
      $region53: #{forward.1} parent=51 // pred_check
        %p304 = pneg %p37
      $region54: #{forward.1} parent=51 // pred_check_branch
        %306 = sbr.rel (%p304) target = $region56
      $region55: #{forward.1} parent=51 // pred_region
        %s307 = smul.u32 52, %s17
        %p308 = scmp.lt.s32.totalorder %s307, 103
        %s309 = scalar_select %p308, %s307, 103
        %s310 = smul.addr %s309, 8
        %s311 = scalar_lea.vmem %s0, %s310
        %s312 = smul.u32 52, %s17
      $region56: #{forward.1} parent=51 // pred_fallthru
        _
    $region52: #{forward.1} parent=5 // pred_fallthru
      _
    %p313 = scmp.le.s32.totalorder 1, %s17
    %p314 = scmp.lt.s32.totalorder %s17, 3
    %p315 = pnand %p313, %p314
    %p316 = pneg %p315
    // Predicated region
    $region57: #{forward.1} parent=5 // pred_check
      _
    $region58: #{forward.1} parent=5 // pred_check_branch
      %318 = sbr.rel (%p315) target = $region60
    $region59: #{forward.1} parent=5 // pred_region
      %s319 = ssub.s32 %s17, 1
      %s320 = smul.u32 52, %s22
      %p321 = scmp.lt.s32.totalorder %s320, 103
      %s322 = scalar_select %p321, %s320, 103
      %s323 = smul.addr %s322, 8
      %s324 = scalar_lea.vmem %s0, %s323
      %p325 = pneg %p43
      %p326 = pneg %p40
      %p327 = pneg %p64
      %p328 = pneg %p61
      %p329 = pneg %p85
      %p330 = pneg %p82
      %p331 = pneg %p106
      %p332 = pneg %p103
      %p333 = pneg %p127
      %p334 = pneg %p124
      %p335 = pneg %p148
      %p336 = pneg %p145
      %p337 = pneg %p169
      %p338 = pneg %p166
      %p339 = pneg %p190
      %p340 = pneg %p187
      %p341 = pneg %p211
      %p342 = pneg %p208
      %p343 = pneg %p232
      %p344 = pneg %p229
      %p345 = pneg %p258
      %p346 = pneg %p255
      %p347 = scmp.lt.s32.totalorder %s22, 1
      %s348 = scalar_select %p347, %s22, 1
      %s349 = scalar_lea.vmem %s11, %s348
      %s350 = smul.u32 52, %s22
      %p351 = scmp.lt.s32.totalorder %s350, 103
      %s352 = scalar_select %p351, %s350, 103
      %s353 = smul.addr %s352, 8
      %s354 = scalar_lea.vmem %s0, %s353
      %s355 = smul.u32 52, %s22
      %p356 = scmp.lt.s32.totalorder %s22, 1
      %s357 = scalar_select %p356, %s22, 1
      %s358 = scalar_lea.vmem %s11, %s357
      %p360 = scmp.lt.u32.totalorder 3136, 8
      %p361 = pneg %p360
      // Predicated region
      $region61: #{forward.1} parent=59 // pred_check
        _
      $region62: #{forward.1} parent=59 // pred_check_branch
        %363 = sbr.rel (%p360) target = $region64
      $region63: #{forward.1} parent=59 // pred_region
        %s378 = sand.u32 3136, 7
        %p379 = scmp.eq.s32.totalorder %s378, 0
        // Predicated region
        $region76: #{forward.1} parent=63 // pred_check
          %p380 = pneg %p379
        $region77: #{forward.1} parent=63 // pred_check_branch
          %382 = sbr.rel (%p380) target = $region79
        $region78: #{forward.1} parent=63 // pred_region
          loop: start=0, step=1, limit=1
          $region80: #{forward.1} parent=78 // loop_pre_header
            _
          $region81: #{forward.1} parent=78 // loop_header
            %s384 = sphi 0, %s388
            %p385 = scmp.ge.s32.totalorder %s384, 1
            %s389 = sphi %s7, %s7
            %s390 = sphi [#allocation8], [#allocation8]
          $region82: #{forward.1} parent=78 // loop_header_branch
            %387 = sbr.rel (%p385) target = $region86
          $region83: #{forward.1} parent=78 // loop_body
            %v391 = vld [vmem:[%s389] sm:$0xff]
            %392 = vst [vmem:[%s390] sm:$0xff] %v391
            %v393 = vld [vmem:[%s389 + $0x8] sm:$0xff]
            %394 = vst [vmem:[%s390 + $0x8] sm:$0xff] %v393
            %v395 = vld [vmem:[%s389 + $0x10] sm:$0xff]
            %396 = vst [vmem:[%s390 + $0x10] sm:$0xff] %v395
            %v397 = vld [vmem:[%s389 + $0x18] sm:$0xff]
            %398 = vst [vmem:[%s390 + $0x18] sm:$0xff] %v397
            %v399 = vld [vmem:[%s389 + $0x20] sm:$0xff]
            %400 = vst [vmem:[%s390 + $0x20] sm:$0xff] %v399
            %v401 = vld [vmem:[%s389 + $0x28] sm:$0xff]
            %402 = vst [vmem:[%s390 + $0x28] sm:$0xff] %v401
            %v403 = vld [vmem:[%s389 + $0x30] sm:$0xff]
            %404 = vst [vmem:[%s390 + $0x30] sm:$0xff] %v403
            %v405 = vld [vmem:[%s389 + $0x38] sm:$0xff]
            %406 = vst [vmem:[%s390 + $0x38] sm:$0xff] %v405
            %v407 = vld [vmem:[%s389 + $0x40] sm:$0xff]
            %408 = vst [vmem:[%s390 + $0x40] sm:$0xff] %v407
            %v409 = vld [vmem:[%s389 + $0x48] sm:$0xff]
            %410 = vst [vmem:[%s390 + $0x48] sm:$0xff] %v409
            %v411 = vld [vmem:[%s389 + $0x50] sm:$0xff]
            %412 = vst [vmem:[%s390 + $0x50] sm:$0xff] %v411
            %v413 = vld [vmem:[%s389 + $0x58] sm:$0xff]
            %414 = vst [vmem:[%s390 + $0x58] sm:$0xff] %v413
            %v415 = vld [vmem:[%s389 + $0x60] sm:$0xff]
            %416 = vst [vmem:[%s390 + $0x60] sm:$0xff] %v415
            %v417 = vld [vmem:[%s389 + $0x68] sm:$0xff]
            %418 = vst [vmem:[%s390 + $0x68] sm:$0xff] %v417
            %v419 = vld [vmem:[%s389 + $0x70] sm:$0xff]
            %420 = vst [vmem:[%s390 + $0x70] sm:$0xff] %v419
            %v421 = vld [vmem:[%s389 + $0x78] sm:$0xff]
            %422 = vst [vmem:[%s390 + $0x78] sm:$0xff] %v421
            %v423 = vld [vmem:[%s389 + $0x80] sm:$0xff]
            %424 = vst [vmem:[%s390 + $0x80] sm:$0xff] %v423
            %v425 = vld [vmem:[%s389 + $0x88] sm:$0xff]
            %426 = vst [vmem:[%s390 + $0x88] sm:$0xff] %v425
            %v427 = vld [vmem:[%s389 + $0x90] sm:$0xff]
            %428 = vst [vmem:[%s390 + $0x90] sm:$0xff] %v427
            %v429 = vld [vmem:[%s389 + $0x98] sm:$0xff]
            %430 = vst [vmem:[%s390 + $0x98] sm:$0xff] %v429
            %v431 = vld [vmem:[%s389 + $0xa0] sm:$0xff]
            %432 = vst [vmem:[%s390 + $0xa0] sm:$0xff] %v431
            %v433 = vld [vmem:[%s389 + $0xa8] sm:$0xff]
            %434 = vst [vmem:[%s390 + $0xa8] sm:$0xff] %v433
            %v435 = vld [vmem:[%s389 + $0xb0] sm:$0xff]
            %436 = vst [vmem:[%s390 + $0xb0] sm:$0xff] %v435
            %v437 = vld [vmem:[%s389 + $0xb8] sm:$0xff]
            %438 = vst [vmem:[%s390 + $0xb8] sm:$0xff] %v437
            %v439 = vld [vmem:[%s389 + $0xc0] sm:$0xff]
            %440 = vst [vmem:[%s390 + $0xc0] sm:$0xff] %v439
            %v441 = vld [vmem:[%s389 + $0xc8] sm:$0xff]
            %442 = vst [vmem:[%s390 + $0xc8] sm:$0xff] %v441
            %v443 = vld [vmem:[%s389 + $0xd0] sm:$0xff]
            %444 = vst [vmem:[%s390 + $0xd0] sm:$0xff] %v443
            %v445 = vld [vmem:[%s389 + $0xd8] sm:$0xff]
            %446 = vst [vmem:[%s390 + $0xd8] sm:$0xff] %v445
            %v447 = vld [vmem:[%s389 + $0xe0] sm:$0xff]
            %448 = vst [vmem:[%s390 + $0xe0] sm:$0xff] %v447
            %v449 = vld [vmem:[%s389 + $0xe8] sm:$0xff]
            %450 = vst [vmem:[%s390 + $0xe8] sm:$0xff] %v449
            %v451 = vld [vmem:[%s389 + $0xf0] sm:$0xff]
            %452 = vst [vmem:[%s390 + $0xf0] sm:$0xff] %v451
            %v453 = vld [vmem:[%s389 + $0xf8] sm:$0xff]
            %454 = vst [vmem:[%s390 + $0xf8] sm:$0xff] %v453
            %v455 = vld [vmem:[%s389 + $0x100] sm:$0xff]
            %456 = vst [vmem:[%s390 + $0x100] sm:$0xff] %v455
            %v457 = vld [vmem:[%s389 + $0x108] sm:$0xff]
            %458 = vst [vmem:[%s390 + $0x108] sm:$0xff] %v457
            %v459 = vld [vmem:[%s389 + $0x110] sm:$0xff]
            %460 = vst [vmem:[%s390 + $0x110] sm:$0xff] %v459
            %v461 = vld [vmem:[%s389 + $0x118] sm:$0xff]
            %462 = vst [vmem:[%s390 + $0x118] sm:$0xff] %v461
            %v463 = vld [vmem:[%s389 + $0x120] sm:$0xff]
            %464 = vst [vmem:[%s390 + $0x120] sm:$0xff] %v463
            %v465 = vld [vmem:[%s389 + $0x128] sm:$0xff]
            %466 = vst [vmem:[%s390 + $0x128] sm:$0xff] %v465
            %v467 = vld [vmem:[%s389 + $0x130] sm:$0xff]
            %468 = vst [vmem:[%s390 + $0x130] sm:$0xff] %v467
            %v469 = vld [vmem:[%s389 + $0x138] sm:$0xff]
            %470 = vst [vmem:[%s390 + $0x138] sm:$0xff] %v469
            %v471 = vld [vmem:[%s389 + $0x140] sm:$0xff]
            %472 = vst [vmem:[%s390 + $0x140] sm:$0xff] %v471
            %v473 = vld [vmem:[%s389 + $0x148] sm:$0xff]
            %474 = vst [vmem:[%s390 + $0x148] sm:$0xff] %v473
            %v475 = vld [vmem:[%s389 + $0x150] sm:$0xff]
            %476 = vst [vmem:[%s390 + $0x150] sm:$0xff] %v475
            %v477 = vld [vmem:[%s389 + $0x158] sm:$0xff]
            %478 = vst [vmem:[%s390 + $0x158] sm:$0xff] %v477
            %v479 = vld [vmem:[%s389 + $0x160] sm:$0xff]
            %480 = vst [vmem:[%s390 + $0x160] sm:$0xff] %v479
            %v481 = vld [vmem:[%s389 + $0x168] sm:$0xff]
            %482 = vst [vmem:[%s390 + $0x168] sm:$0xff] %v481
            %v483 = vld [vmem:[%s389 + $0x170] sm:$0xff]
            %484 = vst [vmem:[%s390 + $0x170] sm:$0xff] %v483
            %v485 = vld [vmem:[%s389 + $0x178] sm:$0xff]
            %486 = vst [vmem:[%s390 + $0x178] sm:$0xff] %v485
            %v487 = vld [vmem:[%s389 + $0x180] sm:$0xff]
            %488 = vst [vmem:[%s390 + $0x180] sm:$0xff] %v487
            %v489 = vld [vmem:[%s389 + $0x188] sm:$0xff]
            %490 = vst [vmem:[%s390 + $0x188] sm:$0xff] %v489
            %v491 = vld [vmem:[%s389 + $0x190] sm:$0xff]
            %492 = vst [vmem:[%s390 + $0x190] sm:$0xff] %v491
            %v493 = vld [vmem:[%s389 + $0x198] sm:$0xff]
            %494 = vst [vmem:[%s390 + $0x198] sm:$0xff] %v493
            %v495 = vld [vmem:[%s389 + $0x1a0] sm:$0xff]
            %496 = vst [vmem:[%s390 + $0x1a0] sm:$0xff] %v495
            %v497 = vld [vmem:[%s389 + $0x1a8] sm:$0xff]
            %498 = vst [vmem:[%s390 + $0x1a8] sm:$0xff] %v497
            %v499 = vld [vmem:[%s389 + $0x1b0] sm:$0xff]
            %500 = vst [vmem:[%s390 + $0x1b0] sm:$0xff] %v499
            %v501 = vld [vmem:[%s389 + $0x1b8] sm:$0xff]
            %502 = vst [vmem:[%s390 + $0x1b8] sm:$0xff] %v501
            %v503 = vld [vmem:[%s389 + $0x1c0] sm:$0xff]
            %504 = vst [vmem:[%s390 + $0x1c0] sm:$0xff] %v503
            %v505 = vld [vmem:[%s389 + $0x1c8] sm:$0xff]
            %506 = vst [vmem:[%s390 + $0x1c8] sm:$0xff] %v505
            %v507 = vld [vmem:[%s389 + $0x1d0] sm:$0xff]
            %508 = vst [vmem:[%s390 + $0x1d0] sm:$0xff] %v507
            %v509 = vld [vmem:[%s389 + $0x1d8] sm:$0xff]
            %510 = vst [vmem:[%s390 + $0x1d8] sm:$0xff] %v509
            %v511 = vld [vmem:[%s389 + $0x1e0] sm:$0xff]
            %512 = vst [vmem:[%s390 + $0x1e0] sm:$0xff] %v511
            %v513 = vld [vmem:[%s389 + $0x1e8] sm:$0xff]
            %514 = vst [vmem:[%s390 + $0x1e8] sm:$0xff] %v513
            %v515 = vld [vmem:[%s389 + $0x1f0] sm:$0xff]
            %516 = vst [vmem:[%s390 + $0x1f0] sm:$0xff] %v515
            %v517 = vld [vmem:[%s389 + $0x1f8] sm:$0xff]
            %518 = vst [vmem:[%s390 + $0x1f8] sm:$0xff] %v517
            %v519 = vld [vmem:[%s389 + $0x200] sm:$0xff]
            %520 = vst [vmem:[%s390 + $0x200] sm:$0xff] %v519
            %v521 = vld [vmem:[%s389 + $0x208] sm:$0xff]
            %522 = vst [vmem:[%s390 + $0x208] sm:$0xff] %v521
            %v523 = vld [vmem:[%s389 + $0x210] sm:$0xff]
            %524 = vst [vmem:[%s390 + $0x210] sm:$0xff] %v523
            %v525 = vld [vmem:[%s389 + $0x218] sm:$0xff]
            %526 = vst [vmem:[%s390 + $0x218] sm:$0xff] %v525
            %v527 = vld [vmem:[%s389 + $0x220] sm:$0xff]
            %528 = vst [vmem:[%s390 + $0x220] sm:$0xff] %v527
            %v529 = vld [vmem:[%s389 + $0x228] sm:$0xff]
            %530 = vst [vmem:[%s390 + $0x228] sm:$0xff] %v529
            %v531 = vld [vmem:[%s389 + $0x230] sm:$0xff]
            %532 = vst [vmem:[%s390 + $0x230] sm:$0xff] %v531
            %v533 = vld [vmem:[%s389 + $0x238] sm:$0xff]
            %534 = vst [vmem:[%s390 + $0x238] sm:$0xff] %v533
            %v535 = vld [vmem:[%s389 + $0x240] sm:$0xff]
            %536 = vst [vmem:[%s390 + $0x240] sm:$0xff] %v535
            %v537 = vld [vmem:[%s389 + $0x248] sm:$0xff]
            %538 = vst [vmem:[%s390 + $0x248] sm:$0xff] %v537
            %v539 = vld [vmem:[%s389 + $0x250] sm:$0xff]
            %540 = vst [vmem:[%s390 + $0x250] sm:$0xff] %v539
            %v541 = vld [vmem:[%s389 + $0x258] sm:$0xff]
            %542 = vst [vmem:[%s390 + $0x258] sm:$0xff] %v541
            %v543 = vld [vmem:[%s389 + $0x260] sm:$0xff]
            %544 = vst [vmem:[%s390 + $0x260] sm:$0xff] %v543
            %v545 = vld [vmem:[%s389 + $0x268] sm:$0xff]
            %546 = vst [vmem:[%s390 + $0x268] sm:$0xff] %v545
            %v547 = vld [vmem:[%s389 + $0x270] sm:$0xff]
            %548 = vst [vmem:[%s390 + $0x270] sm:$0xff] %v547
            %v549 = vld [vmem:[%s389 + $0x278] sm:$0xff]
            %550 = vst [vmem:[%s390 + $0x278] sm:$0xff] %v549
            %v551 = vld [vmem:[%s389 + $0x280] sm:$0xff]
            %552 = vst [vmem:[%s390 + $0x280] sm:$0xff] %v551
            %v553 = vld [vmem:[%s389 + $0x288] sm:$0xff]
            %554 = vst [vmem:[%s390 + $0x288] sm:$0xff] %v553
            %v555 = vld [vmem:[%s389 + $0x290] sm:$0xff]
            %556 = vst [vmem:[%s390 + $0x290] sm:$0xff] %v555
            %v557 = vld [vmem:[%s389 + $0x298] sm:$0xff]
            %558 = vst [vmem:[%s390 + $0x298] sm:$0xff] %v557
            %v559 = vld [vmem:[%s389 + $0x2a0] sm:$0xff]
            %560 = vst [vmem:[%s390 + $0x2a0] sm:$0xff] %v559
            %v561 = vld [vmem:[%s389 + $0x2a8] sm:$0xff]
            %562 = vst [vmem:[%s390 + $0x2a8] sm:$0xff] %v561
            %v563 = vld [vmem:[%s389 + $0x2b0] sm:$0xff]
            %564 = vst [vmem:[%s390 + $0x2b0] sm:$0xff] %v563
            %v565 = vld [vmem:[%s389 + $0x2b8] sm:$0xff]
            %566 = vst [vmem:[%s390 + $0x2b8] sm:$0xff] %v565
            %v567 = vld [vmem:[%s389 + $0x2c0] sm:$0xff]
            %568 = vst [vmem:[%s390 + $0x2c0] sm:$0xff] %v567
            %v569 = vld [vmem:[%s389 + $0x2c8] sm:$0xff]
            %570 = vst [vmem:[%s390 + $0x2c8] sm:$0xff] %v569
            %v571 = vld [vmem:[%s389 + $0x2d0] sm:$0xff]
            %572 = vst [vmem:[%s390 + $0x2d0] sm:$0xff] %v571
            %v573 = vld [vmem:[%s389 + $0x2d8] sm:$0xff]
            %574 = vst [vmem:[%s390 + $0x2d8] sm:$0xff] %v573
            %v575 = vld [vmem:[%s389 + $0x2e0] sm:$0xff]
            %576 = vst [vmem:[%s390 + $0x2e0] sm:$0xff] %v575
            %v577 = vld [vmem:[%s389 + $0x2e8] sm:$0xff]
            %578 = vst [vmem:[%s390 + $0x2e8] sm:$0xff] %v577
            %v579 = vld [vmem:[%s389 + $0x2f0] sm:$0xff]
            %580 = vst [vmem:[%s390 + $0x2f0] sm:$0xff] %v579
            %v581 = vld [vmem:[%s389 + $0x2f8] sm:$0xff]
            %582 = vst [vmem:[%s390 + $0x2f8] sm:$0xff] %v581
            %v583 = vld [vmem:[%s389 + $0x300] sm:$0xff]
            %584 = vst [vmem:[%s390 + $0x300] sm:$0xff] %v583
            %v585 = vld [vmem:[%s389 + $0x308] sm:$0xff]
            %586 = vst [vmem:[%s390 + $0x308] sm:$0xff] %v585
            %v587 = vld [vmem:[%s389 + $0x310] sm:$0xff]
            %588 = vst [vmem:[%s390 + $0x310] sm:$0xff] %v587
            %v589 = vld [vmem:[%s389 + $0x318] sm:$0xff]
            %590 = vst [vmem:[%s390 + $0x318] sm:$0xff] %v589
            %v591 = vld [vmem:[%s389 + $0x320] sm:$0xff]
            %592 = vst [vmem:[%s390 + $0x320] sm:$0xff] %v591
            %v593 = vld [vmem:[%s389 + $0x328] sm:$0xff]
            %594 = vst [vmem:[%s390 + $0x328] sm:$0xff] %v593
            %v595 = vld [vmem:[%s389 + $0x330] sm:$0xff]
            %596 = vst [vmem:[%s390 + $0x330] sm:$0xff] %v595
            %v597 = vld [vmem:[%s389 + $0x338] sm:$0xff]
            %598 = vst [vmem:[%s390 + $0x338] sm:$0xff] %v597
            %v599 = vld [vmem:[%s389 + $0x340] sm:$0xff]
            %600 = vst [vmem:[%s390 + $0x340] sm:$0xff] %v599
            %v601 = vld [vmem:[%s389 + $0x348] sm:$0xff]
            %602 = vst [vmem:[%s390 + $0x348] sm:$0xff] %v601
            %v603 = vld [vmem:[%s389 + $0x350] sm:$0xff]
            %604 = vst [vmem:[%s390 + $0x350] sm:$0xff] %v603
            %v605 = vld [vmem:[%s389 + $0x358] sm:$0xff]
            %606 = vst [vmem:[%s390 + $0x358] sm:$0xff] %v605
            %v607 = vld [vmem:[%s389 + $0x360] sm:$0xff]
            %608 = vst [vmem:[%s390 + $0x360] sm:$0xff] %v607
            %v609 = vld [vmem:[%s389 + $0x368] sm:$0xff]
            %610 = vst [vmem:[%s390 + $0x368] sm:$0xff] %v609
            %v611 = vld [vmem:[%s389 + $0x370] sm:$0xff]
            %612 = vst [vmem:[%s390 + $0x370] sm:$0xff] %v611
            %v613 = vld [vmem:[%s389 + $0x378] sm:$0xff]
            %614 = vst [vmem:[%s390 + $0x378] sm:$0xff] %v613
            %v615 = vld [vmem:[%s389 + $0x380] sm:$0xff]
            %616 = vst [vmem:[%s390 + $0x380] sm:$0xff] %v615
            %v617 = vld [vmem:[%s389 + $0x388] sm:$0xff]
            %618 = vst [vmem:[%s390 + $0x388] sm:$0xff] %v617
            %v619 = vld [vmem:[%s389 + $0x390] sm:$0xff]
            %620 = vst [vmem:[%s390 + $0x390] sm:$0xff] %v619
            %v621 = vld [vmem:[%s389 + $0x398] sm:$0xff]
            %622 = vst [vmem:[%s390 + $0x398] sm:$0xff] %v621
            %v623 = vld [vmem:[%s389 + $0x3a0] sm:$0xff]
            %624 = vst [vmem:[%s390 + $0x3a0] sm:$0xff] %v623
            %v625 = vld [vmem:[%s389 + $0x3a8] sm:$0xff]
            %626 = vst [vmem:[%s390 + $0x3a8] sm:$0xff] %v625
            %v627 = vld [vmem:[%s389 + $0x3b0] sm:$0xff]
            %628 = vst [vmem:[%s390 + $0x3b0] sm:$0xff] %v627
            %v629 = vld [vmem:[%s389 + $0x3b8] sm:$0xff]
            %630 = vst [vmem:[%s390 + $0x3b8] sm:$0xff] %v629
            %v631 = vld [vmem:[%s389 + $0x3c0] sm:$0xff]
            %632 = vst [vmem:[%s390 + $0x3c0] sm:$0xff] %v631
            %v633 = vld [vmem:[%s389 + $0x3c8] sm:$0xff]
            %634 = vst [vmem:[%s390 + $0x3c8] sm:$0xff] %v633
            %v635 = vld [vmem:[%s389 + $0x3d0] sm:$0xff]
            %636 = vst [vmem:[%s390 + $0x3d0] sm:$0xff] %v635
            %v637 = vld [vmem:[%s389 + $0x3d8] sm:$0xff]
            %638 = vst [vmem:[%s390 + $0x3d8] sm:$0xff] %v637
            %v639 = vld [vmem:[%s389 + $0x3e0] sm:$0xff]
            %640 = vst [vmem:[%s390 + $0x3e0] sm:$0xff] %v639
            %v641 = vld [vmem:[%s389 + $0x3e8] sm:$0xff]
            %642 = vst [vmem:[%s390 + $0x3e8] sm:$0xff] %v641
            %v643 = vld [vmem:[%s389 + $0x3f0] sm:$0xff]
            %644 = vst [vmem:[%s390 + $0x3f0] sm:$0xff] %v643
            %v645 = vld [vmem:[%s389 + $0x3f8] sm:$0xff]
            %646 = vst [vmem:[%s390 + $0x3f8] sm:$0xff] %v645
            %v647 = vld [vmem:[%s389 + $0x400] sm:$0xff]
            %648 = vst [vmem:[%s390 + $0x400] sm:$0xff] %v647
            %v649 = vld [vmem:[%s389 + $0x408] sm:$0xff]
            %650 = vst [vmem:[%s390 + $0x408] sm:$0xff] %v649
            %v651 = vld [vmem:[%s389 + $0x410] sm:$0xff]
            %652 = vst [vmem:[%s390 + $0x410] sm:$0xff] %v651
            %v653 = vld [vmem:[%s389 + $0x418] sm:$0xff]
            %654 = vst [vmem:[%s390 + $0x418] sm:$0xff] %v653
            %v655 = vld [vmem:[%s389 + $0x420] sm:$0xff]
            %656 = vst [vmem:[%s390 + $0x420] sm:$0xff] %v655
            %v657 = vld [vmem:[%s389 + $0x428] sm:$0xff]
            %658 = vst [vmem:[%s390 + $0x428] sm:$0xff] %v657
            %v659 = vld [vmem:[%s389 + $0x430] sm:$0xff]
            %660 = vst [vmem:[%s390 + $0x430] sm:$0xff] %v659
            %v661 = vld [vmem:[%s389 + $0x438] sm:$0xff]
            %662 = vst [vmem:[%s390 + $0x438] sm:$0xff] %v661
            %v663 = vld [vmem:[%s389 + $0x440] sm:$0xff]
            %664 = vst [vmem:[%s390 + $0x440] sm:$0xff] %v663
            %v665 = vld [vmem:[%s389 + $0x448] sm:$0xff]
            %666 = vst [vmem:[%s390 + $0x448] sm:$0xff] %v665
            %v667 = vld [vmem:[%s389 + $0x450] sm:$0xff]
            %668 = vst [vmem:[%s390 + $0x450] sm:$0xff] %v667
            %v669 = vld [vmem:[%s389 + $0x458] sm:$0xff]
            %670 = vst [vmem:[%s390 + $0x458] sm:$0xff] %v669
            %v671 = vld [vmem:[%s389 + $0x460] sm:$0xff]
            %672 = vst [vmem:[%s390 + $0x460] sm:$0xff] %v671
            %v673 = vld [vmem:[%s389 + $0x468] sm:$0xff]
            %674 = vst [vmem:[%s390 + $0x468] sm:$0xff] %v673
            %v675 = vld [vmem:[%s389 + $0x470] sm:$0xff]
            %676 = vst [vmem:[%s390 + $0x470] sm:$0xff] %v675
            %v677 = vld [vmem:[%s389 + $0x478] sm:$0xff]
            %678 = vst [vmem:[%s390 + $0x478] sm:$0xff] %v677
            %v679 = vld [vmem:[%s389 + $0x480] sm:$0xff]
            %680 = vst [vmem:[%s390 + $0x480] sm:$0xff] %v679
            %v681 = vld [vmem:[%s389 + $0x488] sm:$0xff]
            %682 = vst [vmem:[%s390 + $0x488] sm:$0xff] %v681
            %v683 = vld [vmem:[%s389 + $0x490] sm:$0xff]
            %684 = vst [vmem:[%s390 + $0x490] sm:$0xff] %v683
            %v685 = vld [vmem:[%s389 + $0x498] sm:$0xff]
            %686 = vst [vmem:[%s390 + $0x498] sm:$0xff] %v685
            %v687 = vld [vmem:[%s389 + $0x4a0] sm:$0xff]
            %688 = vst [vmem:[%s390 + $0x4a0] sm:$0xff] %v687
            %v689 = vld [vmem:[%s389 + $0x4a8] sm:$0xff]
            %690 = vst [vmem:[%s390 + $0x4a8] sm:$0xff] %v689
            %v691 = vld [vmem:[%s389 + $0x4b0] sm:$0xff]
            %692 = vst [vmem:[%s390 + $0x4b0] sm:$0xff] %v691
            %v693 = vld [vmem:[%s389 + $0x4b8] sm:$0xff]
            %694 = vst [vmem:[%s390 + $0x4b8] sm:$0xff] %v693
            %v695 = vld [vmem:[%s389 + $0x4c0] sm:$0xff]
            %696 = vst [vmem:[%s390 + $0x4c0] sm:$0xff] %v695
            %v697 = vld [vmem:[%s389 + $0x4c8] sm:$0xff]
            %698 = vst [vmem:[%s390 + $0x4c8] sm:$0xff] %v697
            %v699 = vld [vmem:[%s389 + $0x4d0] sm:$0xff]
            %700 = vst [vmem:[%s390 + $0x4d0] sm:$0xff] %v699
            %v701 = vld [vmem:[%s389 + $0x4d8] sm:$0xff]
            %702 = vst [vmem:[%s390 + $0x4d8] sm:$0xff] %v701
            %v703 = vld [vmem:[%s389 + $0x4e0] sm:$0xff]
            %704 = vst [vmem:[%s390 + $0x4e0] sm:$0xff] %v703
            %v705 = vld [vmem:[%s389 + $0x4e8] sm:$0xff]
            %706 = vst [vmem:[%s390 + $0x4e8] sm:$0xff] %v705
            %v707 = vld [vmem:[%s389 + $0x4f0] sm:$0xff]
            %708 = vst [vmem:[%s390 + $0x4f0] sm:$0xff] %v707
            %v709 = vld [vmem:[%s389 + $0x4f8] sm:$0xff]
            %710 = vst [vmem:[%s390 + $0x4f8] sm:$0xff] %v709
            %v711 = vld [vmem:[%s389 + $0x500] sm:$0xff]
            %712 = vst [vmem:[%s390 + $0x500] sm:$0xff] %v711
            %v713 = vld [vmem:[%s389 + $0x508] sm:$0xff]
            %714 = vst [vmem:[%s390 + $0x508] sm:$0xff] %v713
            %v715 = vld [vmem:[%s389 + $0x510] sm:$0xff]
            %716 = vst [vmem:[%s390 + $0x510] sm:$0xff] %v715
            %v717 = vld [vmem:[%s389 + $0x518] sm:$0xff]
            %718 = vst [vmem:[%s390 + $0x518] sm:$0xff] %v717
            %v719 = vld [vmem:[%s389 + $0x520] sm:$0xff]
            %720 = vst [vmem:[%s390 + $0x520] sm:$0xff] %v719
            %v721 = vld [vmem:[%s389 + $0x528] sm:$0xff]
            %722 = vst [vmem:[%s390 + $0x528] sm:$0xff] %v721
            %v723 = vld [vmem:[%s389 + $0x530] sm:$0xff]
            %724 = vst [vmem:[%s390 + $0x530] sm:$0xff] %v723
            %v725 = vld [vmem:[%s389 + $0x538] sm:$0xff]
            %726 = vst [vmem:[%s390 + $0x538] sm:$0xff] %v725
            %v727 = vld [vmem:[%s389 + $0x540] sm:$0xff]
            %728 = vst [vmem:[%s390 + $0x540] sm:$0xff] %v727
            %v729 = vld [vmem:[%s389 + $0x548] sm:$0xff]
            %730 = vst [vmem:[%s390 + $0x548] sm:$0xff] %v729
            %v731 = vld [vmem:[%s389 + $0x550] sm:$0xff]
            %732 = vst [vmem:[%s390 + $0x550] sm:$0xff] %v731
            %v733 = vld [vmem:[%s389 + $0x558] sm:$0xff]
            %734 = vst [vmem:[%s390 + $0x558] sm:$0xff] %v733
            %v735 = vld [vmem:[%s389 + $0x560] sm:$0xff]
            %736 = vst [vmem:[%s390 + $0x560] sm:$0xff] %v735
            %v737 = vld [vmem:[%s389 + $0x568] sm:$0xff]
            %738 = vst [vmem:[%s390 + $0x568] sm:$0xff] %v737
            %v739 = vld [vmem:[%s389 + $0x570] sm:$0xff]
            %740 = vst [vmem:[%s390 + $0x570] sm:$0xff] %v739
            %v741 = vld [vmem:[%s389 + $0x578] sm:$0xff]
            %742 = vst [vmem:[%s390 + $0x578] sm:$0xff] %v741
            %v743 = vld [vmem:[%s389 + $0x580] sm:$0xff]
            %744 = vst [vmem:[%s390 + $0x580] sm:$0xff] %v743
            %v745 = vld [vmem:[%s389 + $0x588] sm:$0xff]
            %746 = vst [vmem:[%s390 + $0x588] sm:$0xff] %v745
            %v747 = vld [vmem:[%s389 + $0x590] sm:$0xff]
            %748 = vst [vmem:[%s390 + $0x590] sm:$0xff] %v747
            %v749 = vld [vmem:[%s389 + $0x598] sm:$0xff]
            %750 = vst [vmem:[%s390 + $0x598] sm:$0xff] %v749
            %v751 = vld [vmem:[%s389 + $0x5a0] sm:$0xff]
            %752 = vst [vmem:[%s390 + $0x5a0] sm:$0xff] %v751
            %v753 = vld [vmem:[%s389 + $0x5a8] sm:$0xff]
            %754 = vst [vmem:[%s390 + $0x5a8] sm:$0xff] %v753
            %v755 = vld [vmem:[%s389 + $0x5b0] sm:$0xff]
            %756 = vst [vmem:[%s390 + $0x5b0] sm:$0xff] %v755
            %v757 = vld [vmem:[%s389 + $0x5b8] sm:$0xff]
            %758 = vst [vmem:[%s390 + $0x5b8] sm:$0xff] %v757
            %v759 = vld [vmem:[%s389 + $0x5c0] sm:$0xff]
            %760 = vst [vmem:[%s390 + $0x5c0] sm:$0xff] %v759
            %v761 = vld [vmem:[%s389 + $0x5c8] sm:$0xff]
            %762 = vst [vmem:[%s390 + $0x5c8] sm:$0xff] %v761
            %v763 = vld [vmem:[%s389 + $0x5d0] sm:$0xff]
            %764 = vst [vmem:[%s390 + $0x5d0] sm:$0xff] %v763
            %v765 = vld [vmem:[%s389 + $0x5d8] sm:$0xff]
            %766 = vst [vmem:[%s390 + $0x5d8] sm:$0xff] %v765
            %v767 = vld [vmem:[%s389 + $0x5e0] sm:$0xff]
            %768 = vst [vmem:[%s390 + $0x5e0] sm:$0xff] %v767
            %v769 = vld [vmem:[%s389 + $0x5e8] sm:$0xff]
            %770 = vst [vmem:[%s390 + $0x5e8] sm:$0xff] %v769
            %v771 = vld [vmem:[%s389 + $0x5f0] sm:$0xff]
            %772 = vst [vmem:[%s390 + $0x5f0] sm:$0xff] %v771
            %v773 = vld [vmem:[%s389 + $0x5f8] sm:$0xff]
            %774 = vst [vmem:[%s390 + $0x5f8] sm:$0xff] %v773
            %v775 = vld [vmem:[%s389 + $0x600] sm:$0xff]
            %776 = vst [vmem:[%s390 + $0x600] sm:$0xff] %v775
            %v777 = vld [vmem:[%s389 + $0x608] sm:$0xff]
            %778 = vst [vmem:[%s390 + $0x608] sm:$0xff] %v777
            %v779 = vld [vmem:[%s389 + $0x610] sm:$0xff]
            %780 = vst [vmem:[%s390 + $0x610] sm:$0xff] %v779
            %v781 = vld [vmem:[%s389 + $0x618] sm:$0xff]
            %782 = vst [vmem:[%s390 + $0x618] sm:$0xff] %v781
            %v783 = vld [vmem:[%s389 + $0x620] sm:$0xff]
            %784 = vst [vmem:[%s390 + $0x620] sm:$0xff] %v783
            %v785 = vld [vmem:[%s389 + $0x628] sm:$0xff]
            %786 = vst [vmem:[%s390 + $0x628] sm:$0xff] %v785
            %v787 = vld [vmem:[%s389 + $0x630] sm:$0xff]
            %788 = vst [vmem:[%s390 + $0x630] sm:$0xff] %v787
            %v789 = vld [vmem:[%s389 + $0x638] sm:$0xff]
            %790 = vst [vmem:[%s390 + $0x638] sm:$0xff] %v789
            %v791 = vld [vmem:[%s389 + $0x640] sm:$0xff]
            %792 = vst [vmem:[%s390 + $0x640] sm:$0xff] %v791
            %v793 = vld [vmem:[%s389 + $0x648] sm:$0xff]
            %794 = vst [vmem:[%s390 + $0x648] sm:$0xff] %v793
            %v795 = vld [vmem:[%s389 + $0x650] sm:$0xff]
            %796 = vst [vmem:[%s390 + $0x650] sm:$0xff] %v795
            %v797 = vld [vmem:[%s389 + $0x658] sm:$0xff]
            %798 = vst [vmem:[%s390 + $0x658] sm:$0xff] %v797
            %v799 = vld [vmem:[%s389 + $0x660] sm:$0xff]
            %800 = vst [vmem:[%s390 + $0x660] sm:$0xff] %v799
            %v801 = vld [vmem:[%s389 + $0x668] sm:$0xff]
            %802 = vst [vmem:[%s390 + $0x668] sm:$0xff] %v801
            %v803 = vld [vmem:[%s389 + $0x670] sm:$0xff]
            %804 = vst [vmem:[%s390 + $0x670] sm:$0xff] %v803
            %v805 = vld [vmem:[%s389 + $0x678] sm:$0xff]
            %806 = vst [vmem:[%s390 + $0x678] sm:$0xff] %v805
            %v807 = vld [vmem:[%s389 + $0x680] sm:$0xff]
            %808 = vst [vmem:[%s390 + $0x680] sm:$0xff] %v807
            %v809 = vld [vmem:[%s389 + $0x688] sm:$0xff]
            %810 = vst [vmem:[%s390 + $0x688] sm:$0xff] %v809
            %v811 = vld [vmem:[%s389 + $0x690] sm:$0xff]
            %812 = vst [vmem:[%s390 + $0x690] sm:$0xff] %v811
            %v813 = vld [vmem:[%s389 + $0x698] sm:$0xff]
            %814 = vst [vmem:[%s390 + $0x698] sm:$0xff] %v813
            %v815 = vld [vmem:[%s389 + $0x6a0] sm:$0xff]
            %816 = vst [vmem:[%s390 + $0x6a0] sm:$0xff] %v815
            %v817 = vld [vmem:[%s389 + $0x6a8] sm:$0xff]
            %818 = vst [vmem:[%s390 + $0x6a8] sm:$0xff] %v817
            %v819 = vld [vmem:[%s389 + $0x6b0] sm:$0xff]
            %820 = vst [vmem:[%s390 + $0x6b0] sm:$0xff] %v819
            %v821 = vld [vmem:[%s389 + $0x6b8] sm:$0xff]
            %822 = vst [vmem:[%s390 + $0x6b8] sm:$0xff] %v821
            %v823 = vld [vmem:[%s389 + $0x6c0] sm:$0xff]
            %824 = vst [vmem:[%s390 + $0x6c0] sm:$0xff] %v823
            %v825 = vld [vmem:[%s389 + $0x6c8] sm:$0xff]
            %826 = vst [vmem:[%s390 + $0x6c8] sm:$0xff] %v825
            %v827 = vld [vmem:[%s389 + $0x6d0] sm:$0xff]
            %828 = vst [vmem:[%s390 + $0x6d0] sm:$0xff] %v827
            %v829 = vld [vmem:[%s389 + $0x6d8] sm:$0xff]
            %830 = vst [vmem:[%s390 + $0x6d8] sm:$0xff] %v829
            %v831 = vld [vmem:[%s389 + $0x6e0] sm:$0xff]
            %832 = vst [vmem:[%s390 + $0x6e0] sm:$0xff] %v831
            %v833 = vld [vmem:[%s389 + $0x6e8] sm:$0xff]
            %834 = vst [vmem:[%s390 + $0x6e8] sm:$0xff] %v833
            %v835 = vld [vmem:[%s389 + $0x6f0] sm:$0xff]
            %836 = vst [vmem:[%s390 + $0x6f0] sm:$0xff] %v835
            %v837 = vld [vmem:[%s389 + $0x6f8] sm:$0xff]
            %838 = vst [vmem:[%s390 + $0x6f8] sm:$0xff] %v837
            %v839 = vld [vmem:[%s389 + $0x700] sm:$0xff]
            %840 = vst [vmem:[%s390 + $0x700] sm:$0xff] %v839
            %v841 = vld [vmem:[%s389 + $0x708] sm:$0xff]
            %842 = vst [vmem:[%s390 + $0x708] sm:$0xff] %v841
            %v843 = vld [vmem:[%s389 + $0x710] sm:$0xff]
            %844 = vst [vmem:[%s390 + $0x710] sm:$0xff] %v843
            %v845 = vld [vmem:[%s389 + $0x718] sm:$0xff]
            %846 = vst [vmem:[%s390 + $0x718] sm:$0xff] %v845
            %v847 = vld [vmem:[%s389 + $0x720] sm:$0xff]
            %848 = vst [vmem:[%s390 + $0x720] sm:$0xff] %v847
            %v849 = vld [vmem:[%s389 + $0x728] sm:$0xff]
            %850 = vst [vmem:[%s390 + $0x728] sm:$0xff] %v849
            %v851 = vld [vmem:[%s389 + $0x730] sm:$0xff]
            %852 = vst [vmem:[%s390 + $0x730] sm:$0xff] %v851
            %v853 = vld [vmem:[%s389 + $0x738] sm:$0xff]
            %854 = vst [vmem:[%s390 + $0x738] sm:$0xff] %v853
            %v855 = vld [vmem:[%s389 + $0x740] sm:$0xff]
            %856 = vst [vmem:[%s390 + $0x740] sm:$0xff] %v855
            %v857 = vld [vmem:[%s389 + $0x748] sm:$0xff]
            %858 = vst [vmem:[%s390 + $0x748] sm:$0xff] %v857
            %v859 = vld [vmem:[%s389 + $0x750] sm:$0xff]
            %860 = vst [vmem:[%s390 + $0x750] sm:$0xff] %v859
            %v861 = vld [vmem:[%s389 + $0x758] sm:$0xff]
            %862 = vst [vmem:[%s390 + $0x758] sm:$0xff] %v861
            %v863 = vld [vmem:[%s389 + $0x760] sm:$0xff]
            %864 = vst [vmem:[%s390 + $0x760] sm:$0xff] %v863
            %v865 = vld [vmem:[%s389 + $0x768] sm:$0xff]
            %866 = vst [vmem:[%s390 + $0x768] sm:$0xff] %v865
            %v867 = vld [vmem:[%s389 + $0x770] sm:$0xff]
            %868 = vst [vmem:[%s390 + $0x770] sm:$0xff] %v867
            %v869 = vld [vmem:[%s389 + $0x778] sm:$0xff]
            %870 = vst [vmem:[%s390 + $0x778] sm:$0xff] %v869
            %v871 = vld [vmem:[%s389 + $0x780] sm:$0xff]
            %872 = vst [vmem:[%s390 + $0x780] sm:$0xff] %v871
            %v873 = vld [vmem:[%s389 + $0x788] sm:$0xff]
            %874 = vst [vmem:[%s390 + $0x788] sm:$0xff] %v873
            %v875 = vld [vmem:[%s389 + $0x790] sm:$0xff]
            %876 = vst [vmem:[%s390 + $0x790] sm:$0xff] %v875
            %v877 = vld [vmem:[%s389 + $0x798] sm:$0xff]
            %878 = vst [vmem:[%s390 + $0x798] sm:$0xff] %v877
            %v879 = vld [vmem:[%s389 + $0x7a0] sm:$0xff]
            %880 = vst [vmem:[%s390 + $0x7a0] sm:$0xff] %v879
            %v881 = vld [vmem:[%s389 + $0x7a8] sm:$0xff]
            %882 = vst [vmem:[%s390 + $0x7a8] sm:$0xff] %v881
            %v883 = vld [vmem:[%s389 + $0x7b0] sm:$0xff]
            %884 = vst [vmem:[%s390 + $0x7b0] sm:$0xff] %v883
            %v885 = vld [vmem:[%s389 + $0x7b8] sm:$0xff]
            %886 = vst [vmem:[%s390 + $0x7b8] sm:$0xff] %v885
            %v887 = vld [vmem:[%s389 + $0x7c0] sm:$0xff]
            %888 = vst [vmem:[%s390 + $0x7c0] sm:$0xff] %v887
            %v889 = vld [vmem:[%s389 + $0x7c8] sm:$0xff]
            %890 = vst [vmem:[%s390 + $0x7c8] sm:$0xff] %v889
            %v891 = vld [vmem:[%s389 + $0x7d0] sm:$0xff]
            %892 = vst [vmem:[%s390 + $0x7d0] sm:$0xff] %v891
            %v893 = vld [vmem:[%s389 + $0x7d8] sm:$0xff]
            %894 = vst [vmem:[%s390 + $0x7d8] sm:$0xff] %v893
            %v895 = vld [vmem:[%s389 + $0x7e0] sm:$0xff]
            %896 = vst [vmem:[%s390 + $0x7e0] sm:$0xff] %v895
            %v897 = vld [vmem:[%s389 + $0x7e8] sm:$0xff]
            %898 = vst [vmem:[%s390 + $0x7e8] sm:$0xff] %v897
            %v899 = vld [vmem:[%s389 + $0x7f0] sm:$0xff]
            %900 = vst [vmem:[%s390 + $0x7f0] sm:$0xff] %v899
            %v901 = vld [vmem:[%s389 + $0x7f8] sm:$0xff]
            %902 = vst [vmem:[%s390 + $0x7f8] sm:$0xff] %v901
            %v903 = vld [vmem:[%s389 + $0x800] sm:$0xff]
            %904 = vst [vmem:[%s390 + $0x800] sm:$0xff] %v903
            %v905 = vld [vmem:[%s389 + $0x808] sm:$0xff]
            %906 = vst [vmem:[%s390 + $0x808] sm:$0xff] %v905
            %v907 = vld [vmem:[%s389 + $0x810] sm:$0xff]
            %908 = vst [vmem:[%s390 + $0x810] sm:$0xff] %v907
            %v909 = vld [vmem:[%s389 + $0x818] sm:$0xff]
            %910 = vst [vmem:[%s390 + $0x818] sm:$0xff] %v909
            %v911 = vld [vmem:[%s389 + $0x820] sm:$0xff]
            %912 = vst [vmem:[%s390 + $0x820] sm:$0xff] %v911
            %v913 = vld [vmem:[%s389 + $0x828] sm:$0xff]
            %914 = vst [vmem:[%s390 + $0x828] sm:$0xff] %v913
            %v915 = vld [vmem:[%s389 + $0x830] sm:$0xff]
            %916 = vst [vmem:[%s390 + $0x830] sm:$0xff] %v915
            %v917 = vld [vmem:[%s389 + $0x838] sm:$0xff]
            %918 = vst [vmem:[%s390 + $0x838] sm:$0xff] %v917
            %v919 = vld [vmem:[%s389 + $0x840] sm:$0xff]
            %920 = vst [vmem:[%s390 + $0x840] sm:$0xff] %v919
            %v921 = vld [vmem:[%s389 + $0x848] sm:$0xff]
            %922 = vst [vmem:[%s390 + $0x848] sm:$0xff] %v921
            %v923 = vld [vmem:[%s389 + $0x850] sm:$0xff]
            %924 = vst [vmem:[%s390 + $0x850] sm:$0xff] %v923
            %v925 = vld [vmem:[%s389 + $0x858] sm:$0xff]
            %926 = vst [vmem:[%s390 + $0x858] sm:$0xff] %v925
            %v927 = vld [vmem:[%s389 + $0x860] sm:$0xff]
            %928 = vst [vmem:[%s390 + $0x860] sm:$0xff] %v927
            %v929 = vld [vmem:[%s389 + $0x868] sm:$0xff]
            %930 = vst [vmem:[%s390 + $0x868] sm:$0xff] %v929
            %v931 = vld [vmem:[%s389 + $0x870] sm:$0xff]
            %932 = vst [vmem:[%s390 + $0x870] sm:$0xff] %v931
            %v933 = vld [vmem:[%s389 + $0x878] sm:$0xff]
            %934 = vst [vmem:[%s390 + $0x878] sm:$0xff] %v933
            %v935 = vld [vmem:[%s389 + $0x880] sm:$0xff]
            %936 = vst [vmem:[%s390 + $0x880] sm:$0xff] %v935
            %v937 = vld [vmem:[%s389 + $0x888] sm:$0xff]
            %938 = vst [vmem:[%s390 + $0x888] sm:$0xff] %v937
            %v939 = vld [vmem:[%s389 + $0x890] sm:$0xff]
            %940 = vst [vmem:[%s390 + $0x890] sm:$0xff] %v939
            %v941 = vld [vmem:[%s389 + $0x898] sm:$0xff]
            %942 = vst [vmem:[%s390 + $0x898] sm:$0xff] %v941
            %v943 = vld [vmem:[%s389 + $0x8a0] sm:$0xff]
            %944 = vst [vmem:[%s390 + $0x8a0] sm:$0xff] %v943
            %v945 = vld [vmem:[%s389 + $0x8a8] sm:$0xff]
            %946 = vst [vmem:[%s390 + $0x8a8] sm:$0xff] %v945
            %v947 = vld [vmem:[%s389 + $0x8b0] sm:$0xff]
            %948 = vst [vmem:[%s390 + $0x8b0] sm:$0xff] %v947
            %v949 = vld [vmem:[%s389 + $0x8b8] sm:$0xff]
            %950 = vst [vmem:[%s390 + $0x8b8] sm:$0xff] %v949
            %v951 = vld [vmem:[%s389 + $0x8c0] sm:$0xff]
            %952 = vst [vmem:[%s390 + $0x8c0] sm:$0xff] %v951
            %v953 = vld [vmem:[%s389 + $0x8c8] sm:$0xff]
            %954 = vst [vmem:[%s390 + $0x8c8] sm:$0xff] %v953
            %v955 = vld [vmem:[%s389 + $0x8d0] sm:$0xff]
            %956 = vst [vmem:[%s390 + $0x8d0] sm:$0xff] %v955
            %v957 = vld [vmem:[%s389 + $0x8d8] sm:$0xff]
            %958 = vst [vmem:[%s390 + $0x8d8] sm:$0xff] %v957
            %v959 = vld [vmem:[%s389 + $0x8e0] sm:$0xff]
            %960 = vst [vmem:[%s390 + $0x8e0] sm:$0xff] %v959
            %v961 = vld [vmem:[%s389 + $0x8e8] sm:$0xff]
            %962 = vst [vmem:[%s390 + $0x8e8] sm:$0xff] %v961
            %v963 = vld [vmem:[%s389 + $0x8f0] sm:$0xff]
            %964 = vst [vmem:[%s390 + $0x8f0] sm:$0xff] %v963
            %v965 = vld [vmem:[%s389 + $0x8f8] sm:$0xff]
            %966 = vst [vmem:[%s390 + $0x8f8] sm:$0xff] %v965
            %v967 = vld [vmem:[%s389 + $0x900] sm:$0xff]
            %968 = vst [vmem:[%s390 + $0x900] sm:$0xff] %v967
            %v969 = vld [vmem:[%s389 + $0x908] sm:$0xff]
            %970 = vst [vmem:[%s390 + $0x908] sm:$0xff] %v969
            %v971 = vld [vmem:[%s389 + $0x910] sm:$0xff]
            %972 = vst [vmem:[%s390 + $0x910] sm:$0xff] %v971
            %v973 = vld [vmem:[%s389 + $0x918] sm:$0xff]
            %974 = vst [vmem:[%s390 + $0x918] sm:$0xff] %v973
            %v975 = vld [vmem:[%s389 + $0x920] sm:$0xff]
            %976 = vst [vmem:[%s390 + $0x920] sm:$0xff] %v975
            %v977 = vld [vmem:[%s389 + $0x928] sm:$0xff]
            %978 = vst [vmem:[%s390 + $0x928] sm:$0xff] %v977
            %v979 = vld [vmem:[%s389 + $0x930] sm:$0xff]
            %980 = vst [vmem:[%s390 + $0x930] sm:$0xff] %v979
            %v981 = vld [vmem:[%s389 + $0x938] sm:$0xff]
            %982 = vst [vmem:[%s390 + $0x938] sm:$0xff] %v981
            %v983 = vld [vmem:[%s389 + $0x940] sm:$0xff]
            %984 = vst [vmem:[%s390 + $0x940] sm:$0xff] %v983
            %v985 = vld [vmem:[%s389 + $0x948] sm:$0xff]
            %986 = vst [vmem:[%s390 + $0x948] sm:$0xff] %v985
            %v987 = vld [vmem:[%s389 + $0x950] sm:$0xff]
            %988 = vst [vmem:[%s390 + $0x950] sm:$0xff] %v987
            %v989 = vld [vmem:[%s389 + $0x958] sm:$0xff]
            %990 = vst [vmem:[%s390 + $0x958] sm:$0xff] %v989
            %v991 = vld [vmem:[%s389 + $0x960] sm:$0xff]
            %992 = vst [vmem:[%s390 + $0x960] sm:$0xff] %v991
            %v993 = vld [vmem:[%s389 + $0x968] sm:$0xff]
            %994 = vst [vmem:[%s390 + $0x968] sm:$0xff] %v993
            %v995 = vld [vmem:[%s389 + $0x970] sm:$0xff]
            %996 = vst [vmem:[%s390 + $0x970] sm:$0xff] %v995
            %v997 = vld [vmem:[%s389 + $0x978] sm:$0xff]
            %998 = vst [vmem:[%s390 + $0x978] sm:$0xff] %v997
            %v999 = vld [vmem:[%s389 + $0x980] sm:$0xff]
            %1000 = vst [vmem:[%s390 + $0x980] sm:$0xff] %v999
            %v1001 = vld [vmem:[%s389 + $0x988] sm:$0xff]
            %1002 = vst [vmem:[%s390 + $0x988] sm:$0xff] %v1001
            %v1003 = vld [vmem:[%s389 + $0x990] sm:$0xff]
            %1004 = vst [vmem:[%s390 + $0x990] sm:$0xff] %v1003
            %v1005 = vld [vmem:[%s389 + $0x998] sm:$0xff]
            %1006 = vst [vmem:[%s390 + $0x998] sm:$0xff] %v1005
            %v1007 = vld [vmem:[%s389 + $0x9a0] sm:$0xff]
            %1008 = vst [vmem:[%s390 + $0x9a0] sm:$0xff] %v1007
            %v1009 = vld [vmem:[%s389 + $0x9a8] sm:$0xff]
            %1010 = vst [vmem:[%s390 + $0x9a8] sm:$0xff] %v1009
            %v1011 = vld [vmem:[%s389 + $0x9b0] sm:$0xff]
            %1012 = vst [vmem:[%s390 + $0x9b0] sm:$0xff] %v1011
            %v1013 = vld [vmem:[%s389 + $0x9b8] sm:$0xff]
            %1014 = vst [vmem:[%s390 + $0x9b8] sm:$0xff] %v1013
            %v1015 = vld [vmem:[%s389 + $0x9c0] sm:$0xff]
            %1016 = vst [vmem:[%s390 + $0x9c0] sm:$0xff] %v1015
            %v1017 = vld [vmem:[%s389 + $0x9c8] sm:$0xff]
            %1018 = vst [vmem:[%s390 + $0x9c8] sm:$0xff] %v1017
            %v1019 = vld [vmem:[%s389 + $0x9d0] sm:$0xff]
            %1020 = vst [vmem:[%s390 + $0x9d0] sm:$0xff] %v1019
            %v1021 = vld [vmem:[%s389 + $0x9d8] sm:$0xff]
            %1022 = vst [vmem:[%s390 + $0x9d8] sm:$0xff] %v1021
            %v1023 = vld [vmem:[%s389 + $0x9e0] sm:$0xff]
            %1024 = vst [vmem:[%s390 + $0x9e0] sm:$0xff] %v1023
            %v1025 = vld [vmem:[%s389 + $0x9e8] sm:$0xff]
            %1026 = vst [vmem:[%s390 + $0x9e8] sm:$0xff] %v1025
            %v1027 = vld [vmem:[%s389 + $0x9f0] sm:$0xff]
            %1028 = vst [vmem:[%s390 + $0x9f0] sm:$0xff] %v1027
            %v1029 = vld [vmem:[%s389 + $0x9f8] sm:$0xff]
            %1030 = vst [vmem:[%s390 + $0x9f8] sm:$0xff] %v1029
            %v1031 = vld [vmem:[%s389 + $0xa00] sm:$0xff]
            %1032 = vst [vmem:[%s390 + $0xa00] sm:$0xff] %v1031
            %v1033 = vld [vmem:[%s389 + $0xa08] sm:$0xff]
            %1034 = vst [vmem:[%s390 + $0xa08] sm:$0xff] %v1033
            %v1035 = vld [vmem:[%s389 + $0xa10] sm:$0xff]
            %1036 = vst [vmem:[%s390 + $0xa10] sm:$0xff] %v1035
            %v1037 = vld [vmem:[%s389 + $0xa18] sm:$0xff]
            %1038 = vst [vmem:[%s390 + $0xa18] sm:$0xff] %v1037
            %v1039 = vld [vmem:[%s389 + $0xa20] sm:$0xff]
            %1040 = vst [vmem:[%s390 + $0xa20] sm:$0xff] %v1039
            %v1041 = vld [vmem:[%s389 + $0xa28] sm:$0xff]
            %1042 = vst [vmem:[%s390 + $0xa28] sm:$0xff] %v1041
            %v1043 = vld [vmem:[%s389 + $0xa30] sm:$0xff]
            %1044 = vst [vmem:[%s390 + $0xa30] sm:$0xff] %v1043
            %v1045 = vld [vmem:[%s389 + $0xa38] sm:$0xff]
            %1046 = vst [vmem:[%s390 + $0xa38] sm:$0xff] %v1045
            %v1047 = vld [vmem:[%s389 + $0xa40] sm:$0xff]
            %1048 = vst [vmem:[%s390 + $0xa40] sm:$0xff] %v1047
            %v1049 = vld [vmem:[%s389 + $0xa48] sm:$0xff]
            %1050 = vst [vmem:[%s390 + $0xa48] sm:$0xff] %v1049
            %v1051 = vld [vmem:[%s389 + $0xa50] sm:$0xff]
            %1052 = vst [vmem:[%s390 + $0xa50] sm:$0xff] %v1051
            %v1053 = vld [vmem:[%s389 + $0xa58] sm:$0xff]
            %1054 = vst [vmem:[%s390 + $0xa58] sm:$0xff] %v1053
            %v1055 = vld [vmem:[%s389 + $0xa60] sm:$0xff]
            %1056 = vst [vmem:[%s390 + $0xa60] sm:$0xff] %v1055
            %v1057 = vld [vmem:[%s389 + $0xa68] sm:$0xff]
            %1058 = vst [vmem:[%s390 + $0xa68] sm:$0xff] %v1057
            %v1059 = vld [vmem:[%s389 + $0xa70] sm:$0xff]
            %1060 = vst [vmem:[%s390 + $0xa70] sm:$0xff] %v1059
            %v1061 = vld [vmem:[%s389 + $0xa78] sm:$0xff]
            %1062 = vst [vmem:[%s390 + $0xa78] sm:$0xff] %v1061
            %v1063 = vld [vmem:[%s389 + $0xa80] sm:$0xff]
            %1064 = vst [vmem:[%s390 + $0xa80] sm:$0xff] %v1063
            %v1065 = vld [vmem:[%s389 + $0xa88] sm:$0xff]
            %1066 = vst [vmem:[%s390 + $0xa88] sm:$0xff] %v1065
            %v1067 = vld [vmem:[%s389 + $0xa90] sm:$0xff]
            %1068 = vst [vmem:[%s390 + $0xa90] sm:$0xff] %v1067
            %v1069 = vld [vmem:[%s389 + $0xa98] sm:$0xff]
            %1070 = vst [vmem:[%s390 + $0xa98] sm:$0xff] %v1069
            %v1071 = vld [vmem:[%s389 + $0xaa0] sm:$0xff]
            %1072 = vst [vmem:[%s390 + $0xaa0] sm:$0xff] %v1071
            %v1073 = vld [vmem:[%s389 + $0xaa8] sm:$0xff]
            %1074 = vst [vmem:[%s390 + $0xaa8] sm:$0xff] %v1073
            %v1075 = vld [vmem:[%s389 + $0xab0] sm:$0xff]
            %1076 = vst [vmem:[%s390 + $0xab0] sm:$0xff] %v1075
            %v1077 = vld [vmem:[%s389 + $0xab8] sm:$0xff]
            %1078 = vst [vmem:[%s390 + $0xab8] sm:$0xff] %v1077
            %v1079 = vld [vmem:[%s389 + $0xac0] sm:$0xff]
            %1080 = vst [vmem:[%s390 + $0xac0] sm:$0xff] %v1079
            %v1081 = vld [vmem:[%s389 + $0xac8] sm:$0xff]
            %1082 = vst [vmem:[%s390 + $0xac8] sm:$0xff] %v1081
            %v1083 = vld [vmem:[%s389 + $0xad0] sm:$0xff]
            %1084 = vst [vmem:[%s390 + $0xad0] sm:$0xff] %v1083
            %v1085 = vld [vmem:[%s389 + $0xad8] sm:$0xff]
            %1086 = vst [vmem:[%s390 + $0xad8] sm:$0xff] %v1085
            %v1087 = vld [vmem:[%s389 + $0xae0] sm:$0xff]
            %1088 = vst [vmem:[%s390 + $0xae0] sm:$0xff] %v1087
            %v1089 = vld [vmem:[%s389 + $0xae8] sm:$0xff]
            %1090 = vst [vmem:[%s390 + $0xae8] sm:$0xff] %v1089
            %v1091 = vld [vmem:[%s389 + $0xaf0] sm:$0xff]
            %1092 = vst [vmem:[%s390 + $0xaf0] sm:$0xff] %v1091
            %v1093 = vld [vmem:[%s389 + $0xaf8] sm:$0xff]
            %1094 = vst [vmem:[%s390 + $0xaf8] sm:$0xff] %v1093
            %v1095 = vld [vmem:[%s389 + $0xb00] sm:$0xff]
            %1096 = vst [vmem:[%s390 + $0xb00] sm:$0xff] %v1095
            %v1097 = vld [vmem:[%s389 + $0xb08] sm:$0xff]
            %1098 = vst [vmem:[%s390 + $0xb08] sm:$0xff] %v1097
            %v1099 = vld [vmem:[%s389 + $0xb10] sm:$0xff]
            %1100 = vst [vmem:[%s390 + $0xb10] sm:$0xff] %v1099
            %v1101 = vld [vmem:[%s389 + $0xb18] sm:$0xff]
            %1102 = vst [vmem:[%s390 + $0xb18] sm:$0xff] %v1101
            %v1103 = vld [vmem:[%s389 + $0xb20] sm:$0xff]
            %1104 = vst [vmem:[%s390 + $0xb20] sm:$0xff] %v1103
            %v1105 = vld [vmem:[%s389 + $0xb28] sm:$0xff]
            %1106 = vst [vmem:[%s390 + $0xb28] sm:$0xff] %v1105
            %v1107 = vld [vmem:[%s389 + $0xb30] sm:$0xff]
            %1108 = vst [vmem:[%s390 + $0xb30] sm:$0xff] %v1107
            %v1109 = vld [vmem:[%s389 + $0xb38] sm:$0xff]
            %1110 = vst [vmem:[%s390 + $0xb38] sm:$0xff] %v1109
            %v1111 = vld [vmem:[%s389 + $0xb40] sm:$0xff]
            %1112 = vst [vmem:[%s390 + $0xb40] sm:$0xff] %v1111
            %v1113 = vld [vmem:[%s389 + $0xb48] sm:$0xff]
            %1114 = vst [vmem:[%s390 + $0xb48] sm:$0xff] %v1113
            %v1115 = vld [vmem:[%s389 + $0xb50] sm:$0xff]
            %1116 = vst [vmem:[%s390 + $0xb50] sm:$0xff] %v1115
            %v1117 = vld [vmem:[%s389 + $0xb58] sm:$0xff]
            %1118 = vst [vmem:[%s390 + $0xb58] sm:$0xff] %v1117
            %v1119 = vld [vmem:[%s389 + $0xb60] sm:$0xff]
            %1120 = vst [vmem:[%s390 + $0xb60] sm:$0xff] %v1119
            %v1121 = vld [vmem:[%s389 + $0xb68] sm:$0xff]
            %1122 = vst [vmem:[%s390 + $0xb68] sm:$0xff] %v1121
            %v1123 = vld [vmem:[%s389 + $0xb70] sm:$0xff]
            %1124 = vst [vmem:[%s390 + $0xb70] sm:$0xff] %v1123
            %v1125 = vld [vmem:[%s389 + $0xb78] sm:$0xff]
            %1126 = vst [vmem:[%s390 + $0xb78] sm:$0xff] %v1125
            %v1127 = vld [vmem:[%s389 + $0xb80] sm:$0xff]
            %1128 = vst [vmem:[%s390 + $0xb80] sm:$0xff] %v1127
            %v1129 = vld [vmem:[%s389 + $0xb88] sm:$0xff]
            %1130 = vst [vmem:[%s390 + $0xb88] sm:$0xff] %v1129
            %v1131 = vld [vmem:[%s389 + $0xb90] sm:$0xff]
            %1132 = vst [vmem:[%s390 + $0xb90] sm:$0xff] %v1131
            %v1133 = vld [vmem:[%s389 + $0xb98] sm:$0xff]
            %1134 = vst [vmem:[%s390 + $0xb98] sm:$0xff] %v1133
            %v1135 = vld [vmem:[%s389 + $0xba0] sm:$0xff]
            %1136 = vst [vmem:[%s390 + $0xba0] sm:$0xff] %v1135
            %v1137 = vld [vmem:[%s389 + $0xba8] sm:$0xff]
            %1138 = vst [vmem:[%s390 + $0xba8] sm:$0xff] %v1137
            %v1139 = vld [vmem:[%s389 + $0xbb0] sm:$0xff]
            %1140 = vst [vmem:[%s390 + $0xbb0] sm:$0xff] %v1139
            %v1141 = vld [vmem:[%s389 + $0xbb8] sm:$0xff]
            %1142 = vst [vmem:[%s390 + $0xbb8] sm:$0xff] %v1141
            %v1143 = vld [vmem:[%s389 + $0xbc0] sm:$0xff]
            %1144 = vst [vmem:[%s390 + $0xbc0] sm:$0xff] %v1143
            %v1145 = vld [vmem:[%s389 + $0xbc8] sm:$0xff]
            %1146 = vst [vmem:[%s390 + $0xbc8] sm:$0xff] %v1145
            %v1147 = vld [vmem:[%s389 + $0xbd0] sm:$0xff]
            %1148 = vst [vmem:[%s390 + $0xbd0] sm:$0xff] %v1147
            %v1149 = vld [vmem:[%s389 + $0xbd8] sm:$0xff]
            %1150 = vst [vmem:[%s390 + $0xbd8] sm:$0xff] %v1149
            %v1151 = vld [vmem:[%s389 + $0xbe0] sm:$0xff]
            %1152 = vst [vmem:[%s390 + $0xbe0] sm:$0xff] %v1151
            %v1153 = vld [vmem:[%s389 + $0xbe8] sm:$0xff]
            %1154 = vst [vmem:[%s390 + $0xbe8] sm:$0xff] %v1153
            %v1155 = vld [vmem:[%s389 + $0xbf0] sm:$0xff]
            %1156 = vst [vmem:[%s390 + $0xbf0] sm:$0xff] %v1155
            %v1157 = vld [vmem:[%s389 + $0xbf8] sm:$0xff]
            %1158 = vst [vmem:[%s390 + $0xbf8] sm:$0xff] %v1157
            %v1159 = vld [vmem:[%s389 + $0xc00] sm:$0xff]
            %1160 = vst [vmem:[%s390 + $0xc00] sm:$0xff] %v1159
            %v1161 = vld [vmem:[%s389 + $0xc08] sm:$0xff]
            %1162 = vst [vmem:[%s390 + $0xc08] sm:$0xff] %v1161
            %v1163 = vld [vmem:[%s389 + $0xc10] sm:$0xff]
            %1164 = vst [vmem:[%s390 + $0xc10] sm:$0xff] %v1163
            %v1165 = vld [vmem:[%s389 + $0xc18] sm:$0xff]
            %1166 = vst [vmem:[%s390 + $0xc18] sm:$0xff] %v1165
            %v1167 = vld [vmem:[%s389 + $0xc20] sm:$0xff]
            %1168 = vst [vmem:[%s390 + $0xc20] sm:$0xff] %v1167
            %v1169 = vld [vmem:[%s389 + $0xc28] sm:$0xff]
            %1170 = vst [vmem:[%s390 + $0xc28] sm:$0xff] %v1169
            %v1171 = vld [vmem:[%s389 + $0xc30] sm:$0xff]
            %1172 = vst [vmem:[%s390 + $0xc30] sm:$0xff] %v1171
            %v1173 = vld [vmem:[%s389 + $0xc38] sm:$0xff]
            %1174 = vst [vmem:[%s390 + $0xc38] sm:$0xff] %v1173
          $region84: #{forward.1} parent=78 // loop_footer
            %s388 = sadd.s32 1, %s384
          $region85: #{forward.1} parent=78 // loop_footer_branch
            %383 = sbr.rel target = $region81
          $region86: #{forward.1} parent=78 // loop_exit
            _
        $region79: #{forward.1} parent=63 // pred_fallthru
          _
        %p1175 = pneg %p379
        // Predicated region
        $region87: #{forward.1} parent=63 // pred_check
          _
        $region88: #{forward.1} parent=63 // pred_check_branch
          %1177 = sbr.rel (%p379) target = $region90
        $region89: #{forward.1} parent=63 // pred_region
          %s1178 = sand.u32 3136, 7
        $region90: #{forward.1} parent=63 // pred_fallthru
          _
      $region64: #{forward.1} parent=59 // pred_fallthru
        _
      // Predicated region
      $region65: #{forward.1} parent=59 // pred_check
        %p364 = pneg %p360
      $region66: #{forward.1} parent=59 // pred_check_branch
        %366 = sbr.rel (%p364) target = $region68
      $region67: #{forward.1} parent=59 // pred_region
        %s367 = sshllo.u32 0, 3136
        loop: start=0, step=1, limit=1
        $region69: #{forward.1} parent=67 // loop_pre_header
          _
        $region70: #{forward.1} parent=67 // loop_header
          %s369 = sphi 0, %s373
          %p370 = scmp.ge.s32.totalorder %s369, 1
          %s374 = sphi %s7, %s7
          %s375 = sphi [#allocation8], [#allocation8]
        $region71: #{forward.1} parent=67 // loop_header_branch
          %372 = sbr.rel (%p370) target = $region75
        $region72: #{forward.1} parent=67 // loop_body
          %v376 = vld [vmem:[%s374] sm:%s367]
          %377 = vst [vmem:[%s375] sm:%s367] %v376
        $region73: #{forward.1} parent=67 // loop_footer
          %s373 = sadd.s32 1, %s369
        $region74: #{forward.1} parent=67 // loop_footer_branch
          %368 = sbr.rel target = $region70
        $region75: #{forward.1} parent=67 // loop_exit
          _
      $region68: #{forward.1} parent=59 // pred_fallthru
        _
      // Predicated region
      $region91: #{forward.1} parent=59 // pred_check
        _
      $region92: #{forward.1} parent=59 // pred_check_branch
        %1181 = sbr.rel (0) target = $region94
      $region93: #{forward.1} parent=59 // pred_region
        %1182 = vsyncadd [#allocation9], 50176
      $region94: #{forward.1} parent=59 // pred_fallthru
        _
      %v1183 = vld [vmem:[%s354] sm:$0xff]
      %v1184 = vld [vmem:[%s354 + $0x8] sm:$0xff]
      %v1185 = vld [vmem:[%s354 + $0x10] sm:$0xff]
      %v1186 = vld [vmem:[%s354 + $0x18] sm:$0xff]
      %v1187 = vld [vmem:[%s354 + $0x20] sm:$0xff]
      %v1188 = vld [vmem:[%s354 + $0x28] sm:$0xff]
      %v1189 = vld [vmem:[%s354 + $0x30] sm:$0xff]
      %v1190 = vld [vmem:[%s354 + $0x38] sm:$0xff]
      %v1191 = vld [vmem:[%s354 + $0x40] sm:$0xff]
      %v1192 = vld [vmem:[%s354 + $0x48] sm:$0xff]
      %v1193 = vld [vmem:[%s354 + $0x50] sm:$0xff]
      %v1194 = vld [vmem:[%s354 + $0x58] sm:$0xff]
      %v1195 = vld [vmem:[%s354 + $0x60] sm:$0xff]
      %v1196 = vld [vmem:[%s354 + $0x68] sm:$0xff]
      %v1197 = vld [vmem:[%s354 + $0x70] sm:$0xff]
      %v1198 = vld [vmem:[%s354 + $0x78] sm:$0xff]
      %v1199 = vld [vmem:[%s354 + $0x80] sm:$0xff]
      %v1200 = vld [vmem:[%s354 + $0x88] sm:$0xff]
      %v1201 = vld [vmem:[%s354 + $0x90] sm:$0xff]
      %v1202 = vld [vmem:[%s354 + $0x98] sm:$0xff]
      %v1203 = vld [vmem:[%s354 + $0xa0] sm:$0xff]
      %v1204 = vld [vmem:[%s354 + $0xa8] sm:$0xff]
      %v1205 = vld [vmem:[%s354 + $0xb0] sm:$0xff]
      %v1206 = vld [vmem:[%s354 + $0xb8] sm:$0xff]
      %v1207 = vld [vmem:[%s354 + $0xc0] sm:$0xff]
      %v1208 = vld [vmem:[%s354 + $0xc8] sm:$0xff]
      %v1209 = vld [vmem:[%s354 + $0xd0] sm:$0xff]
      %v1210 = vld [vmem:[%s354 + $0xd8] sm:$0xff]
      %v1211 = vld [vmem:[%s354 + $0xe0] sm:$0xff]
      %v1212 = vld [vmem:[%s354 + $0xe8] sm:$0xff]
      %v1213 = vld [vmem:[%s354 + $0xf0] sm:$0xff]
      %v1214 = vld [vmem:[%s354 + $0xf8] sm:$0xff]
      %v1215 = vld [vmem:[%s354 + $0x100] sm:$0xff]
      %v1216 = vld [vmem:[%s354 + $0x108] sm:$0xff]
      %v1217 = vld [vmem:[%s354 + $0x110] sm:$0xff]
      %v1218 = vld [vmem:[%s354 + $0x118] sm:$0xff]
      %v1219 = vld [vmem:[%s354 + $0x120] sm:$0xff]
      %v1220 = vld [vmem:[%s354 + $0x128] sm:$0xff]
      %v1221 = vld [vmem:[%s354 + $0x130] sm:$0xff]
      %v1222 = vld [vmem:[%s354 + $0x138] sm:$0xff]
      %v1223 = vld [vmem:[%s354 + $0x140] sm:$0xff]
      %v1224 = vld [vmem:[%s354 + $0x148] sm:$0xff]
      %v1225 = vld [vmem:[%s354 + $0x150] sm:$0xff]
      %v1226 = vld [vmem:[%s354 + $0x158] sm:$0xff]
      %v1227 = vld [vmem:[%s354 + $0x160] sm:$0xff]
      %v1228 = vld [vmem:[%s354 + $0x168] sm:$0xff]
      %v1229 = vld [vmem:[%s354 + $0x170] sm:$0xff]
      %v1230 = vld [vmem:[%s354 + $0x178] sm:$0xff]
      %v1231 = vld [vmem:[%s354 + $0x180] sm:$0xff]
      %v1232 = vld [vmem:[%s354 + $0x188] sm:$0xff]
      %v1233 = vld [vmem:[%s354 + $0x190] sm:$0xff]
      %v1234 = vld [vmem:[%s354 + $0x198] sm:$0xff]
      %v1235 = vld [vmem:[%s1] sm:$0xff]
      %v1236 = vld [vmem:[%s1 + $0x8] sm:$0xff]
      %v1237 = vld [vmem:[%s1 + $0x10] sm:$0xff]
      %v1238 = vld [vmem:[%s1 + $0x18] sm:$0xff]
      %v1239 = vld [vmem:[%s1 + $0x20] sm:$0xff]
      %v1240 = vld [vmem:[%s1 + $0x28] sm:$0xff]
      %v1241 = vld [vmem:[%s1 + $0x30] sm:$0xff]
      %v1242 = vld [vmem:[%s1 + $0x38] sm:$0xff]
      %v1243 = vld [vmem:[%s2] sm:$0x1]
      %v1245 = vlaneseq
      %v1246 = vshrl.u32 %v1245, 7
      %v1247 = vsub.s32 0, %v1246
      %v1248 = vrot.slane %v1243, %v1247
      %vm1250 = vcmask 523264
      %v1252 = vsel %vm1250, %v1183, 0
      %v1255 = vsel %vm1250, %v1184, 0
      %v1258 = vsel %vm1250, %v1185, 0
      %v1261 = vsel %vm1250, %v1186, 0
      %v1264 = vsel %vm1250, %v1187, 0
      %v1267 = vsel %vm1250, %v1188, 0
      %v1270 = vsel %vm1250, %v1189, 0
      %v1273 = vsel %vm1250, %v1190, 0
      %v1276 = vsel %vm1250, %v1191, 0
      %v1279 = vsel %vm1250, %v1192, 0
      %v1282 = vsel %vm1250, %v1193, 0
      %v1285 = vsel %vm1250, %v1194, 0
      %v1288 = vsel %vm1250, %v1195, 0
      %v1291 = vsel %vm1250, %v1196, 0
      %v1294 = vsel %vm1250, %v1197, 0
      %v1297 = vsel %vm1250, %v1198, 0
      %v1300 = vsel %vm1250, %v1199, 0
      %v1303 = vsel %vm1250, %v1200, 0
      %v1306 = vsel %vm1250, %v1201, 0
      %v1309 = vsel %vm1250, %v1202, 0
      %v1312 = vsel %vm1250, %v1203, 0
      %v1315 = vsel %vm1250, %v1204, 0
      %v1318 = vsel %vm1250, %v1205, 0
      %v1321 = vsel %vm1250, %v1206, 0
      %v1324 = vsel %vm1250, %v1207, 0
      %v1327 = vsel %vm1250, %v1208, 0
      %v1330 = vsel %vm1250, %v1209, 0
      %v1333 = vsel %vm1250, %v1210, 0
      %v1336 = vsel %vm1250, %v1211, 0
      %v1339 = vsel %vm1250, %v1212, 0
      %v1342 = vsel %vm1250, %v1213, 0
      %v1345 = vsel %vm1250, %v1214, 0
      %v1348 = vsel %vm1250, %v1215, 0
      %v1351 = vsel %vm1250, %v1216, 0
      %v1354 = vsel %vm1250, %v1217, 0
      %v1357 = vsel %vm1250, %v1218, 0
      %v1360 = vsel %vm1250, %v1219, 0
      %v1363 = vsel %vm1250, %v1220, 0
      %v1366 = vsel %vm1250, %v1221, 0
      %v1369 = vsel %vm1250, %v1222, 0
      %v1372 = vsel %vm1250, %v1223, 0
      %v1375 = vsel %vm1250, %v1224, 0
      %v1378 = vsel %vm1250, %v1225, 0
      %v1381 = vsel %vm1250, %v1226, 0
      %v1384 = vsel %vm1250, %v1227, 0
      %v1387 = vsel %vm1250, %v1228, 0
      %v1390 = vsel %vm1250, %v1229, 0
      %v1393 = vsel %vm1250, %v1230, 0
      %v1396 = vsel %vm1250, %v1231, 0
      %v1399 = vsel %vm1250, %v1232, 0
      %v1402 = vsel %vm1250, %v1233, 0
      %v1405 = vsel %vm1250, %v1234, 0
      %1407 = vmatprep.subr.mxu0 0.0
      %1408 = vmatpush1.msra.mxu0 %v1235
      %1409 = vmatprep.subr.mxu0 0.0
      %1410 = vmatpush1.msra.mxu0 %v1236
      %1411 = vmatprep.subr.mxu0 0.0
      %1412 = vmatpush1.msra.mxu0 %v1237
      %1413 = vmatprep.subr.mxu0 0.0
      %1414 = vmatpush1.msra.mxu0 %v1238
      %1415 = vmatprep.subr.mxu0 0.0
      %1416 = vmatpush1.msra.mxu0 %v1239
      %1417 = vmatprep.subr.mxu0 0.0
      %1418 = vmatpush1.msra.mxu0 %v1240
      %1419 = vmatprep.subr.mxu0 0.0
      %1420 = vmatpush1.msra.mxu0 %v1241
      %1421 = vmatprep.subr.mxu0 0.0
      %1422 = vmatpush1.msra.mxu0 %v1242
      %1423 = vmatprep.subr.mxu0 0.0
      %1424 = vmatpush1.msra.mxu0 0.0
      %1425 = vmatprep.subr.mxu0 0.0
      %1426 = vmatpush1.msra.mxu0 0.0
      %1427 = vmatprep.subr.mxu0 0.0
      %1428 = vmatpush1.msra.mxu0 0.0
      %1429 = vmatprep.subr.mxu0 0.0
      %1430 = vmatpush1.msra.mxu0 0.0
      %1431 = vmatprep.subr.mxu0 0.0
      %1432 = vmatpush1.msra.mxu0 0.0
      %1433 = vmatprep.subr.mxu0 0.0
      %1434 = vmatpush1.msra.mxu0 0.0
      %1435 = vmatprep.subr.mxu0 0.0
      %1436 = vmatpush1.msra.mxu0 0.0
      %1437 = vmatprep.subr.mxu0 0.0
      %1438 = vmatpush1.msra.mxu0 0.0
      %1439 = vmatprep.subr.mxu0 0.0
      %1440 = vmatpush1.msra.mxu0 0.0
      %1441 = vmatprep.subr.mxu0 0.0
      %1442 = vmatpush1.msra.mxu0 0.0
      %1443 = vmatprep.subr.mxu0 0.0
      %1444 = vmatpush1.msra.mxu0 0.0
      %1445 = vmatprep.subr.mxu0 0.0
      %1446 = vmatpush1.msra.mxu0 0.0
      %1447 = vmatprep.subr.mxu0 0.0
      %1448 = vmatpush1.msra.mxu0 0.0
      %1449 = vmatprep.subr.mxu0 0.0
      %1450 = vmatpush1.msra.mxu0 0.0
      %1451 = vmatprep.subr.mxu0 0.0
      %1452 = vmatpush1.msra.mxu0 0.0
      %1453 = vmatprep.subr.mxu0 0.0
      %1454 = vmatpush1.msra.mxu0 0.0
      %1455 = vmatprep.subr.mxu0 0.0
      %1456 = vmatpush1.msra.mxu0 0.0
      %1457 = vmatprep.subr.mxu0 0.0
      %1458 = vmatpush1.msra.mxu0 0.0
      %1459 = vmatprep.subr.mxu0 0.0
      %1460 = vmatpush1.msra.mxu0 0.0
      %1461 = vmatprep.subr.mxu0 0.0
      %1462 = vmatpush1.msra.mxu0 0.0
      %1463 = vmatprep.subr.mxu0 0.0
      %1464 = vmatpush1.msra.mxu0 0.0
      %1465 = vmatprep.subr.mxu0 0.0
      %1466 = vmatpush1.msra.mxu0 0.0
      %1467 = vmatprep.subr.mxu0 0.0
      %1468 = vmatpush1.msra.mxu0 0.0
      %1469 = vmatprep.subr.mxu0 0.0
      %1470 = vmatpush1.msra.mxu0 0.0
      %1471 = vmatprep.mubr.f32.mxu0 0.0
      %1472 = vmatmul.mubr.f32.gmra.mrb[0].mxu0 %v1252
      %v1473 = vpop.f32.mrb[0].mxu0
      %v1474 = vadd.f32 %v1248, %v1473
      %v1475 = vpop.f32.mrb[0].mxu0
      %1476 = vmatprep.mubr.f32.mxu0 0.0
      %1477 = vmatmul.mubr.f32.gmra.mrb[0].mxu0 %v1255
      %v1478 = vpop.f32.mrb[0].mxu0
      %v1479 = vadd.f32 %v1248, %v1478
      %v1480 = vpop.f32.mrb[0].mxu0
      %1481 = vmatprep.mubr.f32.mxu0 0.0
      %1482 = vmatmul.mubr.f32.gmra.mrb[0].mxu0 %v1258
      %v1483 = vpop.f32.mrb[0].mxu0
      %v1484 = vadd.f32 %v1248, %v1483
      %v1485 = vpop.f32.mrb[0].mxu0
      %1486 = vmatprep.mubr.f32.mxu0 0.0
      %1487 = vmatmul.mubr.f32.gmra.mrb[0].mxu0 %v1261
      %v1488 = vpop.f32.mrb[0].mxu0
      %v1489 = vadd.f32 %v1248, %v1488
      %v1490 = vpop.f32.mrb[0].mxu0
      %1491 = vmatprep.mubr.f32.mxu0 0.0
      %1492 = vmatmul.mubr.f32.gmra.mrb[0].mxu0 %v1264
      %v1493 = vpop.f32.mrb[0].mxu0
      %v1494 = vadd.f32 %v1248, %v1493
      %v1495 = vpop.f32.mrb[0].mxu0
      %1496 = vmatprep.mubr.f32.mxu0 0.0
      %1497 = vmatmul.mubr.f32.gmra.mrb[0].mxu0 %v1267
      %v1498 = vpop.f32.mrb[0].mxu0
      %v1499 = vadd.f32 %v1248, %v1498
      %v1500 = vpop.f32.mrb[0].mxu0
      %1501 = vmatprep.mubr.f32.mxu0 0.0
      %1502 = vmatmul.mubr.f32.gmra.mrb[0].mxu0 %v1270
      %v1503 = vpop.f32.mrb[0].mxu0
      %v1504 = vadd.f32 %v1248, %v1503
      %v1505 = vpop.f32.mrb[0].mxu0
      %1506 = vmatprep.mubr.f32.mxu0 0.0
      %1507 = vmatmul.mubr.f32.gmra.mrb[0].mxu0 %v1273
      %v1508 = vpop.f32.mrb[0].mxu0
      %v1509 = vadd.f32 %v1248, %v1508
      %v1510 = vpop.f32.mrb[0].mxu0
      %1511 = vmatprep.mubr.f32.mxu0 0.0
      %1512 = vmatmul.mubr.f32.gmra.mrb[0].mxu0 %v1276
      %v1513 = vpop.f32.mrb[0].mxu0
      %v1514 = vadd.f32 %v1248, %v1513
      %v1515 = vpop.f32.mrb[0].mxu0
      %1516 = vmatprep.mubr.f32.mxu0 0.0
      %1517 = vmatmul.mubr.f32.gmra.mrb[0].mxu0 %v1279
      %v1518 = vpop.f32.mrb[0].mxu0
      %v1519 = vadd.f32 %v1248, %v1518
      %v1520 = vpop.f32.mrb[0].mxu0
      %1521 = vmatprep.mubr.f32.mxu0 0.0
      %1522 = vmatmul.mubr.f32.gmra.mrb[0].mxu0 %v1282
      %v1523 = vpop.f32.mrb[0].mxu0
      %v1524 = vadd.f32 %v1248, %v1523
      %v1525 = vpop.f32.mrb[0].mxu0
      %1526 = vmatprep.mubr.f32.mxu0 0.0
      %1527 = vmatmul.mubr.f32.gmra.mrb[0].mxu0 %v1285
      %v1528 = vpop.f32.mrb[0].mxu0
      %v1529 = vadd.f32 %v1248, %v1528
      %v1530 = vpop.f32.mrb[0].mxu0
      %1531 = vmatprep.mubr.f32.mxu0 0.0
      %1532 = vmatmul.mubr.f32.gmra.mrb[0].mxu0 %v1288
      %v1533 = vpop.f32.mrb[0].mxu0
      %v1534 = vadd.f32 %v1248, %v1533
      %v1535 = vpop.f32.mrb[0].mxu0
      %1536 = vmatprep.mubr.f32.mxu0 0.0
      %1537 = vmatmul.mubr.f32.gmra.mrb[0].mxu0 %v1291
      %v1538 = vpop.f32.mrb[0].mxu0
      %v1539 = vadd.f32 %v1248, %v1538
      %v1540 = vpop.f32.mrb[0].mxu0
      %1541 = vmatprep.mubr.f32.mxu0 0.0
      %1542 = vmatmul.mubr.f32.gmra.mrb[0].mxu0 %v1294
      %v1543 = vpop.f32.mrb[0].mxu0
      %v1544 = vadd.f32 %v1248, %v1543
      %v1545 = vpop.f32.mrb[0].mxu0
      %1546 = vmatprep.mubr.f32.mxu0 0.0
      %1547 = vmatmul.mubr.f32.gmra.mrb[0].mxu0 %v1297
      %v1548 = vpop.f32.mrb[0].mxu0
      %v1549 = vadd.f32 %v1248, %v1548
      %v1550 = vpop.f32.mrb[0].mxu0
      %1551 = vmatprep.mubr.f32.mxu0 0.0
      %1552 = vmatmul.mubr.f32.gmra.mrb[0].mxu0 %v1300
      %v1553 = vpop.f32.mrb[0].mxu0
      %v1554 = vadd.f32 %v1248, %v1553
      %v1555 = vpop.f32.mrb[0].mxu0
      %1556 = vmatprep.mubr.f32.mxu0 0.0
      %1557 = vmatmul.mubr.f32.gmra.mrb[0].mxu0 %v1303
      %v1558 = vpop.f32.mrb[0].mxu0
      %v1559 = vadd.f32 %v1248, %v1558
      %v1560 = vpop.f32.mrb[0].mxu0
      %1561 = vmatprep.mubr.f32.mxu0 0.0
      %1562 = vmatmul.mubr.f32.gmra.mrb[0].mxu0 %v1306
      %v1563 = vpop.f32.mrb[0].mxu0
      %v1564 = vadd.f32 %v1248, %v1563
      %v1565 = vpop.f32.mrb[0].mxu0
      %1566 = vmatprep.mubr.f32.mxu0 0.0
      %1567 = vmatmul.mubr.f32.gmra.mrb[0].mxu0 %v1309
      %v1568 = vpop.f32.mrb[0].mxu0
      %v1569 = vadd.f32 %v1248, %v1568
      %v1570 = vpop.f32.mrb[0].mxu0
      %1571 = vmatprep.mubr.f32.mxu0 0.0
      %1572 = vmatmul.mubr.f32.gmra.mrb[0].mxu0 %v1312
      %v1573 = vpop.f32.mrb[0].mxu0
      %v1574 = vadd.f32 %v1248, %v1573
      %v1575 = vpop.f32.mrb[0].mxu0
      %1576 = vmatprep.mubr.f32.mxu0 0.0
      %1577 = vmatmul.mubr.f32.gmra.mrb[0].mxu0 %v1315
      %v1578 = vpop.f32.mrb[0].mxu0
      %v1579 = vadd.f32 %v1248, %v1578
      %v1580 = vpop.f32.mrb[0].mxu0
      %1581 = vmatprep.mubr.f32.mxu0 0.0
      %1582 = vmatmul.mubr.f32.gmra.mrb[0].mxu0 %v1318
      %v1583 = vpop.f32.mrb[0].mxu0
      %v1584 = vadd.f32 %v1248, %v1583
      %v1585 = vpop.f32.mrb[0].mxu0
      %1586 = vmatprep.mubr.f32.mxu0 0.0
      %1587 = vmatmul.mubr.f32.gmra.mrb[0].mxu0 %v1321
      %v1588 = vpop.f32.mrb[0].mxu0
      %v1589 = vadd.f32 %v1248, %v1588
      %v1590 = vpop.f32.mrb[0].mxu0
      %1591 = vmatprep.mubr.f32.mxu0 0.0
      %1592 = vmatmul.mubr.f32.gmra.mrb[0].mxu0 %v1324
      %v1593 = vpop.f32.mrb[0].mxu0
      %v1594 = vadd.f32 %v1248, %v1593
      %v1595 = vpop.f32.mrb[0].mxu0
      %1596 = vmatprep.mubr.f32.mxu0 0.0
      %1597 = vmatmul.mubr.f32.gmra.mrb[0].mxu0 %v1327
      %v1598 = vpop.f32.mrb[0].mxu0
      %v1599 = vadd.f32 %v1248, %v1598
      %v1600 = vpop.f32.mrb[0].mxu0
      %1601 = vmatprep.mubr.f32.mxu0 0.0
      %1602 = vmatmul.mubr.f32.gmra.mrb[0].mxu0 %v1330
      %v1603 = vpop.f32.mrb[0].mxu0
      %v1604 = vadd.f32 %v1248, %v1603
      %v1605 = vpop.f32.mrb[0].mxu0
      %1606 = vmatprep.mubr.f32.mxu0 0.0
      %1607 = vmatmul.mubr.f32.gmra.mrb[0].mxu0 %v1333
      %v1608 = vpop.f32.mrb[0].mxu0
      %v1609 = vadd.f32 %v1248, %v1608
      %v1610 = vpop.f32.mrb[0].mxu0
      %1611 = vmatprep.mubr.f32.mxu0 0.0
      %1612 = vmatmul.mubr.f32.gmra.mrb[0].mxu0 %v1336
      %v1613 = vpop.f32.mrb[0].mxu0
      %v1614 = vadd.f32 %v1248, %v1613
      %v1615 = vpop.f32.mrb[0].mxu0
      %1616 = vmatprep.mubr.f32.mxu0 0.0
      %1617 = vmatmul.mubr.f32.gmra.mrb[0].mxu0 %v1339
      %v1618 = vpop.f32.mrb[0].mxu0
      %v1619 = vadd.f32 %v1248, %v1618
      %v1620 = vpop.f32.mrb[0].mxu0
      %1621 = vmatprep.mubr.f32.mxu0 0.0
      %1622 = vmatmul.mubr.f32.gmra.mrb[0].mxu0 %v1342
      %v1623 = vpop.f32.mrb[0].mxu0
      %v1624 = vadd.f32 %v1248, %v1623
      %v1625 = vpop.f32.mrb[0].mxu0
      %1626 = vmatprep.mubr.f32.mxu0 0.0
      %1627 = vmatmul.mubr.f32.gmra.mrb[0].mxu0 %v1345
      %v1628 = vpop.f32.mrb[0].mxu0
      %v1629 = vadd.f32 %v1248, %v1628
      %v1630 = vpop.f32.mrb[0].mxu0
      %1631 = vmatprep.mubr.f32.mxu0 0.0
      %1632 = vmatmul.mubr.f32.gmra.mrb[0].mxu0 %v1348
      %v1633 = vpop.f32.mrb[0].mxu0
      %v1634 = vadd.f32 %v1248, %v1633
      %v1635 = vpop.f32.mrb[0].mxu0
      %1636 = vmatprep.mubr.f32.mxu0 0.0
      %1637 = vmatmul.mubr.f32.gmra.mrb[0].mxu0 %v1351
      %v1638 = vpop.f32.mrb[0].mxu0
      %v1639 = vadd.f32 %v1248, %v1638
      %v1640 = vpop.f32.mrb[0].mxu0
      %1641 = vmatprep.mubr.f32.mxu0 0.0
      %1642 = vmatmul.mubr.f32.gmra.mrb[0].mxu0 %v1354
      %v1643 = vpop.f32.mrb[0].mxu0
      %v1644 = vadd.f32 %v1248, %v1643
      %v1645 = vpop.f32.mrb[0].mxu0
      %1646 = vmatprep.mubr.f32.mxu0 0.0
      %1647 = vmatmul.mubr.f32.gmra.mrb[0].mxu0 %v1357
      %v1648 = vpop.f32.mrb[0].mxu0
      %v1649 = vadd.f32 %v1248, %v1648
      %v1650 = vpop.f32.mrb[0].mxu0
      %1651 = vmatprep.mubr.f32.mxu0 0.0
      %1652 = vmatmul.mubr.f32.gmra.mrb[0].mxu0 %v1360
      %v1653 = vpop.f32.mrb[0].mxu0
      %v1654 = vadd.f32 %v1248, %v1653
      %v1655 = vpop.f32.mrb[0].mxu0
      %1656 = vmatprep.mubr.f32.mxu0 0.0
      %1657 = vmatmul.mubr.f32.gmra.mrb[0].mxu0 %v1363
      %v1658 = vpop.f32.mrb[0].mxu0
      %v1659 = vadd.f32 %v1248, %v1658
      %v1660 = vpop.f32.mrb[0].mxu0
      %1661 = vmatprep.mubr.f32.mxu0 0.0
      %1662 = vmatmul.mubr.f32.gmra.mrb[0].mxu0 %v1366
      %v1663 = vpop.f32.mrb[0].mxu0
      %v1664 = vadd.f32 %v1248, %v1663
      %v1665 = vpop.f32.mrb[0].mxu0
      %1666 = vmatprep.mubr.f32.mxu0 0.0
      %1667 = vmatmul.mubr.f32.gmra.mrb[0].mxu0 %v1369
      %v1668 = vpop.f32.mrb[0].mxu0
      %v1669 = vadd.f32 %v1248, %v1668
      %v1670 = vpop.f32.mrb[0].mxu0
      %1671 = vmatprep.mubr.f32.mxu0 0.0
      %1672 = vmatmul.mubr.f32.gmra.mrb[0].mxu0 %v1372
      %v1673 = vpop.f32.mrb[0].mxu0
      %v1674 = vadd.f32 %v1248, %v1673
      %v1675 = vpop.f32.mrb[0].mxu0
      %1676 = vmatprep.mubr.f32.mxu0 0.0
      %1677 = vmatmul.mubr.f32.gmra.mrb[0].mxu0 %v1375
      %v1678 = vpop.f32.mrb[0].mxu0
      %v1679 = vadd.f32 %v1248, %v1678
      %v1680 = vpop.f32.mrb[0].mxu0
      %1681 = vmatprep.mubr.f32.mxu0 0.0
      %1682 = vmatmul.mubr.f32.gmra.mrb[0].mxu0 %v1378
      %v1683 = vpop.f32.mrb[0].mxu0
      %v1684 = vadd.f32 %v1248, %v1683
      %v1685 = vpop.f32.mrb[0].mxu0
      %1686 = vmatprep.mubr.f32.mxu0 0.0
      %1687 = vmatmul.mubr.f32.gmra.mrb[0].mxu0 %v1381
      %v1688 = vpop.f32.mrb[0].mxu0
      %v1689 = vadd.f32 %v1248, %v1688
      %v1690 = vpop.f32.mrb[0].mxu0
      %1691 = vmatprep.mubr.f32.mxu0 0.0
      %1692 = vmatmul.mubr.f32.gmra.mrb[0].mxu0 %v1384
      %v1693 = vpop.f32.mrb[0].mxu0
      %v1694 = vadd.f32 %v1248, %v1693
      %v1695 = vpop.f32.mrb[0].mxu0
      %1696 = vmatprep.mubr.f32.mxu0 0.0
      %1697 = vmatmul.mubr.f32.gmra.mrb[0].mxu0 %v1387
      %v1698 = vpop.f32.mrb[0].mxu0
      %v1699 = vadd.f32 %v1248, %v1698
      %v1700 = vpop.f32.mrb[0].mxu0
      %1701 = vmatprep.mubr.f32.mxu0 0.0
      %1702 = vmatmul.mubr.f32.gmra.mrb[0].mxu0 %v1390
      %v1703 = vpop.f32.mrb[0].mxu0
      %v1704 = vadd.f32 %v1248, %v1703
      %v1705 = vpop.f32.mrb[0].mxu0
      %1706 = vmatprep.mubr.f32.mxu0 0.0
      %1707 = vmatmul.mubr.f32.gmra.mrb[0].mxu0 %v1393
      %v1708 = vpop.f32.mrb[0].mxu0
      %v1709 = vadd.f32 %v1248, %v1708
      %v1710 = vpop.f32.mrb[0].mxu0
      %1711 = vmatprep.mubr.f32.mxu0 0.0
      %1712 = vmatmul.mubr.f32.gmra.mrb[0].mxu0 %v1396
      %v1713 = vpop.f32.mrb[0].mxu0
      %v1714 = vadd.f32 %v1248, %v1713
      %v1715 = vpop.f32.mrb[0].mxu0
      %1716 = vmatprep.mubr.f32.mxu0 0.0
      %1717 = vmatmul.mubr.f32.gmra.mrb[0].mxu0 %v1399
      %v1718 = vpop.f32.mrb[0].mxu0
      %v1719 = vadd.f32 %v1248, %v1718
      %v1720 = vpop.f32.mrb[0].mxu0
      %1721 = vmatprep.mubr.f32.mxu0 0.0
      %1722 = vmatmul.mubr.f32.gmra.mrb[0].mxu0 %v1402
      %v1723 = vpop.f32.mrb[0].mxu0
      %v1724 = vadd.f32 %v1248, %v1723
      %v1725 = vpop.f32.mrb[0].mxu0
      %1726 = vmatprep.mubr.f32.mxu0 0.0
      %1727 = vmatmul.mubr.f32.gmra.mrb[0].mxu0 %v1405
      %v1728 = vpop.f32.mrb[0].mxu0
      %v1729 = vadd.f32 %v1248, %v1728
      %v1730 = vpop.f32.mrb[0].mxu0
      %1731 = vdwg.mxu0
      %v1732 = vmax.f32 %v1474, 0.0
      %v1733 = vmax.f32 %v1479, 0.0
      %v1734 = vmax.f32 %v1484, 0.0
      %v1735 = vmax.f32 %v1489, 0.0
      %v1736 = vmax.f32 %v1494, 0.0
      %v1737 = vmax.f32 %v1499, 0.0
      %v1738 = vmax.f32 %v1504, 0.0
      %v1739 = vmax.f32 %v1509, 0.0
      %v1740 = vmax.f32 %v1514, 0.0
      %v1741 = vmax.f32 %v1519, 0.0
      %v1742 = vmax.f32 %v1524, 0.0
      %v1743 = vmax.f32 %v1529, 0.0
      %v1744 = vmax.f32 %v1534, 0.0
      %v1745 = vmax.f32 %v1539, 0.0
      %v1746 = vmax.f32 %v1544, 0.0
      %v1747 = vmax.f32 %v1549, 0.0
      %v1748 = vmax.f32 %v1554, 0.0
      %v1749 = vmax.f32 %v1559, 0.0
      %v1750 = vmax.f32 %v1564, 0.0
      %v1751 = vmax.f32 %v1569, 0.0
      %v1752 = vmax.f32 %v1574, 0.0
      %v1753 = vmax.f32 %v1579, 0.0
      %v1754 = vmax.f32 %v1584, 0.0
      %v1755 = vmax.f32 %v1589, 0.0
      %v1756 = vmax.f32 %v1594, 0.0
      %v1757 = vmax.f32 %v1599, 0.0
      %v1758 = vmax.f32 %v1604, 0.0
      %v1759 = vmax.f32 %v1609, 0.0
      %v1760 = vmax.f32 %v1614, 0.0
      %v1761 = vmax.f32 %v1619, 0.0
      %v1762 = vmax.f32 %v1624, 0.0
      %v1763 = vmax.f32 %v1629, 0.0
      %v1764 = vmax.f32 %v1634, 0.0
      %v1765 = vmax.f32 %v1639, 0.0
      %v1766 = vmax.f32 %v1644, 0.0
      %v1767 = vmax.f32 %v1649, 0.0
      %v1768 = vmax.f32 %v1654, 0.0
      %v1769 = vmax.f32 %v1659, 0.0
      %v1770 = vmax.f32 %v1664, 0.0
      %v1771 = vmax.f32 %v1669, 0.0
      %v1772 = vmax.f32 %v1674, 0.0
      %v1773 = vmax.f32 %v1679, 0.0
      %v1774 = vmax.f32 %v1684, 0.0
      %v1775 = vmax.f32 %v1689, 0.0
      %v1776 = vmax.f32 %v1694, 0.0
      %v1777 = vmax.f32 %v1699, 0.0
      %v1778 = vmax.f32 %v1704, 0.0
      %v1779 = vmax.f32 %v1709, 0.0
      %v1780 = vmax.f32 %v1714, 0.0
      %v1781 = vmax.f32 %v1719, 0.0
      %v1782 = vmax.f32 %v1724, 0.0
      %v1783 = vmax.f32 %v1729, 0.0
      %vm1784 = vcmask 261120
      %1785 = vst.msk [vmem:[#allocation2] sm:$0xff] %vm1784, %v1732
      %1786 = vst.msk [vmem:[#allocation2 + $0x8] sm:$0xff] %vm1784, %v1733
      %1787 = vst.msk [vmem:[#allocation2 + $0x10] sm:$0xff] %vm1784, %v1734
      %1788 = vst.msk [vmem:[#allocation2 + $0x18] sm:$0xff] %vm1784, %v1735
      %1789 = vst.msk [vmem:[#allocation2 + $0x20] sm:$0xff] %vm1784, %v1736
      %1790 = vst.msk [vmem:[#allocation2 + $0x28] sm:$0xff] %vm1784, %v1737
      %1791 = vst.msk [vmem:[#allocation2 + $0x30] sm:$0xff] %vm1784, %v1738
      %1792 = vst.msk [vmem:[#allocation2 + $0x38] sm:$0xff] %vm1784, %v1739
      %1793 = vst.msk [vmem:[#allocation2 + $0x40] sm:$0xff] %vm1784, %v1740
      %1794 = vst.msk [vmem:[#allocation2 + $0x48] sm:$0xff] %vm1784, %v1741
      %1795 = vst.msk [vmem:[#allocation2 + $0x50] sm:$0xff] %vm1784, %v1742
      %1796 = vst.msk [vmem:[#allocation2 + $0x58] sm:$0xff] %vm1784, %v1743
      %1797 = vst.msk [vmem:[#allocation2 + $0x60] sm:$0xff] %vm1784, %v1744
      %1798 = vst.msk [vmem:[#allocation2 + $0x68] sm:$0xff] %vm1784, %v1745
      %1799 = vst.msk [vmem:[#allocation2 + $0x70] sm:$0xff] %vm1784, %v1746
      %1800 = vst.msk [vmem:[#allocation2 + $0x78] sm:$0xff] %vm1784, %v1747
      %1801 = vst.msk [vmem:[#allocation2 + $0x80] sm:$0xff] %vm1784, %v1748
      %1802 = vst.msk [vmem:[#allocation2 + $0x88] sm:$0xff] %vm1784, %v1749
      %1803 = vst.msk [vmem:[#allocation2 + $0x90] sm:$0xff] %vm1784, %v1750
      %1804 = vst.msk [vmem:[#allocation2 + $0x98] sm:$0xff] %vm1784, %v1751
      %1805 = vst.msk [vmem:[#allocation2 + $0xa0] sm:$0xff] %vm1784, %v1752
      %1806 = vst.msk [vmem:[#allocation2 + $0xa8] sm:$0xff] %vm1784, %v1753
      %1807 = vst.msk [vmem:[#allocation2 + $0xb0] sm:$0xff] %vm1784, %v1754
      %1808 = vst.msk [vmem:[#allocation2 + $0xb8] sm:$0xff] %vm1784, %v1755
      %1809 = vst.msk [vmem:[#allocation2 + $0xc0] sm:$0xff] %vm1784, %v1756
      %1810 = vst.msk [vmem:[#allocation2 + $0xc8] sm:$0xff] %vm1784, %v1757
      %1811 = vst.msk [vmem:[#allocation2 + $0xd0] sm:$0xff] %vm1784, %v1758
      %1812 = vst.msk [vmem:[#allocation2 + $0xd8] sm:$0xff] %vm1784, %v1759
      %1813 = vst.msk [vmem:[#allocation2 + $0xe0] sm:$0xff] %vm1784, %v1760
      %1814 = vst.msk [vmem:[#allocation2 + $0xe8] sm:$0xff] %vm1784, %v1761
      %1815 = vst.msk [vmem:[#allocation2 + $0xf0] sm:$0xff] %vm1784, %v1762
      %1816 = vst.msk [vmem:[#allocation2 + $0xf8] sm:$0xff] %vm1784, %v1763
      %1817 = vst.msk [vmem:[#allocation2 + $0x100] sm:$0xff] %vm1784, %v1764
      %1818 = vst.msk [vmem:[#allocation2 + $0x108] sm:$0xff] %vm1784, %v1765
      %1819 = vst.msk [vmem:[#allocation2 + $0x110] sm:$0xff] %vm1784, %v1766
      %1820 = vst.msk [vmem:[#allocation2 + $0x118] sm:$0xff] %vm1784, %v1767
      %1821 = vst.msk [vmem:[#allocation2 + $0x120] sm:$0xff] %vm1784, %v1768
      %1822 = vst.msk [vmem:[#allocation2 + $0x128] sm:$0xff] %vm1784, %v1769
      %1823 = vst.msk [vmem:[#allocation2 + $0x130] sm:$0xff] %vm1784, %v1770
      %1824 = vst.msk [vmem:[#allocation2 + $0x138] sm:$0xff] %vm1784, %v1771
      %1825 = vst.msk [vmem:[#allocation2 + $0x140] sm:$0xff] %vm1784, %v1772
      %1826 = vst.msk [vmem:[#allocation2 + $0x148] sm:$0xff] %vm1784, %v1773
      %1827 = vst.msk [vmem:[#allocation2 + $0x150] sm:$0xff] %vm1784, %v1774
      %1828 = vst.msk [vmem:[#allocation2 + $0x158] sm:$0xff] %vm1784, %v1775
      %1829 = vst.msk [vmem:[#allocation2 + $0x160] sm:$0xff] %vm1784, %v1776
      %1830 = vst.msk [vmem:[#allocation2 + $0x168] sm:$0xff] %vm1784, %v1777
      %1831 = vst.msk [vmem:[#allocation2 + $0x170] sm:$0xff] %vm1784, %v1778
      %1832 = vst.msk [vmem:[#allocation2 + $0x178] sm:$0xff] %vm1784, %v1779
      %1833 = vst.msk [vmem:[#allocation2 + $0x180] sm:$0xff] %vm1784, %v1780
      %1834 = vst.msk [vmem:[#allocation2 + $0x188] sm:$0xff] %vm1784, %v1781
      %1835 = vst.msk [vmem:[#allocation2 + $0x190] sm:$0xff] %vm1784, %v1782
      %1836 = vst.msk [vmem:[#allocation2 + $0x198] sm:$0xff] %vm1784, %v1783
      %1837 = vst [vmem:[#allocation3 + $0x160] sm:$0xff] 0.0
      %1838 = vst [vmem:[#allocation3 + $0x168] sm:$0xff] 0.0
      %1839 = vst [vmem:[#allocation3 + $0x170] sm:$0xff] 0.0
      %1840 = vst [vmem:[#allocation3 + $0x178] sm:$0xff] 0.0
      %v1841 = vld [vmem:[#allocation2] sm:$0xff]
      %v1842 = vld [vmem:[#allocation2 + $0x8] sm:$0xff]
      %v1843 = vld [vmem:[#allocation2 + $0x10] sm:$0xff]
      %v1844 = vld [vmem:[#allocation2 + $0x18] sm:$0xff]
      %v1845 = vld [vmem:[#allocation2 + $0x20] sm:$0xff]
      %v1846 = vld [vmem:[#allocation2 + $0x28] sm:$0xff]
      %v1847 = vld [vmem:[#allocation2 + $0x30] sm:$0xff]
      %v1848 = vld [vmem:[#allocation2 + $0x38] sm:$0xff]
      %v1849 = vld [vmem:[#allocation2 + $0x40] sm:$0xff]
      %v1850 = vld [vmem:[#allocation2 + $0x48] sm:$0xff]
      %v1851 = vld [vmem:[#allocation2 + $0x50] sm:$0xff]
      %v1852 = vld [vmem:[#allocation2 + $0x58] sm:$0x3]
      %1853 = vst.msk [vmem:[#allocation3] sm:$0xff] %vm1784, %v1841
      %1854 = vst.msk [vmem:[#allocation3 + $0x20] sm:$0xff] %vm1784, %v1842
      %1855 = vst.msk [vmem:[#allocation3 + $0x40] sm:$0xff] %vm1784, %v1843
      %1856 = vst.msk [vmem:[#allocation3 + $0x60] sm:$0xff] %vm1784, %v1844
      %1857 = vst.msk [vmem:[#allocation3 + $0x80] sm:$0xff] %vm1784, %v1845
      %1858 = vst.msk [vmem:[#allocation3 + $0xa0] sm:$0xff] %vm1784, %v1846
      %1859 = vst.msk [vmem:[#allocation3 + $0xc0] sm:$0xff] %vm1784, %v1847
      %1860 = vst.msk [vmem:[#allocation3 + $0xe0] sm:$0xff] %vm1784, %v1848
      %1861 = vst.msk [vmem:[#allocation3 + $0x100] sm:$0xff] %vm1784, %v1849
      %1862 = vst.msk [vmem:[#allocation3 + $0x120] sm:$0xff] %vm1784, %v1850
      %1863 = vst.msk [vmem:[#allocation3 + $0x140] sm:$0xff] %vm1784, %v1851
      %vm1864 = vcmask 254976
      %1865 = vst.msk [vmem:[#allocation3 + $0x160] sm:$0x3] %vm1864, %v1852
      %v1866 = vld [vmem:[#allocation2 + $0x68] sm:$0xff]
      %v1867 = vld [vmem:[#allocation2 + $0x70] sm:$0xff]
      %v1868 = vld [vmem:[#allocation2 + $0x78] sm:$0xff]
      %v1869 = vld [vmem:[#allocation2 + $0x80] sm:$0xff]
      %v1870 = vld [vmem:[#allocation2 + $0x88] sm:$0xff]
      %v1871 = vld [vmem:[#allocation2 + $0x90] sm:$0xff]
      %v1872 = vld [vmem:[#allocation2 + $0x98] sm:$0xff]
      %v1873 = vld [vmem:[#allocation2 + $0xa0] sm:$0xff]
      %v1874 = vld [vmem:[#allocation2 + $0xa8] sm:$0xff]
      %v1875 = vld [vmem:[#allocation2 + $0xb0] sm:$0xff]
      %v1876 = vld [vmem:[#allocation2 + $0xb8] sm:$0xff]
      %v1877 = vld [vmem:[#allocation2 + $0xc0] sm:$0x3]
      %1890 = vrot.lane.b32.xlu0 %v1866, 32
      %v1891 = vpop.permute.xlu0 %1890
      %1892 = vrot.lane.b32.xlu0 %v1867, 32
      %v1893 = vpop.permute.xlu0 %1892
      %1894 = vrot.lane.b32.xlu0 %v1868, 32
      %v1895 = vpop.permute.xlu0 %1894
      %1896 = vrot.lane.b32.xlu0 %v1869, 32
      %v1897 = vpop.permute.xlu0 %1896
      %1898 = vrot.lane.b32.xlu0 %v1870, 32
      %v1899 = vpop.permute.xlu0 %1898
      %1900 = vrot.lane.b32.xlu0 %v1871, 32
      %v1901 = vpop.permute.xlu0 %1900
      %1902 = vrot.lane.b32.xlu0 %v1872, 32
      %v1903 = vpop.permute.xlu0 %1902
      %1904 = vrot.lane.b32.xlu0 %v1873, 32
      %v1905 = vpop.permute.xlu0 %1904
      %1906 = vrot.lane.b32.xlu0 %v1874, 32
      %v1907 = vpop.permute.xlu0 %1906
      %1908 = vrot.lane.b32.xlu0 %v1875, 32
      %v1909 = vpop.permute.xlu0 %1908
      %1910 = vrot.lane.b32.xlu0 %v1876, 32
      %v1911 = vpop.permute.xlu0 %1910
      %1912 = vrot.lane.b32.xlu0 %v1877, 32
      %v1913 = vpop.permute.xlu0 %1912
      %vm1926 = vcmask 523520
      %1927 = vst.msk [vmem:[#allocation3] sm:$0xff] %vm1926, %v1891
      %1928 = vst.msk [vmem:[#allocation3 + $0x20] sm:$0xff] %vm1926, %v1893
      %1929 = vst.msk [vmem:[#allocation3 + $0x40] sm:$0xff] %vm1926, %v1895
      %1930 = vst.msk [vmem:[#allocation3 + $0x60] sm:$0xff] %vm1926, %v1897
      %1931 = vst.msk [vmem:[#allocation3 + $0x80] sm:$0xff] %vm1926, %v1899
      %1932 = vst.msk [vmem:[#allocation3 + $0xa0] sm:$0xff] %vm1926, %v1901
      %1933 = vst.msk [vmem:[#allocation3 + $0xc0] sm:$0xff] %vm1926, %v1903
      %1934 = vst.msk [vmem:[#allocation3 + $0xe0] sm:$0xff] %vm1926, %v1905
      %1935 = vst.msk [vmem:[#allocation3 + $0x100] sm:$0xff] %vm1926, %v1907
      %1936 = vst.msk [vmem:[#allocation3 + $0x120] sm:$0xff] %vm1926, %v1909
      %1937 = vst.msk [vmem:[#allocation3 + $0x140] sm:$0xff] %vm1926, %v1911
      %vm1938 = vcmask 517376
      %1939 = vst.msk [vmem:[#allocation3 + $0x160] sm:$0x3] %vm1938, %v1913
      %v1940 = vld [vmem:[#allocation2 + $0x1] sm:$0xff]
      %v1941 = vld [vmem:[#allocation2 + $0x9] sm:$0xff]
      %v1942 = vld [vmem:[#allocation2 + $0x11] sm:$0xff]
      %v1943 = vld [vmem:[#allocation2 + $0x19] sm:$0xff]
      %v1944 = vld [vmem:[#allocation2 + $0x21] sm:$0xff]
      %v1945 = vld [vmem:[#allocation2 + $0x29] sm:$0xff]
      %v1946 = vld [vmem:[#allocation2 + $0x31] sm:$0xff]
      %v1947 = vld [vmem:[#allocation2 + $0x39] sm:$0xff]
      %v1948 = vld [vmem:[#allocation2 + $0x41] sm:$0xff]
      %v1949 = vld [vmem:[#allocation2 + $0x49] sm:$0xff]
      %v1950 = vld [vmem:[#allocation2 + $0x51] sm:$0xff]
      %v1951 = vld [vmem:[#allocation2 + $0x59] sm:$0x3]
      %1964 = vrot.lane.b32.xlu0 %v1940, 64
      %v1965 = vpop.permute.xlu0 %1964
      %1966 = vrot.lane.b32.xlu0 %v1941, 64
      %v1967 = vpop.permute.xlu0 %1966
      %1968 = vrot.lane.b32.xlu0 %v1942, 64
      %v1969 = vpop.permute.xlu0 %1968
      %1970 = vrot.lane.b32.xlu0 %v1943, 64
      %v1971 = vpop.permute.xlu0 %1970
      %1972 = vrot.lane.b32.xlu0 %v1944, 64
      %v1973 = vpop.permute.xlu0 %1972
      %1974 = vrot.lane.b32.xlu0 %v1945, 64
      %v1975 = vpop.permute.xlu0 %1974
      %1976 = vrot.lane.b32.xlu0 %v1946, 64
      %v1977 = vpop.permute.xlu0 %1976
      %1978 = vrot.lane.b32.xlu0 %v1947, 64
      %v1979 = vpop.permute.xlu0 %1978
      %1980 = vrot.lane.b32.xlu0 %v1948, 64
      %v1981 = vpop.permute.xlu0 %1980
      %1982 = vrot.lane.b32.xlu0 %v1949, 64
      %v1983 = vpop.permute.xlu0 %1982
      %1984 = vrot.lane.b32.xlu0 %v1950, 64
      %v1985 = vpop.permute.xlu0 %1984
      %1986 = vrot.lane.b32.xlu0 %v1951, 64
      %v1987 = vpop.permute.xlu0 %1986
      %vm2000 = vcmask 785920
      %2001 = vst.msk [vmem:[#allocation3] sm:$0xff] %vm2000, %v1965
      %2002 = vst.msk [vmem:[#allocation3 + $0x20] sm:$0xff] %vm2000, %v1967
      %2003 = vst.msk [vmem:[#allocation3 + $0x40] sm:$0xff] %vm2000, %v1969
      %2004 = vst.msk [vmem:[#allocation3 + $0x60] sm:$0xff] %vm2000, %v1971
      %2005 = vst.msk [vmem:[#allocation3 + $0x80] sm:$0xff] %vm2000, %v1973
      %2006 = vst.msk [vmem:[#allocation3 + $0xa0] sm:$0xff] %vm2000, %v1975
      %2007 = vst.msk [vmem:[#allocation3 + $0xc0] sm:$0xff] %vm2000, %v1977
      %2008 = vst.msk [vmem:[#allocation3 + $0xe0] sm:$0xff] %vm2000, %v1979
      %2009 = vst.msk [vmem:[#allocation3 + $0x100] sm:$0xff] %vm2000, %v1981
      %2010 = vst.msk [vmem:[#allocation3 + $0x120] sm:$0xff] %vm2000, %v1983
      %2011 = vst.msk [vmem:[#allocation3 + $0x140] sm:$0xff] %vm2000, %v1985
      %vm2012 = vcmask 779776
      %2013 = vst.msk [vmem:[#allocation3 + $0x160] sm:$0x3] %vm2012, %v1987
      %v2014 = vld [vmem:[#allocation2 + $0x69] sm:$0xff]
      %v2015 = vld [vmem:[#allocation2 + $0x71] sm:$0xff]
      %v2016 = vld [vmem:[#allocation2 + $0x79] sm:$0xff]
      %v2017 = vld [vmem:[#allocation2 + $0x81] sm:$0xff]
      %v2018 = vld [vmem:[#allocation2 + $0x89] sm:$0xff]
      %v2019 = vld [vmem:[#allocation2 + $0x91] sm:$0xff]
      %v2020 = vld [vmem:[#allocation2 + $0x99] sm:$0xff]
      %v2021 = vld [vmem:[#allocation2 + $0xa1] sm:$0xff]
      %v2022 = vld [vmem:[#allocation2 + $0xa9] sm:$0xff]
      %v2023 = vld [vmem:[#allocation2 + $0xb1] sm:$0xff]
      %v2024 = vld [vmem:[#allocation2 + $0xb9] sm:$0xff]
      %v2025 = vld [vmem:[#allocation2 + $0xc1] sm:$0x3]
      %2038 = vrot.lane.b32.xlu0 %v2014, 96
      %v2039 = vpop.permute.xlu0 %2038
      %2040 = vrot.lane.b32.xlu0 %v2015, 96
      %v2041 = vpop.permute.xlu0 %2040
      %2042 = vrot.lane.b32.xlu0 %v2016, 96
      %v2043 = vpop.permute.xlu0 %2042
      %2044 = vrot.lane.b32.xlu0 %v2017, 96
      %v2045 = vpop.permute.xlu0 %2044
      %2046 = vrot.lane.b32.xlu0 %v2018, 96
      %v2047 = vpop.permute.xlu0 %2046
      %2048 = vrot.lane.b32.xlu0 %v2019, 96
      %v2049 = vpop.permute.xlu0 %2048
      %2050 = vrot.lane.b32.xlu0 %v2020, 96
      %v2051 = vpop.permute.xlu0 %2050
      %2052 = vrot.lane.b32.xlu0 %v2021, 96
      %v2053 = vpop.permute.xlu0 %2052
      %2054 = vrot.lane.b32.xlu0 %v2022, 96
      %v2055 = vpop.permute.xlu0 %2054
      %2056 = vrot.lane.b32.xlu0 %v2023, 96
      %v2057 = vpop.permute.xlu0 %2056
      %2058 = vrot.lane.b32.xlu0 %v2024, 96
      %v2059 = vpop.permute.xlu0 %2058
      %2060 = vrot.lane.b32.xlu0 %v2025, 96
      %v2061 = vpop.permute.xlu0 %2060
      %vm2074 = vcmask 1048320
      %2075 = vst.msk [vmem:[#allocation3] sm:$0xff] %vm2074, %v2039
      %2076 = vst.msk [vmem:[#allocation3 + $0x20] sm:$0xff] %vm2074, %v2041
      %2077 = vst.msk [vmem:[#allocation3 + $0x40] sm:$0xff] %vm2074, %v2043
      %2078 = vst.msk [vmem:[#allocation3 + $0x60] sm:$0xff] %vm2074, %v2045
      %2079 = vst.msk [vmem:[#allocation3 + $0x80] sm:$0xff] %vm2074, %v2047
      %2080 = vst.msk [vmem:[#allocation3 + $0xa0] sm:$0xff] %vm2074, %v2049
      %2081 = vst.msk [vmem:[#allocation3 + $0xc0] sm:$0xff] %vm2074, %v2051
      %2082 = vst.msk [vmem:[#allocation3 + $0xe0] sm:$0xff] %vm2074, %v2053
      %2083 = vst.msk [vmem:[#allocation3 + $0x100] sm:$0xff] %vm2074, %v2055
      %2084 = vst.msk [vmem:[#allocation3 + $0x120] sm:$0xff] %vm2074, %v2057
      %2085 = vst.msk [vmem:[#allocation3 + $0x140] sm:$0xff] %vm2074, %v2059
      %vm2086 = vcmask 1042176
      %2087 = vst.msk [vmem:[#allocation3 + $0x160] sm:$0x3] %vm2086, %v2061
      %v2088 = vld [vmem:[#allocation2 + $0xd0] sm:$0xff]
      %v2089 = vld [vmem:[#allocation2 + $0xd8] sm:$0xff]
      %v2090 = vld [vmem:[#allocation2 + $0xe0] sm:$0xff]
      %v2091 = vld [vmem:[#allocation2 + $0xe8] sm:$0xff]
      %v2092 = vld [vmem:[#allocation2 + $0xf0] sm:$0xff]
      %v2093 = vld [vmem:[#allocation2 + $0xf8] sm:$0xff]
      %v2094 = vld [vmem:[#allocation2 + $0x100] sm:$0xff]
      %v2095 = vld [vmem:[#allocation2 + $0x108] sm:$0xff]
      %v2096 = vld [vmem:[#allocation2 + $0x110] sm:$0xff]
      %v2097 = vld [vmem:[#allocation2 + $0x118] sm:$0xff]
      %v2098 = vld [vmem:[#allocation2 + $0x120] sm:$0xff]
      %v2099 = vld [vmem:[#allocation2 + $0x128] sm:$0x3]
      %2100 = vst.msk [vmem:[#allocation3 + $0x8] sm:$0xff] %vm1784, %v2088
      %2101 = vst.msk [vmem:[#allocation3 + $0x28] sm:$0xff] %vm1784, %v2089
      %2102 = vst.msk [vmem:[#allocation3 + $0x48] sm:$0xff] %vm1784, %v2090
      %2103 = vst.msk [vmem:[#allocation3 + $0x68] sm:$0xff] %vm1784, %v2091
      %2104 = vst.msk [vmem:[#allocation3 + $0x88] sm:$0xff] %vm1784, %v2092
      %2105 = vst.msk [vmem:[#allocation3 + $0xa8] sm:$0xff] %vm1784, %v2093
      %2106 = vst.msk [vmem:[#allocation3 + $0xc8] sm:$0xff] %vm1784, %v2094
      %2107 = vst.msk [vmem:[#allocation3 + $0xe8] sm:$0xff] %vm1784, %v2095
      %2108 = vst.msk [vmem:[#allocation3 + $0x108] sm:$0xff] %vm1784, %v2096
      %2109 = vst.msk [vmem:[#allocation3 + $0x128] sm:$0xff] %vm1784, %v2097
      %2110 = vst.msk [vmem:[#allocation3 + $0x148] sm:$0xff] %vm1784, %v2098
      %2111 = vst.msk [vmem:[#allocation3 + $0x168] sm:$0x3] %vm1864, %v2099
      %v2112 = vld [vmem:[#allocation2 + $0x138] sm:$0xff]
      %v2113 = vld [vmem:[#allocation2 + $0x140] sm:$0xff]
      %v2114 = vld [vmem:[#allocation2 + $0x148] sm:$0xff]
      %v2115 = vld [vmem:[#allocation2 + $0x150] sm:$0xff]
      %v2116 = vld [vmem:[#allocation2 + $0x158] sm:$0xff]
      %v2117 = vld [vmem:[#allocation2 + $0x160] sm:$0xff]
      %v2118 = vld [vmem:[#allocation2 + $0x168] sm:$0xff]
      %v2119 = vld [vmem:[#allocation2 + $0x170] sm:$0xff]
      %v2120 = vld [vmem:[#allocation2 + $0x178] sm:$0xff]
      %v2121 = vld [vmem:[#allocation2 + $0x180] sm:$0xff]
      %v2122 = vld [vmem:[#allocation2 + $0x188] sm:$0xff]
      %v2123 = vld [vmem:[#allocation2 + $0x190] sm:$0x3]
      %2136 = vrot.lane.b32.xlu0 %v2112, 32
      %v2137 = vpop.permute.xlu0 %2136
      %2138 = vrot.lane.b32.xlu0 %v2113, 32
      %v2139 = vpop.permute.xlu0 %2138
      %2140 = vrot.lane.b32.xlu0 %v2114, 32
      %v2141 = vpop.permute.xlu0 %2140
      %2142 = vrot.lane.b32.xlu0 %v2115, 32
      %v2143 = vpop.permute.xlu0 %2142
      %2144 = vrot.lane.b32.xlu0 %v2116, 32
      %v2145 = vpop.permute.xlu0 %2144
      %2146 = vrot.lane.b32.xlu0 %v2117, 32
      %v2147 = vpop.permute.xlu0 %2146
      %2148 = vrot.lane.b32.xlu0 %v2118, 32
      %v2149 = vpop.permute.xlu0 %2148
      %2150 = vrot.lane.b32.xlu0 %v2119, 32
      %v2151 = vpop.permute.xlu0 %2150
      %2152 = vrot.lane.b32.xlu0 %v2120, 32
      %v2153 = vpop.permute.xlu0 %2152
      %2154 = vrot.lane.b32.xlu0 %v2121, 32
      %v2155 = vpop.permute.xlu0 %2154
      %2156 = vrot.lane.b32.xlu0 %v2122, 32
      %v2157 = vpop.permute.xlu0 %2156
      %2158 = vrot.lane.b32.xlu0 %v2123, 32
      %v2159 = vpop.permute.xlu0 %2158
      %2172 = vst.msk [vmem:[#allocation3 + $0x8] sm:$0xff] %vm1926, %v2137
      %2173 = vst.msk [vmem:[#allocation3 + $0x28] sm:$0xff] %vm1926, %v2139
      %2174 = vst.msk [vmem:[#allocation3 + $0x48] sm:$0xff] %vm1926, %v2141
      %2175 = vst.msk [vmem:[#allocation3 + $0x68] sm:$0xff] %vm1926, %v2143
      %2176 = vst.msk [vmem:[#allocation3 + $0x88] sm:$0xff] %vm1926, %v2145
      %2177 = vst.msk [vmem:[#allocation3 + $0xa8] sm:$0xff] %vm1926, %v2147
      %2178 = vst.msk [vmem:[#allocation3 + $0xc8] sm:$0xff] %vm1926, %v2149
      %2179 = vst.msk [vmem:[#allocation3 + $0xe8] sm:$0xff] %vm1926, %v2151
      %2180 = vst.msk [vmem:[#allocation3 + $0x108] sm:$0xff] %vm1926, %v2153
      %2181 = vst.msk [vmem:[#allocation3 + $0x128] sm:$0xff] %vm1926, %v2155
      %2182 = vst.msk [vmem:[#allocation3 + $0x148] sm:$0xff] %vm1926, %v2157
      %2183 = vst.msk [vmem:[#allocation3 + $0x168] sm:$0x3] %vm1938, %v2159
      %v2184 = vld [vmem:[#allocation2 + $0xd1] sm:$0xff]
      %v2185 = vld [vmem:[#allocation2 + $0xd9] sm:$0xff]
      %v2186 = vld [vmem:[#allocation2 + $0xe1] sm:$0xff]
      %v2187 = vld [vmem:[#allocation2 + $0xe9] sm:$0xff]
      %v2188 = vld [vmem:[#allocation2 + $0xf1] sm:$0xff]
      %v2189 = vld [vmem:[#allocation2 + $0xf9] sm:$0xff]
      %v2190 = vld [vmem:[#allocation2 + $0x101] sm:$0xff]
      %v2191 = vld [vmem:[#allocation2 + $0x109] sm:$0xff]
      %v2192 = vld [vmem:[#allocation2 + $0x111] sm:$0xff]
      %v2193 = vld [vmem:[#allocation2 + $0x119] sm:$0xff]
      %v2194 = vld [vmem:[#allocation2 + $0x121] sm:$0xff]
      %v2195 = vld [vmem:[#allocation2 + $0x129] sm:$0x3]
      %2208 = vrot.lane.b32.xlu0 %v2184, 64
      %v2209 = vpop.permute.xlu0 %2208
      %2210 = vrot.lane.b32.xlu0 %v2185, 64
      %v2211 = vpop.permute.xlu0 %2210
      %2212 = vrot.lane.b32.xlu0 %v2186, 64
      %v2213 = vpop.permute.xlu0 %2212
      %2214 = vrot.lane.b32.xlu0 %v2187, 64
      %v2215 = vpop.permute.xlu0 %2214
      %2216 = vrot.lane.b32.xlu0 %v2188, 64
      %v2217 = vpop.permute.xlu0 %2216
      %2218 = vrot.lane.b32.xlu0 %v2189, 64
      %v2219 = vpop.permute.xlu0 %2218
      %2220 = vrot.lane.b32.xlu0 %v2190, 64
      %v2221 = vpop.permute.xlu0 %2220
      %2222 = vrot.lane.b32.xlu0 %v2191, 64
      %v2223 = vpop.permute.xlu0 %2222
      %2224 = vrot.lane.b32.xlu0 %v2192, 64
      %v2225 = vpop.permute.xlu0 %2224
      %2226 = vrot.lane.b32.xlu0 %v2193, 64
      %v2227 = vpop.permute.xlu0 %2226
      %2228 = vrot.lane.b32.xlu0 %v2194, 64
      %v2229 = vpop.permute.xlu0 %2228
      %2230 = vrot.lane.b32.xlu0 %v2195, 64
      %v2231 = vpop.permute.xlu0 %2230
      %2244 = vst.msk [vmem:[#allocation3 + $0x8] sm:$0xff] %vm2000, %v2209
      %2245 = vst.msk [vmem:[#allocation3 + $0x28] sm:$0xff] %vm2000, %v2211
      %2246 = vst.msk [vmem:[#allocation3 + $0x48] sm:$0xff] %vm2000, %v2213
      %2247 = vst.msk [vmem:[#allocation3 + $0x68] sm:$0xff] %vm2000, %v2215
      %2248 = vst.msk [vmem:[#allocation3 + $0x88] sm:$0xff] %vm2000, %v2217
      %2249 = vst.msk [vmem:[#allocation3 + $0xa8] sm:$0xff] %vm2000, %v2219
      %2250 = vst.msk [vmem:[#allocation3 + $0xc8] sm:$0xff] %vm2000, %v2221
      %2251 = vst.msk [vmem:[#allocation3 + $0xe8] sm:$0xff] %vm2000, %v2223
      %2252 = vst.msk [vmem:[#allocation3 + $0x108] sm:$0xff] %vm2000, %v2225
      %2253 = vst.msk [vmem:[#allocation3 + $0x128] sm:$0xff] %vm2000, %v2227
      %2254 = vst.msk [vmem:[#allocation3 + $0x148] sm:$0xff] %vm2000, %v2229
      %2255 = vst.msk [vmem:[#allocation3 + $0x168] sm:$0x3] %vm2012, %v2231
      %v2256 = vld [vmem:[#allocation2 + $0x139] sm:$0xff]
      %v2257 = vld [vmem:[#allocation2 + $0x141] sm:$0xff]
      %v2258 = vld [vmem:[#allocation2 + $0x149] sm:$0xff]
      %v2259 = vld [vmem:[#allocation2 + $0x151] sm:$0xff]
      %v2260 = vld [vmem:[#allocation2 + $0x159] sm:$0xff]
      %v2261 = vld [vmem:[#allocation2 + $0x161] sm:$0xff]
      %v2262 = vld [vmem:[#allocation2 + $0x169] sm:$0xff]
      %v2263 = vld [vmem:[#allocation2 + $0x171] sm:$0xff]
      %v2264 = vld [vmem:[#allocation2 + $0x179] sm:$0xff]
      %v2265 = vld [vmem:[#allocation2 + $0x181] sm:$0xff]
      %v2266 = vld [vmem:[#allocation2 + $0x189] sm:$0xff]
      %v2267 = vld [vmem:[#allocation2 + $0x191] sm:$0x3]
      %2280 = vrot.lane.b32.xlu0 %v2256, 96
      %v2281 = vpop.permute.xlu0 %2280
      %2282 = vrot.lane.b32.xlu0 %v2257, 96
      %v2283 = vpop.permute.xlu0 %2282
      %2284 = vrot.lane.b32.xlu0 %v2258, 96
      %v2285 = vpop.permute.xlu0 %2284
      %2286 = vrot.lane.b32.xlu0 %v2259, 96
      %v2287 = vpop.permute.xlu0 %2286
      %2288 = vrot.lane.b32.xlu0 %v2260, 96
      %v2289 = vpop.permute.xlu0 %2288
      %2290 = vrot.lane.b32.xlu0 %v2261, 96
      %v2291 = vpop.permute.xlu0 %2290
      %2292 = vrot.lane.b32.xlu0 %v2262, 96
      %v2293 = vpop.permute.xlu0 %2292
      %2294 = vrot.lane.b32.xlu0 %v2263, 96
      %v2295 = vpop.permute.xlu0 %2294
      %2296 = vrot.lane.b32.xlu0 %v2264, 96
      %v2297 = vpop.permute.xlu0 %2296
      %2298 = vrot.lane.b32.xlu0 %v2265, 96
      %v2299 = vpop.permute.xlu0 %2298
      %2300 = vrot.lane.b32.xlu0 %v2266, 96
      %v2301 = vpop.permute.xlu0 %2300
      %2302 = vrot.lane.b32.xlu0 %v2267, 96
      %v2303 = vpop.permute.xlu0 %2302
      %2316 = vst.msk [vmem:[#allocation3 + $0x8] sm:$0xff] %vm2074, %v2281
      %2317 = vst.msk [vmem:[#allocation3 + $0x28] sm:$0xff] %vm2074, %v2283
      %2318 = vst.msk [vmem:[#allocation3 + $0x48] sm:$0xff] %vm2074, %v2285
      %2319 = vst.msk [vmem:[#allocation3 + $0x68] sm:$0xff] %vm2074, %v2287
      %2320 = vst.msk [vmem:[#allocation3 + $0x88] sm:$0xff] %vm2074, %v2289
      %2321 = vst.msk [vmem:[#allocation3 + $0xa8] sm:$0xff] %vm2074, %v2291
      %2322 = vst.msk [vmem:[#allocation3 + $0xc8] sm:$0xff] %vm2074, %v2293
      %2323 = vst.msk [vmem:[#allocation3 + $0xe8] sm:$0xff] %vm2074, %v2295
      %2324 = vst.msk [vmem:[#allocation3 + $0x108] sm:$0xff] %vm2074, %v2297
      %2325 = vst.msk [vmem:[#allocation3 + $0x128] sm:$0xff] %vm2074, %v2299
      %2326 = vst.msk [vmem:[#allocation3 + $0x148] sm:$0xff] %vm2074, %v2301
      %2327 = vst.msk [vmem:[#allocation3 + $0x168] sm:$0x3] %vm2086, %v2303
      %v2328 = vld [vmem:[#allocation2 + $0xa] sm:$0xff]
      %v2329 = vld [vmem:[#allocation2 + $0x12] sm:$0xff]
      %v2330 = vld [vmem:[#allocation2 + $0x1a] sm:$0xff]
      %v2331 = vld [vmem:[#allocation2 + $0x22] sm:$0xff]
      %v2332 = vld [vmem:[#allocation2 + $0x2a] sm:$0xff]
      %v2333 = vld [vmem:[#allocation2 + $0x32] sm:$0xff]
      %v2334 = vld [vmem:[#allocation2 + $0x3a] sm:$0xff]
      %v2335 = vld [vmem:[#allocation2 + $0x42] sm:$0xff]
      %v2336 = vld [vmem:[#allocation2 + $0x4a] sm:$0xff]
      %v2337 = vld [vmem:[#allocation2 + $0x52] sm:$0xff]
      %v2338 = vld [vmem:[#allocation2 + $0x5a] sm:$0xff]
      %v2339 = vld [vmem:[#allocation2 + $0x62] sm:$0x3]
      %2340 = vst.msk [vmem:[#allocation3 + $0x10] sm:$0xff] %vm1784, %v2328
      %2341 = vst.msk [vmem:[#allocation3 + $0x30] sm:$0xff] %vm1784, %v2329
      %2342 = vst.msk [vmem:[#allocation3 + $0x50] sm:$0xff] %vm1784, %v2330
      %2343 = vst.msk [vmem:[#allocation3 + $0x70] sm:$0xff] %vm1784, %v2331
      %2344 = vst.msk [vmem:[#allocation3 + $0x90] sm:$0xff] %vm1784, %v2332
      %2345 = vst.msk [vmem:[#allocation3 + $0xb0] sm:$0xff] %vm1784, %v2333
      %2346 = vst.msk [vmem:[#allocation3 + $0xd0] sm:$0xff] %vm1784, %v2334
      %2347 = vst.msk [vmem:[#allocation3 + $0xf0] sm:$0xff] %vm1784, %v2335
      %2348 = vst.msk [vmem:[#allocation3 + $0x110] sm:$0xff] %vm1784, %v2336
      %2349 = vst.msk [vmem:[#allocation3 + $0x130] sm:$0xff] %vm1784, %v2337
      %2350 = vst.msk [vmem:[#allocation3 + $0x150] sm:$0xff] %vm1784, %v2338
      %2351 = vst.msk [vmem:[#allocation3 + $0x170] sm:$0x3] %vm1864, %v2339
      %v2352 = vld [vmem:[#allocation2 + $0x72] sm:$0xff]
      %v2353 = vld [vmem:[#allocation2 + $0x7a] sm:$0xff]
      %v2354 = vld [vmem:[#allocation2 + $0x82] sm:$0xff]
      %v2355 = vld [vmem:[#allocation2 + $0x8a] sm:$0xff]
      %v2356 = vld [vmem:[#allocation2 + $0x92] sm:$0xff]
      %v2357 = vld [vmem:[#allocation2 + $0x9a] sm:$0xff]
      %v2358 = vld [vmem:[#allocation2 + $0xa2] sm:$0xff]
      %v2359 = vld [vmem:[#allocation2 + $0xaa] sm:$0xff]
      %v2360 = vld [vmem:[#allocation2 + $0xb2] sm:$0xff]
      %v2361 = vld [vmem:[#allocation2 + $0xba] sm:$0xff]
      %v2362 = vld [vmem:[#allocation2 + $0xc2] sm:$0xff]
      %v2363 = vld [vmem:[#allocation2 + $0xca] sm:$0x3]
      %2376 = vrot.lane.b32.xlu0 %v2352, 32
      %v2377 = vpop.permute.xlu0 %2376
      %2378 = vrot.lane.b32.xlu0 %v2353, 32
      %v2379 = vpop.permute.xlu0 %2378
      %2380 = vrot.lane.b32.xlu0 %v2354, 32
      %v2381 = vpop.permute.xlu0 %2380
      %2382 = vrot.lane.b32.xlu0 %v2355, 32
      %v2383 = vpop.permute.xlu0 %2382
      %2384 = vrot.lane.b32.xlu0 %v2356, 32
      %v2385 = vpop.permute.xlu0 %2384
      %2386 = vrot.lane.b32.xlu0 %v2357, 32
      %v2387 = vpop.permute.xlu0 %2386
      %2388 = vrot.lane.b32.xlu0 %v2358, 32
      %v2389 = vpop.permute.xlu0 %2388
      %2390 = vrot.lane.b32.xlu0 %v2359, 32
      %v2391 = vpop.permute.xlu0 %2390
      %2392 = vrot.lane.b32.xlu0 %v2360, 32
      %v2393 = vpop.permute.xlu0 %2392
      %2394 = vrot.lane.b32.xlu0 %v2361, 32
      %v2395 = vpop.permute.xlu0 %2394
      %2396 = vrot.lane.b32.xlu0 %v2362, 32
      %v2397 = vpop.permute.xlu0 %2396
      %2398 = vrot.lane.b32.xlu0 %v2363, 32
      %v2399 = vpop.permute.xlu0 %2398
      %2412 = vst.msk [vmem:[#allocation3 + $0x10] sm:$0xff] %vm1926, %v2377
      %2413 = vst.msk [vmem:[#allocation3 + $0x30] sm:$0xff] %vm1926, %v2379
      %2414 = vst.msk [vmem:[#allocation3 + $0x50] sm:$0xff] %vm1926, %v2381
      %2415 = vst.msk [vmem:[#allocation3 + $0x70] sm:$0xff] %vm1926, %v2383
      %2416 = vst.msk [vmem:[#allocation3 + $0x90] sm:$0xff] %vm1926, %v2385
      %2417 = vst.msk [vmem:[#allocation3 + $0xb0] sm:$0xff] %vm1926, %v2387
      %2418 = vst.msk [vmem:[#allocation3 + $0xd0] sm:$0xff] %vm1926, %v2389
      %2419 = vst.msk [vmem:[#allocation3 + $0xf0] sm:$0xff] %vm1926, %v2391
      %2420 = vst.msk [vmem:[#allocation3 + $0x110] sm:$0xff] %vm1926, %v2393
      %2421 = vst.msk [vmem:[#allocation3 + $0x130] sm:$0xff] %vm1926, %v2395
      %2422 = vst.msk [vmem:[#allocation3 + $0x150] sm:$0xff] %vm1926, %v2397
      %2423 = vst.msk [vmem:[#allocation3 + $0x170] sm:$0x3] %vm1938, %v2399
      %v2424 = vld [vmem:[#allocation2 + $0xb] sm:$0xff]
      %v2425 = vld [vmem:[#allocation2 + $0x13] sm:$0xff]
      %v2426 = vld [vmem:[#allocation2 + $0x1b] sm:$0xff]
      %v2427 = vld [vmem:[#allocation2 + $0x23] sm:$0xff]
      %v2428 = vld [vmem:[#allocation2 + $0x2b] sm:$0xff]
      %v2429 = vld [vmem:[#allocation2 + $0x33] sm:$0xff]
      %v2430 = vld [vmem:[#allocation2 + $0x3b] sm:$0xff]
      %v2431 = vld [vmem:[#allocation2 + $0x43] sm:$0xff]
      %v2432 = vld [vmem:[#allocation2 + $0x4b] sm:$0xff]
      %v2433 = vld [vmem:[#allocation2 + $0x53] sm:$0xff]
      %v2434 = vld [vmem:[#allocation2 + $0x5b] sm:$0xff]
      %v2435 = vld [vmem:[#allocation2 + $0x63] sm:$0x3]
      %2448 = vrot.lane.b32.xlu0 %v2424, 64
      %v2449 = vpop.permute.xlu0 %2448
      %2450 = vrot.lane.b32.xlu0 %v2425, 64
      %v2451 = vpop.permute.xlu0 %2450
      %2452 = vrot.lane.b32.xlu0 %v2426, 64
      %v2453 = vpop.permute.xlu0 %2452
      %2454 = vrot.lane.b32.xlu0 %v2427, 64
      %v2455 = vpop.permute.xlu0 %2454
      %2456 = vrot.lane.b32.xlu0 %v2428, 64
      %v2457 = vpop.permute.xlu0 %2456
      %2458 = vrot.lane.b32.xlu0 %v2429, 64
      %v2459 = vpop.permute.xlu0 %2458
      %2460 = vrot.lane.b32.xlu0 %v2430, 64
      %v2461 = vpop.permute.xlu0 %2460
      %2462 = vrot.lane.b32.xlu0 %v2431, 64
      %v2463 = vpop.permute.xlu0 %2462
      %2464 = vrot.lane.b32.xlu0 %v2432, 64
      %v2465 = vpop.permute.xlu0 %2464
      %2466 = vrot.lane.b32.xlu0 %v2433, 64
      %v2467 = vpop.permute.xlu0 %2466
      %2468 = vrot.lane.b32.xlu0 %v2434, 64
      %v2469 = vpop.permute.xlu0 %2468
      %2470 = vrot.lane.b32.xlu0 %v2435, 64
      %v2471 = vpop.permute.xlu0 %2470
      %2484 = vst.msk [vmem:[#allocation3 + $0x10] sm:$0xff] %vm2000, %v2449
      %2485 = vst.msk [vmem:[#allocation3 + $0x30] sm:$0xff] %vm2000, %v2451
      %2486 = vst.msk [vmem:[#allocation3 + $0x50] sm:$0xff] %vm2000, %v2453
      %2487 = vst.msk [vmem:[#allocation3 + $0x70] sm:$0xff] %vm2000, %v2455
      %2488 = vst.msk [vmem:[#allocation3 + $0x90] sm:$0xff] %vm2000, %v2457
      %2489 = vst.msk [vmem:[#allocation3 + $0xb0] sm:$0xff] %vm2000, %v2459
      %2490 = vst.msk [vmem:[#allocation3 + $0xd0] sm:$0xff] %vm2000, %v2461
      %2491 = vst.msk [vmem:[#allocation3 + $0xf0] sm:$0xff] %vm2000, %v2463
      %2492 = vst.msk [vmem:[#allocation3 + $0x110] sm:$0xff] %vm2000, %v2465
      %2493 = vst.msk [vmem:[#allocation3 + $0x130] sm:$0xff] %vm2000, %v2467
      %2494 = vst.msk [vmem:[#allocation3 + $0x150] sm:$0xff] %vm2000, %v2469
      %2495 = vst.msk [vmem:[#allocation3 + $0x170] sm:$0x3] %vm2012, %v2471
      %v2496 = vld [vmem:[#allocation2 + $0x73] sm:$0xff]
      %v2497 = vld [vmem:[#allocation2 + $0x7b] sm:$0xff]
      %v2498 = vld [vmem:[#allocation2 + $0x83] sm:$0xff]
      %v2499 = vld [vmem:[#allocation2 + $0x8b] sm:$0xff]
      %v2500 = vld [vmem:[#allocation2 + $0x93] sm:$0xff]
      %v2501 = vld [vmem:[#allocation2 + $0x9b] sm:$0xff]
      %v2502 = vld [vmem:[#allocation2 + $0xa3] sm:$0xff]
      %v2503 = vld [vmem:[#allocation2 + $0xab] sm:$0xff]
      %v2504 = vld [vmem:[#allocation2 + $0xb3] sm:$0xff]
      %v2505 = vld [vmem:[#allocation2 + $0xbb] sm:$0xff]
      %v2506 = vld [vmem:[#allocation2 + $0xc3] sm:$0xff]
      %v2507 = vld [vmem:[#allocation2 + $0xcb] sm:$0x3]
      %2520 = vrot.lane.b32.xlu0 %v2496, 96
      %v2521 = vpop.permute.xlu0 %2520
      %2522 = vrot.lane.b32.xlu0 %v2497, 96
      %v2523 = vpop.permute.xlu0 %2522
      %2524 = vrot.lane.b32.xlu0 %v2498, 96
      %v2525 = vpop.permute.xlu0 %2524
      %2526 = vrot.lane.b32.xlu0 %v2499, 96
      %v2527 = vpop.permute.xlu0 %2526
      %2528 = vrot.lane.b32.xlu0 %v2500, 96
      %v2529 = vpop.permute.xlu0 %2528
      %2530 = vrot.lane.b32.xlu0 %v2501, 96
      %v2531 = vpop.permute.xlu0 %2530
      %2532 = vrot.lane.b32.xlu0 %v2502, 96
      %v2533 = vpop.permute.xlu0 %2532
      %2534 = vrot.lane.b32.xlu0 %v2503, 96
      %v2535 = vpop.permute.xlu0 %2534
      %2536 = vrot.lane.b32.xlu0 %v2504, 96
      %v2537 = vpop.permute.xlu0 %2536
      %2538 = vrot.lane.b32.xlu0 %v2505, 96
      %v2539 = vpop.permute.xlu0 %2538
      %2540 = vrot.lane.b32.xlu0 %v2506, 96
      %v2541 = vpop.permute.xlu0 %2540
      %2542 = vrot.lane.b32.xlu0 %v2507, 96
      %v2543 = vpop.permute.xlu0 %2542
      %2556 = vst.msk [vmem:[#allocation3 + $0x10] sm:$0xff] %vm2074, %v2521
      %2557 = vst.msk [vmem:[#allocation3 + $0x30] sm:$0xff] %vm2074, %v2523
      %2558 = vst.msk [vmem:[#allocation3 + $0x50] sm:$0xff] %vm2074, %v2525
      %2559 = vst.msk [vmem:[#allocation3 + $0x70] sm:$0xff] %vm2074, %v2527
      %2560 = vst.msk [vmem:[#allocation3 + $0x90] sm:$0xff] %vm2074, %v2529
      %2561 = vst.msk [vmem:[#allocation3 + $0xb0] sm:$0xff] %vm2074, %v2531
      %2562 = vst.msk [vmem:[#allocation3 + $0xd0] sm:$0xff] %vm2074, %v2533
      %2563 = vst.msk [vmem:[#allocation3 + $0xf0] sm:$0xff] %vm2074, %v2535
      %2564 = vst.msk [vmem:[#allocation3 + $0x110] sm:$0xff] %vm2074, %v2537
      %2565 = vst.msk [vmem:[#allocation3 + $0x130] sm:$0xff] %vm2074, %v2539
      %2566 = vst.msk [vmem:[#allocation3 + $0x150] sm:$0xff] %vm2074, %v2541
      %2567 = vst.msk [vmem:[#allocation3 + $0x170] sm:$0x3] %vm2086, %v2543
      %v2568 = vld [vmem:[#allocation2 + $0xda] sm:$0xff]
      %v2569 = vld [vmem:[#allocation2 + $0xe2] sm:$0xff]
      %v2570 = vld [vmem:[#allocation2 + $0xea] sm:$0xff]
      %v2571 = vld [vmem:[#allocation2 + $0xf2] sm:$0xff]
      %v2572 = vld [vmem:[#allocation2 + $0xfa] sm:$0xff]
      %v2573 = vld [vmem:[#allocation2 + $0x102] sm:$0xff]
      %v2574 = vld [vmem:[#allocation2 + $0x10a] sm:$0xff]
      %v2575 = vld [vmem:[#allocation2 + $0x112] sm:$0xff]
      %v2576 = vld [vmem:[#allocation2 + $0x11a] sm:$0xff]
      %v2577 = vld [vmem:[#allocation2 + $0x122] sm:$0xff]
      %v2578 = vld [vmem:[#allocation2 + $0x12a] sm:$0xff]
      %v2579 = vld [vmem:[#allocation2 + $0x132] sm:$0x3]
      %2580 = vst.msk [vmem:[#allocation3 + $0x18] sm:$0xff] %vm1784, %v2568
      %2581 = vst.msk [vmem:[#allocation3 + $0x38] sm:$0xff] %vm1784, %v2569
      %2582 = vst.msk [vmem:[#allocation3 + $0x58] sm:$0xff] %vm1784, %v2570
      %2583 = vst.msk [vmem:[#allocation3 + $0x78] sm:$0xff] %vm1784, %v2571
      %2584 = vst.msk [vmem:[#allocation3 + $0x98] sm:$0xff] %vm1784, %v2572
      %2585 = vst.msk [vmem:[#allocation3 + $0xb8] sm:$0xff] %vm1784, %v2573
      %2586 = vst.msk [vmem:[#allocation3 + $0xd8] sm:$0xff] %vm1784, %v2574
      %2587 = vst.msk [vmem:[#allocation3 + $0xf8] sm:$0xff] %vm1784, %v2575
      %2588 = vst.msk [vmem:[#allocation3 + $0x118] sm:$0xff] %vm1784, %v2576
      %2589 = vst.msk [vmem:[#allocation3 + $0x138] sm:$0xff] %vm1784, %v2577
      %2590 = vst.msk [vmem:[#allocation3 + $0x158] sm:$0xff] %vm1784, %v2578
      %2591 = vst.msk [vmem:[#allocation3 + $0x178] sm:$0x3] %vm1864, %v2579
      %v2592 = vld [vmem:[#allocation2 + $0x142] sm:$0xff]
      %v2593 = vld [vmem:[#allocation2 + $0x14a] sm:$0xff]
      %v2594 = vld [vmem:[#allocation2 + $0x152] sm:$0xff]
      %v2595 = vld [vmem:[#allocation2 + $0x15a] sm:$0xff]
      %v2596 = vld [vmem:[#allocation2 + $0x162] sm:$0xff]
      %v2597 = vld [vmem:[#allocation2 + $0x16a] sm:$0xff]
      %v2598 = vld [vmem:[#allocation2 + $0x172] sm:$0xff]
      %v2599 = vld [vmem:[#allocation2 + $0x17a] sm:$0xff]
      %v2600 = vld [vmem:[#allocation2 + $0x182] sm:$0xff]
      %v2601 = vld [vmem:[#allocation2 + $0x18a] sm:$0xff]
      %v2602 = vld [vmem:[#allocation2 + $0x192] sm:$0xff]
      %v2603 = vld [vmem:[#allocation2 + $0x19a] sm:$0x3]
      %2616 = vrot.lane.b32.xlu0 %v2592, 32
      %v2617 = vpop.permute.xlu0 %2616
      %2618 = vrot.lane.b32.xlu0 %v2593, 32
      %v2619 = vpop.permute.xlu0 %2618
      %2620 = vrot.lane.b32.xlu0 %v2594, 32
      %v2621 = vpop.permute.xlu0 %2620
      %2622 = vrot.lane.b32.xlu0 %v2595, 32
      %v2623 = vpop.permute.xlu0 %2622
      %2624 = vrot.lane.b32.xlu0 %v2596, 32
      %v2625 = vpop.permute.xlu0 %2624
      %2626 = vrot.lane.b32.xlu0 %v2597, 32
      %v2627 = vpop.permute.xlu0 %2626
      %2628 = vrot.lane.b32.xlu0 %v2598, 32
      %v2629 = vpop.permute.xlu0 %2628
      %2630 = vrot.lane.b32.xlu0 %v2599, 32
      %v2631 = vpop.permute.xlu0 %2630
      %2632 = vrot.lane.b32.xlu0 %v2600, 32
      %v2633 = vpop.permute.xlu0 %2632
      %2634 = vrot.lane.b32.xlu0 %v2601, 32
      %v2635 = vpop.permute.xlu0 %2634
      %2636 = vrot.lane.b32.xlu0 %v2602, 32
      %v2637 = vpop.permute.xlu0 %2636
      %2638 = vrot.lane.b32.xlu0 %v2603, 32
      %v2639 = vpop.permute.xlu0 %2638
      %2652 = vst.msk [vmem:[#allocation3 + $0x18] sm:$0xff] %vm1926, %v2617
      %2653 = vst.msk [vmem:[#allocation3 + $0x38] sm:$0xff] %vm1926, %v2619
      %2654 = vst.msk [vmem:[#allocation3 + $0x58] sm:$0xff] %vm1926, %v2621
      %2655 = vst.msk [vmem:[#allocation3 + $0x78] sm:$0xff] %vm1926, %v2623
      %2656 = vst.msk [vmem:[#allocation3 + $0x98] sm:$0xff] %vm1926, %v2625
      %2657 = vst.msk [vmem:[#allocation3 + $0xb8] sm:$0xff] %vm1926, %v2627
      %2658 = vst.msk [vmem:[#allocation3 + $0xd8] sm:$0xff] %vm1926, %v2629
      %2659 = vst.msk [vmem:[#allocation3 + $0xf8] sm:$0xff] %vm1926, %v2631
      %2660 = vst.msk [vmem:[#allocation3 + $0x118] sm:$0xff] %vm1926, %v2633
      %2661 = vst.msk [vmem:[#allocation3 + $0x138] sm:$0xff] %vm1926, %v2635
      %2662 = vst.msk [vmem:[#allocation3 + $0x158] sm:$0xff] %vm1926, %v2637
      %2663 = vst.msk [vmem:[#allocation3 + $0x178] sm:$0x3] %vm1938, %v2639
      %v2664 = vld [vmem:[#allocation2 + $0xdb] sm:$0xff]
      %v2665 = vld [vmem:[#allocation2 + $0xe3] sm:$0xff]
      %v2666 = vld [vmem:[#allocation2 + $0xeb] sm:$0xff]
      %v2667 = vld [vmem:[#allocation2 + $0xf3] sm:$0xff]
      %v2668 = vld [vmem:[#allocation2 + $0xfb] sm:$0xff]
      %v2669 = vld [vmem:[#allocation2 + $0x103] sm:$0xff]
      %v2670 = vld [vmem:[#allocation2 + $0x10b] sm:$0xff]
      %v2671 = vld [vmem:[#allocation2 + $0x113] sm:$0xff]
      %v2672 = vld [vmem:[#allocation2 + $0x11b] sm:$0xff]
      %v2673 = vld [vmem:[#allocation2 + $0x123] sm:$0xff]
      %v2674 = vld [vmem:[#allocation2 + $0x12b] sm:$0xff]
      %v2675 = vld [vmem:[#allocation2 + $0x133] sm:$0x3]
      %2688 = vrot.lane.b32.xlu0 %v2664, 64
      %v2689 = vpop.permute.xlu0 %2688
      %2690 = vrot.lane.b32.xlu0 %v2665, 64
      %v2691 = vpop.permute.xlu0 %2690
      %2692 = vrot.lane.b32.xlu0 %v2666, 64
      %v2693 = vpop.permute.xlu0 %2692
      %2694 = vrot.lane.b32.xlu0 %v2667, 64
      %v2695 = vpop.permute.xlu0 %2694
      %2696 = vrot.lane.b32.xlu0 %v2668, 64
      %v2697 = vpop.permute.xlu0 %2696
      %2698 = vrot.lane.b32.xlu0 %v2669, 64
      %v2699 = vpop.permute.xlu0 %2698
      %2700 = vrot.lane.b32.xlu0 %v2670, 64
      %v2701 = vpop.permute.xlu0 %2700
      %2702 = vrot.lane.b32.xlu0 %v2671, 64
      %v2703 = vpop.permute.xlu0 %2702
      %2704 = vrot.lane.b32.xlu0 %v2672, 64
      %v2705 = vpop.permute.xlu0 %2704
      %2706 = vrot.lane.b32.xlu0 %v2673, 64
      %v2707 = vpop.permute.xlu0 %2706
      %2708 = vrot.lane.b32.xlu0 %v2674, 64
      %v2709 = vpop.permute.xlu0 %2708
      %2710 = vrot.lane.b32.xlu0 %v2675, 64
      %v2711 = vpop.permute.xlu0 %2710
      %2724 = vst.msk [vmem:[#allocation3 + $0x18] sm:$0xff] %vm2000, %v2689
      %2725 = vst.msk [vmem:[#allocation3 + $0x38] sm:$0xff] %vm2000, %v2691
      %2726 = vst.msk [vmem:[#allocation3 + $0x58] sm:$0xff] %vm2000, %v2693
      %2727 = vst.msk [vmem:[#allocation3 + $0x78] sm:$0xff] %vm2000, %v2695
      %2728 = vst.msk [vmem:[#allocation3 + $0x98] sm:$0xff] %vm2000, %v2697
      %2729 = vst.msk [vmem:[#allocation3 + $0xb8] sm:$0xff] %vm2000, %v2699
      %2730 = vst.msk [vmem:[#allocation3 + $0xd8] sm:$0xff] %vm2000, %v2701
      %2731 = vst.msk [vmem:[#allocation3 + $0xf8] sm:$0xff] %vm2000, %v2703
      %2732 = vst.msk [vmem:[#allocation3 + $0x118] sm:$0xff] %vm2000, %v2705
      %2733 = vst.msk [vmem:[#allocation3 + $0x138] sm:$0xff] %vm2000, %v2707
      %2734 = vst.msk [vmem:[#allocation3 + $0x158] sm:$0xff] %vm2000, %v2709
      %2735 = vst.msk [vmem:[#allocation3 + $0x178] sm:$0x3] %vm2012, %v2711
      %v2736 = vld [vmem:[#allocation2 + $0x143] sm:$0xff]
      %v2737 = vld [vmem:[#allocation2 + $0x14b] sm:$0xff]
      %v2738 = vld [vmem:[#allocation2 + $0x153] sm:$0xff]
      %v2739 = vld [vmem:[#allocation2 + $0x15b] sm:$0xff]
      %v2740 = vld [vmem:[#allocation2 + $0x163] sm:$0xff]
      %v2741 = vld [vmem:[#allocation2 + $0x16b] sm:$0xff]
      %v2742 = vld [vmem:[#allocation2 + $0x173] sm:$0xff]
      %v2743 = vld [vmem:[#allocation2 + $0x17b] sm:$0xff]
      %v2744 = vld [vmem:[#allocation2 + $0x183] sm:$0xff]
      %v2745 = vld [vmem:[#allocation2 + $0x18b] sm:$0xff]
      %v2746 = vld [vmem:[#allocation2 + $0x193] sm:$0xff]
      %v2747 = vld [vmem:[#allocation2 + $0x19b] sm:$0x3]
      %2760 = vrot.lane.b32.xlu0 %v2736, 96
      %v2761 = vpop.permute.xlu0 %2760
      %2762 = vrot.lane.b32.xlu0 %v2737, 96
      %v2763 = vpop.permute.xlu0 %2762
      %2764 = vrot.lane.b32.xlu0 %v2738, 96
      %v2765 = vpop.permute.xlu0 %2764
      %2766 = vrot.lane.b32.xlu0 %v2739, 96
      %v2767 = vpop.permute.xlu0 %2766
      %2768 = vrot.lane.b32.xlu0 %v2740, 96
      %v2769 = vpop.permute.xlu0 %2768
      %2770 = vrot.lane.b32.xlu0 %v2741, 96
      %v2771 = vpop.permute.xlu0 %2770
      %2772 = vrot.lane.b32.xlu0 %v2742, 96
      %v2773 = vpop.permute.xlu0 %2772
      %2774 = vrot.lane.b32.xlu0 %v2743, 96
      %v2775 = vpop.permute.xlu0 %2774
      %2776 = vrot.lane.b32.xlu0 %v2744, 96
      %v2777 = vpop.permute.xlu0 %2776
      %2778 = vrot.lane.b32.xlu0 %v2745, 96
      %v2779 = vpop.permute.xlu0 %2778
      %2780 = vrot.lane.b32.xlu0 %v2746, 96
      %v2781 = vpop.permute.xlu0 %2780
      %2782 = vrot.lane.b32.xlu0 %v2747, 96
      %v2783 = vpop.permute.xlu0 %2782
      %2796 = vst.msk [vmem:[#allocation3 + $0x18] sm:$0xff] %vm2074, %v2761
      %2797 = vst.msk [vmem:[#allocation3 + $0x38] sm:$0xff] %vm2074, %v2763
      %2798 = vst.msk [vmem:[#allocation3 + $0x58] sm:$0xff] %vm2074, %v2765
      %2799 = vst.msk [vmem:[#allocation3 + $0x78] sm:$0xff] %vm2074, %v2767
      %2800 = vst.msk [vmem:[#allocation3 + $0x98] sm:$0xff] %vm2074, %v2769
      %2801 = vst.msk [vmem:[#allocation3 + $0xb8] sm:$0xff] %vm2074, %v2771
      %2802 = vst.msk [vmem:[#allocation3 + $0xd8] sm:$0xff] %vm2074, %v2773
      %2803 = vst.msk [vmem:[#allocation3 + $0xf8] sm:$0xff] %vm2074, %v2775
      %2804 = vst.msk [vmem:[#allocation3 + $0x118] sm:$0xff] %vm2074, %v2777
      %2805 = vst.msk [vmem:[#allocation3 + $0x138] sm:$0xff] %vm2074, %v2779
      %2806 = vst.msk [vmem:[#allocation3 + $0x158] sm:$0xff] %vm2074, %v2781
      %2807 = vst.msk [vmem:[#allocation3 + $0x178] sm:$0x3] %vm2086, %v2783
      %v2808 = vld [vmem:[#allocation3] sm:$0xff]
      %v2809 = vld [vmem:[#allocation3 + $0x8] sm:$0xff]
      %v2810 = vld [vmem:[#allocation3 + $0x10] sm:$0xff]
      %v2811 = vld [vmem:[#allocation3 + $0x18] sm:$0xff]
      %v2812 = vld [vmem:[#allocation3 + $0x20] sm:$0xff]
      %v2813 = vld [vmem:[#allocation3 + $0x28] sm:$0xff]
      %v2814 = vld [vmem:[#allocation3 + $0x30] sm:$0xff]
      %v2815 = vld [vmem:[#allocation3 + $0x38] sm:$0xff]
      %v2816 = vld [vmem:[#allocation3 + $0x40] sm:$0xff]
      %v2817 = vld [vmem:[#allocation3 + $0x48] sm:$0xff]
      %v2818 = vld [vmem:[#allocation3 + $0x50] sm:$0xff]
      %v2819 = vld [vmem:[#allocation3 + $0x58] sm:$0xff]
      %v2820 = vld [vmem:[#allocation3 + $0x60] sm:$0xff]
      %v2821 = vld [vmem:[#allocation3 + $0x68] sm:$0xff]
      %v2822 = vld [vmem:[#allocation3 + $0x70] sm:$0xff]
      %v2823 = vld [vmem:[#allocation3 + $0x78] sm:$0xff]
      %v2824 = vld [vmem:[#allocation3 + $0x80] sm:$0xff]
      %v2825 = vld [vmem:[#allocation3 + $0x88] sm:$0xff]
      %v2826 = vld [vmem:[#allocation3 + $0x90] sm:$0xff]
      %v2827 = vld [vmem:[#allocation3 + $0x98] sm:$0xff]
      %v2828 = vld [vmem:[#allocation3 + $0xa0] sm:$0xff]
      %v2829 = vld [vmem:[#allocation3 + $0xa8] sm:$0xff]
      %v2830 = vld [vmem:[#allocation3 + $0xb0] sm:$0xff]
      %v2831 = vld [vmem:[#allocation3 + $0xb8] sm:$0xff]
      %v2832 = vld [vmem:[#allocation3 + $0xc0] sm:$0xff]
      %v2833 = vld [vmem:[#allocation3 + $0xc8] sm:$0xff]
      %v2834 = vld [vmem:[#allocation3 + $0xd0] sm:$0xff]
      %v2835 = vld [vmem:[#allocation3 + $0xd8] sm:$0xff]
      %v2836 = vld [vmem:[#allocation3 + $0xe0] sm:$0xff]
      %v2837 = vld [vmem:[#allocation3 + $0xe8] sm:$0xff]
      %v2838 = vld [vmem:[#allocation3 + $0xf0] sm:$0xff]
      %v2839 = vld [vmem:[#allocation3 + $0xf8] sm:$0xff]
      %v2840 = vld [vmem:[#allocation3 + $0x100] sm:$0xff]
      %v2841 = vld [vmem:[#allocation3 + $0x108] sm:$0xff]
      %v2842 = vld [vmem:[#allocation3 + $0x110] sm:$0xff]
      %v2843 = vld [vmem:[#allocation3 + $0x118] sm:$0xff]
      %v2844 = vld [vmem:[#allocation3 + $0x120] sm:$0xff]
      %v2845 = vld [vmem:[#allocation3 + $0x128] sm:$0xff]
      %v2846 = vld [vmem:[#allocation3 + $0x130] sm:$0xff]
      %v2847 = vld [vmem:[#allocation3 + $0x138] sm:$0xff]
      %v2848 = vld [vmem:[#allocation3 + $0x140] sm:$0xff]
      %v2849 = vld [vmem:[#allocation3 + $0x148] sm:$0xff]
      %v2850 = vld [vmem:[#allocation3 + $0x150] sm:$0xff]
      %v2851 = vld [vmem:[#allocation3 + $0x158] sm:$0xff]
      %v2852 = vld [vmem:[#allocation3 + $0x160] sm:$0xff]
      %v2853 = vld [vmem:[#allocation3 + $0x168] sm:$0xff]
      %v2854 = vld [vmem:[#allocation3 + $0x170] sm:$0xff]
      %v2855 = vld [vmem:[#allocation3 + $0x178] sm:$0xff]
      %v2856 = vld [vmem:[%s3] sm:$0xff]
      %v2857 = vld [vmem:[%s3 + $0x8] sm:$0xff]
      %v2858 = vld [vmem:[%s3 + $0x10] sm:$0xff]
      %v2859 = vld [vmem:[%s3 + $0x18] sm:$0xff]
      %v2860 = vld [vmem:[%s3 + $0x20] sm:$0xff]
      %v2861 = vld [vmem:[%s3 + $0x28] sm:$0xff]
      %v2862 = vld [vmem:[%s3 + $0x30] sm:$0xff]
      %v2863 = vld [vmem:[%s3 + $0x38] sm:$0xff]
      %v2864 = vld [vmem:[%s3 + $0x40] sm:$0xff]
      %v2865 = vld [vmem:[%s3 + $0x48] sm:$0xff]
      %v2866 = vld [vmem:[%s3 + $0x50] sm:$0xff]
      %v2867 = vld [vmem:[%s3 + $0x58] sm:$0xff]
      %v2868 = vld [vmem:[%s3 + $0x60] sm:$0xff]
      %v2869 = vld [vmem:[%s3 + $0x68] sm:$0xff]
      %v2870 = vld [vmem:[%s3 + $0x70] sm:$0xff]
      %v2871 = vld [vmem:[%s3 + $0x78] sm:$0xff]
      %v2872 = vld [vmem:[%s3 + $0x80] sm:$0xff]
      %v2873 = vld [vmem:[%s3 + $0x88] sm:$0xff]
      %v2874 = vld [vmem:[%s3 + $0x90] sm:$0xff]
      %v2875 = vld [vmem:[%s3 + $0x98] sm:$0xff]
      %v2876 = vld [vmem:[%s3 + $0xa0] sm:$0xff]
      %v2877 = vld [vmem:[%s3 + $0xa8] sm:$0xff]
      %v2878 = vld [vmem:[%s3 + $0xb0] sm:$0xff]
      %v2879 = vld [vmem:[%s3 + $0xb8] sm:$0xff]
      %v2880 = vld [vmem:[%s3 + $0xc0] sm:$0xff]
      %v2881 = vld [vmem:[%s3 + $0xc8] sm:$0xff]
      %v2882 = vld [vmem:[%s3 + $0xd0] sm:$0xff]
      %v2883 = vld [vmem:[%s3 + $0xd8] sm:$0xff]
      %v2884 = vld [vmem:[%s3 + $0xe0] sm:$0xff]
      %v2885 = vld [vmem:[%s3 + $0xe8] sm:$0xff]
      %v2886 = vld [vmem:[%s3 + $0xf0] sm:$0xff]
      %v2887 = vld [vmem:[%s3 + $0xf8] sm:$0xff]
      %v2888 = vld [vmem:[%s3 + $0x100] sm:$0xff]
      %v2889 = vld [vmem:[%s3 + $0x108] sm:$0xff]
      %v2890 = vld [vmem:[%s3 + $0x110] sm:$0xff]
      %v2891 = vld [vmem:[%s3 + $0x118] sm:$0xff]
      %v2892 = vld [vmem:[%s3 + $0x120] sm:$0xff]
      %v2893 = vld [vmem:[%s3 + $0x128] sm:$0xff]
      %v2894 = vld [vmem:[%s3 + $0x130] sm:$0xff]
      %v2895 = vld [vmem:[%s3 + $0x138] sm:$0xff]
      %v2896 = vld [vmem:[%s3 + $0x140] sm:$0xff]
      %v2897 = vld [vmem:[%s3 + $0x148] sm:$0xff]
      %v2898 = vld [vmem:[%s3 + $0x150] sm:$0xff]
      %v2899 = vld [vmem:[%s3 + $0x158] sm:$0xff]
      %v2900 = vld [vmem:[%s3 + $0x160] sm:$0xff]
      %v2901 = vld [vmem:[%s3 + $0x168] sm:$0xff]
      %v2902 = vld [vmem:[%s3 + $0x170] sm:$0xff]
      %v2903 = vld [vmem:[%s3 + $0x178] sm:$0xff]
      %v2904 = vld [vmem:[%s3 + $0x180] sm:$0xff]
      %v2905 = vld [vmem:[%s3 + $0x188] sm:$0xff]
      %v2906 = vld [vmem:[%s3 + $0x190] sm:$0xff]
      %v2907 = vld [vmem:[%s3 + $0x198] sm:$0xff]
      %v2908 = vld [vmem:[%s3 + $0x1a0] sm:$0xff]
      %v2909 = vld [vmem:[%s3 + $0x1a8] sm:$0xff]
      %v2910 = vld [vmem:[%s3 + $0x1b0] sm:$0xff]
      %v2911 = vld [vmem:[%s3 + $0x1b8] sm:$0xff]
      %v2912 = vld [vmem:[%s3 + $0x1c0] sm:$0xff]
      %v2913 = vld [vmem:[%s3 + $0x1c8] sm:$0xff]
      %v2914 = vld [vmem:[%s3 + $0x1d0] sm:$0xff]
      %v2915 = vld [vmem:[%s3 + $0x1d8] sm:$0xff]
      %v2916 = vld [vmem:[%s3 + $0x1e0] sm:$0xff]
      %v2917 = vld [vmem:[%s3 + $0x1e8] sm:$0xff]
      %v2918 = vld [vmem:[%s3 + $0x1f0] sm:$0xff]
      %v2919 = vld [vmem:[%s3 + $0x1f8] sm:$0xff]
      %v2920 = vld [vmem:[%s4] sm:$0x1]
      %v2922 = vlaneseq
      %v2923 = vshrl.u32 %v2922, 7
      %v2924 = vsub.s32 0, %v2923
      %v2925 = vrot.slane %v2920, %v2924
      %2927 = vmatprep.subr.mxu0 0.0
      %2928 = vmatpush1.msra.mxu0 %v2856
      %2929 = vmatprep.subr.mxu0 0.0
      %2930 = vmatpush1.msra.mxu0 %v2857
      %2931 = vmatprep.subr.mxu0 0.0
      %2932 = vmatpush1.msra.mxu0 %v2858
      %2933 = vmatprep.subr.mxu0 0.0
      %2934 = vmatpush1.msra.mxu0 %v2859
      %2935 = vmatprep.subr.mxu0 0.0
      %2936 = vmatpush1.msra.mxu0 %v2860
      %2937 = vmatprep.subr.mxu0 0.0
      %2938 = vmatpush1.msra.mxu0 %v2861
      %2939 = vmatprep.subr.mxu0 0.0
      %2940 = vmatpush1.msra.mxu0 %v2862
      %2941 = vmatprep.subr.mxu0 0.0
      %2942 = vmatpush1.msra.mxu0 %v2863
      %2943 = vmatprep.subr.mxu0 0.0
      %2944 = vmatpush1.msra.mxu0 %v2864
      %2945 = vmatprep.subr.mxu0 0.0
      %2946 = vmatpush1.msra.mxu0 %v2865
      %2947 = vmatprep.subr.mxu0 0.0
      %2948 = vmatpush1.msra.mxu0 %v2866
      %2949 = vmatprep.subr.mxu0 0.0
      %2950 = vmatpush1.msra.mxu0 %v2867
      %2951 = vmatprep.subr.mxu0 0.0
      %2952 = vmatpush1.msra.mxu0 %v2868
      %2953 = vmatprep.subr.mxu0 0.0
      %2954 = vmatpush1.msra.mxu0 %v2869
      %2955 = vmatprep.subr.mxu0 0.0
      %2956 = vmatpush1.msra.mxu0 %v2870
      %2957 = vmatprep.subr.mxu0 0.0
      %2958 = vmatpush1.msra.mxu0 %v2871
      %2959 = vmatprep.subr.mxu0 0.0
      %2960 = vmatpush1.msra.mxu0 %v2872
      %2961 = vmatprep.subr.mxu0 0.0
      %2962 = vmatpush1.msra.mxu0 %v2873
      %2963 = vmatprep.subr.mxu0 0.0
      %2964 = vmatpush1.msra.mxu0 %v2874
      %2965 = vmatprep.subr.mxu0 0.0
      %2966 = vmatpush1.msra.mxu0 %v2875
      %2967 = vmatprep.subr.mxu0 0.0
      %2968 = vmatpush1.msra.mxu0 %v2876
      %2969 = vmatprep.subr.mxu0 0.0
      %2970 = vmatpush1.msra.mxu0 %v2877
      %2971 = vmatprep.subr.mxu0 0.0
      %2972 = vmatpush1.msra.mxu0 %v2878
      %2973 = vmatprep.subr.mxu0 0.0
      %2974 = vmatpush1.msra.mxu0 %v2879
      %2975 = vmatprep.subr.mxu0 0.0
      %2976 = vmatpush1.msra.mxu0 %v2880
      %2977 = vmatprep.subr.mxu0 0.0
      %2978 = vmatpush1.msra.mxu0 %v2881
      %2979 = vmatprep.subr.mxu0 0.0
      %2980 = vmatpush1.msra.mxu0 %v2882
      %2981 = vmatprep.subr.mxu0 0.0
      %2982 = vmatpush1.msra.mxu0 %v2883
      %2983 = vmatprep.subr.mxu0 0.0
      %2984 = vmatpush1.msra.mxu0 %v2884
      %2985 = vmatprep.subr.mxu0 0.0
      %2986 = vmatpush1.msra.mxu0 %v2885
      %2987 = vmatprep.subr.mxu0 0.0
      %2988 = vmatpush1.msra.mxu0 %v2886
      %2989 = vmatprep.subr.mxu0 0.0
      %2990 = vmatpush1.msra.mxu0 %v2887
      %2991 = vmatprep.mubr.f32.mxu0 %v2809
      %2992 = vmatmul.mubr.f32.gmra.mrb[0].mxu0 %v2808
      %v2993 = vpop.f32.mrb[0].mxu0
      %v2994 = vadd.f32 %v2925, %v2993
      %v2995 = vpop.f32.mrb[0].mxu0
      %2996 = vmatprep.mubr.f32.mxu0 %v2813
      %2997 = vmatmul.mubr.f32.gmra.mrb[0].mxu0 %v2812
      %v2998 = vpop.f32.mrb[0].mxu0
      %v2999 = vadd.f32 %v2925, %v2998
      %v3000 = vpop.f32.mrb[0].mxu0
      %3001 = vmatprep.mubr.f32.mxu0 %v2817
      %3002 = vmatmul.mubr.f32.gmra.mrb[0].mxu0 %v2816
      %v3003 = vpop.f32.mrb[0].mxu0
      %v3004 = vadd.f32 %v2925, %v3003
      %v3005 = vpop.f32.mrb[0].mxu0
      %3006 = vmatprep.mubr.f32.mxu0 %v2821
      %3007 = vmatmul.mubr.f32.gmra.mrb[0].mxu0 %v2820
      %v3008 = vpop.f32.mrb[0].mxu0
      %v3009 = vadd.f32 %v2925, %v3008
      %v3010 = vpop.f32.mrb[0].mxu0
      %3011 = vmatprep.mubr.f32.mxu0 %v2825
      %3012 = vmatmul.mubr.f32.gmra.mrb[0].mxu0 %v2824
      %v3013 = vpop.f32.mrb[0].mxu0
      %v3014 = vadd.f32 %v2925, %v3013
      %v3015 = vpop.f32.mrb[0].mxu0
      %3016 = vmatprep.mubr.f32.mxu0 %v2829
      %3017 = vmatmul.mubr.f32.gmra.mrb[0].mxu0 %v2828
      %v3018 = vpop.f32.mrb[0].mxu0
      %v3019 = vadd.f32 %v2925, %v3018
      %v3020 = vpop.f32.mrb[0].mxu0
      %3021 = vmatprep.mubr.f32.mxu0 %v2833
      %3022 = vmatmul.mubr.f32.gmra.mrb[0].mxu0 %v2832
      %v3023 = vpop.f32.mrb[0].mxu0
      %v3024 = vadd.f32 %v2925, %v3023
      %v3025 = vpop.f32.mrb[0].mxu0
      %3026 = vmatprep.mubr.f32.mxu0 %v2837
      %3027 = vmatmul.mubr.f32.gmra.mrb[0].mxu0 %v2836
      %v3028 = vpop.f32.mrb[0].mxu0
      %v3029 = vadd.f32 %v2925, %v3028
      %v3030 = vpop.f32.mrb[0].mxu0
      %3031 = vmatprep.mubr.f32.mxu0 %v2841
      %3032 = vmatmul.mubr.f32.gmra.mrb[0].mxu0 %v2840
      %v3033 = vpop.f32.mrb[0].mxu0
      %v3034 = vadd.f32 %v2925, %v3033
      %v3035 = vpop.f32.mrb[0].mxu0
      %3036 = vmatprep.mubr.f32.mxu0 %v2845
      %3037 = vmatmul.mubr.f32.gmra.mrb[0].mxu0 %v2844
      %v3038 = vpop.f32.mrb[0].mxu0
      %v3039 = vadd.f32 %v2925, %v3038
      %v3040 = vpop.f32.mrb[0].mxu0
      %3041 = vmatprep.mubr.f32.mxu0 %v2849
      %3042 = vmatmul.mubr.f32.gmra.mrb[0].mxu0 %v2848
      %v3043 = vpop.f32.mrb[0].mxu0
      %v3044 = vadd.f32 %v2925, %v3043
      %v3045 = vpop.f32.mrb[0].mxu0
      %3046 = vmatprep.mubr.f32.mxu0 %v2853
      %3047 = vmatmul.mubr.f32.gmra.mrb[0].mxu0 %v2852
      %v3048 = vpop.f32.mrb[0].mxu0
      %v3049 = vadd.f32 %v2925, %v3048
      %v3050 = vpop.f32.mrb[0].mxu0
      %3051 = vdwg.mxu0
      %3052 = vmatprep.subr.mxu0 0.0
      %3053 = vmatpush1.msra.mxu0 %v2888
      %3054 = vmatprep.subr.mxu0 0.0
      %3055 = vmatpush1.msra.mxu0 %v2889
      %3056 = vmatprep.subr.mxu0 0.0
      %3057 = vmatpush1.msra.mxu0 %v2890
      %3058 = vmatprep.subr.mxu0 0.0
      %3059 = vmatpush1.msra.mxu0 %v2891
      %3060 = vmatprep.subr.mxu0 0.0
      %3061 = vmatpush1.msra.mxu0 %v2892
      %3062 = vmatprep.subr.mxu0 0.0
      %3063 = vmatpush1.msra.mxu0 %v2893
      %3064 = vmatprep.subr.mxu0 0.0
      %3065 = vmatpush1.msra.mxu0 %v2894
      %3066 = vmatprep.subr.mxu0 0.0
      %3067 = vmatpush1.msra.mxu0 %v2895
      %3068 = vmatprep.subr.mxu0 0.0
      %3069 = vmatpush1.msra.mxu0 %v2896
      %3070 = vmatprep.subr.mxu0 0.0
      %3071 = vmatpush1.msra.mxu0 %v2897
      %3072 = vmatprep.subr.mxu0 0.0
      %3073 = vmatpush1.msra.mxu0 %v2898
      %3074 = vmatprep.subr.mxu0 0.0
      %3075 = vmatpush1.msra.mxu0 %v2899
      %3076 = vmatprep.subr.mxu0 0.0
      %3077 = vmatpush1.msra.mxu0 %v2900
      %3078 = vmatprep.subr.mxu0 0.0
      %3079 = vmatpush1.msra.mxu0 %v2901
      %3080 = vmatprep.subr.mxu0 0.0
      %3081 = vmatpush1.msra.mxu0 %v2902
      %3082 = vmatprep.subr.mxu0 0.0
      %3083 = vmatpush1.msra.mxu0 %v2903
      %3084 = vmatprep.subr.mxu0 0.0
      %3085 = vmatpush1.msra.mxu0 %v2904
      %3086 = vmatprep.subr.mxu0 0.0
      %3087 = vmatpush1.msra.mxu0 %v2905
      %3088 = vmatprep.subr.mxu0 0.0
      %3089 = vmatpush1.msra.mxu0 %v2906
      %3090 = vmatprep.subr.mxu0 0.0
      %3091 = vmatpush1.msra.mxu0 %v2907
      %3092 = vmatprep.subr.mxu0 0.0
      %3093 = vmatpush1.msra.mxu0 %v2908
      %3094 = vmatprep.subr.mxu0 0.0
      %3095 = vmatpush1.msra.mxu0 %v2909
      %3096 = vmatprep.subr.mxu0 0.0
      %3097 = vmatpush1.msra.mxu0 %v2910
      %3098 = vmatprep.subr.mxu0 0.0
      %3099 = vmatpush1.msra.mxu0 %v2911
      %3100 = vmatprep.subr.mxu0 0.0
      %3101 = vmatpush1.msra.mxu0 %v2912
      %3102 = vmatprep.subr.mxu0 0.0
      %3103 = vmatpush1.msra.mxu0 %v2913
      %3104 = vmatprep.subr.mxu0 0.0
      %3105 = vmatpush1.msra.mxu0 %v2914
      %3106 = vmatprep.subr.mxu0 0.0
      %3107 = vmatpush1.msra.mxu0 %v2915
      %3108 = vmatprep.subr.mxu0 0.0
      %3109 = vmatpush1.msra.mxu0 %v2916
      %3110 = vmatprep.subr.mxu0 0.0
      %3111 = vmatpush1.msra.mxu0 %v2917
      %3112 = vmatprep.subr.mxu0 0.0
      %3113 = vmatpush1.msra.mxu0 %v2918
      %3114 = vmatprep.subr.mxu0 0.0
      %3115 = vmatpush1.msra.mxu0 %v2919
      %3116 = vmatprep.mubr.f32.mxu0 %v2811
      %3117 = vmatmul.mubr.f32.gmra.mrb[0].mxu0 %v2810
      %v3118 = vpop.f32.mrb[0].mxu0
      %v3119 = vadd.f32 %v2994, %v3118
      %v3120 = vpop.f32.mrb[0].mxu0
      %3121 = vmatprep.mubr.f32.mxu0 %v2815
      %3122 = vmatmul.mubr.f32.gmra.mrb[0].mxu0 %v2814
      %v3123 = vpop.f32.mrb[0].mxu0
      %v3124 = vadd.f32 %v2999, %v3123
      %v3125 = vpop.f32.mrb[0].mxu0
      %3126 = vmatprep.mubr.f32.mxu0 %v2819
      %3127 = vmatmul.mubr.f32.gmra.mrb[0].mxu0 %v2818
      %v3128 = vpop.f32.mrb[0].mxu0
      %v3129 = vadd.f32 %v3004, %v3128
      %v3130 = vpop.f32.mrb[0].mxu0
      %3131 = vmatprep.mubr.f32.mxu0 %v2823
      %3132 = vmatmul.mubr.f32.gmra.mrb[0].mxu0 %v2822
      %v3133 = vpop.f32.mrb[0].mxu0
      %v3134 = vadd.f32 %v3009, %v3133
      %v3135 = vpop.f32.mrb[0].mxu0
      %3136 = vmatprep.mubr.f32.mxu0 %v2827
      %3137 = vmatmul.mubr.f32.gmra.mrb[0].mxu0 %v2826
      %v3138 = vpop.f32.mrb[0].mxu0
      %v3139 = vadd.f32 %v3014, %v3138
      %v3140 = vpop.f32.mrb[0].mxu0
      %3141 = vmatprep.mubr.f32.mxu0 %v2831
      %3142 = vmatmul.mubr.f32.gmra.mrb[0].mxu0 %v2830
      %v3143 = vpop.f32.mrb[0].mxu0
      %v3144 = vadd.f32 %v3019, %v3143
      %v3145 = vpop.f32.mrb[0].mxu0
      %3146 = vmatprep.mubr.f32.mxu0 %v2835
      %3147 = vmatmul.mubr.f32.gmra.mrb[0].mxu0 %v2834
      %v3148 = vpop.f32.mrb[0].mxu0
      %v3149 = vadd.f32 %v3024, %v3148
      %v3150 = vpop.f32.mrb[0].mxu0
      %3151 = vmatprep.mubr.f32.mxu0 %v2839
      %3152 = vmatmul.mubr.f32.gmra.mrb[0].mxu0 %v2838
      %v3153 = vpop.f32.mrb[0].mxu0
      %v3154 = vadd.f32 %v3029, %v3153
      %v3155 = vpop.f32.mrb[0].mxu0
      %3156 = vmatprep.mubr.f32.mxu0 %v2843
      %3157 = vmatmul.mubr.f32.gmra.mrb[0].mxu0 %v2842
      %v3158 = vpop.f32.mrb[0].mxu0
      %v3159 = vadd.f32 %v3034, %v3158
      %v3160 = vpop.f32.mrb[0].mxu0
      %3161 = vmatprep.mubr.f32.mxu0 %v2847
      %3162 = vmatmul.mubr.f32.gmra.mrb[0].mxu0 %v2846
      %v3163 = vpop.f32.mrb[0].mxu0
      %v3164 = vadd.f32 %v3039, %v3163
      %v3165 = vpop.f32.mrb[0].mxu0
      %3166 = vmatprep.mubr.f32.mxu0 %v2851
      %3167 = vmatmul.mubr.f32.gmra.mrb[0].mxu0 %v2850
      %v3168 = vpop.f32.mrb[0].mxu0
      %v3169 = vadd.f32 %v3044, %v3168
      %v3170 = vpop.f32.mrb[0].mxu0
      %3171 = vmatprep.mubr.f32.mxu0 %v2855
      %3172 = vmatmul.mubr.f32.gmra.mrb[0].mxu0 %v2854
      %v3173 = vpop.f32.mrb[0].mxu0
      %v3174 = vadd.f32 %v3049, %v3173
      %v3175 = vpop.f32.mrb[0].mxu0
      %3176 = vdwg.mxu0
      %v3177 = vmax.f32 %v3119, 0.0
      %v3178 = vmax.f32 %v3124, 0.0
      %v3179 = vmax.f32 %v3129, 0.0
      %v3180 = vmax.f32 %v3134, 0.0
      %v3181 = vmax.f32 %v3139, 0.0
      %v3182 = vmax.f32 %v3144, 0.0
      %v3183 = vmax.f32 %v3149, 0.0
      %v3184 = vmax.f32 %v3154, 0.0
      %v3185 = vmax.f32 %v3159, 0.0
      %v3186 = vmax.f32 %v3164, 0.0
      %v3187 = vmax.f32 %v3169, 0.0
      %v3188 = vmax.f32 %v3174, 0.0
      %3189 = vst.msk [vmem:[#allocation4] sm:$0xff] %vm1250, %v3177
      %3190 = vst.msk [vmem:[#allocation4 + $0x8] sm:$0xff] %vm1250, %v3178
      %3191 = vst.msk [vmem:[#allocation4 + $0x10] sm:$0xff] %vm1250, %v3179
      %3192 = vst.msk [vmem:[#allocation4 + $0x18] sm:$0xff] %vm1250, %v3180
      %3193 = vst.msk [vmem:[#allocation4 + $0x20] sm:$0xff] %vm1250, %v3181
      %3194 = vst.msk [vmem:[#allocation4 + $0x28] sm:$0xff] %vm1250, %v3182
      %3195 = vst.msk [vmem:[#allocation4 + $0x30] sm:$0xff] %vm1250, %v3183
      %3196 = vst.msk [vmem:[#allocation4 + $0x38] sm:$0xff] %vm1250, %v3184
      %3197 = vst.msk [vmem:[#allocation4 + $0x40] sm:$0xff] %vm1250, %v3185
      %3198 = vst.msk [vmem:[#allocation4 + $0x48] sm:$0xff] %vm1250, %v3186
      %3199 = vst.msk [vmem:[#allocation4 + $0x50] sm:$0xff] %vm1250, %v3187
      %3200 = vst.msk [vmem:[#allocation4 + $0x58] sm:$0xff] %vm1250, %v3188
      %3201 = vst [vmem:[#allocation5 + $0x140] sm:$0xff] 0.0
      %3202 = vst [vmem:[#allocation5 + $0x148] sm:$0xff] 0.0
      %3203 = vst [vmem:[#allocation5 + $0x150] sm:$0xff] 0.0
      %3204 = vst [vmem:[#allocation5 + $0x158] sm:$0xff] 0.0
      %3205 = vst.msk [vmem:[#allocation5 + $0x160] sm:$0xff] %vm1250, 0.0
      %v3206 = vld [vmem:[#allocation4] sm:$0xff]
      %v3207 = vld [vmem:[#allocation4 + $0x8] sm:$0xff]
      %v3208 = vld [vmem:[#allocation4 + $0x10] sm:$0xff]
      %v3209 = vld [vmem:[#allocation4 + $0x18] sm:$0xff]
      %v3210 = vld [vmem:[#allocation4 + $0x20] sm:$0xff]
      %v3211 = vld [vmem:[#allocation4 + $0x28] sm:$0xff]
      %v3212 = vld [vmem:[#allocation4 + $0x30] sm:$0xff]
      %v3213 = vld [vmem:[#allocation4 + $0x38] sm:$0xff]
      %v3214 = vld [vmem:[#allocation4 + $0x40] sm:$0x3f]
      %3215 = vst.msk [vmem:[#allocation5] sm:$0xff] %vm1250, %v3206
      %3216 = vst.msk [vmem:[#allocation5 + $0x28] sm:$0xff] %vm1250, %v3207
      %3217 = vst.msk [vmem:[#allocation5 + $0x50] sm:$0xff] %vm1250, %v3208
      %3218 = vst.msk [vmem:[#allocation5 + $0x78] sm:$0xff] %vm1250, %v3209
      %3219 = vst.msk [vmem:[#allocation5 + $0xa0] sm:$0xff] %vm1250, %v3210
      %3220 = vst.msk [vmem:[#allocation5 + $0xc8] sm:$0xff] %vm1250, %v3211
      %3221 = vst.msk [vmem:[#allocation5 + $0xf0] sm:$0xff] %vm1250, %v3212
      %3222 = vst.msk [vmem:[#allocation5 + $0x118] sm:$0xff] %vm1250, %v3213
      %vm3223 = vcmask 521216
      %3224 = vst.msk [vmem:[#allocation5 + $0x140] sm:$0x3f] %vm3223, %v3214
      %v3225 = vld [vmem:[#allocation4 + $0x1] sm:$0xff]
      %v3226 = vld [vmem:[#allocation4 + $0x9] sm:$0xff]
      %v3227 = vld [vmem:[#allocation4 + $0x11] sm:$0xff]
      %v3228 = vld [vmem:[#allocation4 + $0x19] sm:$0xff]
      %v3229 = vld [vmem:[#allocation4 + $0x21] sm:$0xff]
      %v3230 = vld [vmem:[#allocation4 + $0x29] sm:$0xff]
      %v3231 = vld [vmem:[#allocation4 + $0x31] sm:$0xff]
      %v3232 = vld [vmem:[#allocation4 + $0x39] sm:$0xff]
      %v3233 = vld [vmem:[#allocation4 + $0x41] sm:$0x3f]
      %3243 = vrot.lane.b32.xlu0 %v3225, 64
      %v3244 = vpop.permute.xlu0 %3243
      %3245 = vrot.lane.b32.xlu0 %v3226, 64
      %v3246 = vpop.permute.xlu0 %3245
      %3247 = vrot.lane.b32.xlu0 %v3227, 64
      %v3248 = vpop.permute.xlu0 %3247
      %3249 = vrot.lane.b32.xlu0 %v3228, 64
      %v3250 = vpop.permute.xlu0 %3249
      %3251 = vrot.lane.b32.xlu0 %v3229, 64
      %v3252 = vpop.permute.xlu0 %3251
      %3253 = vrot.lane.b32.xlu0 %v3230, 64
      %v3254 = vpop.permute.xlu0 %3253
      %3255 = vrot.lane.b32.xlu0 %v3231, 64
      %v3256 = vpop.permute.xlu0 %3255
      %3257 = vrot.lane.b32.xlu0 %v3232, 64
      %v3258 = vpop.permute.xlu0 %3257
      %3259 = vrot.lane.b32.xlu0 %v3233, 64
      %v3260 = vpop.permute.xlu0 %3259
      %vm3270 = vcmask 1048064
      %3271 = vst.msk [vmem:[#allocation5] sm:$0xff] %vm3270, %v3244
      %3272 = vst.msk [vmem:[#allocation5 + $0x28] sm:$0xff] %vm3270, %v3246
      %3273 = vst.msk [vmem:[#allocation5 + $0x50] sm:$0xff] %vm3270, %v3248
      %3274 = vst.msk [vmem:[#allocation5 + $0x78] sm:$0xff] %vm3270, %v3250
      %3275 = vst.msk [vmem:[#allocation5 + $0xa0] sm:$0xff] %vm3270, %v3252
      %3276 = vst.msk [vmem:[#allocation5 + $0xc8] sm:$0xff] %vm3270, %v3254
      %3277 = vst.msk [vmem:[#allocation5 + $0xf0] sm:$0xff] %vm3270, %v3256
      %3278 = vst.msk [vmem:[#allocation5 + $0x118] sm:$0xff] %vm3270, %v3258
      %vm3279 = vcmask 1046016
      %3280 = vst.msk [vmem:[#allocation5 + $0x140] sm:$0x3f] %vm3279, %v3260
      %v3281 = vld [vmem:[#allocation4 + $0x2] sm:$0xff]
      %v3282 = vld [vmem:[#allocation4 + $0xa] sm:$0xff]
      %v3283 = vld [vmem:[#allocation4 + $0x12] sm:$0xff]
      %v3284 = vld [vmem:[#allocation4 + $0x1a] sm:$0xff]
      %v3285 = vld [vmem:[#allocation4 + $0x22] sm:$0xff]
      %v3286 = vld [vmem:[#allocation4 + $0x2a] sm:$0xff]
      %v3287 = vld [vmem:[#allocation4 + $0x32] sm:$0xff]
      %v3288 = vld [vmem:[#allocation4 + $0x3a] sm:$0xff]
      %v3289 = vld [vmem:[#allocation4 + $0x42] sm:$0x3f]
      %3290 = vst.msk [vmem:[#allocation5 + $0x8] sm:$0xff] %vm1250, %v3281
      %3291 = vst.msk [vmem:[#allocation5 + $0x30] sm:$0xff] %vm1250, %v3282
      %3292 = vst.msk [vmem:[#allocation5 + $0x58] sm:$0xff] %vm1250, %v3283
      %3293 = vst.msk [vmem:[#allocation5 + $0x80] sm:$0xff] %vm1250, %v3284
      %3294 = vst.msk [vmem:[#allocation5 + $0xa8] sm:$0xff] %vm1250, %v3285
      %3295 = vst.msk [vmem:[#allocation5 + $0xd0] sm:$0xff] %vm1250, %v3286
      %3296 = vst.msk [vmem:[#allocation5 + $0xf8] sm:$0xff] %vm1250, %v3287
      %3297 = vst.msk [vmem:[#allocation5 + $0x120] sm:$0xff] %vm1250, %v3288
      %3298 = vst.msk [vmem:[#allocation5 + $0x148] sm:$0x3f] %vm3223, %v3289
      %v3299 = vld [vmem:[#allocation4 + $0xa] sm:$0xff]
      %v3300 = vld [vmem:[#allocation4 + $0x12] sm:$0xff]
      %v3301 = vld [vmem:[#allocation4 + $0x1a] sm:$0xff]
      %v3302 = vld [vmem:[#allocation4 + $0x22] sm:$0xff]
      %v3303 = vld [vmem:[#allocation4 + $0x2a] sm:$0xff]
      %v3304 = vld [vmem:[#allocation4 + $0x32] sm:$0xff]
      %v3305 = vld [vmem:[#allocation4 + $0x3a] sm:$0xff]
      %v3306 = vld [vmem:[#allocation4 + $0x42] sm:$0xff]
      %v3307 = vld [vmem:[#allocation4 + $0x4a] sm:$0x3f]
      %3317 = vrot.lane.b32.xlu0 %v3299, 64
      %v3318 = vpop.permute.xlu0 %3317
      %3319 = vrot.lane.b32.xlu0 %v3300, 64
      %v3320 = vpop.permute.xlu0 %3319
      %3321 = vrot.lane.b32.xlu0 %v3301, 64
      %v3322 = vpop.permute.xlu0 %3321
      %3323 = vrot.lane.b32.xlu0 %v3302, 64
      %v3324 = vpop.permute.xlu0 %3323
      %3325 = vrot.lane.b32.xlu0 %v3303, 64
      %v3326 = vpop.permute.xlu0 %3325
      %3327 = vrot.lane.b32.xlu0 %v3304, 64
      %v3328 = vpop.permute.xlu0 %3327
      %3329 = vrot.lane.b32.xlu0 %v3305, 64
      %v3330 = vpop.permute.xlu0 %3329
      %3331 = vrot.lane.b32.xlu0 %v3306, 64
      %v3332 = vpop.permute.xlu0 %3331
      %3333 = vrot.lane.b32.xlu0 %v3307, 64
      %v3334 = vpop.permute.xlu0 %3333
      %3344 = vst.msk [vmem:[#allocation5 + $0x8] sm:$0xff] %vm3270, %v3318
      %3345 = vst.msk [vmem:[#allocation5 + $0x30] sm:$0xff] %vm3270, %v3320
      %3346 = vst.msk [vmem:[#allocation5 + $0x58] sm:$0xff] %vm3270, %v3322
      %3347 = vst.msk [vmem:[#allocation5 + $0x80] sm:$0xff] %vm3270, %v3324
      %3348 = vst.msk [vmem:[#allocation5 + $0xa8] sm:$0xff] %vm3270, %v3326
      %3349 = vst.msk [vmem:[#allocation5 + $0xd0] sm:$0xff] %vm3270, %v3328
      %3350 = vst.msk [vmem:[#allocation5 + $0xf8] sm:$0xff] %vm3270, %v3330
      %3351 = vst.msk [vmem:[#allocation5 + $0x120] sm:$0xff] %vm3270, %v3332
      %3352 = vst.msk [vmem:[#allocation5 + $0x148] sm:$0x3f] %vm3279, %v3334
      %v3353 = vld [vmem:[#allocation4 + $0xb] sm:$0xff]
      %v3354 = vld [vmem:[#allocation4 + $0x13] sm:$0xff]
      %v3355 = vld [vmem:[#allocation4 + $0x1b] sm:$0xff]
      %v3356 = vld [vmem:[#allocation4 + $0x23] sm:$0xff]
      %v3357 = vld [vmem:[#allocation4 + $0x2b] sm:$0xff]
      %v3358 = vld [vmem:[#allocation4 + $0x33] sm:$0xff]
      %v3359 = vld [vmem:[#allocation4 + $0x3b] sm:$0xff]
      %v3360 = vld [vmem:[#allocation4 + $0x43] sm:$0xff]
      %v3361 = vld [vmem:[#allocation4 + $0x4b] sm:$0x3f]
      %3362 = vst.msk [vmem:[#allocation5 + $0x10] sm:$0xff] %vm1250, %v3353
      %3363 = vst.msk [vmem:[#allocation5 + $0x38] sm:$0xff] %vm1250, %v3354
      %3364 = vst.msk [vmem:[#allocation5 + $0x60] sm:$0xff] %vm1250, %v3355
      %3365 = vst.msk [vmem:[#allocation5 + $0x88] sm:$0xff] %vm1250, %v3356
      %3366 = vst.msk [vmem:[#allocation5 + $0xb0] sm:$0xff] %vm1250, %v3357
      %3367 = vst.msk [vmem:[#allocation5 + $0xd8] sm:$0xff] %vm1250, %v3358
      %3368 = vst.msk [vmem:[#allocation5 + $0x100] sm:$0xff] %vm1250, %v3359
      %3369 = vst.msk [vmem:[#allocation5 + $0x128] sm:$0xff] %vm1250, %v3360
      %3370 = vst.msk [vmem:[#allocation5 + $0x150] sm:$0x3f] %vm3223, %v3361
      %v3371 = vld [vmem:[#allocation4 + $0xc] sm:$0xff]
      %v3372 = vld [vmem:[#allocation4 + $0x14] sm:$0xff]
      %v3373 = vld [vmem:[#allocation4 + $0x1c] sm:$0xff]
      %v3374 = vld [vmem:[#allocation4 + $0x24] sm:$0xff]
      %v3375 = vld [vmem:[#allocation4 + $0x2c] sm:$0xff]
      %v3376 = vld [vmem:[#allocation4 + $0x34] sm:$0xff]
      %v3377 = vld [vmem:[#allocation4 + $0x3c] sm:$0xff]
      %v3378 = vld [vmem:[#allocation4 + $0x44] sm:$0xff]
      %v3379 = vld [vmem:[#allocation4 + $0x4c] sm:$0x3f]
      %3389 = vrot.lane.b32.xlu0 %v3371, 64
      %v3390 = vpop.permute.xlu0 %3389
      %3391 = vrot.lane.b32.xlu0 %v3372, 64
      %v3392 = vpop.permute.xlu0 %3391
      %3393 = vrot.lane.b32.xlu0 %v3373, 64
      %v3394 = vpop.permute.xlu0 %3393
      %3395 = vrot.lane.b32.xlu0 %v3374, 64
      %v3396 = vpop.permute.xlu0 %3395
      %3397 = vrot.lane.b32.xlu0 %v3375, 64
      %v3398 = vpop.permute.xlu0 %3397
      %3399 = vrot.lane.b32.xlu0 %v3376, 64
      %v3400 = vpop.permute.xlu0 %3399
      %3401 = vrot.lane.b32.xlu0 %v3377, 64
      %v3402 = vpop.permute.xlu0 %3401
      %3403 = vrot.lane.b32.xlu0 %v3378, 64
      %v3404 = vpop.permute.xlu0 %3403
      %3405 = vrot.lane.b32.xlu0 %v3379, 64
      %v3406 = vpop.permute.xlu0 %3405
      %3416 = vst.msk [vmem:[#allocation5 + $0x10] sm:$0xff] %vm3270, %v3390
      %3417 = vst.msk [vmem:[#allocation5 + $0x38] sm:$0xff] %vm3270, %v3392
      %3418 = vst.msk [vmem:[#allocation5 + $0x60] sm:$0xff] %vm3270, %v3394
      %3419 = vst.msk [vmem:[#allocation5 + $0x88] sm:$0xff] %vm3270, %v3396
      %3420 = vst.msk [vmem:[#allocation5 + $0xb0] sm:$0xff] %vm3270, %v3398
      %3421 = vst.msk [vmem:[#allocation5 + $0xd8] sm:$0xff] %vm3270, %v3400
      %3422 = vst.msk [vmem:[#allocation5 + $0x100] sm:$0xff] %vm3270, %v3402
      %3423 = vst.msk [vmem:[#allocation5 + $0x128] sm:$0xff] %vm3270, %v3404
      %3424 = vst.msk [vmem:[#allocation5 + $0x150] sm:$0x3f] %vm3279, %v3406
      %v3425 = vld [vmem:[#allocation4 + $0x14] sm:$0xff]
      %v3426 = vld [vmem:[#allocation4 + $0x1c] sm:$0xff]
      %v3427 = vld [vmem:[#allocation4 + $0x24] sm:$0xff]
      %v3428 = vld [vmem:[#allocation4 + $0x2c] sm:$0xff]
      %v3429 = vld [vmem:[#allocation4 + $0x34] sm:$0xff]
      %v3430 = vld [vmem:[#allocation4 + $0x3c] sm:$0xff]
      %v3431 = vld [vmem:[#allocation4 + $0x44] sm:$0xff]
      %v3432 = vld [vmem:[#allocation4 + $0x4c] sm:$0xff]
      %v3433 = vld [vmem:[#allocation4 + $0x54] sm:$0x3f]
      %3434 = vst.msk [vmem:[#allocation5 + $0x18] sm:$0xff] %vm1250, %v3425
      %3435 = vst.msk [vmem:[#allocation5 + $0x40] sm:$0xff] %vm1250, %v3426
      %3436 = vst.msk [vmem:[#allocation5 + $0x68] sm:$0xff] %vm1250, %v3427
      %3437 = vst.msk [vmem:[#allocation5 + $0x90] sm:$0xff] %vm1250, %v3428
      %3438 = vst.msk [vmem:[#allocation5 + $0xb8] sm:$0xff] %vm1250, %v3429
      %3439 = vst.msk [vmem:[#allocation5 + $0xe0] sm:$0xff] %vm1250, %v3430
      %3440 = vst.msk [vmem:[#allocation5 + $0x108] sm:$0xff] %vm1250, %v3431
      %3441 = vst.msk [vmem:[#allocation5 + $0x130] sm:$0xff] %vm1250, %v3432
      %3442 = vst.msk [vmem:[#allocation5 + $0x158] sm:$0x3f] %vm3223, %v3433
      %v3443 = vld [vmem:[#allocation4 + $0x15] sm:$0xff]
      %v3444 = vld [vmem:[#allocation4 + $0x1d] sm:$0xff]
      %v3445 = vld [vmem:[#allocation4 + $0x25] sm:$0xff]
      %v3446 = vld [vmem:[#allocation4 + $0x2d] sm:$0xff]
      %v3447 = vld [vmem:[#allocation4 + $0x35] sm:$0xff]
      %v3448 = vld [vmem:[#allocation4 + $0x3d] sm:$0xff]
      %v3449 = vld [vmem:[#allocation4 + $0x45] sm:$0xff]
      %v3450 = vld [vmem:[#allocation4 + $0x4d] sm:$0xff]
      %v3451 = vld [vmem:[#allocation4 + $0x55] sm:$0x3f]
      %3461 = vrot.lane.b32.xlu0 %v3443, 64
      %v3462 = vpop.permute.xlu0 %3461
      %3463 = vrot.lane.b32.xlu0 %v3444, 64
      %v3464 = vpop.permute.xlu0 %3463
      %3465 = vrot.lane.b32.xlu0 %v3445, 64
      %v3466 = vpop.permute.xlu0 %3465
      %3467 = vrot.lane.b32.xlu0 %v3446, 64
      %v3468 = vpop.permute.xlu0 %3467
      %3469 = vrot.lane.b32.xlu0 %v3447, 64
      %v3470 = vpop.permute.xlu0 %3469
      %3471 = vrot.lane.b32.xlu0 %v3448, 64
      %v3472 = vpop.permute.xlu0 %3471
      %3473 = vrot.lane.b32.xlu0 %v3449, 64
      %v3474 = vpop.permute.xlu0 %3473
      %3475 = vrot.lane.b32.xlu0 %v3450, 64
      %v3476 = vpop.permute.xlu0 %3475
      %3477 = vrot.lane.b32.xlu0 %v3451, 64
      %v3478 = vpop.permute.xlu0 %3477
      %3488 = vst.msk [vmem:[#allocation5 + $0x18] sm:$0xff] %vm3270, %v3462
      %3489 = vst.msk [vmem:[#allocation5 + $0x40] sm:$0xff] %vm3270, %v3464
      %3490 = vst.msk [vmem:[#allocation5 + $0x68] sm:$0xff] %vm3270, %v3466
      %3491 = vst.msk [vmem:[#allocation5 + $0x90] sm:$0xff] %vm3270, %v3468
      %3492 = vst.msk [vmem:[#allocation5 + $0xb8] sm:$0xff] %vm3270, %v3470
      %3493 = vst.msk [vmem:[#allocation5 + $0xe0] sm:$0xff] %vm3270, %v3472
      %3494 = vst.msk [vmem:[#allocation5 + $0x108] sm:$0xff] %vm3270, %v3474
      %3495 = vst.msk [vmem:[#allocation5 + $0x130] sm:$0xff] %vm3270, %v3476
      %3496 = vst.msk [vmem:[#allocation5 + $0x158] sm:$0x3f] %vm3279, %v3478
      %v3497 = vld [vmem:[#allocation4 + $0x16] sm:$0xff]
      %v3498 = vld [vmem:[#allocation4 + $0x1e] sm:$0xff]
      %v3499 = vld [vmem:[#allocation4 + $0x26] sm:$0xff]
      %v3500 = vld [vmem:[#allocation4 + $0x2e] sm:$0xff]
      %v3501 = vld [vmem:[#allocation4 + $0x36] sm:$0xff]
      %v3502 = vld [vmem:[#allocation4 + $0x3e] sm:$0xff]
      %v3503 = vld [vmem:[#allocation4 + $0x46] sm:$0xff]
      %v3504 = vld [vmem:[#allocation4 + $0x4e] sm:$0xff]
      %v3505 = vld [vmem:[#allocation4 + $0x56] sm:$0x3f]
      %3506 = vst.msk [vmem:[#allocation5 + $0x20] sm:$0xff] %vm1250, %v3497
      %3507 = vst.msk [vmem:[#allocation5 + $0x48] sm:$0xff] %vm1250, %v3498
      %3508 = vst.msk [vmem:[#allocation5 + $0x70] sm:$0xff] %vm1250, %v3499
      %3509 = vst.msk [vmem:[#allocation5 + $0x98] sm:$0xff] %vm1250, %v3500
      %3510 = vst.msk [vmem:[#allocation5 + $0xc0] sm:$0xff] %vm1250, %v3501
      %3511 = vst.msk [vmem:[#allocation5 + $0xe8] sm:$0xff] %vm1250, %v3502
      %3512 = vst.msk [vmem:[#allocation5 + $0x110] sm:$0xff] %vm1250, %v3503
      %3513 = vst.msk [vmem:[#allocation5 + $0x138] sm:$0xff] %vm1250, %v3504
      %3514 = vst.msk [vmem:[#allocation5 + $0x160] sm:$0x3f] %vm3223, %v3505
      %v3515 = vld [vmem:[#allocation5] sm:$0xff]
      %v3516 = vld [vmem:[#allocation5 + $0x8] sm:$0xff]
      %v3517 = vld [vmem:[#allocation5 + $0x10] sm:$0xff]
      %v3518 = vld [vmem:[#allocation5 + $0x18] sm:$0xff]
      %v3519 = vld [vmem:[#allocation5 + $0x20] sm:$0xff]
      %v3520 = vld [vmem:[#allocation5 + $0x28] sm:$0xff]
      %v3521 = vld [vmem:[#allocation5 + $0x30] sm:$0xff]
      %v3522 = vld [vmem:[#allocation5 + $0x38] sm:$0xff]
      %v3523 = vld [vmem:[#allocation5 + $0x40] sm:$0xff]
      %v3524 = vld [vmem:[#allocation5 + $0x48] sm:$0xff]
      %v3525 = vld [vmem:[#allocation5 + $0x50] sm:$0xff]
      %v3526 = vld [vmem:[#allocation5 + $0x58] sm:$0xff]
      %v3527 = vld [vmem:[#allocation5 + $0x60] sm:$0xff]
      %v3528 = vld [vmem:[#allocation5 + $0x68] sm:$0xff]
      %v3529 = vld [vmem:[#allocation5 + $0x70] sm:$0xff]
      %v3530 = vld [vmem:[#allocation5 + $0x78] sm:$0xff]
      %v3531 = vld [vmem:[#allocation5 + $0x80] sm:$0xff]
      %v3532 = vld [vmem:[#allocation5 + $0x88] sm:$0xff]
      %v3533 = vld [vmem:[#allocation5 + $0x90] sm:$0xff]
      %v3534 = vld [vmem:[#allocation5 + $0x98] sm:$0xff]
      %v3535 = vld [vmem:[#allocation5 + $0xa0] sm:$0xff]
      %v3536 = vld [vmem:[#allocation5 + $0xa8] sm:$0xff]
      %v3537 = vld [vmem:[#allocation5 + $0xb0] sm:$0xff]
      %v3538 = vld [vmem:[#allocation5 + $0xb8] sm:$0xff]
      %v3539 = vld [vmem:[#allocation5 + $0xc0] sm:$0xff]
      %v3540 = vld [vmem:[#allocation5 + $0xc8] sm:$0xff]
      %v3541 = vld [vmem:[#allocation5 + $0xd0] sm:$0xff]
      %v3542 = vld [vmem:[#allocation5 + $0xd8] sm:$0xff]
      %v3543 = vld [vmem:[#allocation5 + $0xe0] sm:$0xff]
      %v3544 = vld [vmem:[#allocation5 + $0xe8] sm:$0xff]
      %v3545 = vld [vmem:[#allocation5 + $0xf0] sm:$0xff]
      %v3546 = vld [vmem:[#allocation5 + $0xf8] sm:$0xff]
      %v3547 = vld [vmem:[#allocation5 + $0x100] sm:$0xff]
      %v3548 = vld [vmem:[#allocation5 + $0x108] sm:$0xff]
      %v3549 = vld [vmem:[#allocation5 + $0x110] sm:$0xff]
      %v3550 = vld [vmem:[#allocation5 + $0x118] sm:$0xff]
      %v3551 = vld [vmem:[#allocation5 + $0x120] sm:$0xff]
      %v3552 = vld [vmem:[#allocation5 + $0x128] sm:$0xff]
      %v3553 = vld [vmem:[#allocation5 + $0x130] sm:$0xff]
      %v3554 = vld [vmem:[#allocation5 + $0x138] sm:$0xff]
      %v3555 = vld [vmem:[#allocation5 + $0x140] sm:$0xff]
      %v3556 = vld [vmem:[#allocation5 + $0x148] sm:$0xff]
      %v3557 = vld [vmem:[#allocation5 + $0x150] sm:$0xff]
      %v3558 = vld [vmem:[#allocation5 + $0x158] sm:$0xff]
      %v3559 = vld [vmem:[#allocation5 + $0x160] sm:$0xff]
      %v3560 = vld [vmem:[%s5] sm:$0xff]
      %v3561 = vld [vmem:[%s5 + $0x8] sm:$0xff]
      %v3562 = vld [vmem:[%s5 + $0x10] sm:$0xff]
      %v3563 = vld [vmem:[%s5 + $0x18] sm:$0xff]
      %v3564 = vld [vmem:[%s5 + $0x20] sm:$0xff]
      %v3565 = vld [vmem:[%s5 + $0x28] sm:$0xff]
      %v3566 = vld [vmem:[%s5 + $0x30] sm:$0xff]
      %v3567 = vld [vmem:[%s5 + $0x38] sm:$0xff]
      %v3568 = vld [vmem:[%s5 + $0x40] sm:$0xff]
      %v3569 = vld [vmem:[%s5 + $0x48] sm:$0xff]
      %v3570 = vld [vmem:[%s5 + $0x50] sm:$0xff]
      %v3571 = vld [vmem:[%s5 + $0x58] sm:$0xff]
      %v3572 = vld [vmem:[%s5 + $0x60] sm:$0xff]
      %v3573 = vld [vmem:[%s5 + $0x68] sm:$0xff]
      %v3574 = vld [vmem:[%s5 + $0x70] sm:$0xff]
      %v3575 = vld [vmem:[%s5 + $0x78] sm:$0xff]
      %v3576 = vld [vmem:[%s5 + $0x80] sm:$0xff]
      %v3577 = vld [vmem:[%s5 + $0x88] sm:$0xff]
      %v3578 = vld [vmem:[%s5 + $0x90] sm:$0xff]
      %v3579 = vld [vmem:[%s5 + $0x98] sm:$0xff]
      %v3580 = vld [vmem:[%s5 + $0xa0] sm:$0xff]
      %v3581 = vld [vmem:[%s5 + $0xa8] sm:$0xff]
      %v3582 = vld [vmem:[%s5 + $0xb0] sm:$0xff]
      %v3583 = vld [vmem:[%s5 + $0xb8] sm:$0xff]
      %v3584 = vld [vmem:[%s5 + $0xc0] sm:$0xff]
      %v3585 = vld [vmem:[%s5 + $0xc8] sm:$0xff]
      %v3586 = vld [vmem:[%s5 + $0xd0] sm:$0xff]
      %v3587 = vld [vmem:[%s5 + $0xd8] sm:$0xff]
      %v3588 = vld [vmem:[%s5 + $0xe0] sm:$0xff]
      %v3589 = vld [vmem:[%s5 + $0xe8] sm:$0xff]
      %v3590 = vld [vmem:[%s5 + $0xf0] sm:$0xff]
      %v3591 = vld [vmem:[%s5 + $0xf8] sm:$0xff]
      %v3592 = vld [vmem:[%s5 + $0x100] sm:$0xff]
      %v3593 = vld [vmem:[%s5 + $0x108] sm:$0xff]
      %v3594 = vld [vmem:[%s5 + $0x110] sm:$0xff]
      %v3595 = vld [vmem:[%s5 + $0x118] sm:$0xff]
      %v3596 = vld [vmem:[%s5 + $0x120] sm:$0xff]
      %v3597 = vld [vmem:[%s5 + $0x128] sm:$0xff]
      %v3598 = vld [vmem:[%s5 + $0x130] sm:$0xff]
      %v3599 = vld [vmem:[%s5 + $0x138] sm:$0xff]
      %v3600 = vld [vmem:[%s5 + $0x140] sm:$0xff]
      %v3601 = vld [vmem:[%s5 + $0x148] sm:$0xff]
      %v3602 = vld [vmem:[%s5 + $0x150] sm:$0xff]
      %v3603 = vld [vmem:[%s5 + $0x158] sm:$0xff]
      %v3604 = vld [vmem:[%s5 + $0x160] sm:$0xff]
      %v3605 = vld [vmem:[%s5 + $0x168] sm:$0xff]
      %v3606 = vld [vmem:[%s5 + $0x170] sm:$0xff]
      %v3607 = vld [vmem:[%s5 + $0x178] sm:$0xff]
      %v3608 = vld [vmem:[%s5 + $0x180] sm:$0xff]
      %v3609 = vld [vmem:[%s5 + $0x188] sm:$0xff]
      %v3610 = vld [vmem:[%s5 + $0x190] sm:$0xff]
      %v3611 = vld [vmem:[%s5 + $0x198] sm:$0xff]
      %v3612 = vld [vmem:[%s5 + $0x1a0] sm:$0xff]
      %v3613 = vld [vmem:[%s5 + $0x1a8] sm:$0xff]
      %v3614 = vld [vmem:[%s5 + $0x1b0] sm:$0xff]
      %v3615 = vld [vmem:[%s5 + $0x1b8] sm:$0xff]
      %v3616 = vld [vmem:[%s5 + $0x1c0] sm:$0xff]
      %v3617 = vld [vmem:[%s5 + $0x1c8] sm:$0xff]
      %v3618 = vld [vmem:[%s5 + $0x1d0] sm:$0xff]
      %v3619 = vld [vmem:[%s5 + $0x1d8] sm:$0xff]
      %v3620 = vld [vmem:[%s5 + $0x1e0] sm:$0xff]
      %v3621 = vld [vmem:[%s5 + $0x1e8] sm:$0xff]
      %v3622 = vld [vmem:[%s5 + $0x1f0] sm:$0xff]
      %v3623 = vld [vmem:[%s5 + $0x1f8] sm:$0xff]
      %v3624 = vld [vmem:[%s5 + $0x200] sm:$0xff]
      %v3625 = vld [vmem:[%s5 + $0x208] sm:$0xff]
      %v3626 = vld [vmem:[%s5 + $0x210] sm:$0xff]
      %v3627 = vld [vmem:[%s5 + $0x218] sm:$0xff]
      %v3628 = vld [vmem:[%s5 + $0x220] sm:$0xff]
      %v3629 = vld [vmem:[%s5 + $0x228] sm:$0xff]
      %v3630 = vld [vmem:[%s5 + $0x230] sm:$0xff]
      %v3631 = vld [vmem:[%s5 + $0x238] sm:$0xff]
      %v3632 = vld [vmem:[%s6] sm:$0x1]
      %v3634 = vlaneseq
      %v3635 = vshrl.u32 %v3634, 7
      %v3636 = vsub.s32 0, %v3635
      %v3637 = vrot.slane %v3632, %v3636
      %v3640 = vsel %vm1250, %v3519, 0
      %v3643 = vsel %vm1250, %v3524, 0
      %v3646 = vsel %vm1250, %v3529, 0
      %v3649 = vsel %vm1250, %v3534, 0
      %v3652 = vsel %vm1250, %v3539, 0
      %v3655 = vsel %vm1250, %v3544, 0
      %v3658 = vsel %vm1250, %v3549, 0
      %v3661 = vsel %vm1250, %v3554, 0
      %v3664 = vsel %vm1250, %v3559, 0
      %3666 = vmatprep.subr.mxu0 0.0
      %3667 = vmatpush1.msra.mxu0 %v3560
      %3668 = vmatprep.subr.mxu0 0.0
      %3669 = vmatpush1.msra.mxu0 %v3561
      %3670 = vmatprep.subr.mxu0 0.0
      %3671 = vmatpush1.msra.mxu0 %v3562
      %3672 = vmatprep.subr.mxu0 0.0
      %3673 = vmatpush1.msra.mxu0 %v3563
      %3674 = vmatprep.subr.mxu0 0.0
      %3675 = vmatpush1.msra.mxu0 %v3564
      %3676 = vmatprep.subr.mxu0 0.0
      %3677 = vmatpush1.msra.mxu0 %v3565
      %3678 = vmatprep.subr.mxu0 0.0
      %3679 = vmatpush1.msra.mxu0 %v3566
      %3680 = vmatprep.subr.mxu0 0.0
      %3681 = vmatpush1.msra.mxu0 %v3567
      %3682 = vmatprep.subr.mxu0 0.0
      %3683 = vmatpush1.msra.mxu0 %v3568
      %3684 = vmatprep.subr.mxu0 0.0
      %3685 = vmatpush1.msra.mxu0 %v3569
      %3686 = vmatprep.subr.mxu0 0.0
      %3687 = vmatpush1.msra.mxu0 %v3570
      %3688 = vmatprep.subr.mxu0 0.0
      %3689 = vmatpush1.msra.mxu0 %v3571
      %3690 = vmatprep.subr.mxu0 0.0
      %3691 = vmatpush1.msra.mxu0 %v3572
      %3692 = vmatprep.subr.mxu0 0.0
      %3693 = vmatpush1.msra.mxu0 %v3573
      %3694 = vmatprep.subr.mxu0 0.0
      %3695 = vmatpush1.msra.mxu0 %v3574
      %3696 = vmatprep.subr.mxu0 0.0
      %3697 = vmatpush1.msra.mxu0 %v3575
      %3698 = vmatprep.subr.mxu0 0.0
      %3699 = vmatpush1.msra.mxu0 %v3576
      %3700 = vmatprep.subr.mxu0 0.0
      %3701 = vmatpush1.msra.mxu0 %v3577
      %3702 = vmatprep.subr.mxu0 0.0
      %3703 = vmatpush1.msra.mxu0 %v3578
      %3704 = vmatprep.subr.mxu0 0.0
      %3705 = vmatpush1.msra.mxu0 %v3579
      %3706 = vmatprep.subr.mxu0 0.0
      %3707 = vmatpush1.msra.mxu0 %v3580
      %3708 = vmatprep.subr.mxu0 0.0
      %3709 = vmatpush1.msra.mxu0 %v3581
      %3710 = vmatprep.subr.mxu0 0.0
      %3711 = vmatpush1.msra.mxu0 %v3582
      %3712 = vmatprep.subr.mxu0 0.0
      %3713 = vmatpush1.msra.mxu0 %v3583
      %3714 = vmatprep.subr.mxu0 0.0
      %3715 = vmatpush1.msra.mxu0 %v3584
      %3716 = vmatprep.subr.mxu0 0.0
      %3717 = vmatpush1.msra.mxu0 %v3585
      %3718 = vmatprep.subr.mxu0 0.0
      %3719 = vmatpush1.msra.mxu0 %v3586
      %3720 = vmatprep.subr.mxu0 0.0
      %3721 = vmatpush1.msra.mxu0 %v3587
      %3722 = vmatprep.subr.mxu0 0.0
      %3723 = vmatpush1.msra.mxu0 %v3588
      %3724 = vmatprep.subr.mxu0 0.0
      %3725 = vmatpush1.msra.mxu0 %v3589
      %3726 = vmatprep.subr.mxu0 0.0
      %3727 = vmatpush1.msra.mxu0 %v3590
      %3728 = vmatprep.subr.mxu0 0.0
      %3729 = vmatpush1.msra.mxu0 %v3591
      %3730 = vmatprep.mubr.f32.mxu0 %v3516
      %3731 = vmatmul.mubr.f32.gmra.mrb[0].mxu0 %v3515
      %v3732 = vpop.f32.mrb[0].mxu0
      %v3733 = vadd.f32 %v3637, %v3732
      %v3734 = vpop.f32.mrb[0].mxu0
      %3735 = vmatprep.mubr.f32.mxu0 %v3521
      %3736 = vmatmul.mubr.f32.gmra.mrb[0].mxu0 %v3520
      %v3737 = vpop.f32.mrb[0].mxu0
      %v3738 = vadd.f32 %v3637, %v3737
      %v3739 = vpop.f32.mrb[0].mxu0
      %3740 = vmatprep.mubr.f32.mxu0 %v3526
      %3741 = vmatmul.mubr.f32.gmra.mrb[0].mxu0 %v3525
      %v3742 = vpop.f32.mrb[0].mxu0
      %v3743 = vadd.f32 %v3637, %v3742
      %v3744 = vpop.f32.mrb[0].mxu0
      %3745 = vmatprep.mubr.f32.mxu0 %v3531
      %3746 = vmatmul.mubr.f32.gmra.mrb[0].mxu0 %v3530
      %v3747 = vpop.f32.mrb[0].mxu0
      %v3748 = vadd.f32 %v3637, %v3747
      %v3749 = vpop.f32.mrb[0].mxu0
      %3750 = vmatprep.mubr.f32.mxu0 %v3536
      %3751 = vmatmul.mubr.f32.gmra.mrb[0].mxu0 %v3535
      %v3752 = vpop.f32.mrb[0].mxu0
      %v3753 = vadd.f32 %v3637, %v3752
      %v3754 = vpop.f32.mrb[0].mxu0
      %3755 = vmatprep.mubr.f32.mxu0 %v3541
      %3756 = vmatmul.mubr.f32.gmra.mrb[0].mxu0 %v3540
      %v3757 = vpop.f32.mrb[0].mxu0
      %v3758 = vadd.f32 %v3637, %v3757
      %v3759 = vpop.f32.mrb[0].mxu0
      %3760 = vmatprep.mubr.f32.mxu0 %v3546
      %3761 = vmatmul.mubr.f32.gmra.mrb[0].mxu0 %v3545
      %v3762 = vpop.f32.mrb[0].mxu0
      %v3763 = vadd.f32 %v3637, %v3762
      %v3764 = vpop.f32.mrb[0].mxu0
      %3765 = vmatprep.mubr.f32.mxu0 %v3551
      %3766 = vmatmul.mubr.f32.gmra.mrb[0].mxu0 %v3550
      %v3767 = vpop.f32.mrb[0].mxu0
      %v3768 = vadd.f32 %v3637, %v3767
      %v3769 = vpop.f32.mrb[0].mxu0
      %3770 = vmatprep.mubr.f32.mxu0 %v3556
      %3771 = vmatmul.mubr.f32.gmra.mrb[0].mxu0 %v3555
      %v3772 = vpop.f32.mrb[0].mxu0
      %v3773 = vadd.f32 %v3637, %v3772
      %v3774 = vpop.f32.mrb[0].mxu0
      %3775 = vdwg.mxu0
      %3776 = vmatprep.subr.mxu0 0.0
      %3777 = vmatpush1.msra.mxu0 %v3592
      %3778 = vmatprep.subr.mxu0 0.0
      %3779 = vmatpush1.msra.mxu0 %v3593
      %3780 = vmatprep.subr.mxu0 0.0
      %3781 = vmatpush1.msra.mxu0 %v3594
      %3782 = vmatprep.subr.mxu0 0.0
      %3783 = vmatpush1.msra.mxu0 %v3595
      %3784 = vmatprep.subr.mxu0 0.0
      %3785 = vmatpush1.msra.mxu0 %v3596
      %3786 = vmatprep.subr.mxu0 0.0
      %3787 = vmatpush1.msra.mxu0 %v3597
      %3788 = vmatprep.subr.mxu0 0.0
      %3789 = vmatpush1.msra.mxu0 %v3598
      %3790 = vmatprep.subr.mxu0 0.0
      %3791 = vmatpush1.msra.mxu0 %v3599
      %3792 = vmatprep.subr.mxu0 0.0
      %3793 = vmatpush1.msra.mxu0 %v3600
      %3794 = vmatprep.subr.mxu0 0.0
      %3795 = vmatpush1.msra.mxu0 %v3601
      %3796 = vmatprep.subr.mxu0 0.0
      %3797 = vmatpush1.msra.mxu0 %v3602
      %3798 = vmatprep.subr.mxu0 0.0
      %3799 = vmatpush1.msra.mxu0 %v3603
      %3800 = vmatprep.subr.mxu0 0.0
      %3801 = vmatpush1.msra.mxu0 %v3604
      %3802 = vmatprep.subr.mxu0 0.0
      %3803 = vmatpush1.msra.mxu0 %v3605
      %3804 = vmatprep.subr.mxu0 0.0
      %3805 = vmatpush1.msra.mxu0 %v3606
      %3806 = vmatprep.subr.mxu0 0.0
      %3807 = vmatpush1.msra.mxu0 %v3607
      %3808 = vmatprep.subr.mxu0 0.0
      %3809 = vmatpush1.msra.mxu0 %v3608
      %3810 = vmatprep.subr.mxu0 0.0
      %3811 = vmatpush1.msra.mxu0 %v3609
      %3812 = vmatprep.subr.mxu0 0.0
      %3813 = vmatpush1.msra.mxu0 %v3610
      %3814 = vmatprep.subr.mxu0 0.0
      %3815 = vmatpush1.msra.mxu0 %v3611
      %3816 = vmatprep.subr.mxu0 0.0
      %3817 = vmatpush1.msra.mxu0 %v3612
      %3818 = vmatprep.subr.mxu0 0.0
      %3819 = vmatpush1.msra.mxu0 %v3613
      %3820 = vmatprep.subr.mxu0 0.0
      %3821 = vmatpush1.msra.mxu0 %v3614
      %3822 = vmatprep.subr.mxu0 0.0
      %3823 = vmatpush1.msra.mxu0 %v3615
      %3824 = vmatprep.subr.mxu0 0.0
      %3825 = vmatpush1.msra.mxu0 %v3616
      %3826 = vmatprep.subr.mxu0 0.0
      %3827 = vmatpush1.msra.mxu0 %v3617
      %3828 = vmatprep.subr.mxu0 0.0
      %3829 = vmatpush1.msra.mxu0 %v3618
      %3830 = vmatprep.subr.mxu0 0.0
      %3831 = vmatpush1.msra.mxu0 %v3619
      %3832 = vmatprep.subr.mxu0 0.0
      %3833 = vmatpush1.msra.mxu0 %v3620
      %3834 = vmatprep.subr.mxu0 0.0
      %3835 = vmatpush1.msra.mxu0 %v3621
      %3836 = vmatprep.subr.mxu0 0.0
      %3837 = vmatpush1.msra.mxu0 %v3622
      %3838 = vmatprep.subr.mxu0 0.0
      %3839 = vmatpush1.msra.mxu0 %v3623
      %3840 = vmatprep.mubr.f32.mxu0 %v3518
      %3841 = vmatmul.mubr.f32.gmra.mrb[0].mxu0 %v3517
      %v3842 = vpop.f32.mrb[0].mxu0
      %v3843 = vadd.f32 %v3733, %v3842
      %v3844 = vpop.f32.mrb[0].mxu0
      %3845 = vmatprep.mubr.f32.mxu0 %v3523
      %3846 = vmatmul.mubr.f32.gmra.mrb[0].mxu0 %v3522
      %v3847 = vpop.f32.mrb[0].mxu0
      %v3848 = vadd.f32 %v3738, %v3847
      %v3849 = vpop.f32.mrb[0].mxu0
      %3850 = vmatprep.mubr.f32.mxu0 %v3528
      %3851 = vmatmul.mubr.f32.gmra.mrb[0].mxu0 %v3527
      %v3852 = vpop.f32.mrb[0].mxu0
      %v3853 = vadd.f32 %v3743, %v3852
      %v3854 = vpop.f32.mrb[0].mxu0
      %3855 = vmatprep.mubr.f32.mxu0 %v3533
      %3856 = vmatmul.mubr.f32.gmra.mrb[0].mxu0 %v3532
      %v3857 = vpop.f32.mrb[0].mxu0
      %v3858 = vadd.f32 %v3748, %v3857
      %v3859 = vpop.f32.mrb[0].mxu0
      %3860 = vmatprep.mubr.f32.mxu0 %v3538
      %3861 = vmatmul.mubr.f32.gmra.mrb[0].mxu0 %v3537
      %v3862 = vpop.f32.mrb[0].mxu0
      %v3863 = vadd.f32 %v3753, %v3862
      %v3864 = vpop.f32.mrb[0].mxu0
      %3865 = vmatprep.mubr.f32.mxu0 %v3543
      %3866 = vmatmul.mubr.f32.gmra.mrb[0].mxu0 %v3542
      %v3867 = vpop.f32.mrb[0].mxu0
      %v3868 = vadd.f32 %v3758, %v3867
      %v3869 = vpop.f32.mrb[0].mxu0
      %3870 = vmatprep.mubr.f32.mxu0 %v3548
      %3871 = vmatmul.mubr.f32.gmra.mrb[0].mxu0 %v3547
      %v3872 = vpop.f32.mrb[0].mxu0
      %v3873 = vadd.f32 %v3763, %v3872
      %v3874 = vpop.f32.mrb[0].mxu0
      %3875 = vmatprep.mubr.f32.mxu0 %v3553
      %3876 = vmatmul.mubr.f32.gmra.mrb[0].mxu0 %v3552
      %v3877 = vpop.f32.mrb[0].mxu0
      %v3878 = vadd.f32 %v3768, %v3877
      %v3879 = vpop.f32.mrb[0].mxu0
      %3880 = vmatprep.mubr.f32.mxu0 %v3558
      %3881 = vmatmul.mubr.f32.gmra.mrb[0].mxu0 %v3557
      %v3882 = vpop.f32.mrb[0].mxu0
      %v3883 = vadd.f32 %v3773, %v3882
      %v3884 = vpop.f32.mrb[0].mxu0
      %3885 = vdwg.mxu0
      %3886 = vmatprep.subr.mxu0 0.0
      %3887 = vmatpush1.msra.mxu0 %v3624
      %3888 = vmatprep.subr.mxu0 0.0
      %3889 = vmatpush1.msra.mxu0 %v3625
      %3890 = vmatprep.subr.mxu0 0.0
      %3891 = vmatpush1.msra.mxu0 %v3626
      %3892 = vmatprep.subr.mxu0 0.0
      %3893 = vmatpush1.msra.mxu0 %v3627
      %3894 = vmatprep.subr.mxu0 0.0
      %3895 = vmatpush1.msra.mxu0 %v3628
      %3896 = vmatprep.subr.mxu0 0.0
      %3897 = vmatpush1.msra.mxu0 %v3629
      %3898 = vmatprep.subr.mxu0 0.0
      %3899 = vmatpush1.msra.mxu0 %v3630
      %3900 = vmatprep.subr.mxu0 0.0
      %3901 = vmatpush1.msra.mxu0 %v3631
      %3902 = vmatprep.subr.mxu0 0.0
      %3903 = vmatpush1.msra.mxu0 0.0
      %3904 = vmatprep.subr.mxu0 0.0
      %3905 = vmatpush1.msra.mxu0 0.0
      %3906 = vmatprep.subr.mxu0 0.0
      %3907 = vmatpush1.msra.mxu0 0.0
      %3908 = vmatprep.subr.mxu0 0.0
      %3909 = vmatpush1.msra.mxu0 0.0
      %3910 = vmatprep.subr.mxu0 0.0
      %3911 = vmatpush1.msra.mxu0 0.0
      %3912 = vmatprep.subr.mxu0 0.0
      %3913 = vmatpush1.msra.mxu0 0.0
      %3914 = vmatprep.subr.mxu0 0.0
      %3915 = vmatpush1.msra.mxu0 0.0
      %3916 = vmatprep.subr.mxu0 0.0
      %3917 = vmatpush1.msra.mxu0 0.0
      %3918 = vmatprep.subr.mxu0 0.0
      %3919 = vmatpush1.msra.mxu0 0.0
      %3920 = vmatprep.subr.mxu0 0.0
      %3921 = vmatpush1.msra.mxu0 0.0
      %3922 = vmatprep.subr.mxu0 0.0
      %3923 = vmatpush1.msra.mxu0 0.0
      %3924 = vmatprep.subr.mxu0 0.0
      %3925 = vmatpush1.msra.mxu0 0.0
      %3926 = vmatprep.subr.mxu0 0.0
      %3927 = vmatpush1.msra.mxu0 0.0
      %3928 = vmatprep.subr.mxu0 0.0
      %3929 = vmatpush1.msra.mxu0 0.0
      %3930 = vmatprep.subr.mxu0 0.0
      %3931 = vmatpush1.msra.mxu0 0.0
      %3932 = vmatprep.subr.mxu0 0.0
      %3933 = vmatpush1.msra.mxu0 0.0
      %3934 = vmatprep.subr.mxu0 0.0
      %3935 = vmatpush1.msra.mxu0 0.0
      %3936 = vmatprep.subr.mxu0 0.0
      %3937 = vmatpush1.msra.mxu0 0.0
      %3938 = vmatprep.subr.mxu0 0.0
      %3939 = vmatpush1.msra.mxu0 0.0
      %3940 = vmatprep.subr.mxu0 0.0
      %3941 = vmatpush1.msra.mxu0 0.0
      %3942 = vmatprep.subr.mxu0 0.0
      %3943 = vmatpush1.msra.mxu0 0.0
      %3944 = vmatprep.subr.mxu0 0.0
      %3945 = vmatpush1.msra.mxu0 0.0
      %3946 = vmatprep.subr.mxu0 0.0
      %3947 = vmatpush1.msra.mxu0 0.0
      %3948 = vmatprep.subr.mxu0 0.0
      %3949 = vmatpush1.msra.mxu0 0.0
      %3950 = vmatprep.mubr.f32.mxu0 0.0
      %3951 = vmatmul.mubr.f32.gmra.mrb[0].mxu0 %v3640
      %v3952 = vpop.f32.mrb[0].mxu0
      %v3953 = vadd.f32 %v3843, %v3952
      %v3954 = vpop.f32.mrb[0].mxu0
      %3955 = vmatprep.mubr.f32.mxu0 0.0
      %3956 = vmatmul.mubr.f32.gmra.mrb[0].mxu0 %v3643
      %v3957 = vpop.f32.mrb[0].mxu0
      %v3958 = vadd.f32 %v3848, %v3957
      %v3959 = vpop.f32.mrb[0].mxu0
      %3960 = vmatprep.mubr.f32.mxu0 0.0
      %3961 = vmatmul.mubr.f32.gmra.mrb[0].mxu0 %v3646
      %v3962 = vpop.f32.mrb[0].mxu0
      %v3963 = vadd.f32 %v3853, %v3962
      %v3964 = vpop.f32.mrb[0].mxu0
      %3965 = vmatprep.mubr.f32.mxu0 0.0
      %3966 = vmatmul.mubr.f32.gmra.mrb[0].mxu0 %v3649
      %v3967 = vpop.f32.mrb[0].mxu0
      %v3968 = vadd.f32 %v3858, %v3967
      %v3969 = vpop.f32.mrb[0].mxu0
      %3970 = vmatprep.mubr.f32.mxu0 0.0
      %3971 = vmatmul.mubr.f32.gmra.mrb[0].mxu0 %v3652
      %v3972 = vpop.f32.mrb[0].mxu0
      %v3973 = vadd.f32 %v3863, %v3972
      %v3974 = vpop.f32.mrb[0].mxu0
      %3975 = vmatprep.mubr.f32.mxu0 0.0
      %3976 = vmatmul.mubr.f32.gmra.mrb[0].mxu0 %v3655
      %v3977 = vpop.f32.mrb[0].mxu0
      %v3978 = vadd.f32 %v3868, %v3977
      %v3979 = vpop.f32.mrb[0].mxu0
      %3980 = vmatprep.mubr.f32.mxu0 0.0
      %3981 = vmatmul.mubr.f32.gmra.mrb[0].mxu0 %v3658
      %v3982 = vpop.f32.mrb[0].mxu0
      %v3983 = vadd.f32 %v3873, %v3982
      %v3984 = vpop.f32.mrb[0].mxu0
      %3985 = vmatprep.mubr.f32.mxu0 0.0
      %3986 = vmatmul.mubr.f32.gmra.mrb[0].mxu0 %v3661
      %v3987 = vpop.f32.mrb[0].mxu0
      %v3988 = vadd.f32 %v3878, %v3987
      %v3989 = vpop.f32.mrb[0].mxu0
      %3990 = vmatprep.mubr.f32.mxu0 0.0
      %3991 = vmatmul.mubr.f32.gmra.mrb[0].mxu0 %v3664
      %v3992 = vpop.f32.mrb[0].mxu0
      %v3993 = vadd.f32 %v3883, %v3992
      %v3994 = vpop.f32.mrb[0].mxu0
      %3995 = vdwg.mxu0
      %v3996 = vmax.f32 %v3953, 0.0
      %v3997 = vmax.f32 %v3958, 0.0
      %v3998 = vmax.f32 %v3963, 0.0
      %v3999 = vmax.f32 %v3968, 0.0
      %v4000 = vmax.f32 %v3973, 0.0
      %v4001 = vmax.f32 %v3978, 0.0
      %v4002 = vmax.f32 %v3983, 0.0
      %v4003 = vmax.f32 %v3988, 0.0
      %v4004 = vmax.f32 %v3993, 0.0
      %4005 = vst.msk [vmem:[#allocation6] sm:$0xff] %vm1250, %v3996
      %4006 = vst.msk [vmem:[#allocation6 + $0x8] sm:$0xff] %vm1250, %v3997
      %4007 = vst.msk [vmem:[#allocation6 + $0x10] sm:$0xff] %vm1250, %v3998
      %4008 = vst.msk [vmem:[#allocation6 + $0x18] sm:$0xff] %vm1250, %v3999
      %4009 = vst.msk [vmem:[#allocation6 + $0x20] sm:$0xff] %vm1250, %v4000
      %4010 = vst.msk [vmem:[#allocation6 + $0x28] sm:$0xff] %vm1250, %v4001
      %4011 = vst.msk [vmem:[#allocation6 + $0x30] sm:$0xff] %vm1250, %v4002
      %4012 = vst.msk [vmem:[#allocation6 + $0x38] sm:$0xff] %vm1250, %v4003
      %4013 = vst.msk [vmem:[#allocation6 + $0x40] sm:$0xff] %vm1250, %v4004
      %v4014 = vld [vmem:[#allocation6] sm:$0x1]
      %v4015 = vlaneseq
      %vm4016 = vcmp.ge.s32.totalorder %v4015, 0
      %vm4017 = vcmp.lt.s32.totalorder %v4015, 64
      %vm4018 = vmand %vm4016, %vm4017
      %4019 = vst.msk [vmem:[#allocation7] sm:$0x1] %vm4018, %v4014
      %v4020 = vld [vmem:[#allocation6 + $0x1] sm:$0x1]
      %v4023 = vunpack.c.l.s4 1966171168
      %v4024 = vunpack.c.0.s8 %v4023
      %v4025 = vlaneseq
      %v4026 = vshrl.u32 %v4025, 7
      %v4027 = vsub.s32 %v4024, %v4026
      %v4028 = vrot.slane %v4020, %v4027
      %v4030 = vunpack.c.l.s4 1966171168
      %v4031 = vunpack.c.0.s8 %v4030
      %v4032 = vlaneseq
      %v4033 = vshrl.u32 %v4032, 7
      %v4034 = vsub.s32 %v4031, %v4033
      %v4035 = vrot.slane %v4028, %v4034
      %4036 = vrot.lane.b32.xlu0 %v4035, 64
      %v4037 = vpop.permute.xlu0 %4036
      %vm4039 = vcmp.ge.s32.totalorder %v4015, 64
      %vm4040 = vcmp.lt.s32.totalorder %v4015, 128
      %vm4041 = vmand %vm4039, %vm4040
      %4042 = vst.msk [vmem:[#allocation7] sm:$0x1] %vm4041, %v4037
      %v4043 = vld [vmem:[#allocation6 + $0x2] sm:$0x1]
      %4044 = vst.msk [vmem:[#allocation7 + $0x1] sm:$0x1] %vm4018, %v4043
      %v4045 = vld [vmem:[#allocation6 + $0x3] sm:$0x1]
      %v4048 = vunpack.c.l.s4 1966171168
      %v4049 = vunpack.c.0.s8 %v4048
      %v4050 = vlaneseq
      %v4051 = vshrl.u32 %v4050, 7
      %v4052 = vsub.s32 %v4049, %v4051
      %v4053 = vrot.slane %v4045, %v4052
      %v4055 = vunpack.c.l.s4 1966171168
      %v4056 = vunpack.c.0.s8 %v4055
      %v4057 = vlaneseq
      %v4058 = vshrl.u32 %v4057, 7
      %v4059 = vsub.s32 %v4056, %v4058
      %v4060 = vrot.slane %v4053, %v4059
      %4061 = vrot.lane.b32.xlu0 %v4060, 64
      %v4062 = vpop.permute.xlu0 %4061
      %4064 = vst.msk [vmem:[#allocation7 + $0x1] sm:$0x1] %vm4041, %v4062
      %v4065 = vld [vmem:[#allocation6 + $0x4] sm:$0x1]
      %4066 = vst.msk [vmem:[#allocation7 + $0x2] sm:$0x1] %vm4018, %v4065
      %v4067 = vld [vmem:[#allocation6 + $0x5] sm:$0x1]
      %v4070 = vunpack.c.l.s4 1966171168
      %v4071 = vunpack.c.0.s8 %v4070
      %v4072 = vlaneseq
      %v4073 = vshrl.u32 %v4072, 7
      %v4074 = vsub.s32 %v4071, %v4073
      %v4075 = vrot.slane %v4067, %v4074
      %v4077 = vunpack.c.l.s4 1966171168
      %v4078 = vunpack.c.0.s8 %v4077
      %v4079 = vlaneseq
      %v4080 = vshrl.u32 %v4079, 7
      %v4081 = vsub.s32 %v4078, %v4080
      %v4082 = vrot.slane %v4075, %v4081
      %4083 = vrot.lane.b32.xlu0 %v4082, 64
      %v4084 = vpop.permute.xlu0 %4083
      %4086 = vst.msk [vmem:[#allocation7 + $0x2] sm:$0x1] %vm4041, %v4084
      %v4087 = vld [vmem:[#allocation6 + $0x6] sm:$0x1]
      %4088 = vst.msk [vmem:[#allocation7 + $0x3] sm:$0x1] %vm4018, %v4087
      %v4089 = vld [vmem:[#allocation6 + $0xa] sm:$0x1]
      %v4092 = vunpack.c.l.s4 1966171168
      %v4093 = vunpack.c.0.s8 %v4092
      %v4094 = vlaneseq
      %v4095 = vshrl.u32 %v4094, 7
      %v4096 = vsub.s32 %v4093, %v4095
      %v4097 = vrot.slane %v4089, %v4096
      %v4099 = vunpack.c.l.s4 1966171168
      %v4100 = vunpack.c.0.s8 %v4099
      %v4101 = vlaneseq
      %v4102 = vshrl.u32 %v4101, 7
      %v4103 = vsub.s32 %v4100, %v4102
      %v4104 = vrot.slane %v4097, %v4103
      %4105 = vrot.lane.b32.xlu0 %v4104, 64
      %v4106 = vpop.permute.xlu0 %4105
      %4108 = vst.msk [vmem:[#allocation7 + $0x3] sm:$0x1] %vm4041, %v4106
      %v4109 = vld [vmem:[#allocation6 + $0xb] sm:$0x1]
      %4110 = vst.msk [vmem:[#allocation7 + $0x4] sm:$0x1] %vm4018, %v4109
      %v4111 = vld [vmem:[#allocation6 + $0xc] sm:$0x1]
      %v4114 = vunpack.c.l.s4 1966171168
      %v4115 = vunpack.c.0.s8 %v4114
      %v4116 = vlaneseq
      %v4117 = vshrl.u32 %v4116, 7
      %v4118 = vsub.s32 %v4115, %v4117
      %v4119 = vrot.slane %v4111, %v4118
      %v4121 = vunpack.c.l.s4 1966171168
      %v4122 = vunpack.c.0.s8 %v4121
      %v4123 = vlaneseq
      %v4124 = vshrl.u32 %v4123, 7
      %v4125 = vsub.s32 %v4122, %v4124
      %v4126 = vrot.slane %v4119, %v4125
      %4127 = vrot.lane.b32.xlu0 %v4126, 64
      %v4128 = vpop.permute.xlu0 %4127
      %4130 = vst.msk [vmem:[#allocation7 + $0x4] sm:$0x1] %vm4041, %v4128
      %v4131 = vld [vmem:[#allocation6 + $0xd] sm:$0x1]
      %4132 = vst.msk [vmem:[#allocation7 + $0x5] sm:$0x1] %vm4018, %v4131
      %v4133 = vld [vmem:[#allocation6 + $0xe] sm:$0x1]
      %v4136 = vunpack.c.l.s4 1966171168
      %v4137 = vunpack.c.0.s8 %v4136
      %v4138 = vlaneseq
      %v4139 = vshrl.u32 %v4138, 7
      %v4140 = vsub.s32 %v4137, %v4139
      %v4141 = vrot.slane %v4133, %v4140
      %v4143 = vunpack.c.l.s4 1966171168
      %v4144 = vunpack.c.0.s8 %v4143
      %v4145 = vlaneseq
      %v4146 = vshrl.u32 %v4145, 7
      %v4147 = vsub.s32 %v4144, %v4146
      %v4148 = vrot.slane %v4141, %v4147
      %4149 = vrot.lane.b32.xlu0 %v4148, 64
      %v4150 = vpop.permute.xlu0 %4149
      %4152 = vst.msk [vmem:[#allocation7 + $0x5] sm:$0x1] %vm4041, %v4150
      %v4153 = vld [vmem:[#allocation6 + $0xf] sm:$0x1]
      %4154 = vst.msk [vmem:[#allocation7 + $0x6] sm:$0x1] %vm4018, %v4153
      %v4155 = vld [vmem:[#allocation6 + $0x10] sm:$0x1]
      %v4158 = vunpack.c.l.s4 1966171168
      %v4159 = vunpack.c.0.s8 %v4158
      %v4160 = vlaneseq
      %v4161 = vshrl.u32 %v4160, 7
      %v4162 = vsub.s32 %v4159, %v4161
      %v4163 = vrot.slane %v4155, %v4162
      %v4165 = vunpack.c.l.s4 1966171168
      %v4166 = vunpack.c.0.s8 %v4165
      %v4167 = vlaneseq
      %v4168 = vshrl.u32 %v4167, 7
      %v4169 = vsub.s32 %v4166, %v4168
      %v4170 = vrot.slane %v4163, %v4169
      %4171 = vrot.lane.b32.xlu0 %v4170, 64
      %v4172 = vpop.permute.xlu0 %4171
      %4174 = vst.msk [vmem:[#allocation7 + $0x6] sm:$0x1] %vm4041, %v4172
      %v4175 = vld [vmem:[#allocation6 + $0x14] sm:$0x1]
      %4176 = vst.msk [vmem:[#allocation7 + $0x7] sm:$0x1] %vm4018, %v4175
      %v4177 = vld [vmem:[#allocation6 + $0x15] sm:$0x1]
      %v4180 = vunpack.c.l.s4 1966171168
      %v4181 = vunpack.c.0.s8 %v4180
      %v4182 = vlaneseq
      %v4183 = vshrl.u32 %v4182, 7
      %v4184 = vsub.s32 %v4181, %v4183
      %v4185 = vrot.slane %v4177, %v4184
      %v4187 = vunpack.c.l.s4 1966171168
      %v4188 = vunpack.c.0.s8 %v4187
      %v4189 = vlaneseq
      %v4190 = vshrl.u32 %v4189, 7
      %v4191 = vsub.s32 %v4188, %v4190
      %v4192 = vrot.slane %v4185, %v4191
      %4193 = vrot.lane.b32.xlu0 %v4192, 64
      %v4194 = vpop.permute.xlu0 %4193
      %4196 = vst.msk [vmem:[#allocation7 + $0x7] sm:$0x1] %vm4041, %v4194
      %v4197 = vld [vmem:[#allocation6 + $0x16] sm:$0x1]
      %4198 = vst.msk [vmem:[#allocation7 + $0x8] sm:$0x1] %vm4018, %v4197
      %v4199 = vld [vmem:[#allocation6 + $0x17] sm:$0x1]
      %v4202 = vunpack.c.l.s4 1966171168
      %v4203 = vunpack.c.0.s8 %v4202
      %v4204 = vlaneseq
      %v4205 = vshrl.u32 %v4204, 7
      %v4206 = vsub.s32 %v4203, %v4205
      %v4207 = vrot.slane %v4199, %v4206
      %v4209 = vunpack.c.l.s4 1966171168
      %v4210 = vunpack.c.0.s8 %v4209
      %v4211 = vlaneseq
      %v4212 = vshrl.u32 %v4211, 7
      %v4213 = vsub.s32 %v4210, %v4212
      %v4214 = vrot.slane %v4207, %v4213
      %4215 = vrot.lane.b32.xlu0 %v4214, 64
      %v4216 = vpop.permute.xlu0 %4215
      %4218 = vst.msk [vmem:[#allocation7 + $0x8] sm:$0x1] %vm4041, %v4216
      %v4219 = vld [vmem:[#allocation6 + $0x18] sm:$0x1]
      %4220 = vst.msk [vmem:[#allocation7 + $0x9] sm:$0x1] %vm4018, %v4219
      %v4221 = vld [vmem:[#allocation6 + $0x19] sm:$0x1]
      %v4224 = vunpack.c.l.s4 1966171168
      %v4225 = vunpack.c.0.s8 %v4224
      %v4226 = vlaneseq
      %v4227 = vshrl.u32 %v4226, 7
      %v4228 = vsub.s32 %v4225, %v4227
      %v4229 = vrot.slane %v4221, %v4228
      %v4231 = vunpack.c.l.s4 1966171168
      %v4232 = vunpack.c.0.s8 %v4231
      %v4233 = vlaneseq
      %v4234 = vshrl.u32 %v4233, 7
      %v4235 = vsub.s32 %v4232, %v4234
      %v4236 = vrot.slane %v4229, %v4235
      %4237 = vrot.lane.b32.xlu0 %v4236, 64
      %v4238 = vpop.permute.xlu0 %4237
      %4240 = vst.msk [vmem:[#allocation7 + $0x9] sm:$0x1] %vm4041, %v4238
      %v4241 = vld [vmem:[#allocation6 + $0x1a] sm:$0x1]
      %4242 = vst.msk [vmem:[#allocation7 + $0xa] sm:$0x1] %vm4018, %v4241
      %v4243 = vld [vmem:[#allocation6 + $0x1e] sm:$0x1]
      %v4246 = vunpack.c.l.s4 1966171168
      %v4247 = vunpack.c.0.s8 %v4246
      %v4248 = vlaneseq
      %v4249 = vshrl.u32 %v4248, 7
      %v4250 = vsub.s32 %v4247, %v4249
      %v4251 = vrot.slane %v4243, %v4250
      %v4253 = vunpack.c.l.s4 1966171168
      %v4254 = vunpack.c.0.s8 %v4253
      %v4255 = vlaneseq
      %v4256 = vshrl.u32 %v4255, 7
      %v4257 = vsub.s32 %v4254, %v4256
      %v4258 = vrot.slane %v4251, %v4257
      %4259 = vrot.lane.b32.xlu0 %v4258, 64
      %v4260 = vpop.permute.xlu0 %4259
      %4262 = vst.msk [vmem:[#allocation7 + $0xa] sm:$0x1] %vm4041, %v4260
      %v4263 = vld [vmem:[#allocation6 + $0x1f] sm:$0x1]
      %4264 = vst.msk [vmem:[#allocation7 + $0xb] sm:$0x1] %vm4018, %v4263
      %v4265 = vld [vmem:[#allocation6 + $0x20] sm:$0x1]
      %v4268 = vunpack.c.l.s4 1966171168
      %v4269 = vunpack.c.0.s8 %v4268
      %v4270 = vlaneseq
      %v4271 = vshrl.u32 %v4270, 7
      %v4272 = vsub.s32 %v4269, %v4271
      %v4273 = vrot.slane %v4265, %v4272
      %v4275 = vunpack.c.l.s4 1966171168
      %v4276 = vunpack.c.0.s8 %v4275
      %v4277 = vlaneseq
      %v4278 = vshrl.u32 %v4277, 7
      %v4279 = vsub.s32 %v4276, %v4278
      %v4280 = vrot.slane %v4273, %v4279
      %4281 = vrot.lane.b32.xlu0 %v4280, 64
      %v4282 = vpop.permute.xlu0 %4281
      %4284 = vst.msk [vmem:[#allocation7 + $0xb] sm:$0x1] %vm4041, %v4282
      %v4285 = vld [vmem:[#allocation6 + $0x21] sm:$0x1]
      %4286 = vst.msk [vmem:[#allocation7 + $0xc] sm:$0x1] %vm4018, %v4285
      %v4287 = vld [vmem:[#allocation6 + $0x22] sm:$0x1]
      %v4290 = vunpack.c.l.s4 1966171168
      %v4291 = vunpack.c.0.s8 %v4290
      %v4292 = vlaneseq
      %v4293 = vshrl.u32 %v4292, 7
      %v4294 = vsub.s32 %v4291, %v4293
      %v4295 = vrot.slane %v4287, %v4294
      %v4297 = vunpack.c.l.s4 1966171168
      %v4298 = vunpack.c.0.s8 %v4297
      %v4299 = vlaneseq
      %v4300 = vshrl.u32 %v4299, 7
      %v4301 = vsub.s32 %v4298, %v4300
      %v4302 = vrot.slane %v4295, %v4301
      %4303 = vrot.lane.b32.xlu0 %v4302, 64
      %v4304 = vpop.permute.xlu0 %4303
      %4306 = vst.msk [vmem:[#allocation7 + $0xc] sm:$0x1] %vm4041, %v4304
      %v4307 = vld [vmem:[#allocation6 + $0x23] sm:$0x1]
      %4308 = vst.msk [vmem:[#allocation7 + $0xd] sm:$0x1] %vm4018, %v4307
      %v4309 = vld [vmem:[#allocation6 + $0x24] sm:$0x1]
      %v4312 = vunpack.c.l.s4 1966171168
      %v4313 = vunpack.c.0.s8 %v4312
      %v4314 = vlaneseq
      %v4315 = vshrl.u32 %v4314, 7
      %v4316 = vsub.s32 %v4313, %v4315
      %v4317 = vrot.slane %v4309, %v4316
      %v4319 = vunpack.c.l.s4 1966171168
      %v4320 = vunpack.c.0.s8 %v4319
      %v4321 = vlaneseq
      %v4322 = vshrl.u32 %v4321, 7
      %v4323 = vsub.s32 %v4320, %v4322
      %v4324 = vrot.slane %v4317, %v4323
      %4325 = vrot.lane.b32.xlu0 %v4324, 64
      %v4326 = vpop.permute.xlu0 %4325
      %4328 = vst.msk [vmem:[#allocation7 + $0xd] sm:$0x1] %vm4041, %v4326
      %v4329 = vld [vmem:[#allocation6 + $0x28] sm:$0x1]
      %4330 = vst.msk [vmem:[#allocation7 + $0xe] sm:$0x1] %vm4018, %v4329
      %v4331 = vld [vmem:[#allocation6 + $0x29] sm:$0x1]
      %v4334 = vunpack.c.l.s4 1966171168
      %v4335 = vunpack.c.0.s8 %v4334
      %v4336 = vlaneseq
      %v4337 = vshrl.u32 %v4336, 7
      %v4338 = vsub.s32 %v4335, %v4337
      %v4339 = vrot.slane %v4331, %v4338
      %v4341 = vunpack.c.l.s4 1966171168
      %v4342 = vunpack.c.0.s8 %v4341
      %v4343 = vlaneseq
      %v4344 = vshrl.u32 %v4343, 7
      %v4345 = vsub.s32 %v4342, %v4344
      %v4346 = vrot.slane %v4339, %v4345
      %4347 = vrot.lane.b32.xlu0 %v4346, 64
      %v4348 = vpop.permute.xlu0 %4347
      %4350 = vst.msk [vmem:[#allocation7 + $0xe] sm:$0x1] %vm4041, %v4348
      %v4351 = vld [vmem:[#allocation6 + $0x2a] sm:$0x1]
      %4352 = vst.msk [vmem:[#allocation7 + $0xf] sm:$0x1] %vm4018, %v4351
      %v4353 = vld [vmem:[#allocation6 + $0x2b] sm:$0x1]
      %v4356 = vunpack.c.l.s4 1966171168
      %v4357 = vunpack.c.0.s8 %v4356
      %v4358 = vlaneseq
      %v4359 = vshrl.u32 %v4358, 7
      %v4360 = vsub.s32 %v4357, %v4359
      %v4361 = vrot.slane %v4353, %v4360
      %v4363 = vunpack.c.l.s4 1966171168
      %v4364 = vunpack.c.0.s8 %v4363
      %v4365 = vlaneseq
      %v4366 = vshrl.u32 %v4365, 7
      %v4367 = vsub.s32 %v4364, %v4366
      %v4368 = vrot.slane %v4361, %v4367
      %4369 = vrot.lane.b32.xlu0 %v4368, 64
      %v4370 = vpop.permute.xlu0 %4369
      %4372 = vst.msk [vmem:[#allocation7 + $0xf] sm:$0x1] %vm4041, %v4370
      %v4373 = vld [vmem:[#allocation6 + $0x2c] sm:$0x1]
      %4374 = vst.msk [vmem:[#allocation7 + $0x10] sm:$0x1] %vm4018, %v4373
      %v4375 = vld [vmem:[#allocation6 + $0x2d] sm:$0x1]
      %v4378 = vunpack.c.l.s4 1966171168
      %v4379 = vunpack.c.0.s8 %v4378
      %v4380 = vlaneseq
      %v4381 = vshrl.u32 %v4380, 7
      %v4382 = vsub.s32 %v4379, %v4381
      %v4383 = vrot.slane %v4375, %v4382
      %v4385 = vunpack.c.l.s4 1966171168
      %v4386 = vunpack.c.0.s8 %v4385
      %v4387 = vlaneseq
      %v4388 = vshrl.u32 %v4387, 7
      %v4389 = vsub.s32 %v4386, %v4388
      %v4390 = vrot.slane %v4383, %v4389
      %4391 = vrot.lane.b32.xlu0 %v4390, 64
      %v4392 = vpop.permute.xlu0 %4391
      %4394 = vst.msk [vmem:[#allocation7 + $0x10] sm:$0x1] %vm4041, %v4392
      %v4395 = vld [vmem:[#allocation6 + $0x2e] sm:$0x1]
      %4396 = vst.msk [vmem:[#allocation7 + $0x11] sm:$0x1] %vm4018, %v4395
      %v4397 = vld [vmem:[#allocation6 + $0x32] sm:$0x1]
      %v4400 = vunpack.c.l.s4 1966171168
      %v4401 = vunpack.c.0.s8 %v4400
      %v4402 = vlaneseq
      %v4403 = vshrl.u32 %v4402, 7
      %v4404 = vsub.s32 %v4401, %v4403
      %v4405 = vrot.slane %v4397, %v4404
      %v4407 = vunpack.c.l.s4 1966171168
      %v4408 = vunpack.c.0.s8 %v4407
      %v4409 = vlaneseq
      %v4410 = vshrl.u32 %v4409, 7
      %v4411 = vsub.s32 %v4408, %v4410
      %v4412 = vrot.slane %v4405, %v4411
      %4413 = vrot.lane.b32.xlu0 %v4412, 64
      %v4414 = vpop.permute.xlu0 %4413
      %4416 = vst.msk [vmem:[#allocation7 + $0x11] sm:$0x1] %vm4041, %v4414
      %v4417 = vld [vmem:[#allocation6 + $0x33] sm:$0x1]
      %4418 = vst.msk [vmem:[#allocation7 + $0x12] sm:$0x1] %vm4018, %v4417
      %v4419 = vld [vmem:[#allocation6 + $0x34] sm:$0x1]
      %v4422 = vunpack.c.l.s4 1966171168
      %v4423 = vunpack.c.0.s8 %v4422
      %v4424 = vlaneseq
      %v4425 = vshrl.u32 %v4424, 7
      %v4426 = vsub.s32 %v4423, %v4425
      %v4427 = vrot.slane %v4419, %v4426
      %v4429 = vunpack.c.l.s4 1966171168
      %v4430 = vunpack.c.0.s8 %v4429
      %v4431 = vlaneseq
      %v4432 = vshrl.u32 %v4431, 7
      %v4433 = vsub.s32 %v4430, %v4432
      %v4434 = vrot.slane %v4427, %v4433
      %4435 = vrot.lane.b32.xlu0 %v4434, 64
      %v4436 = vpop.permute.xlu0 %4435
      %4438 = vst.msk [vmem:[#allocation7 + $0x12] sm:$0x1] %vm4041, %v4436
      %v4439 = vld [vmem:[#allocation6 + $0x35] sm:$0x1]
      %4440 = vst.msk [vmem:[#allocation7 + $0x13] sm:$0x1] %vm4018, %v4439
      %v4441 = vld [vmem:[#allocation6 + $0x36] sm:$0x1]
      %v4444 = vunpack.c.l.s4 1966171168
      %v4445 = vunpack.c.0.s8 %v4444
      %v4446 = vlaneseq
      %v4447 = vshrl.u32 %v4446, 7
      %v4448 = vsub.s32 %v4445, %v4447
      %v4449 = vrot.slane %v4441, %v4448
      %v4451 = vunpack.c.l.s4 1966171168
      %v4452 = vunpack.c.0.s8 %v4451
      %v4453 = vlaneseq
      %v4454 = vshrl.u32 %v4453, 7
      %v4455 = vsub.s32 %v4452, %v4454
      %v4456 = vrot.slane %v4449, %v4455
      %4457 = vrot.lane.b32.xlu0 %v4456, 64
      %v4458 = vpop.permute.xlu0 %4457
      %4460 = vst.msk [vmem:[#allocation7 + $0x13] sm:$0x1] %vm4041, %v4458
      %v4461 = vld [vmem:[#allocation6 + $0x37] sm:$0x1]
      %4462 = vst.msk [vmem:[#allocation7 + $0x14] sm:$0x1] %vm4018, %v4461
      %v4463 = vld [vmem:[#allocation6 + $0x38] sm:$0x1]
      %v4466 = vunpack.c.l.s4 1966171168
      %v4467 = vunpack.c.0.s8 %v4466
      %v4468 = vlaneseq
      %v4469 = vshrl.u32 %v4468, 7
      %v4470 = vsub.s32 %v4467, %v4469
      %v4471 = vrot.slane %v4463, %v4470
      %v4473 = vunpack.c.l.s4 1966171168
      %v4474 = vunpack.c.0.s8 %v4473
      %v4475 = vlaneseq
      %v4476 = vshrl.u32 %v4475, 7
      %v4477 = vsub.s32 %v4474, %v4476
      %v4478 = vrot.slane %v4471, %v4477
      %4479 = vrot.lane.b32.xlu0 %v4478, 64
      %v4480 = vpop.permute.xlu0 %4479
      %4482 = vst.msk [vmem:[#allocation7 + $0x14] sm:$0x1] %vm4041, %v4480
      %v4483 = vld [vmem:[#allocation6 + $0x3c] sm:$0x1]
      %4484 = vst.msk [vmem:[#allocation7 + $0x15] sm:$0x1] %vm4018, %v4483
      %v4485 = vld [vmem:[#allocation6 + $0x3d] sm:$0x1]
      %v4488 = vunpack.c.l.s4 1966171168
      %v4489 = vunpack.c.0.s8 %v4488
      %v4490 = vlaneseq
      %v4491 = vshrl.u32 %v4490, 7
      %v4492 = vsub.s32 %v4489, %v4491
      %v4493 = vrot.slane %v4485, %v4492
      %v4495 = vunpack.c.l.s4 1966171168
      %v4496 = vunpack.c.0.s8 %v4495
      %v4497 = vlaneseq
      %v4498 = vshrl.u32 %v4497, 7
      %v4499 = vsub.s32 %v4496, %v4498
      %v4500 = vrot.slane %v4493, %v4499
      %4501 = vrot.lane.b32.xlu0 %v4500, 64
      %v4502 = vpop.permute.xlu0 %4501
      %4504 = vst.msk [vmem:[#allocation7 + $0x15] sm:$0x1] %vm4041, %v4502
      %v4505 = vld [vmem:[#allocation6 + $0x3e] sm:$0x1]
      %4506 = vst.msk [vmem:[#allocation7 + $0x16] sm:$0x1] %vm4018, %v4505
      %v4507 = vld [vmem:[#allocation6 + $0x3f] sm:$0x1]
      %v4510 = vunpack.c.l.s4 1966171168
      %v4511 = vunpack.c.0.s8 %v4510
      %v4512 = vlaneseq
      %v4513 = vshrl.u32 %v4512, 7
      %v4514 = vsub.s32 %v4511, %v4513
      %v4515 = vrot.slane %v4507, %v4514
      %v4517 = vunpack.c.l.s4 1966171168
      %v4518 = vunpack.c.0.s8 %v4517
      %v4519 = vlaneseq
      %v4520 = vshrl.u32 %v4519, 7
      %v4521 = vsub.s32 %v4518, %v4520
      %v4522 = vrot.slane %v4515, %v4521
      %4523 = vrot.lane.b32.xlu0 %v4522, 64
      %v4524 = vpop.permute.xlu0 %4523
      %4526 = vst.msk [vmem:[#allocation7 + $0x16] sm:$0x1] %vm4041, %v4524
      %v4527 = vld [vmem:[#allocation6 + $0x40] sm:$0x1]
      %4528 = vst.msk [vmem:[#allocation7 + $0x17] sm:$0x1] %vm4018, %v4527
      %v4529 = vld [vmem:[#allocation6 + $0x41] sm:$0x1]
      %v4532 = vunpack.c.l.s4 1966171168
      %v4533 = vunpack.c.0.s8 %v4532
      %v4534 = vlaneseq
      %v4535 = vshrl.u32 %v4534, 7
      %v4536 = vsub.s32 %v4533, %v4535
      %v4537 = vrot.slane %v4529, %v4536
      %v4539 = vunpack.c.l.s4 1966171168
      %v4540 = vunpack.c.0.s8 %v4539
      %v4541 = vlaneseq
      %v4542 = vshrl.u32 %v4541, 7
      %v4543 = vsub.s32 %v4540, %v4542
      %v4544 = vrot.slane %v4537, %v4543
      %4545 = vrot.lane.b32.xlu0 %v4544, 64
      %v4546 = vpop.permute.xlu0 %4545
      %4548 = vst.msk [vmem:[#allocation7 + $0x17] sm:$0x1] %vm4041, %v4546
      %v4549 = vld [vmem:[#allocation6 + $0x42] sm:$0x1]
      %4550 = vst.msk [vmem:[#allocation7 + $0x18] sm:$0x1] %vm4018, %v4549
      %s4551 = smul.u32 3136, 1
      %s4552 = sshll.u32 %s4551, 4
      %4553 = dma.done [#allocation9], %s4552
      %v4554 = vld [vmem:[#allocation7] sm:$0xff]
      %v4555 = vld [vmem:[#allocation7 + $0x8] sm:$0xff]
      %v4556 = vld [vmem:[#allocation7 + $0x10] sm:$0xff]
      %v4557 = vld [vmem:[#allocation7 + $0x18] sm:$0x1]
      %v4558 = vld [vmem:[#allocation8] sm:$0xff]
      %v4559 = vld [vmem:[#allocation8 + $0x8] sm:$0xff]
      %v4560 = vld [vmem:[#allocation8 + $0x10] sm:$0xff]
      %v4561 = vld [vmem:[#allocation8 + $0x18] sm:$0xff]
      %v4562 = vld [vmem:[#allocation8 + $0x20] sm:$0xff]
      %v4563 = vld [vmem:[#allocation8 + $0x28] sm:$0xff]
      %v4564 = vld [vmem:[#allocation8 + $0x30] sm:$0xff]
      %v4565 = vld [vmem:[#allocation8 + $0x38] sm:$0xff]
      %v4566 = vld [vmem:[#allocation8 + $0x40] sm:$0xff]
      %v4567 = vld [vmem:[#allocation8 + $0x48] sm:$0xff]
      %v4568 = vld [vmem:[#allocation8 + $0x50] sm:$0xff]
      %v4569 = vld [vmem:[#allocation8 + $0x58] sm:$0xff]
      %v4570 = vld [vmem:[#allocation8 + $0x60] sm:$0xff]
      %v4571 = vld [vmem:[#allocation8 + $0x68] sm:$0xff]
      %v4572 = vld [vmem:[#allocation8 + $0x70] sm:$0xff]
      %v4573 = vld [vmem:[#allocation8 + $0x78] sm:$0xff]
      %v4574 = vld [vmem:[#allocation8 + $0x80] sm:$0xff]
      %v4575 = vld [vmem:[#allocation8 + $0x88] sm:$0xff]
      %v4576 = vld [vmem:[#allocation8 + $0x90] sm:$0xff]
      %v4577 = vld [vmem:[#allocation8 + $0x98] sm:$0xff]
      %v4578 = vld [vmem:[#allocation8 + $0xa0] sm:$0xff]
      %v4579 = vld [vmem:[#allocation8 + $0xa8] sm:$0xff]
      %v4580 = vld [vmem:[#allocation8 + $0xb0] sm:$0xff]
      %v4581 = vld [vmem:[#allocation8 + $0xb8] sm:$0xff]
      %v4582 = vld [vmem:[#allocation8 + $0xc0] sm:$0xff]
      %v4583 = vld [vmem:[#allocation8 + $0xc8] sm:$0xff]
      %v4584 = vld [vmem:[#allocation8 + $0xd0] sm:$0xff]
      %v4585 = vld [vmem:[#allocation8 + $0xd8] sm:$0xff]
      %v4586 = vld [vmem:[#allocation8 + $0xe0] sm:$0xff]
      %v4587 = vld [vmem:[#allocation8 + $0xe8] sm:$0xff]
      %v4588 = vld [vmem:[#allocation8 + $0xf0] sm:$0xff]
      %v4589 = vld [vmem:[#allocation8 + $0xf8] sm:$0xff]
      %v4590 = vld [vmem:[#allocation8 + $0x100] sm:$0xff]
      %v4591 = vld [vmem:[#allocation8 + $0x108] sm:$0xff]
      %v4592 = vld [vmem:[#allocation8 + $0x110] sm:$0xff]
      %v4593 = vld [vmem:[#allocation8 + $0x118] sm:$0xff]
      %v4594 = vld [vmem:[#allocation8 + $0x120] sm:$0xff]
      %v4595 = vld [vmem:[#allocation8 + $0x128] sm:$0xff]
      %v4596 = vld [vmem:[#allocation8 + $0x130] sm:$0xff]
      %v4597 = vld [vmem:[#allocation8 + $0x138] sm:$0xff]
      %v4598 = vld [vmem:[#allocation8 + $0x140] sm:$0xff]
      %v4599 = vld [vmem:[#allocation8 + $0x148] sm:$0xff]
      %v4600 = vld [vmem:[#allocation8 + $0x150] sm:$0xff]
      %v4601 = vld [vmem:[#allocation8 + $0x158] sm:$0xff]
      %v4602 = vld [vmem:[#allocation8 + $0x160] sm:$0xff]
      %v4603 = vld [vmem:[#allocation8 + $0x168] sm:$0xff]
      %v4604 = vld [vmem:[#allocation8 + $0x170] sm:$0xff]
      %v4605 = vld [vmem:[#allocation8 + $0x178] sm:$0xff]
      %v4606 = vld [vmem:[#allocation8 + $0x180] sm:$0xff]
      %v4607 = vld [vmem:[#allocation8 + $0x188] sm:$0xff]
      %v4608 = vld [vmem:[#allocation8 + $0x190] sm:$0xff]
      %v4609 = vld [vmem:[#allocation8 + $0x198] sm:$0xff]
      %v4610 = vld [vmem:[#allocation8 + $0x1a0] sm:$0xff]
      %v4611 = vld [vmem:[#allocation8 + $0x1a8] sm:$0xff]
      %v4612 = vld [vmem:[#allocation8 + $0x1b0] sm:$0xff]
      %v4613 = vld [vmem:[#allocation8 + $0x1b8] sm:$0xff]
      %v4614 = vld [vmem:[#allocation8 + $0x1c0] sm:$0xff]
      %v4615 = vld [vmem:[#allocation8 + $0x1c8] sm:$0xff]
      %v4616 = vld [vmem:[#allocation8 + $0x1d0] sm:$0xff]
      %v4617 = vld [vmem:[#allocation8 + $0x1d8] sm:$0xff]
      %v4618 = vld [vmem:[#allocation8 + $0x1e0] sm:$0xff]
      %v4619 = vld [vmem:[#allocation8 + $0x1e8] sm:$0xff]
      %v4620 = vld [vmem:[#allocation8 + $0x1f0] sm:$0xff]
      %v4621 = vld [vmem:[#allocation8 + $0x1f8] sm:$0xff]
      %v4622 = vld [vmem:[#allocation8 + $0x200] sm:$0xff]
      %v4623 = vld [vmem:[#allocation8 + $0x208] sm:$0xff]
      %v4624 = vld [vmem:[#allocation8 + $0x210] sm:$0xff]
      %v4625 = vld [vmem:[#allocation8 + $0x218] sm:$0xff]
      %v4626 = vld [vmem:[#allocation8 + $0x220] sm:$0xff]
      %v4627 = vld [vmem:[#allocation8 + $0x228] sm:$0xff]
      %v4628 = vld [vmem:[#allocation8 + $0x230] sm:$0xff]
      %v4629 = vld [vmem:[#allocation8 + $0x238] sm:$0xff]
      %v4630 = vld [vmem:[#allocation8 + $0x240] sm:$0xff]
      %v4631 = vld [vmem:[#allocation8 + $0x248] sm:$0xff]
      %v4632 = vld [vmem:[#allocation8 + $0x250] sm:$0xff]
      %v4633 = vld [vmem:[#allocation8 + $0x258] sm:$0xff]
      %v4634 = vld [vmem:[#allocation8 + $0x260] sm:$0xff]
      %v4635 = vld [vmem:[#allocation8 + $0x268] sm:$0xff]
      %v4636 = vld [vmem:[#allocation8 + $0x270] sm:$0xff]
      %v4637 = vld [vmem:[#allocation8 + $0x278] sm:$0xff]
      %v4638 = vld [vmem:[#allocation8 + $0x280] sm:$0xff]
      %v4639 = vld [vmem:[#allocation8 + $0x288] sm:$0xff]
      %v4640 = vld [vmem:[#allocation8 + $0x290] sm:$0xff]
      %v4641 = vld [vmem:[#allocation8 + $0x298] sm:$0xff]
      %v4642 = vld [vmem:[#allocation8 + $0x2a0] sm:$0xff]
      %v4643 = vld [vmem:[#allocation8 + $0x2a8] sm:$0xff]
      %v4644 = vld [vmem:[#allocation8 + $0x2b0] sm:$0xff]
      %v4645 = vld [vmem:[#allocation8 + $0x2b8] sm:$0xff]
      %v4646 = vld [vmem:[#allocation8 + $0x2c0] sm:$0xff]
      %v4647 = vld [vmem:[#allocation8 + $0x2c8] sm:$0xff]
      %v4648 = vld [vmem:[#allocation8 + $0x2d0] sm:$0xff]
      %v4649 = vld [vmem:[#allocation8 + $0x2d8] sm:$0xff]
      %v4650 = vld [vmem:[#allocation8 + $0x2e0] sm:$0xff]
      %v4651 = vld [vmem:[#allocation8 + $0x2e8] sm:$0xff]
      %v4652 = vld [vmem:[#allocation8 + $0x2f0] sm:$0xff]
      %v4653 = vld [vmem:[#allocation8 + $0x2f8] sm:$0xff]
      %v4654 = vld [vmem:[#allocation8 + $0x300] sm:$0xff]
      %v4655 = vld [vmem:[#allocation8 + $0x308] sm:$0xff]
      %v4656 = vld [vmem:[#allocation8 + $0x310] sm:$0xff]
      %v4657 = vld [vmem:[#allocation8 + $0x318] sm:$0xff]
      %v4658 = vld [vmem:[#allocation8 + $0x320] sm:$0xff]
      %v4659 = vld [vmem:[#allocation8 + $0x328] sm:$0xff]
      %v4660 = vld [vmem:[#allocation8 + $0x330] sm:$0xff]
      %v4661 = vld [vmem:[#allocation8 + $0x338] sm:$0xff]
      %v4662 = vld [vmem:[#allocation8 + $0x340] sm:$0xff]
      %v4663 = vld [vmem:[#allocation8 + $0x348] sm:$0xff]
      %v4664 = vld [vmem:[#allocation8 + $0x350] sm:$0xff]
      %v4665 = vld [vmem:[#allocation8 + $0x358] sm:$0xff]
      %v4666 = vld [vmem:[#allocation8 + $0x360] sm:$0xff]
      %v4667 = vld [vmem:[#allocation8 + $0x368] sm:$0xff]
      %v4668 = vld [vmem:[#allocation8 + $0x370] sm:$0xff]
      %v4669 = vld [vmem:[#allocation8 + $0x378] sm:$0xff]
      %v4670 = vld [vmem:[#allocation8 + $0x380] sm:$0xff]
      %v4671 = vld [vmem:[#allocation8 + $0x388] sm:$0xff]
      %v4672 = vld [vmem:[#allocation8 + $0x390] sm:$0xff]
      %v4673 = vld [vmem:[#allocation8 + $0x398] sm:$0xff]
      %v4674 = vld [vmem:[#allocation8 + $0x3a0] sm:$0xff]
      %v4675 = vld [vmem:[#allocation8 + $0x3a8] sm:$0xff]
      %v4676 = vld [vmem:[#allocation8 + $0x3b0] sm:$0xff]
      %v4677 = vld [vmem:[#allocation8 + $0x3b8] sm:$0xff]
      %v4678 = vld [vmem:[#allocation8 + $0x3c0] sm:$0xff]
      %v4679 = vld [vmem:[#allocation8 + $0x3c8] sm:$0xff]
      %v4680 = vld [vmem:[#allocation8 + $0x3d0] sm:$0xff]
      %v4681 = vld [vmem:[#allocation8 + $0x3d8] sm:$0xff]
      %v4682 = vld [vmem:[#allocation8 + $0x3e0] sm:$0xff]
      %v4683 = vld [vmem:[#allocation8 + $0x3e8] sm:$0xff]
      %v4684 = vld [vmem:[#allocation8 + $0x3f0] sm:$0xff]
      %v4685 = vld [vmem:[#allocation8 + $0x3f8] sm:$0xff]
      %v4686 = vld [vmem:[#allocation8 + $0x400] sm:$0xff]
      %v4687 = vld [vmem:[#allocation8 + $0x408] sm:$0xff]
      %v4688 = vld [vmem:[#allocation8 + $0x410] sm:$0xff]
      %v4689 = vld [vmem:[#allocation8 + $0x418] sm:$0xff]
      %v4690 = vld [vmem:[#allocation8 + $0x420] sm:$0xff]
      %v4691 = vld [vmem:[#allocation8 + $0x428] sm:$0xff]
      %v4692 = vld [vmem:[#allocation8 + $0x430] sm:$0xff]
      %v4693 = vld [vmem:[#allocation8 + $0x438] sm:$0xff]
      %v4694 = vld [vmem:[#allocation8 + $0x440] sm:$0xff]
      %v4695 = vld [vmem:[#allocation8 + $0x448] sm:$0xff]
      %v4696 = vld [vmem:[#allocation8 + $0x450] sm:$0xff]
      %v4697 = vld [vmem:[#allocation8 + $0x458] sm:$0xff]
      %v4698 = vld [vmem:[#allocation8 + $0x460] sm:$0xff]
      %v4699 = vld [vmem:[#allocation8 + $0x468] sm:$0xff]
      %v4700 = vld [vmem:[#allocation8 + $0x470] sm:$0xff]
      %v4701 = vld [vmem:[#allocation8 + $0x478] sm:$0xff]
      %v4702 = vld [vmem:[#allocation8 + $0x480] sm:$0xff]
      %v4703 = vld [vmem:[#allocation8 + $0x488] sm:$0xff]
      %v4704 = vld [vmem:[#allocation8 + $0x490] sm:$0xff]
      %v4705 = vld [vmem:[#allocation8 + $0x498] sm:$0xff]
      %v4706 = vld [vmem:[#allocation8 + $0x4a0] sm:$0xff]
      %v4707 = vld [vmem:[#allocation8 + $0x4a8] sm:$0xff]
      %v4708 = vld [vmem:[#allocation8 + $0x4b0] sm:$0xff]
      %v4709 = vld [vmem:[#allocation8 + $0x4b8] sm:$0xff]
      %v4710 = vld [vmem:[#allocation8 + $0x4c0] sm:$0xff]
      %v4711 = vld [vmem:[#allocation8 + $0x4c8] sm:$0xff]
      %v4712 = vld [vmem:[#allocation8 + $0x4d0] sm:$0xff]
      %v4713 = vld [vmem:[#allocation8 + $0x4d8] sm:$0xff]
      %v4714 = vld [vmem:[#allocation8 + $0x4e0] sm:$0xff]
      %v4715 = vld [vmem:[#allocation8 + $0x4e8] sm:$0xff]
      %v4716 = vld [vmem:[#allocation8 + $0x4f0] sm:$0xff]
      %v4717 = vld [vmem:[#allocation8 + $0x4f8] sm:$0xff]
      %v4718 = vld [vmem:[#allocation8 + $0x500] sm:$0xff]
      %v4719 = vld [vmem:[#allocation8 + $0x508] sm:$0xff]
      %v4720 = vld [vmem:[#allocation8 + $0x510] sm:$0xff]
      %v4721 = vld [vmem:[#allocation8 + $0x518] sm:$0xff]
      %v4722 = vld [vmem:[#allocation8 + $0x520] sm:$0xff]
      %v4723 = vld [vmem:[#allocation8 + $0x528] sm:$0xff]
      %v4724 = vld [vmem:[#allocation8 + $0x530] sm:$0xff]
      %v4725 = vld [vmem:[#allocation8 + $0x538] sm:$0xff]
      %v4726 = vld [vmem:[#allocation8 + $0x540] sm:$0xff]
      %v4727 = vld [vmem:[#allocation8 + $0x548] sm:$0xff]
      %v4728 = vld [vmem:[#allocation8 + $0x550] sm:$0xff]
      %v4729 = vld [vmem:[#allocation8 + $0x558] sm:$0xff]
      %v4730 = vld [vmem:[#allocation8 + $0x560] sm:$0xff]
      %v4731 = vld [vmem:[#allocation8 + $0x568] sm:$0xff]
      %v4732 = vld [vmem:[#allocation8 + $0x570] sm:$0xff]
      %v4733 = vld [vmem:[#allocation8 + $0x578] sm:$0xff]
      %v4734 = vld [vmem:[#allocation8 + $0x580] sm:$0xff]
      %v4735 = vld [vmem:[#allocation8 + $0x588] sm:$0xff]
      %v4736 = vld [vmem:[#allocation8 + $0x590] sm:$0xff]
      %v4737 = vld [vmem:[#allocation8 + $0x598] sm:$0xff]
      %v4738 = vld [vmem:[#allocation8 + $0x5a0] sm:$0xff]
      %v4739 = vld [vmem:[#allocation8 + $0x5a8] sm:$0xff]
      %v4740 = vld [vmem:[#allocation8 + $0x5b0] sm:$0xff]
      %v4741 = vld [vmem:[#allocation8 + $0x5b8] sm:$0xff]
      %v4742 = vld [vmem:[#allocation8 + $0x5c0] sm:$0xff]
      %v4743 = vld [vmem:[#allocation8 + $0x5c8] sm:$0xff]
      %v4744 = vld [vmem:[#allocation8 + $0x5d0] sm:$0xff]
      %v4745 = vld [vmem:[#allocation8 + $0x5d8] sm:$0xff]
      %v4746 = vld [vmem:[#allocation8 + $0x5e0] sm:$0xff]
      %v4747 = vld [vmem:[#allocation8 + $0x5e8] sm:$0xff]
      %v4748 = vld [vmem:[#allocation8 + $0x5f0] sm:$0xff]
      %v4749 = vld [vmem:[#allocation8 + $0x5f8] sm:$0xff]
      %v4750 = vld [vmem:[#allocation8 + $0x600] sm:$0xff]
      %v4751 = vld [vmem:[#allocation8 + $0x608] sm:$0xff]
      %v4752 = vld [vmem:[#allocation8 + $0x610] sm:$0xff]
      %v4753 = vld [vmem:[#allocation8 + $0x618] sm:$0xff]
      %v4754 = vld [vmem:[#allocation8 + $0x620] sm:$0xff]
      %v4755 = vld [vmem:[#allocation8 + $0x628] sm:$0xff]
      %v4756 = vld [vmem:[#allocation8 + $0x630] sm:$0xff]
      %v4757 = vld [vmem:[#allocation8 + $0x638] sm:$0xff]
      %v4758 = vld [vmem:[#allocation8 + $0x640] sm:$0xff]
      %v4759 = vld [vmem:[#allocation8 + $0x648] sm:$0xff]
      %v4760 = vld [vmem:[#allocation8 + $0x650] sm:$0xff]
      %v4761 = vld [vmem:[#allocation8 + $0x658] sm:$0xff]
      %v4762 = vld [vmem:[#allocation8 + $0x660] sm:$0xff]
      %v4763 = vld [vmem:[#allocation8 + $0x668] sm:$0xff]
      %v4764 = vld [vmem:[#allocation8 + $0x670] sm:$0xff]
      %v4765 = vld [vmem:[#allocation8 + $0x678] sm:$0xff]
      %v4766 = vld [vmem:[#allocation8 + $0x680] sm:$0xff]
      %v4767 = vld [vmem:[#allocation8 + $0x688] sm:$0xff]
      %v4768 = vld [vmem:[#allocation8 + $0x690] sm:$0xff]
      %v4769 = vld [vmem:[#allocation8 + $0x698] sm:$0xff]
      %v4770 = vld [vmem:[#allocation8 + $0x6a0] sm:$0xff]
      %v4771 = vld [vmem:[#allocation8 + $0x6a8] sm:$0xff]
      %v4772 = vld [vmem:[#allocation8 + $0x6b0] sm:$0xff]
      %v4773 = vld [vmem:[#allocation8 + $0x6b8] sm:$0xff]
      %v4774 = vld [vmem:[#allocation8 + $0x6c0] sm:$0xff]
      %v4775 = vld [vmem:[#allocation8 + $0x6c8] sm:$0xff]
      %v4776 = vld [vmem:[#allocation8 + $0x6d0] sm:$0xff]
      %v4777 = vld [vmem:[#allocation8 + $0x6d8] sm:$0xff]
      %v4778 = vld [vmem:[#allocation8 + $0x6e0] sm:$0xff]
      %v4779 = vld [vmem:[#allocation8 + $0x6e8] sm:$0xff]
      %v4780 = vld [vmem:[#allocation8 + $0x6f0] sm:$0xff]
      %v4781 = vld [vmem:[#allocation8 + $0x6f8] sm:$0xff]
      %v4782 = vld [vmem:[#allocation8 + $0x700] sm:$0xff]
      %v4783 = vld [vmem:[#allocation8 + $0x708] sm:$0xff]
      %v4784 = vld [vmem:[#allocation8 + $0x710] sm:$0xff]
      %v4785 = vld [vmem:[#allocation8 + $0x718] sm:$0xff]
      %v4786 = vld [vmem:[#allocation8 + $0x720] sm:$0xff]
      %v4787 = vld [vmem:[#allocation8 + $0x728] sm:$0xff]
      %v4788 = vld [vmem:[#allocation8 + $0x730] sm:$0xff]
      %v4789 = vld [vmem:[#allocation8 + $0x738] sm:$0xff]
      %v4790 = vld [vmem:[#allocation8 + $0x740] sm:$0xff]
      %v4791 = vld [vmem:[#allocation8 + $0x748] sm:$0xff]
      %v4792 = vld [vmem:[#allocation8 + $0x750] sm:$0xff]
      %v4793 = vld [vmem:[#allocation8 + $0x758] sm:$0xff]
      %v4794 = vld [vmem:[#allocation8 + $0x760] sm:$0xff]
      %v4795 = vld [vmem:[#allocation8 + $0x768] sm:$0xff]
      %v4796 = vld [vmem:[#allocation8 + $0x770] sm:$0xff]
      %v4797 = vld [vmem:[#allocation8 + $0x778] sm:$0xff]
      %v4798 = vld [vmem:[#allocation8 + $0x780] sm:$0xff]
      %v4799 = vld [vmem:[#allocation8 + $0x788] sm:$0xff]
      %v4800 = vld [vmem:[#allocation8 + $0x790] sm:$0xff]
      %v4801 = vld [vmem:[#allocation8 + $0x798] sm:$0xff]
      %v4802 = vld [vmem:[#allocation8 + $0x7a0] sm:$0xff]
      %v4803 = vld [vmem:[#allocation8 + $0x7a8] sm:$0xff]
      %v4804 = vld [vmem:[#allocation8 + $0x7b0] sm:$0xff]
      %v4805 = vld [vmem:[#allocation8 + $0x7b8] sm:$0xff]
      %v4806 = vld [vmem:[#allocation8 + $0x7c0] sm:$0xff]
      %v4807 = vld [vmem:[#allocation8 + $0x7c8] sm:$0xff]
      %v4808 = vld [vmem:[#allocation8 + $0x7d0] sm:$0xff]
      %v4809 = vld [vmem:[#allocation8 + $0x7d8] sm:$0xff]
      %v4810 = vld [vmem:[#allocation8 + $0x7e0] sm:$0xff]
      %v4811 = vld [vmem:[#allocation8 + $0x7e8] sm:$0xff]
      %v4812 = vld [vmem:[#allocation8 + $0x7f0] sm:$0xff]
      %v4813 = vld [vmem:[#allocation8 + $0x7f8] sm:$0xff]
      %v4814 = vld [vmem:[#allocation8 + $0x800] sm:$0xff]
      %v4815 = vld [vmem:[#allocation8 + $0x808] sm:$0xff]
      %v4816 = vld [vmem:[#allocation8 + $0x810] sm:$0xff]
      %v4817 = vld [vmem:[#allocation8 + $0x818] sm:$0xff]
      %v4818 = vld [vmem:[#allocation8 + $0x820] sm:$0xff]
      %v4819 = vld [vmem:[#allocation8 + $0x828] sm:$0xff]
      %v4820 = vld [vmem:[#allocation8 + $0x830] sm:$0xff]
      %v4821 = vld [vmem:[#allocation8 + $0x838] sm:$0xff]
      %v4822 = vld [vmem:[#allocation8 + $0x840] sm:$0xff]
      %v4823 = vld [vmem:[#allocation8 + $0x848] sm:$0xff]
      %v4824 = vld [vmem:[#allocation8 + $0x850] sm:$0xff]
      %v4825 = vld [vmem:[#allocation8 + $0x858] sm:$0xff]
      %v4826 = vld [vmem:[#allocation8 + $0x860] sm:$0xff]
      %v4827 = vld [vmem:[#allocation8 + $0x868] sm:$0xff]
      %v4828 = vld [vmem:[#allocation8 + $0x870] sm:$0xff]
      %v4829 = vld [vmem:[#allocation8 + $0x878] sm:$0xff]
      %v4830 = vld [vmem:[#allocation8 + $0x880] sm:$0xff]
      %v4831 = vld [vmem:[#allocation8 + $0x888] sm:$0xff]
      %v4832 = vld [vmem:[#allocation8 + $0x890] sm:$0xff]
      %v4833 = vld [vmem:[#allocation8 + $0x898] sm:$0xff]
      %v4834 = vld [vmem:[#allocation8 + $0x8a0] sm:$0xff]
      %v4835 = vld [vmem:[#allocation8 + $0x8a8] sm:$0xff]
      %v4836 = vld [vmem:[#allocation8 + $0x8b0] sm:$0xff]
      %v4837 = vld [vmem:[#allocation8 + $0x8b8] sm:$0xff]
      %v4838 = vld [vmem:[#allocation8 + $0x8c0] sm:$0xff]
      %v4839 = vld [vmem:[#allocation8 + $0x8c8] sm:$0xff]
      %v4840 = vld [vmem:[#allocation8 + $0x8d0] sm:$0xff]
      %v4841 = vld [vmem:[#allocation8 + $0x8d8] sm:$0xff]
      %v4842 = vld [vmem:[#allocation8 + $0x8e0] sm:$0xff]
      %v4843 = vld [vmem:[#allocation8 + $0x8e8] sm:$0xff]
      %v4844 = vld [vmem:[#allocation8 + $0x8f0] sm:$0xff]
      %v4845 = vld [vmem:[#allocation8 + $0x8f8] sm:$0xff]
      %v4846 = vld [vmem:[#allocation8 + $0x900] sm:$0xff]
      %v4847 = vld [vmem:[#allocation8 + $0x908] sm:$0xff]
      %v4848 = vld [vmem:[#allocation8 + $0x910] sm:$0xff]
      %v4849 = vld [vmem:[#allocation8 + $0x918] sm:$0xff]
      %v4850 = vld [vmem:[#allocation8 + $0x920] sm:$0xff]
      %v4851 = vld [vmem:[#allocation8 + $0x928] sm:$0xff]
      %v4852 = vld [vmem:[#allocation8 + $0x930] sm:$0xff]
      %v4853 = vld [vmem:[#allocation8 + $0x938] sm:$0xff]
      %v4854 = vld [vmem:[#allocation8 + $0x940] sm:$0xff]
      %v4855 = vld [vmem:[#allocation8 + $0x948] sm:$0xff]
      %v4856 = vld [vmem:[#allocation8 + $0x950] sm:$0xff]
      %v4857 = vld [vmem:[#allocation8 + $0x958] sm:$0xff]
      %v4858 = vld [vmem:[#allocation8 + $0x960] sm:$0xff]
      %v4859 = vld [vmem:[#allocation8 + $0x968] sm:$0xff]
      %v4860 = vld [vmem:[#allocation8 + $0x970] sm:$0xff]
      %v4861 = vld [vmem:[#allocation8 + $0x978] sm:$0xff]
      %v4862 = vld [vmem:[#allocation8 + $0x980] sm:$0xff]
      %v4863 = vld [vmem:[#allocation8 + $0x988] sm:$0xff]
      %v4864 = vld [vmem:[#allocation8 + $0x990] sm:$0xff]
      %v4865 = vld [vmem:[#allocation8 + $0x998] sm:$0xff]
      %v4866 = vld [vmem:[#allocation8 + $0x9a0] sm:$0xff]
      %v4867 = vld [vmem:[#allocation8 + $0x9a8] sm:$0xff]
      %v4868 = vld [vmem:[#allocation8 + $0x9b0] sm:$0xff]
      %v4869 = vld [vmem:[#allocation8 + $0x9b8] sm:$0xff]
      %v4870 = vld [vmem:[#allocation8 + $0x9c0] sm:$0xff]
      %v4871 = vld [vmem:[#allocation8 + $0x9c8] sm:$0xff]
      %v4872 = vld [vmem:[#allocation8 + $0x9d0] sm:$0xff]
      %v4873 = vld [vmem:[#allocation8 + $0x9d8] sm:$0xff]
      %v4874 = vld [vmem:[#allocation8 + $0x9e0] sm:$0xff]
      %v4875 = vld [vmem:[#allocation8 + $0x9e8] sm:$0xff]
      %v4876 = vld [vmem:[#allocation8 + $0x9f0] sm:$0xff]
      %v4877 = vld [vmem:[#allocation8 + $0x9f8] sm:$0xff]
      %v4878 = vld [vmem:[#allocation8 + $0xa00] sm:$0xff]
      %v4879 = vld [vmem:[#allocation8 + $0xa08] sm:$0xff]
      %v4880 = vld [vmem:[#allocation8 + $0xa10] sm:$0xff]
      %v4881 = vld [vmem:[#allocation8 + $0xa18] sm:$0xff]
      %v4882 = vld [vmem:[#allocation8 + $0xa20] sm:$0xff]
      %v4883 = vld [vmem:[#allocation8 + $0xa28] sm:$0xff]
      %v4884 = vld [vmem:[#allocation8 + $0xa30] sm:$0xff]
      %v4885 = vld [vmem:[#allocation8 + $0xa38] sm:$0xff]
      %v4886 = vld [vmem:[#allocation8 + $0xa40] sm:$0xff]
      %v4887 = vld [vmem:[#allocation8 + $0xa48] sm:$0xff]
      %v4888 = vld [vmem:[#allocation8 + $0xa50] sm:$0xff]
      %v4889 = vld [vmem:[#allocation8 + $0xa58] sm:$0xff]
      %v4890 = vld [vmem:[#allocation8 + $0xa60] sm:$0xff]
      %v4891 = vld [vmem:[#allocation8 + $0xa68] sm:$0xff]
      %v4892 = vld [vmem:[#allocation8 + $0xa70] sm:$0xff]
      %v4893 = vld [vmem:[#allocation8 + $0xa78] sm:$0xff]
      %v4894 = vld [vmem:[#allocation8 + $0xa80] sm:$0xff]
      %v4895 = vld [vmem:[#allocation8 + $0xa88] sm:$0xff]
      %v4896 = vld [vmem:[#allocation8 + $0xa90] sm:$0xff]
      %v4897 = vld [vmem:[#allocation8 + $0xa98] sm:$0xff]
      %v4898 = vld [vmem:[#allocation8 + $0xaa0] sm:$0xff]
      %v4899 = vld [vmem:[#allocation8 + $0xaa8] sm:$0xff]
      %v4900 = vld [vmem:[#allocation8 + $0xab0] sm:$0xff]
      %v4901 = vld [vmem:[#allocation8 + $0xab8] sm:$0xff]
      %v4902 = vld [vmem:[#allocation8 + $0xac0] sm:$0xff]
      %v4903 = vld [vmem:[#allocation8 + $0xac8] sm:$0xff]
      %v4904 = vld [vmem:[#allocation8 + $0xad0] sm:$0xff]
      %v4905 = vld [vmem:[#allocation8 + $0xad8] sm:$0xff]
      %v4906 = vld [vmem:[#allocation8 + $0xae0] sm:$0xff]
      %v4907 = vld [vmem:[#allocation8 + $0xae8] sm:$0xff]
      %v4908 = vld [vmem:[#allocation8 + $0xaf0] sm:$0xff]
      %v4909 = vld [vmem:[#allocation8 + $0xaf8] sm:$0xff]
      %v4910 = vld [vmem:[#allocation8 + $0xb00] sm:$0xff]
      %v4911 = vld [vmem:[#allocation8 + $0xb08] sm:$0xff]
      %v4912 = vld [vmem:[#allocation8 + $0xb10] sm:$0xff]
      %v4913 = vld [vmem:[#allocation8 + $0xb18] sm:$0xff]
      %v4914 = vld [vmem:[#allocation8 + $0xb20] sm:$0xff]
      %v4915 = vld [vmem:[#allocation8 + $0xb28] sm:$0xff]
      %v4916 = vld [vmem:[#allocation8 + $0xb30] sm:$0xff]
      %v4917 = vld [vmem:[#allocation8 + $0xb38] sm:$0xff]
      %v4918 = vld [vmem:[#allocation8 + $0xb40] sm:$0xff]
      %v4919 = vld [vmem:[#allocation8 + $0xb48] sm:$0xff]
      %v4920 = vld [vmem:[#allocation8 + $0xb50] sm:$0xff]
      %v4921 = vld [vmem:[#allocation8 + $0xb58] sm:$0xff]
      %v4922 = vld [vmem:[#allocation8 + $0xb60] sm:$0xff]
      %v4923 = vld [vmem:[#allocation8 + $0xb68] sm:$0xff]
      %v4924 = vld [vmem:[#allocation8 + $0xb70] sm:$0xff]
      %v4925 = vld [vmem:[#allocation8 + $0xb78] sm:$0xff]
      %v4926 = vld [vmem:[#allocation8 + $0xb80] sm:$0xff]
      %v4927 = vld [vmem:[#allocation8 + $0xb88] sm:$0xff]
      %v4928 = vld [vmem:[#allocation8 + $0xb90] sm:$0xff]
      %v4929 = vld [vmem:[#allocation8 + $0xb98] sm:$0xff]
      %v4930 = vld [vmem:[#allocation8 + $0xba0] sm:$0xff]
      %v4931 = vld [vmem:[#allocation8 + $0xba8] sm:$0xff]
      %v4932 = vld [vmem:[#allocation8 + $0xbb0] sm:$0xff]
      %v4933 = vld [vmem:[#allocation8 + $0xbb8] sm:$0xff]
      %v4934 = vld [vmem:[#allocation8 + $0xbc0] sm:$0xff]
      %v4935 = vld [vmem:[#allocation8 + $0xbc8] sm:$0xff]
      %v4936 = vld [vmem:[#allocation8 + $0xbd0] sm:$0xff]
      %v4937 = vld [vmem:[#allocation8 + $0xbd8] sm:$0xff]
      %v4938 = vld [vmem:[#allocation8 + $0xbe0] sm:$0xff]
      %v4939 = vld [vmem:[#allocation8 + $0xbe8] sm:$0xff]
      %v4940 = vld [vmem:[#allocation8 + $0xbf0] sm:$0xff]
      %v4941 = vld [vmem:[#allocation8 + $0xbf8] sm:$0xff]
      %v4942 = vld [vmem:[#allocation8 + $0xc00] sm:$0xff]
      %v4943 = vld [vmem:[#allocation8 + $0xc08] sm:$0xff]
      %v4944 = vld [vmem:[#allocation8 + $0xc10] sm:$0xff]
      %v4945 = vld [vmem:[#allocation8 + $0xc18] sm:$0xff]
      %v4946 = vld [vmem:[#allocation8 + $0xc20] sm:$0xff]
      %v4947 = vld [vmem:[#allocation8 + $0xc28] sm:$0xff]
      %v4948 = vld [vmem:[#allocation8 + $0xc30] sm:$0xff]
      %v4949 = vld [vmem:[#allocation8 + $0xc38] sm:$0xff]
      %v4950 = vld [vmem:[%s8] sm:$0x1]
      %v4955 = vlaneseq
      %v4956 = vshrl.u32 %v4955, 7
      %v4957 = vsub.s32 0, %v4956
      %v4958 = vrot.slane %v4554, %v4957
      %v4959 = vlaneseq
      %v4960 = vshrl.u32 %v4959, 7
      %v4961 = vsub.s32 1, %v4960
      %v4962 = vrot.slane %v4554, %v4961
      %v4963 = vlaneseq
      %v4964 = vshrl.u32 %v4963, 7
      %v4965 = vsub.s32 2, %v4964
      %v4966 = vrot.slane %v4554, %v4965
      %v4967 = vlaneseq
      %v4968 = vshrl.u32 %v4967, 7
      %v4969 = vsub.s32 3, %v4968
      %v4970 = vrot.slane %v4554, %v4969
      %v4971 = vlaneseq
      %v4972 = vshrl.u32 %v4971, 7
      %v4973 = vsub.s32 4, %v4972
      %v4974 = vrot.slane %v4554, %v4973
      %v4975 = vlaneseq
      %v4976 = vshrl.u32 %v4975, 7
      %v4977 = vsub.s32 5, %v4976
      %v4978 = vrot.slane %v4554, %v4977
      %v4979 = vlaneseq
      %v4980 = vshrl.u32 %v4979, 7
      %v4981 = vsub.s32 6, %v4980
      %v4982 = vrot.slane %v4554, %v4981
      %v4983 = vlaneseq
      %v4984 = vshrl.u32 %v4983, 7
      %v4985 = vsub.s32 7, %v4984
      %v4986 = vrot.slane %v4554, %v4985
      %v4987 = vlaneseq
      %v4988 = vshrl.u32 %v4987, 7
      %v4989 = vsub.s32 0, %v4988
      %v4990 = vrot.slane %v4555, %v4989
      %v4991 = vlaneseq
      %v4992 = vshrl.u32 %v4991, 7
      %v4993 = vsub.s32 1, %v4992
      %v4994 = vrot.slane %v4555, %v4993
      %v4995 = vlaneseq
      %v4996 = vshrl.u32 %v4995, 7
      %v4997 = vsub.s32 2, %v4996
      %v4998 = vrot.slane %v4555, %v4997
      %v4999 = vlaneseq
      %v5000 = vshrl.u32 %v4999, 7
      %v5001 = vsub.s32 3, %v5000
      %v5002 = vrot.slane %v4555, %v5001
      %v5003 = vlaneseq
      %v5004 = vshrl.u32 %v5003, 7
      %v5005 = vsub.s32 4, %v5004
      %v5006 = vrot.slane %v4555, %v5005
      %v5007 = vlaneseq
      %v5008 = vshrl.u32 %v5007, 7
      %v5009 = vsub.s32 5, %v5008
      %v5010 = vrot.slane %v4555, %v5009
      %v5011 = vlaneseq
      %v5012 = vshrl.u32 %v5011, 7
      %v5013 = vsub.s32 6, %v5012
      %v5014 = vrot.slane %v4555, %v5013
      %v5015 = vlaneseq
      %v5016 = vshrl.u32 %v5015, 7
      %v5017 = vsub.s32 7, %v5016
      %v5018 = vrot.slane %v4555, %v5017
      %v5019 = vlaneseq
      %v5020 = vshrl.u32 %v5019, 7
      %v5021 = vsub.s32 0, %v5020
      %v5022 = vrot.slane %v4556, %v5021
      %v5023 = vlaneseq
      %v5024 = vshrl.u32 %v5023, 7
      %v5025 = vsub.s32 1, %v5024
      %v5026 = vrot.slane %v4556, %v5025
      %v5027 = vlaneseq
      %v5028 = vshrl.u32 %v5027, 7
      %v5029 = vsub.s32 2, %v5028
      %v5030 = vrot.slane %v4556, %v5029
      %v5031 = vlaneseq
      %v5032 = vshrl.u32 %v5031, 7
      %v5033 = vsub.s32 3, %v5032
      %v5034 = vrot.slane %v4556, %v5033
      %v5035 = vlaneseq
      %v5036 = vshrl.u32 %v5035, 7
      %v5037 = vsub.s32 4, %v5036
      %v5038 = vrot.slane %v4556, %v5037
      %v5039 = vlaneseq
      %v5040 = vshrl.u32 %v5039, 7
      %v5041 = vsub.s32 5, %v5040
      %v5042 = vrot.slane %v4556, %v5041
      %v5043 = vlaneseq
      %v5044 = vshrl.u32 %v5043, 7
      %v5045 = vsub.s32 6, %v5044
      %v5046 = vrot.slane %v4556, %v5045
      %v5047 = vlaneseq
      %v5048 = vshrl.u32 %v5047, 7
      %v5049 = vsub.s32 7, %v5048
      %v5050 = vrot.slane %v4556, %v5049
      %v5051 = vlaneseq
      %v5052 = vshrl.u32 %v5051, 7
      %v5053 = vsub.s32 0, %v5052
      %v5054 = vrot.slane %v4557, %v5053
      %v5079 = vsel %vm1250, %v5054, 0
      %5081 = vmatprep.subr.mxu0 0.0
      %5082 = vmatpush1.msra.mxu0 %v4558
      %5083 = vmatprep.subr.mxu0 0.0
      %5084 = vmatpush1.msra.mxu0 %v4559
      %5085 = vmatprep.subr.mxu0 0.0
      %5086 = vmatpush1.msra.mxu0 %v4560
      %5087 = vmatprep.subr.mxu0 0.0
      %5088 = vmatpush1.msra.mxu0 %v4561
      %5089 = vmatprep.subr.mxu0 0.0
      %5090 = vmatpush1.msra.mxu0 %v4562
      %5091 = vmatprep.subr.mxu0 0.0
      %5092 = vmatpush1.msra.mxu0 %v4563
      %5093 = vmatprep.subr.mxu0 0.0
      %5094 = vmatpush1.msra.mxu0 %v4564
      %5095 = vmatprep.subr.mxu0 0.0
      %5096 = vmatpush1.msra.mxu0 %v4565
      %5097 = vmatprep.subr.mxu0 0.0
      %5098 = vmatpush1.msra.mxu0 %v4566
      %5099 = vmatprep.subr.mxu0 0.0
      %5100 = vmatpush1.msra.mxu0 %v4567
      %5101 = vmatprep.subr.mxu0 0.0
      %5102 = vmatpush1.msra.mxu0 %v4568
      %5103 = vmatprep.subr.mxu0 0.0
      %5104 = vmatpush1.msra.mxu0 %v4569
      %5105 = vmatprep.subr.mxu0 0.0
      %5106 = vmatpush1.msra.mxu0 %v4570
      %5107 = vmatprep.subr.mxu0 0.0
      %5108 = vmatpush1.msra.mxu0 %v4571
      %5109 = vmatprep.subr.mxu0 0.0
      %5110 = vmatpush1.msra.mxu0 %v4572
      %5111 = vmatprep.subr.mxu0 0.0
      %5112 = vmatpush1.msra.mxu0 %v4573
      %5113 = vmatprep.subr.mxu0 0.0
      %5114 = vmatpush1.msra.mxu0 %v4574
      %5115 = vmatprep.subr.mxu0 0.0
      %5116 = vmatpush1.msra.mxu0 %v4575
      %5117 = vmatprep.subr.mxu0 0.0
      %5118 = vmatpush1.msra.mxu0 %v4576
      %5119 = vmatprep.subr.mxu0 0.0
      %5120 = vmatpush1.msra.mxu0 %v4577
      %5121 = vmatprep.subr.mxu0 0.0
      %5122 = vmatpush1.msra.mxu0 %v4578
      %5123 = vmatprep.subr.mxu0 0.0
      %5124 = vmatpush1.msra.mxu0 %v4579
      %5125 = vmatprep.subr.mxu0 0.0
      %5126 = vmatpush1.msra.mxu0 %v4580
      %5127 = vmatprep.subr.mxu0 0.0
      %5128 = vmatpush1.msra.mxu0 %v4581
      %5129 = vmatprep.subr.mxu0 0.0
      %5130 = vmatpush1.msra.mxu0 %v4582
      %5131 = vmatprep.subr.mxu0 0.0
      %5132 = vmatpush1.msra.mxu0 %v4583
      %5133 = vmatprep.subr.mxu0 0.0
      %5134 = vmatpush1.msra.mxu0 %v4584
      %5135 = vmatprep.subr.mxu0 0.0
      %5136 = vmatpush1.msra.mxu0 %v4585
      %5137 = vmatprep.subr.mxu0 0.0
      %5138 = vmatpush1.msra.mxu0 %v4586
      %5139 = vmatprep.subr.mxu0 0.0
      %5140 = vmatpush1.msra.mxu0 %v4587
      %5141 = vmatprep.subr.mxu0 0.0
      %5142 = vmatpush1.msra.mxu0 %v4588
      %5143 = vmatprep.subr.mxu0 0.0
      %5144 = vmatpush1.msra.mxu0 %v4589
      %5145 = vmatprep.mubr.f32.mxu0 %v4962
      %5146 = vmatmul.mubr.f32.gmra.mrb[0].mxu0 %v4958
      %v5147 = vpop.f32.mrb[0].mxu0
      %v5148 = vadd.f32 %v4950, %v5147
      %v5149 = vpop.f32.mrb[0].mxu0
      %5150 = vdwg.mxu0
      %5151 = vmatprep.subr.mxu0 0.0
      %5152 = vmatpush1.msra.mxu0 %v4590
      %5153 = vmatprep.subr.mxu0 0.0
      %5154 = vmatpush1.msra.mxu0 %v4591
      %5155 = vmatprep.subr.mxu0 0.0
      %5156 = vmatpush1.msra.mxu0 %v4592
      %5157 = vmatprep.subr.mxu0 0.0
      %5158 = vmatpush1.msra.mxu0 %v4593
      %5159 = vmatprep.subr.mxu0 0.0
      %5160 = vmatpush1.msra.mxu0 %v4594
      %5161 = vmatprep.subr.mxu0 0.0
      %5162 = vmatpush1.msra.mxu0 %v4595
      %5163 = vmatprep.subr.mxu0 0.0
      %5164 = vmatpush1.msra.mxu0 %v4596
      %5165 = vmatprep.subr.mxu0 0.0
      %5166 = vmatpush1.msra.mxu0 %v4597
      %5167 = vmatprep.subr.mxu0 0.0
      %5168 = vmatpush1.msra.mxu0 %v4598
      %5169 = vmatprep.subr.mxu0 0.0
      %5170 = vmatpush1.msra.mxu0 %v4599
      %5171 = vmatprep.subr.mxu0 0.0
      %5172 = vmatpush1.msra.mxu0 %v4600
      %5173 = vmatprep.subr.mxu0 0.0
      %5174 = vmatpush1.msra.mxu0 %v4601
      %5175 = vmatprep.subr.mxu0 0.0
      %5176 = vmatpush1.msra.mxu0 %v4602
      %5177 = vmatprep.subr.mxu0 0.0
      %5178 = vmatpush1.msra.mxu0 %v4603
      %5179 = vmatprep.subr.mxu0 0.0
      %5180 = vmatpush1.msra.mxu0 %v4604
      %5181 = vmatprep.subr.mxu0 0.0
      %5182 = vmatpush1.msra.mxu0 %v4605
      %5183 = vmatprep.subr.mxu0 0.0
      %5184 = vmatpush1.msra.mxu0 %v4606
      %5185 = vmatprep.subr.mxu0 0.0
      %5186 = vmatpush1.msra.mxu0 %v4607
      %5187 = vmatprep.subr.mxu0 0.0
      %5188 = vmatpush1.msra.mxu0 %v4608
      %5189 = vmatprep.subr.mxu0 0.0
      %5190 = vmatpush1.msra.mxu0 %v4609
      %5191 = vmatprep.subr.mxu0 0.0
      %5192 = vmatpush1.msra.mxu0 %v4610
      %5193 = vmatprep.subr.mxu0 0.0
      %5194 = vmatpush1.msra.mxu0 %v4611
      %5195 = vmatprep.subr.mxu0 0.0
      %5196 = vmatpush1.msra.mxu0 %v4612
      %5197 = vmatprep.subr.mxu0 0.0
      %5198 = vmatpush1.msra.mxu0 %v4613
      %5199 = vmatprep.subr.mxu0 0.0
      %5200 = vmatpush1.msra.mxu0 %v4614
      %5201 = vmatprep.subr.mxu0 0.0
      %5202 = vmatpush1.msra.mxu0 %v4615
      %5203 = vmatprep.subr.mxu0 0.0
      %5204 = vmatpush1.msra.mxu0 %v4616
      %5205 = vmatprep.subr.mxu0 0.0
      %5206 = vmatpush1.msra.mxu0 %v4617
      %5207 = vmatprep.subr.mxu0 0.0
      %5208 = vmatpush1.msra.mxu0 %v4618
      %5209 = vmatprep.subr.mxu0 0.0
      %5210 = vmatpush1.msra.mxu0 %v4619
      %5211 = vmatprep.subr.mxu0 0.0
      %5212 = vmatpush1.msra.mxu0 %v4620
      %5213 = vmatprep.subr.mxu0 0.0
      %5214 = vmatpush1.msra.mxu0 %v4621
      %5215 = vmatprep.mubr.f32.mxu0 %v4970
      %5216 = vmatmul.mubr.f32.gmra.mrb[0].mxu0 %v4966
      %v5217 = vpop.f32.mrb[0].mxu0
      %v5218 = vadd.f32 %v5148, %v5217
      %v5219 = vpop.f32.mrb[0].mxu0
      %5220 = vdwg.mxu0
      %5221 = vmatprep.subr.mxu0 0.0
      %5222 = vmatpush1.msra.mxu0 %v4622
      %5223 = vmatprep.subr.mxu0 0.0
      %5224 = vmatpush1.msra.mxu0 %v4623
      %5225 = vmatprep.subr.mxu0 0.0
      %5226 = vmatpush1.msra.mxu0 %v4624
      %5227 = vmatprep.subr.mxu0 0.0
      %5228 = vmatpush1.msra.mxu0 %v4625
      %5229 = vmatprep.subr.mxu0 0.0
      %5230 = vmatpush1.msra.mxu0 %v4626
      %5231 = vmatprep.subr.mxu0 0.0
      %5232 = vmatpush1.msra.mxu0 %v4627
      %5233 = vmatprep.subr.mxu0 0.0
      %5234 = vmatpush1.msra.mxu0 %v4628
      %5235 = vmatprep.subr.mxu0 0.0
      %5236 = vmatpush1.msra.mxu0 %v4629
      %5237 = vmatprep.subr.mxu0 0.0
      %5238 = vmatpush1.msra.mxu0 %v4630
      %5239 = vmatprep.subr.mxu0 0.0
      %5240 = vmatpush1.msra.mxu0 %v4631
      %5241 = vmatprep.subr.mxu0 0.0
      %5242 = vmatpush1.msra.mxu0 %v4632
      %5243 = vmatprep.subr.mxu0 0.0
      %5244 = vmatpush1.msra.mxu0 %v4633
      %5245 = vmatprep.subr.mxu0 0.0
      %5246 = vmatpush1.msra.mxu0 %v4634
      %5247 = vmatprep.subr.mxu0 0.0
      %5248 = vmatpush1.msra.mxu0 %v4635
      %5249 = vmatprep.subr.mxu0 0.0
      %5250 = vmatpush1.msra.mxu0 %v4636
      %5251 = vmatprep.subr.mxu0 0.0
      %5252 = vmatpush1.msra.mxu0 %v4637
      %5253 = vmatprep.subr.mxu0 0.0
      %5254 = vmatpush1.msra.mxu0 %v4638
      %5255 = vmatprep.subr.mxu0 0.0
      %5256 = vmatpush1.msra.mxu0 %v4639
      %5257 = vmatprep.subr.mxu0 0.0
      %5258 = vmatpush1.msra.mxu0 %v4640
      %5259 = vmatprep.subr.mxu0 0.0
      %5260 = vmatpush1.msra.mxu0 %v4641
      %5261 = vmatprep.subr.mxu0 0.0
      %5262 = vmatpush1.msra.mxu0 %v4642
      %5263 = vmatprep.subr.mxu0 0.0
      %5264 = vmatpush1.msra.mxu0 %v4643
      %5265 = vmatprep.subr.mxu0 0.0
      %5266 = vmatpush1.msra.mxu0 %v4644
      %5267 = vmatprep.subr.mxu0 0.0
      %5268 = vmatpush1.msra.mxu0 %v4645
      %5269 = vmatprep.subr.mxu0 0.0
      %5270 = vmatpush1.msra.mxu0 %v4646
      %5271 = vmatprep.subr.mxu0 0.0
      %5272 = vmatpush1.msra.mxu0 %v4647
      %5273 = vmatprep.subr.mxu0 0.0
      %5274 = vmatpush1.msra.mxu0 %v4648
      %5275 = vmatprep.subr.mxu0 0.0
      %5276 = vmatpush1.msra.mxu0 %v4649
      %5277 = vmatprep.subr.mxu0 0.0
      %5278 = vmatpush1.msra.mxu0 %v4650
      %5279 = vmatprep.subr.mxu0 0.0
      %5280 = vmatpush1.msra.mxu0 %v4651
      %5281 = vmatprep.subr.mxu0 0.0
      %5282 = vmatpush1.msra.mxu0 %v4652
      %5283 = vmatprep.subr.mxu0 0.0
      %5284 = vmatpush1.msra.mxu0 %v4653
      %5285 = vmatprep.mubr.f32.mxu0 %v4978
      %5286 = vmatmul.mubr.f32.gmra.mrb[0].mxu0 %v4974
      %v5287 = vpop.f32.mrb[0].mxu0
      %v5288 = vadd.f32 %v5218, %v5287
      %v5289 = vpop.f32.mrb[0].mxu0
      %5290 = vdwg.mxu0
      %5291 = vmatprep.subr.mxu0 0.0
      %5292 = vmatpush1.msra.mxu0 %v4654
      %5293 = vmatprep.subr.mxu0 0.0
      %5294 = vmatpush1.msra.mxu0 %v4655
      %5295 = vmatprep.subr.mxu0 0.0
      %5296 = vmatpush1.msra.mxu0 %v4656
      %5297 = vmatprep.subr.mxu0 0.0
      %5298 = vmatpush1.msra.mxu0 %v4657
      %5299 = vmatprep.subr.mxu0 0.0
      %5300 = vmatpush1.msra.mxu0 %v4658
      %5301 = vmatprep.subr.mxu0 0.0
      %5302 = vmatpush1.msra.mxu0 %v4659
      %5303 = vmatprep.subr.mxu0 0.0
      %5304 = vmatpush1.msra.mxu0 %v4660
      %5305 = vmatprep.subr.mxu0 0.0
      %5306 = vmatpush1.msra.mxu0 %v4661
      %5307 = vmatprep.subr.mxu0 0.0
      %5308 = vmatpush1.msra.mxu0 %v4662
      %5309 = vmatprep.subr.mxu0 0.0
      %5310 = vmatpush1.msra.mxu0 %v4663
      %5311 = vmatprep.subr.mxu0 0.0
      %5312 = vmatpush1.msra.mxu0 %v4664
      %5313 = vmatprep.subr.mxu0 0.0
      %5314 = vmatpush1.msra.mxu0 %v4665
      %5315 = vmatprep.subr.mxu0 0.0
      %5316 = vmatpush1.msra.mxu0 %v4666
      %5317 = vmatprep.subr.mxu0 0.0
      %5318 = vmatpush1.msra.mxu0 %v4667
      %5319 = vmatprep.subr.mxu0 0.0
      %5320 = vmatpush1.msra.mxu0 %v4668
      %5321 = vmatprep.subr.mxu0 0.0
      %5322 = vmatpush1.msra.mxu0 %v4669
      %5323 = vmatprep.subr.mxu0 0.0
      %5324 = vmatpush1.msra.mxu0 %v4670
      %5325 = vmatprep.subr.mxu0 0.0
      %5326 = vmatpush1.msra.mxu0 %v4671
      %5327 = vmatprep.subr.mxu0 0.0
      %5328 = vmatpush1.msra.mxu0 %v4672
      %5329 = vmatprep.subr.mxu0 0.0
      %5330 = vmatpush1.msra.mxu0 %v4673
      %5331 = vmatprep.subr.mxu0 0.0
      %5332 = vmatpush1.msra.mxu0 %v4674
      %5333 = vmatprep.subr.mxu0 0.0
      %5334 = vmatpush1.msra.mxu0 %v4675
      %5335 = vmatprep.subr.mxu0 0.0
      %5336 = vmatpush1.msra.mxu0 %v4676
      %5337 = vmatprep.subr.mxu0 0.0
      %5338 = vmatpush1.msra.mxu0 %v4677
      %5339 = vmatprep.subr.mxu0 0.0
      %5340 = vmatpush1.msra.mxu0 %v4678
      %5341 = vmatprep.subr.mxu0 0.0
      %5342 = vmatpush1.msra.mxu0 %v4679
      %5343 = vmatprep.subr.mxu0 0.0
      %5344 = vmatpush1.msra.mxu0 %v4680
      %5345 = vmatprep.subr.mxu0 0.0
      %5346 = vmatpush1.msra.mxu0 %v4681
      %5347 = vmatprep.subr.mxu0 0.0
      %5348 = vmatpush1.msra.mxu0 %v4682
      %5349 = vmatprep.subr.mxu0 0.0
      %5350 = vmatpush1.msra.mxu0 %v4683
      %5351 = vmatprep.subr.mxu0 0.0
      %5352 = vmatpush1.msra.mxu0 %v4684
      %5353 = vmatprep.subr.mxu0 0.0
      %5354 = vmatpush1.msra.mxu0 %v4685
      %5355 = vmatprep.mubr.f32.mxu0 %v4986
      %5356 = vmatmul.mubr.f32.gmra.mrb[0].mxu0 %v4982
      %v5357 = vpop.f32.mrb[0].mxu0
      %v5358 = vadd.f32 %v5288, %v5357
      %v5359 = vpop.f32.mrb[0].mxu0
      %5360 = vdwg.mxu0
      %5361 = vmatprep.subr.mxu0 0.0
      %5362 = vmatpush1.msra.mxu0 %v4686
      %5363 = vmatprep.subr.mxu0 0.0
      %5364 = vmatpush1.msra.mxu0 %v4687
      %5365 = vmatprep.subr.mxu0 0.0
      %5366 = vmatpush1.msra.mxu0 %v4688
      %5367 = vmatprep.subr.mxu0 0.0
      %5368 = vmatpush1.msra.mxu0 %v4689
      %5369 = vmatprep.subr.mxu0 0.0
      %5370 = vmatpush1.msra.mxu0 %v4690
      %5371 = vmatprep.subr.mxu0 0.0
      %5372 = vmatpush1.msra.mxu0 %v4691
      %5373 = vmatprep.subr.mxu0 0.0
      %5374 = vmatpush1.msra.mxu0 %v4692
      %5375 = vmatprep.subr.mxu0 0.0
      %5376 = vmatpush1.msra.mxu0 %v4693
      %5377 = vmatprep.subr.mxu0 0.0
      %5378 = vmatpush1.msra.mxu0 %v4694
      %5379 = vmatprep.subr.mxu0 0.0
      %5380 = vmatpush1.msra.mxu0 %v4695
      %5381 = vmatprep.subr.mxu0 0.0
      %5382 = vmatpush1.msra.mxu0 %v4696
      %5383 = vmatprep.subr.mxu0 0.0
      %5384 = vmatpush1.msra.mxu0 %v4697
      %5385 = vmatprep.subr.mxu0 0.0
      %5386 = vmatpush1.msra.mxu0 %v4698
      %5387 = vmatprep.subr.mxu0 0.0
      %5388 = vmatpush1.msra.mxu0 %v4699
      %5389 = vmatprep.subr.mxu0 0.0
      %5390 = vmatpush1.msra.mxu0 %v4700
      %5391 = vmatprep.subr.mxu0 0.0
      %5392 = vmatpush1.msra.mxu0 %v4701
      %5393 = vmatprep.subr.mxu0 0.0
      %5394 = vmatpush1.msra.mxu0 %v4702
      %5395 = vmatprep.subr.mxu0 0.0
      %5396 = vmatpush1.msra.mxu0 %v4703
      %5397 = vmatprep.subr.mxu0 0.0
      %5398 = vmatpush1.msra.mxu0 %v4704
      %5399 = vmatprep.subr.mxu0 0.0
      %5400 = vmatpush1.msra.mxu0 %v4705
      %5401 = vmatprep.subr.mxu0 0.0
      %5402 = vmatpush1.msra.mxu0 %v4706
      %5403 = vmatprep.subr.mxu0 0.0
      %5404 = vmatpush1.msra.mxu0 %v4707
      %5405 = vmatprep.subr.mxu0 0.0
      %5406 = vmatpush1.msra.mxu0 %v4708
      %5407 = vmatprep.subr.mxu0 0.0
      %5408 = vmatpush1.msra.mxu0 %v4709
      %5409 = vmatprep.subr.mxu0 0.0
      %5410 = vmatpush1.msra.mxu0 %v4710
      %5411 = vmatprep.subr.mxu0 0.0
      %5412 = vmatpush1.msra.mxu0 %v4711
      %5413 = vmatprep.subr.mxu0 0.0
      %5414 = vmatpush1.msra.mxu0 %v4712
      %5415 = vmatprep.subr.mxu0 0.0
      %5416 = vmatpush1.msra.mxu0 %v4713
      %5417 = vmatprep.subr.mxu0 0.0
      %5418 = vmatpush1.msra.mxu0 %v4714
      %5419 = vmatprep.subr.mxu0 0.0
      %5420 = vmatpush1.msra.mxu0 %v4715
      %5421 = vmatprep.subr.mxu0 0.0
      %5422 = vmatpush1.msra.mxu0 %v4716
      %5423 = vmatprep.subr.mxu0 0.0
      %5424 = vmatpush1.msra.mxu0 %v4717
      %5425 = vmatprep.mubr.f32.mxu0 %v4994
      %5426 = vmatmul.mubr.f32.gmra.mrb[0].mxu0 %v4990
      %v5427 = vpop.f32.mrb[0].mxu0
      %v5428 = vadd.f32 %v5358, %v5427
      %v5429 = vpop.f32.mrb[0].mxu0
      %5430 = vdwg.mxu0
      %5431 = vmatprep.subr.mxu0 0.0
      %5432 = vmatpush1.msra.mxu0 %v4718
      %5433 = vmatprep.subr.mxu0 0.0
      %5434 = vmatpush1.msra.mxu0 %v4719
      %5435 = vmatprep.subr.mxu0 0.0
      %5436 = vmatpush1.msra.mxu0 %v4720
      %5437 = vmatprep.subr.mxu0 0.0
      %5438 = vmatpush1.msra.mxu0 %v4721
      %5439 = vmatprep.subr.mxu0 0.0
      %5440 = vmatpush1.msra.mxu0 %v4722
      %5441 = vmatprep.subr.mxu0 0.0
      %5442 = vmatpush1.msra.mxu0 %v4723
      %5443 = vmatprep.subr.mxu0 0.0
      %5444 = vmatpush1.msra.mxu0 %v4724
      %5445 = vmatprep.subr.mxu0 0.0
      %5446 = vmatpush1.msra.mxu0 %v4725
      %5447 = vmatprep.subr.mxu0 0.0
      %5448 = vmatpush1.msra.mxu0 %v4726
      %5449 = vmatprep.subr.mxu0 0.0
      %5450 = vmatpush1.msra.mxu0 %v4727
      %5451 = vmatprep.subr.mxu0 0.0
      %5452 = vmatpush1.msra.mxu0 %v4728
      %5453 = vmatprep.subr.mxu0 0.0
      %5454 = vmatpush1.msra.mxu0 %v4729
      %5455 = vmatprep.subr.mxu0 0.0
      %5456 = vmatpush1.msra.mxu0 %v4730
      %5457 = vmatprep.subr.mxu0 0.0
      %5458 = vmatpush1.msra.mxu0 %v4731
      %5459 = vmatprep.subr.mxu0 0.0
      %5460 = vmatpush1.msra.mxu0 %v4732
      %5461 = vmatprep.subr.mxu0 0.0
      %5462 = vmatpush1.msra.mxu0 %v4733
      %5463 = vmatprep.subr.mxu0 0.0
      %5464 = vmatpush1.msra.mxu0 %v4734
      %5465 = vmatprep.subr.mxu0 0.0
      %5466 = vmatpush1.msra.mxu0 %v4735
      %5467 = vmatprep.subr.mxu0 0.0
      %5468 = vmatpush1.msra.mxu0 %v4736
      %5469 = vmatprep.subr.mxu0 0.0
      %5470 = vmatpush1.msra.mxu0 %v4737
      %5471 = vmatprep.subr.mxu0 0.0
      %5472 = vmatpush1.msra.mxu0 %v4738
      %5473 = vmatprep.subr.mxu0 0.0
      %5474 = vmatpush1.msra.mxu0 %v4739
      %5475 = vmatprep.subr.mxu0 0.0
      %5476 = vmatpush1.msra.mxu0 %v4740
      %5477 = vmatprep.subr.mxu0 0.0
      %5478 = vmatpush1.msra.mxu0 %v4741
      %5479 = vmatprep.subr.mxu0 0.0
      %5480 = vmatpush1.msra.mxu0 %v4742
      %5481 = vmatprep.subr.mxu0 0.0
      %5482 = vmatpush1.msra.mxu0 %v4743
      %5483 = vmatprep.subr.mxu0 0.0
      %5484 = vmatpush1.msra.mxu0 %v4744
      %5485 = vmatprep.subr.mxu0 0.0
      %5486 = vmatpush1.msra.mxu0 %v4745
      %5487 = vmatprep.subr.mxu0 0.0
      %5488 = vmatpush1.msra.mxu0 %v4746
      %5489 = vmatprep.subr.mxu0 0.0
      %5490 = vmatpush1.msra.mxu0 %v4747
      %5491 = vmatprep.subr.mxu0 0.0
      %5492 = vmatpush1.msra.mxu0 %v4748
      %5493 = vmatprep.subr.mxu0 0.0
      %5494 = vmatpush1.msra.mxu0 %v4749
      %5495 = vmatprep.mubr.f32.mxu0 %v5002
      %5496 = vmatmul.mubr.f32.gmra.mrb[0].mxu0 %v4998
      %v5497 = vpop.f32.mrb[0].mxu0
      %v5498 = vadd.f32 %v5428, %v5497
      %v5499 = vpop.f32.mrb[0].mxu0
      %5500 = vdwg.mxu0
      %5501 = vmatprep.subr.mxu0 0.0
      %5502 = vmatpush1.msra.mxu0 %v4750
      %5503 = vmatprep.subr.mxu0 0.0
      %5504 = vmatpush1.msra.mxu0 %v4751
      %5505 = vmatprep.subr.mxu0 0.0
      %5506 = vmatpush1.msra.mxu0 %v4752
      %5507 = vmatprep.subr.mxu0 0.0
      %5508 = vmatpush1.msra.mxu0 %v4753
      %5509 = vmatprep.subr.mxu0 0.0
      %5510 = vmatpush1.msra.mxu0 %v4754
      %5511 = vmatprep.subr.mxu0 0.0
      %5512 = vmatpush1.msra.mxu0 %v4755
      %5513 = vmatprep.subr.mxu0 0.0
      %5514 = vmatpush1.msra.mxu0 %v4756
      %5515 = vmatprep.subr.mxu0 0.0
      %5516 = vmatpush1.msra.mxu0 %v4757
      %5517 = vmatprep.subr.mxu0 0.0
      %5518 = vmatpush1.msra.mxu0 %v4758
      %5519 = vmatprep.subr.mxu0 0.0
      %5520 = vmatpush1.msra.mxu0 %v4759
      %5521 = vmatprep.subr.mxu0 0.0
      %5522 = vmatpush1.msra.mxu0 %v4760
      %5523 = vmatprep.subr.mxu0 0.0
      %5524 = vmatpush1.msra.mxu0 %v4761
      %5525 = vmatprep.subr.mxu0 0.0
      %5526 = vmatpush1.msra.mxu0 %v4762
      %5527 = vmatprep.subr.mxu0 0.0
      %5528 = vmatpush1.msra.mxu0 %v4763
      %5529 = vmatprep.subr.mxu0 0.0
      %5530 = vmatpush1.msra.mxu0 %v4764
      %5531 = vmatprep.subr.mxu0 0.0
      %5532 = vmatpush1.msra.mxu0 %v4765
      %5533 = vmatprep.subr.mxu0 0.0
      %5534 = vmatpush1.msra.mxu0 %v4766
      %5535 = vmatprep.subr.mxu0 0.0
      %5536 = vmatpush1.msra.mxu0 %v4767
      %5537 = vmatprep.subr.mxu0 0.0
      %5538 = vmatpush1.msra.mxu0 %v4768
      %5539 = vmatprep.subr.mxu0 0.0
      %5540 = vmatpush1.msra.mxu0 %v4769
      %5541 = vmatprep.subr.mxu0 0.0
      %5542 = vmatpush1.msra.mxu0 %v4770
      %5543 = vmatprep.subr.mxu0 0.0
      %5544 = vmatpush1.msra.mxu0 %v4771
      %5545 = vmatprep.subr.mxu0 0.0
      %5546 = vmatpush1.msra.mxu0 %v4772
      %5547 = vmatprep.subr.mxu0 0.0
      %5548 = vmatpush1.msra.mxu0 %v4773
      %5549 = vmatprep.subr.mxu0 0.0
      %5550 = vmatpush1.msra.mxu0 %v4774
      %5551 = vmatprep.subr.mxu0 0.0
      %5552 = vmatpush1.msra.mxu0 %v4775
      %5553 = vmatprep.subr.mxu0 0.0
      %5554 = vmatpush1.msra.mxu0 %v4776
      %5555 = vmatprep.subr.mxu0 0.0
      %5556 = vmatpush1.msra.mxu0 %v4777
      %5557 = vmatprep.subr.mxu0 0.0
      %5558 = vmatpush1.msra.mxu0 %v4778
      %5559 = vmatprep.subr.mxu0 0.0
      %5560 = vmatpush1.msra.mxu0 %v4779
      %5561 = vmatprep.subr.mxu0 0.0
      %5562 = vmatpush1.msra.mxu0 %v4780
      %5563 = vmatprep.subr.mxu0 0.0
      %5564 = vmatpush1.msra.mxu0 %v4781
      %5565 = vmatprep.mubr.f32.mxu0 %v5010
      %5566 = vmatmul.mubr.f32.gmra.mrb[0].mxu0 %v5006
      %v5567 = vpop.f32.mrb[0].mxu0
      %v5568 = vadd.f32 %v5498, %v5567
      %v5569 = vpop.f32.mrb[0].mxu0
      %5570 = vdwg.mxu0
      %5571 = vmatprep.subr.mxu0 0.0
      %5572 = vmatpush1.msra.mxu0 %v4782
      %5573 = vmatprep.subr.mxu0 0.0
      %5574 = vmatpush1.msra.mxu0 %v4783
      %5575 = vmatprep.subr.mxu0 0.0
      %5576 = vmatpush1.msra.mxu0 %v4784
      %5577 = vmatprep.subr.mxu0 0.0
      %5578 = vmatpush1.msra.mxu0 %v4785
      %5579 = vmatprep.subr.mxu0 0.0
      %5580 = vmatpush1.msra.mxu0 %v4786
      %5581 = vmatprep.subr.mxu0 0.0
      %5582 = vmatpush1.msra.mxu0 %v4787
      %5583 = vmatprep.subr.mxu0 0.0
      %5584 = vmatpush1.msra.mxu0 %v4788
      %5585 = vmatprep.subr.mxu0 0.0
      %5586 = vmatpush1.msra.mxu0 %v4789
      %5587 = vmatprep.subr.mxu0 0.0
      %5588 = vmatpush1.msra.mxu0 %v4790
      %5589 = vmatprep.subr.mxu0 0.0
      %5590 = vmatpush1.msra.mxu0 %v4791
      %5591 = vmatprep.subr.mxu0 0.0
      %5592 = vmatpush1.msra.mxu0 %v4792
      %5593 = vmatprep.subr.mxu0 0.0
      %5594 = vmatpush1.msra.mxu0 %v4793
      %5595 = vmatprep.subr.mxu0 0.0
      %5596 = vmatpush1.msra.mxu0 %v4794
      %5597 = vmatprep.subr.mxu0 0.0
      %5598 = vmatpush1.msra.mxu0 %v4795
      %5599 = vmatprep.subr.mxu0 0.0
      %5600 = vmatpush1.msra.mxu0 %v4796
      %5601 = vmatprep.subr.mxu0 0.0
      %5602 = vmatpush1.msra.mxu0 %v4797
      %5603 = vmatprep.subr.mxu0 0.0
      %5604 = vmatpush1.msra.mxu0 %v4798
      %5605 = vmatprep.subr.mxu0 0.0
      %5606 = vmatpush1.msra.mxu0 %v4799
      %5607 = vmatprep.subr.mxu0 0.0
      %5608 = vmatpush1.msra.mxu0 %v4800
      %5609 = vmatprep.subr.mxu0 0.0
      %5610 = vmatpush1.msra.mxu0 %v4801
      %5611 = vmatprep.subr.mxu0 0.0
      %5612 = vmatpush1.msra.mxu0 %v4802
      %5613 = vmatprep.subr.mxu0 0.0
      %5614 = vmatpush1.msra.mxu0 %v4803
      %5615 = vmatprep.subr.mxu0 0.0
      %5616 = vmatpush1.msra.mxu0 %v4804
      %5617 = vmatprep.subr.mxu0 0.0
      %5618 = vmatpush1.msra.mxu0 %v4805
      %5619 = vmatprep.subr.mxu0 0.0
      %5620 = vmatpush1.msra.mxu0 %v4806
      %5621 = vmatprep.subr.mxu0 0.0
      %5622 = vmatpush1.msra.mxu0 %v4807
      %5623 = vmatprep.subr.mxu0 0.0
      %5624 = vmatpush1.msra.mxu0 %v4808
      %5625 = vmatprep.subr.mxu0 0.0
      %5626 = vmatpush1.msra.mxu0 %v4809
      %5627 = vmatprep.subr.mxu0 0.0
      %5628 = vmatpush1.msra.mxu0 %v4810
      %5629 = vmatprep.subr.mxu0 0.0
      %5630 = vmatpush1.msra.mxu0 %v4811
      %5631 = vmatprep.subr.mxu0 0.0
      %5632 = vmatpush1.msra.mxu0 %v4812
      %5633 = vmatprep.subr.mxu0 0.0
      %5634 = vmatpush1.msra.mxu0 %v4813
      %5635 = vmatprep.mubr.f32.mxu0 %v5018
      %5636 = vmatmul.mubr.f32.gmra.mrb[0].mxu0 %v5014
      %v5637 = vpop.f32.mrb[0].mxu0
      %v5638 = vadd.f32 %v5568, %v5637
      %v5639 = vpop.f32.mrb[0].mxu0
      %5640 = vdwg.mxu0
      %5641 = vmatprep.subr.mxu0 0.0
      %5642 = vmatpush1.msra.mxu0 %v4814
      %5643 = vmatprep.subr.mxu0 0.0
      %5644 = vmatpush1.msra.mxu0 %v4815
      %5645 = vmatprep.subr.mxu0 0.0
      %5646 = vmatpush1.msra.mxu0 %v4816
      %5647 = vmatprep.subr.mxu0 0.0
      %5648 = vmatpush1.msra.mxu0 %v4817
      %5649 = vmatprep.subr.mxu0 0.0
      %5650 = vmatpush1.msra.mxu0 %v4818
      %5651 = vmatprep.subr.mxu0 0.0
      %5652 = vmatpush1.msra.mxu0 %v4819
      %5653 = vmatprep.subr.mxu0 0.0
      %5654 = vmatpush1.msra.mxu0 %v4820
      %5655 = vmatprep.subr.mxu0 0.0
      %5656 = vmatpush1.msra.mxu0 %v4821
      %5657 = vmatprep.subr.mxu0 0.0
      %5658 = vmatpush1.msra.mxu0 %v4822
      %5659 = vmatprep.subr.mxu0 0.0
      %5660 = vmatpush1.msra.mxu0 %v4823
      %5661 = vmatprep.subr.mxu0 0.0
      %5662 = vmatpush1.msra.mxu0 %v4824
      %5663 = vmatprep.subr.mxu0 0.0
      %5664 = vmatpush1.msra.mxu0 %v4825
      %5665 = vmatprep.subr.mxu0 0.0
      %5666 = vmatpush1.msra.mxu0 %v4826
      %5667 = vmatprep.subr.mxu0 0.0
      %5668 = vmatpush1.msra.mxu0 %v4827
      %5669 = vmatprep.subr.mxu0 0.0
      %5670 = vmatpush1.msra.mxu0 %v4828
      %5671 = vmatprep.subr.mxu0 0.0
      %5672 = vmatpush1.msra.mxu0 %v4829
      %5673 = vmatprep.subr.mxu0 0.0
      %5674 = vmatpush1.msra.mxu0 %v4830
      %5675 = vmatprep.subr.mxu0 0.0
      %5676 = vmatpush1.msra.mxu0 %v4831
      %5677 = vmatprep.subr.mxu0 0.0
      %5678 = vmatpush1.msra.mxu0 %v4832
      %5679 = vmatprep.subr.mxu0 0.0
      %5680 = vmatpush1.msra.mxu0 %v4833
      %5681 = vmatprep.subr.mxu0 0.0
      %5682 = vmatpush1.msra.mxu0 %v4834
      %5683 = vmatprep.subr.mxu0 0.0
      %5684 = vmatpush1.msra.mxu0 %v4835
      %5685 = vmatprep.subr.mxu0 0.0
      %5686 = vmatpush1.msra.mxu0 %v4836
      %5687 = vmatprep.subr.mxu0 0.0
      %5688 = vmatpush1.msra.mxu0 %v4837
      %5689 = vmatprep.subr.mxu0 0.0
      %5690 = vmatpush1.msra.mxu0 %v4838
      %5691 = vmatprep.subr.mxu0 0.0
      %5692 = vmatpush1.msra.mxu0 %v4839
      %5693 = vmatprep.subr.mxu0 0.0
      %5694 = vmatpush1.msra.mxu0 %v4840
      %5695 = vmatprep.subr.mxu0 0.0
      %5696 = vmatpush1.msra.mxu0 %v4841
      %5697 = vmatprep.subr.mxu0 0.0
      %5698 = vmatpush1.msra.mxu0 %v4842
      %5699 = vmatprep.subr.mxu0 0.0
      %5700 = vmatpush1.msra.mxu0 %v4843
      %5701 = vmatprep.subr.mxu0 0.0
      %5702 = vmatpush1.msra.mxu0 %v4844
      %5703 = vmatprep.subr.mxu0 0.0
      %5704 = vmatpush1.msra.mxu0 %v4845
      %5705 = vmatprep.mubr.f32.mxu0 %v5026
      %5706 = vmatmul.mubr.f32.gmra.mrb[0].mxu0 %v5022
      %v5707 = vpop.f32.mrb[0].mxu0
      %v5708 = vadd.f32 %v5638, %v5707
      %v5709 = vpop.f32.mrb[0].mxu0
      %5710 = vdwg.mxu0
      %5711 = vmatprep.subr.mxu0 0.0
      %5712 = vmatpush1.msra.mxu0 %v4846
      %5713 = vmatprep.subr.mxu0 0.0
      %5714 = vmatpush1.msra.mxu0 %v4847
      %5715 = vmatprep.subr.mxu0 0.0
      %5716 = vmatpush1.msra.mxu0 %v4848
      %5717 = vmatprep.subr.mxu0 0.0
      %5718 = vmatpush1.msra.mxu0 %v4849
      %5719 = vmatprep.subr.mxu0 0.0
      %5720 = vmatpush1.msra.mxu0 %v4850
      %5721 = vmatprep.subr.mxu0 0.0
      %5722 = vmatpush1.msra.mxu0 %v4851
      %5723 = vmatprep.subr.mxu0 0.0
      %5724 = vmatpush1.msra.mxu0 %v4852
      %5725 = vmatprep.subr.mxu0 0.0
      %5726 = vmatpush1.msra.mxu0 %v4853
      %5727 = vmatprep.subr.mxu0 0.0
      %5728 = vmatpush1.msra.mxu0 %v4854
      %5729 = vmatprep.subr.mxu0 0.0
      %5730 = vmatpush1.msra.mxu0 %v4855
      %5731 = vmatprep.subr.mxu0 0.0
      %5732 = vmatpush1.msra.mxu0 %v4856
      %5733 = vmatprep.subr.mxu0 0.0
      %5734 = vmatpush1.msra.mxu0 %v4857
      %5735 = vmatprep.subr.mxu0 0.0
      %5736 = vmatpush1.msra.mxu0 %v4858
      %5737 = vmatprep.subr.mxu0 0.0
      %5738 = vmatpush1.msra.mxu0 %v4859
      %5739 = vmatprep.subr.mxu0 0.0
      %5740 = vmatpush1.msra.mxu0 %v4860
      %5741 = vmatprep.subr.mxu0 0.0
      %5742 = vmatpush1.msra.mxu0 %v4861
      %5743 = vmatprep.subr.mxu0 0.0
      %5744 = vmatpush1.msra.mxu0 %v4862
      %5745 = vmatprep.subr.mxu0 0.0
      %5746 = vmatpush1.msra.mxu0 %v4863
      %5747 = vmatprep.subr.mxu0 0.0
      %5748 = vmatpush1.msra.mxu0 %v4864
      %5749 = vmatprep.subr.mxu0 0.0
      %5750 = vmatpush1.msra.mxu0 %v4865
      %5751 = vmatprep.subr.mxu0 0.0
      %5752 = vmatpush1.msra.mxu0 %v4866
      %5753 = vmatprep.subr.mxu0 0.0
      %5754 = vmatpush1.msra.mxu0 %v4867
      %5755 = vmatprep.subr.mxu0 0.0
      %5756 = vmatpush1.msra.mxu0 %v4868
      %5757 = vmatprep.subr.mxu0 0.0
      %5758 = vmatpush1.msra.mxu0 %v4869
      %5759 = vmatprep.subr.mxu0 0.0
      %5760 = vmatpush1.msra.mxu0 %v4870
      %5761 = vmatprep.subr.mxu0 0.0
      %5762 = vmatpush1.msra.mxu0 %v4871
      %5763 = vmatprep.subr.mxu0 0.0
      %5764 = vmatpush1.msra.mxu0 %v4872
      %5765 = vmatprep.subr.mxu0 0.0
      %5766 = vmatpush1.msra.mxu0 %v4873
      %5767 = vmatprep.subr.mxu0 0.0
      %5768 = vmatpush1.msra.mxu0 %v4874
      %5769 = vmatprep.subr.mxu0 0.0
      %5770 = vmatpush1.msra.mxu0 %v4875
      %5771 = vmatprep.subr.mxu0 0.0
      %5772 = vmatpush1.msra.mxu0 %v4876
      %5773 = vmatprep.subr.mxu0 0.0
      %5774 = vmatpush1.msra.mxu0 %v4877
      %5775 = vmatprep.mubr.f32.mxu0 %v5034
      %5776 = vmatmul.mubr.f32.gmra.mrb[0].mxu0 %v5030
      %v5777 = vpop.f32.mrb[0].mxu0
      %v5778 = vadd.f32 %v5708, %v5777
      %v5779 = vpop.f32.mrb[0].mxu0
      %5780 = vdwg.mxu0
      %5781 = vmatprep.subr.mxu0 0.0
      %5782 = vmatpush1.msra.mxu0 %v4878
      %5783 = vmatprep.subr.mxu0 0.0
      %5784 = vmatpush1.msra.mxu0 %v4879
      %5785 = vmatprep.subr.mxu0 0.0
      %5786 = vmatpush1.msra.mxu0 %v4880
      %5787 = vmatprep.subr.mxu0 0.0
      %5788 = vmatpush1.msra.mxu0 %v4881
      %5789 = vmatprep.subr.mxu0 0.0
      %5790 = vmatpush1.msra.mxu0 %v4882
      %5791 = vmatprep.subr.mxu0 0.0
      %5792 = vmatpush1.msra.mxu0 %v4883
      %5793 = vmatprep.subr.mxu0 0.0
      %5794 = vmatpush1.msra.mxu0 %v4884
      %5795 = vmatprep.subr.mxu0 0.0
      %5796 = vmatpush1.msra.mxu0 %v4885
      %5797 = vmatprep.subr.mxu0 0.0
      %5798 = vmatpush1.msra.mxu0 %v4886
      %5799 = vmatprep.subr.mxu0 0.0
      %5800 = vmatpush1.msra.mxu0 %v4887
      %5801 = vmatprep.subr.mxu0 0.0
      %5802 = vmatpush1.msra.mxu0 %v4888
      %5803 = vmatprep.subr.mxu0 0.0
      %5804 = vmatpush1.msra.mxu0 %v4889
      %5805 = vmatprep.subr.mxu0 0.0
      %5806 = vmatpush1.msra.mxu0 %v4890
      %5807 = vmatprep.subr.mxu0 0.0
      %5808 = vmatpush1.msra.mxu0 %v4891
      %5809 = vmatprep.subr.mxu0 0.0
      %5810 = vmatpush1.msra.mxu0 %v4892
      %5811 = vmatprep.subr.mxu0 0.0
      %5812 = vmatpush1.msra.mxu0 %v4893
      %5813 = vmatprep.subr.mxu0 0.0
      %5814 = vmatpush1.msra.mxu0 %v4894
      %5815 = vmatprep.subr.mxu0 0.0
      %5816 = vmatpush1.msra.mxu0 %v4895
      %5817 = vmatprep.subr.mxu0 0.0
      %5818 = vmatpush1.msra.mxu0 %v4896
      %5819 = vmatprep.subr.mxu0 0.0
      %5820 = vmatpush1.msra.mxu0 %v4897
      %5821 = vmatprep.subr.mxu0 0.0
      %5822 = vmatpush1.msra.mxu0 %v4898
      %5823 = vmatprep.subr.mxu0 0.0
      %5824 = vmatpush1.msra.mxu0 %v4899
      %5825 = vmatprep.subr.mxu0 0.0
      %5826 = vmatpush1.msra.mxu0 %v4900
      %5827 = vmatprep.subr.mxu0 0.0
      %5828 = vmatpush1.msra.mxu0 %v4901
      %5829 = vmatprep.subr.mxu0 0.0
      %5830 = vmatpush1.msra.mxu0 %v4902
      %5831 = vmatprep.subr.mxu0 0.0
      %5832 = vmatpush1.msra.mxu0 %v4903
      %5833 = vmatprep.subr.mxu0 0.0
      %5834 = vmatpush1.msra.mxu0 %v4904
      %5835 = vmatprep.subr.mxu0 0.0
      %5836 = vmatpush1.msra.mxu0 %v4905
      %5837 = vmatprep.subr.mxu0 0.0
      %5838 = vmatpush1.msra.mxu0 %v4906
      %5839 = vmatprep.subr.mxu0 0.0
      %5840 = vmatpush1.msra.mxu0 %v4907
      %5841 = vmatprep.subr.mxu0 0.0
      %5842 = vmatpush1.msra.mxu0 %v4908
      %5843 = vmatprep.subr.mxu0 0.0
      %5844 = vmatpush1.msra.mxu0 %v4909
      %5845 = vmatprep.mubr.f32.mxu0 %v5042
      %5846 = vmatmul.mubr.f32.gmra.mrb[0].mxu0 %v5038
      %v5847 = vpop.f32.mrb[0].mxu0
      %v5848 = vadd.f32 %v5778, %v5847
      %v5849 = vpop.f32.mrb[0].mxu0
      %5850 = vdwg.mxu0
      %5851 = vmatprep.subr.mxu0 0.0
      %5852 = vmatpush1.msra.mxu0 %v4910
      %5853 = vmatprep.subr.mxu0 0.0
      %5854 = vmatpush1.msra.mxu0 %v4911
      %5855 = vmatprep.subr.mxu0 0.0
      %5856 = vmatpush1.msra.mxu0 %v4912
      %5857 = vmatprep.subr.mxu0 0.0
      %5858 = vmatpush1.msra.mxu0 %v4913
      %5859 = vmatprep.subr.mxu0 0.0
      %5860 = vmatpush1.msra.mxu0 %v4914
      %5861 = vmatprep.subr.mxu0 0.0
      %5862 = vmatpush1.msra.mxu0 %v4915
      %5863 = vmatprep.subr.mxu0 0.0
      %5864 = vmatpush1.msra.mxu0 %v4916
      %5865 = vmatprep.subr.mxu0 0.0
      %5866 = vmatpush1.msra.mxu0 %v4917
      %5867 = vmatprep.subr.mxu0 0.0
      %5868 = vmatpush1.msra.mxu0 %v4918
      %5869 = vmatprep.subr.mxu0 0.0
      %5870 = vmatpush1.msra.mxu0 %v4919
      %5871 = vmatprep.subr.mxu0 0.0
      %5872 = vmatpush1.msra.mxu0 %v4920
      %5873 = vmatprep.subr.mxu0 0.0
      %5874 = vmatpush1.msra.mxu0 %v4921
      %5875 = vmatprep.subr.mxu0 0.0
      %5876 = vmatpush1.msra.mxu0 %v4922
      %5877 = vmatprep.subr.mxu0 0.0
      %5878 = vmatpush1.msra.mxu0 %v4923
      %5879 = vmatprep.subr.mxu0 0.0
      %5880 = vmatpush1.msra.mxu0 %v4924
      %5881 = vmatprep.subr.mxu0 0.0
      %5882 = vmatpush1.msra.mxu0 %v4925
      %5883 = vmatprep.subr.mxu0 0.0
      %5884 = vmatpush1.msra.mxu0 %v4926
      %5885 = vmatprep.subr.mxu0 0.0
      %5886 = vmatpush1.msra.mxu0 %v4927
      %5887 = vmatprep.subr.mxu0 0.0
      %5888 = vmatpush1.msra.mxu0 %v4928
      %5889 = vmatprep.subr.mxu0 0.0
      %5890 = vmatpush1.msra.mxu0 %v4929
      %5891 = vmatprep.subr.mxu0 0.0
      %5892 = vmatpush1.msra.mxu0 %v4930
      %5893 = vmatprep.subr.mxu0 0.0
      %5894 = vmatpush1.msra.mxu0 %v4931
      %5895 = vmatprep.subr.mxu0 0.0
      %5896 = vmatpush1.msra.mxu0 %v4932
      %5897 = vmatprep.subr.mxu0 0.0
      %5898 = vmatpush1.msra.mxu0 %v4933
      %5899 = vmatprep.subr.mxu0 0.0
      %5900 = vmatpush1.msra.mxu0 %v4934
      %5901 = vmatprep.subr.mxu0 0.0
      %5902 = vmatpush1.msra.mxu0 %v4935
      %5903 = vmatprep.subr.mxu0 0.0
      %5904 = vmatpush1.msra.mxu0 %v4936
      %5905 = vmatprep.subr.mxu0 0.0
      %5906 = vmatpush1.msra.mxu0 %v4937
      %5907 = vmatprep.subr.mxu0 0.0
      %5908 = vmatpush1.msra.mxu0 %v4938
      %5909 = vmatprep.subr.mxu0 0.0
      %5910 = vmatpush1.msra.mxu0 %v4939
      %5911 = vmatprep.subr.mxu0 0.0
      %5912 = vmatpush1.msra.mxu0 %v4940
      %5913 = vmatprep.subr.mxu0 0.0
      %5914 = vmatpush1.msra.mxu0 %v4941
      %5915 = vmatprep.mubr.f32.mxu0 %v5050
      %5916 = vmatmul.mubr.f32.gmra.mrb[0].mxu0 %v5046
      %v5917 = vpop.f32.mrb[0].mxu0
      %v5918 = vadd.f32 %v5848, %v5917
      %v5919 = vpop.f32.mrb[0].mxu0
      %5920 = vdwg.mxu0
      %5921 = vmatprep.subr.mxu0 0.0
      %5922 = vmatpush1.msra.mxu0 %v4942
      %5923 = vmatprep.subr.mxu0 0.0
      %5924 = vmatpush1.msra.mxu0 %v4943
      %5925 = vmatprep.subr.mxu0 0.0
      %5926 = vmatpush1.msra.mxu0 %v4944
      %5927 = vmatprep.subr.mxu0 0.0
      %5928 = vmatpush1.msra.mxu0 %v4945
      %5929 = vmatprep.subr.mxu0 0.0
      %5930 = vmatpush1.msra.mxu0 %v4946
      %5931 = vmatprep.subr.mxu0 0.0
      %5932 = vmatpush1.msra.mxu0 %v4947
      %5933 = vmatprep.subr.mxu0 0.0
      %5934 = vmatpush1.msra.mxu0 %v4948
      %5935 = vmatprep.subr.mxu0 0.0
      %5936 = vmatpush1.msra.mxu0 %v4949
      %5937 = vmatprep.subr.mxu0 0.0
      %5938 = vmatpush1.msra.mxu0 0.0
      %5939 = vmatprep.subr.mxu0 0.0
      %5940 = vmatpush1.msra.mxu0 0.0
      %5941 = vmatprep.subr.mxu0 0.0
      %5942 = vmatpush1.msra.mxu0 0.0
      %5943 = vmatprep.subr.mxu0 0.0
      %5944 = vmatpush1.msra.mxu0 0.0
      %5945 = vmatprep.subr.mxu0 0.0
      %5946 = vmatpush1.msra.mxu0 0.0
      %5947 = vmatprep.subr.mxu0 0.0
      %5948 = vmatpush1.msra.mxu0 0.0
      %5949 = vmatprep.subr.mxu0 0.0
      %5950 = vmatpush1.msra.mxu0 0.0
      %5951 = vmatprep.subr.mxu0 0.0
      %5952 = vmatpush1.msra.mxu0 0.0
      %5953 = vmatprep.subr.mxu0 0.0
      %5954 = vmatpush1.msra.mxu0 0.0
      %5955 = vmatprep.subr.mxu0 0.0
      %5956 = vmatpush1.msra.mxu0 0.0
      %5957 = vmatprep.subr.mxu0 0.0
      %5958 = vmatpush1.msra.mxu0 0.0
      %5959 = vmatprep.subr.mxu0 0.0
      %5960 = vmatpush1.msra.mxu0 0.0
      %5961 = vmatprep.subr.mxu0 0.0
      %5962 = vmatpush1.msra.mxu0 0.0
      %5963 = vmatprep.subr.mxu0 0.0
      %5964 = vmatpush1.msra.mxu0 0.0
      %5965 = vmatprep.subr.mxu0 0.0
      %5966 = vmatpush1.msra.mxu0 0.0
      %5967 = vmatprep.subr.mxu0 0.0
      %5968 = vmatpush1.msra.mxu0 0.0
      %5969 = vmatprep.subr.mxu0 0.0
      %5970 = vmatpush1.msra.mxu0 0.0
      %5971 = vmatprep.subr.mxu0 0.0
      %5972 = vmatpush1.msra.mxu0 0.0
      %5973 = vmatprep.subr.mxu0 0.0
      %5974 = vmatpush1.msra.mxu0 0.0
      %5975 = vmatprep.subr.mxu0 0.0
      %5976 = vmatpush1.msra.mxu0 0.0
      %5977 = vmatprep.subr.mxu0 0.0
      %5978 = vmatpush1.msra.mxu0 0.0
      %5979 = vmatprep.subr.mxu0 0.0
      %5980 = vmatpush1.msra.mxu0 0.0
      %5981 = vmatprep.subr.mxu0 0.0
      %5982 = vmatpush1.msra.mxu0 0.0
      %5983 = vmatprep.subr.mxu0 0.0
      %5984 = vmatpush1.msra.mxu0 0.0
      %5985 = vmatprep.mubr.f32.mxu0 0.0
      %5986 = vmatmul.mubr.f32.gmra.mrb[0].mxu0 %v5079
      %v5987 = vpop.f32.mrb[0].mxu0
      %v5988 = vadd.f32 %v5918, %v5987
      %v5989 = vpop.f32.mrb[0].mxu0
      %5990 = vdwg.mxu0
      %v5991 = vmax.f32 %v5988, 0.0
      %v5992 = vld [vmem:[%s9] sm:$0xff]
      %v5993 = vld [vmem:[%s9 + $0x8] sm:$0xff]
      %v5994 = vld [vmem:[%s9 + $0x10] sm:$0xff]
      %v5995 = vld [vmem:[%s9 + $0x18] sm:$0xff]
      %v5996 = vld [vmem:[%s9 + $0x20] sm:$0xff]
      %v5997 = vld [vmem:[%s9 + $0x28] sm:$0xff]
      %v5998 = vld [vmem:[%s9 + $0x30] sm:$0xff]
      %v5999 = vld [vmem:[%s9 + $0x38] sm:$0xff]
      %v6000 = vld [vmem:[%s10] sm:$0x1]
      %v6002 = vsel %vm1250, %v5991, 0
      %6004 = vmatprep.subr.mxu0 0.0
      %6005 = vmatpush1.msra.mxu0 %v5992
      %6006 = vmatprep.subr.mxu0 0.0
      %6007 = vmatpush1.msra.mxu0 %v5993
      %6008 = vmatprep.subr.mxu0 0.0
      %6009 = vmatpush1.msra.mxu0 %v5994
      %6010 = vmatprep.subr.mxu0 0.0
      %6011 = vmatpush1.msra.mxu0 %v5995
      %6012 = vmatprep.subr.mxu0 0.0
      %6013 = vmatpush1.msra.mxu0 %v5996
      %6014 = vmatprep.subr.mxu0 0.0
      %6015 = vmatpush1.msra.mxu0 %v5997
      %6016 = vmatprep.subr.mxu0 0.0
      %6017 = vmatpush1.msra.mxu0 %v5998
      %6018 = vmatprep.subr.mxu0 0.0
      %6019 = vmatpush1.msra.mxu0 %v5999
      %6020 = vmatprep.subr.mxu0 0.0
      %6021 = vmatpush1.msra.mxu0 0.0
      %6022 = vmatprep.subr.mxu0 0.0
      %6023 = vmatpush1.msra.mxu0 0.0
      %6024 = vmatprep.subr.mxu0 0.0
      %6025 = vmatpush1.msra.mxu0 0.0
      %6026 = vmatprep.subr.mxu0 0.0
      %6027 = vmatpush1.msra.mxu0 0.0
      %6028 = vmatprep.subr.mxu0 0.0
      %6029 = vmatpush1.msra.mxu0 0.0
      %6030 = vmatprep.subr.mxu0 0.0
      %6031 = vmatpush1.msra.mxu0 0.0
      %6032 = vmatprep.subr.mxu0 0.0
      %6033 = vmatpush1.msra.mxu0 0.0
      %6034 = vmatprep.subr.mxu0 0.0
      %6035 = vmatpush1.msra.mxu0 0.0
      %6036 = vmatprep.subr.mxu0 0.0
      %6037 = vmatpush1.msra.mxu0 0.0
      %6038 = vmatprep.subr.mxu0 0.0
      %6039 = vmatpush1.msra.mxu0 0.0
      %6040 = vmatprep.subr.mxu0 0.0
      %6041 = vmatpush1.msra.mxu0 0.0
      %6042 = vmatprep.subr.mxu0 0.0
      %6043 = vmatpush1.msra.mxu0 0.0
      %6044 = vmatprep.subr.mxu0 0.0
      %6045 = vmatpush1.msra.mxu0 0.0
      %6046 = vmatprep.subr.mxu0 0.0
      %6047 = vmatpush1.msra.mxu0 0.0
      %6048 = vmatprep.subr.mxu0 0.0
      %6049 = vmatpush1.msra.mxu0 0.0
      %6050 = vmatprep.subr.mxu0 0.0
      %6051 = vmatpush1.msra.mxu0 0.0
      %6052 = vmatprep.subr.mxu0 0.0
      %6053 = vmatpush1.msra.mxu0 0.0
      %6054 = vmatprep.subr.mxu0 0.0
      %6055 = vmatpush1.msra.mxu0 0.0
      %6056 = vmatprep.subr.mxu0 0.0
      %6057 = vmatpush1.msra.mxu0 0.0
      %6058 = vmatprep.subr.mxu0 0.0
      %6059 = vmatpush1.msra.mxu0 0.0
      %6060 = vmatprep.subr.mxu0 0.0
      %6061 = vmatpush1.msra.mxu0 0.0
      %6062 = vmatprep.subr.mxu0 0.0
      %6063 = vmatpush1.msra.mxu0 0.0
      %6064 = vmatprep.subr.mxu0 0.0
      %6065 = vmatpush1.msra.mxu0 0.0
      %6066 = vmatprep.subr.mxu0 0.0
      %6067 = vmatpush1.msra.mxu0 0.0
      %6068 = vmatprep.mubr.f32.mxu0 0.0
      %6069 = vmatmul.mubr.f32.gmra.mrb[0].mxu0 %v6002
      %v6070 = vpop.f32.mrb[0].mxu0
      %v6071 = vadd.f32 %v6000, %v6070
      %v6072 = vpop.f32.mrb[0].mxu0
      %6073 = vdwg.mxu0
      %vm6074 = vcmask 32768
      %6075 = vst.msk [vmem:[%s358] sm:$0x1] %vm6074, %v6071
      %p6076 = scmp.lt.s32.totalorder %s22, 1
      %s6077 = scalar_select %p6076, %s22, 1
      %s6078 = scalar_lea.vmem %s11, %s6077
      // Predicated region
      $region95: #{forward.1} parent=59 // pred_check
        %p6079 = pneg %p255
      $region96: #{forward.1} parent=59 // pred_check_branch
        %6081 = sbr.rel (%p6079) target = $region98
      $region97: #{forward.1} parent=59 // pred_region
        _
      $region98: #{forward.1} parent=59 // pred_fallthru
        _
    $region60: #{forward.1} parent=5 // pred_fallthru
      _
    %p6082 = scmp.le.s32.totalorder 2, %s17
    // Predicated region
    $region99: #{forward.1} parent=5 // pred_check
      %p6083 = pneg %p6082
    $region100: #{forward.1} parent=5 // pred_check_branch
      %6085 = sbr.rel (%p6083) target = $region102
    $region101: #{forward.1} parent=5 // pred_region
      %s6086 = ssub.s32 %s17, 2
      // Predicated region
      $region103: #{forward.1} parent=101 // pred_check
        %p6087 = pneg %p261
      $region104: #{forward.1} parent=101 // pred_check_branch
        %6089 = sbr.rel (%p6087) target = $region106
      $region105: #{forward.1} parent=101 // pred_region
        %p6090 = scmp.lt.s32.totalorder %s23, 1
        %s6091 = scalar_select %p6090, %s23, 1
        %s6092 = scalar_lea.vmem %s11, %s6091
      $region106: #{forward.1} parent=101 // pred_fallthru
        _
    $region102: #{forward.1} parent=5 // pred_fallthru
      _
  $region6: #{forward.1} parent=0 // loop_footer
    %s21 = sadd.s32 1, %s17
  $region7: #{forward.1} parent=0 // loop_footer_branch
    %16 = sbr.rel target = $region3
  $region8: #{forward.1} parent=0 // loop_exit
    _
  %6093 = vsyncmov [#allocation9]
  %s6094 = vpop.sfrf %6093
  %p6095 = scmp.eq.s32.totalorder %s6094, 0
  %p6096 = pneg %p6095
  %6098 = shalt.err (%p6096)

</llo_original>
